<compile_context>
chip_gen: v6e
topology: v6e:2x2x1
jax: 0.10.0
libtpu: 0.0.40
codegen_flags: <defaults>
</compile_context>

<pallas_src>
import jax
import jax.numpy as jnp
from jax.experimental import pallas as pl
from jax.experimental.pallas import tpu as pltpu

C_IN, C_OUT, K = 24, 24, 3
H, W = 112, 112
N = H * W                 # 12544 = 98 * 128  (lane-dense minor dim)
TAP = 2 * W               # one n-step == 2 H-rows == 224 flat elements

SHIFT = 1                 # the torch module draws +/-1 from unseeded random; fixed here
assert abs(SHIFT) == 1
_SGN = 1 if SHIFT > 0 else -1
WRAP_COL = 0 if SHIFT > 0 else W - 1      # the one W-column whose roll source wraps inside its row
ROLL_MAIN = SHIFT * (2 * W + 1)           # fused flat roll (W-roll + H-roll) for normal columns
ROLL_WRAP = ROLL_MAIN - _SGN * W          # fused flat roll for the wrapping column


def _conv_roll_kernel(x_ref, w_ref, o_ref):
    # x_ref: (C_IN, N) f32 ; w_ref: (C_OUT, K*C_IN) f32 (k-major, j-minor) ; o_ref: (C_OUT, N) f32
    x = x_ref[...]

    # Fused rolls: the per-row W-roll by SHIFT is a flat shift by SHIFT except at one column
    # (which wraps within its row); composing with the flat H-roll by 2*W*SHIFT (a multiple of W)
    # leaves that wrap-column mask unchanged, so both rolls collapse into two flat rolls + select.
    col = jax.lax.broadcasted_iota(jnp.int32, (1, N), 1)
    wrap = (col % W) == WRAP_COL
    x_pre = jnp.where(wrap,
                      jnp.roll(x, ROLL_WRAP, axis=1),
                      jnp.roll(x, ROLL_MAIN, axis=1))

    # Taps along n (flat offsets -2W, 0, +2W), zero padded at the n boundaries.
    # Stack k-major along the contraction axis -> (K*C_IN, N); sublane blocks of 24 (8-aligned).
    zpad = jnp.zeros((C_IN, TAP), jnp.float32)
    tap_prev = jnp.concatenate([zpad, x_pre[:, : N - TAP]], axis=1)   # k = 0 : reads n - 1
    tap_next = jnp.concatenate([x_pre[:, TAP:], zpad], axis=1)        # k = 2 : reads n + 1
    taps = jnp.concatenate([tap_prev, x_pre, tap_next], axis=0)       # (72, 12544)

    # Single weight-stationary MXU matmul: (24, 72) @ (72, 12544) -> (24, 12544) == NCHW flat.
    o_ref[...] = jnp.dot(w_ref[...], taps, preferred_element_type=jnp.float32)


@jax.jit
def kernel_generated_0_forward(x_nchw, weight):
    # x_nchw: (1, 24, 112, 112) f32 ; weight: (24, 24, 3) f32 ; returns (1, 24, 112, 112) f32
    x_flat = x_nchw.reshape(C_IN, N)                                     # free contiguous merge
    w_flat = jnp.transpose(weight, (0, 2, 1)).reshape(C_OUT, K * C_IN)   # tiny (6.9 KiB), k-major
    out = pl.pallas_call(
        _conv_roll_kernel,
        out_shape=jax.ShapeDtypeStruct((C_OUT, N), jnp.float32),
        in_specs=[pl.BlockSpec(memory_space=pltpu.MemorySpace.VMEM),
                  pl.BlockSpec(memory_space=pltpu.MemorySpace.VMEM)],
        out_specs=pl.BlockSpec(memory_space=pltpu.MemorySpace.VMEM),
        compiler_params=pltpu.CompilerParams(vmem_limit_bytes=48 * 1024 * 1024),
    )(x_flat, w_flat)
    return out.reshape(1, C_OUT, H, W)                                   # free contiguous split


def reference_forward(x_nchw, weight, shift):
    # Direct jnp transcription of the torch forward, for verification.
    t = x_nchw.reshape(1, C_IN, H // 2, 2, W)
    t = jnp.roll(t, shift, axis=2)
    t = t.reshape(1, C_IN, H // 2, 2 * W)
    tp = jnp.pad(t, ((0, 0), (0, 0), (1, 1), (0, 0)))
    u = jnp.stack([tp[:, :, k:k + H // 2, :] for k in range(K)], axis=2)  # (1,24,3,56,224)
    u = u.reshape(1, C_IN, K, H // 2, 2, W)
    t3 = jnp.einsum('mjknol,ijk->minol', u, weight)                       # (1,24,56,2,112)
    t4 = t3.reshape(1, C_OUT, H, W)
    return jnp.roll(t4, shift, axis=3)


if __name__ == "__main__":
    key = jax.random.PRNGKey(0)
    kx, kw = jax.random.split(key)
    # Shapes are hard-coded by the module's reshapes: x must be (1, 24, 112, 112).
    x = jax.random.normal(kx, (1, C_IN, H, W), dtype=jnp.float32)
    weight = jax.random.normal(kw, (C_OUT, C_IN, K), dtype=jnp.float32)

    y = jax.block_until_ready(kernel_generated_0_forward(x, weight))
    y_ref = reference_forward(x, weight, SHIFT)

    assert y.shape == (1, C_OUT, H, W), y.shape
    max_err = float(jnp.max(jnp.abs(y - y_ref)))
    assert jnp.allclose(y, y_ref, rtol=1e-3, atol=1e-3), max_err
    print("KERNEL_OK")
</pallas_src>

<mosaic_0001>
module attributes {stable_mosaic.version = 11 : i64} {
  func.func @_conv_roll_kernel(%arg0: memref<24x12544xf32, #tpu.memory_space<vmem>>, %arg1: memref<24x72xf32, #tpu.memory_space<vmem>>, %arg2: memref<24x12544xf32, #tpu.memory_space<vmem>>) attributes {dimension_semantics = [], scalar_prefetch = 0 : i64, scratch_operands = 0 : i64, tpu.core_type = #tpu.core_type<tc>} {
    %c0 = arith.constant 0 : index
    %c0_0 = arith.constant 0 : index
    %0 = vector.load %arg0[%c0, %c0_0] : memref<24x12544xf32, #tpu.memory_space<vmem>>, vector<24x12544xf32>
    %1 = tpu.iota {dimensions = array<i32: 1>} : vector<1x12544xi32>
    %c112_i32 = arith.constant 112 : i32
    %c0_i32 = arith.constant 0 : i32
    %2 = arith.cmpi eq, %c112_i32, %c0_i32 : i32
    %c1_i32 = arith.constant 1 : i32
    %3 = arith.select %2, %c1_i32, %c112_i32 : i32
    %4 = vector.broadcast %3 : i32 to vector<1x12544xi32>
    %5 = arith.remsi %1, %4 : vector<1x12544xi32>
    %c0_i32_1 = arith.constant 0 : i32
    %6 = vector.broadcast %c0_i32_1 : i32 to vector<1x12544xi32>
    %7 = arith.cmpi ne, %5, %6 : vector<1x12544xi32>
    %c0_i32_2 = arith.constant 0 : i32
    %8 = vector.broadcast %c0_i32_2 : i32 to vector<1x12544xi32>
    %9 = arith.cmpi slt, %5, %8 : vector<1x12544xi32>
    %c0_i32_3 = arith.constant 0 : i32
    %10 = arith.cmpi slt, %3, %c0_i32_3 : i32
    %11 = vector.broadcast %10 : i1 to vector<1x12544xi1>
    %12 = vector.broadcast %11 : vector<1x12544xi1> to vector<1x12544xi1>
    %13 = arith.xori %9, %12 : vector<1x12544xi1>
    %14 = arith.andi %13, %7 : vector<1x12544xi1>
    %15 = vector.broadcast %3 : i32 to vector<1x12544xi32>
    %16 = arith.addi %5, %15 : vector<1x12544xi32>
    %17 = arith.select %14, %16, %5 : vector<1x12544xi1>, vector<1x12544xi32>
    %c0_i32_4 = arith.constant 0 : i32
    %18 = vector.broadcast %c0_i32_4 : i32 to vector<1x12544xi32>
    %19 = arith.cmpi eq, %17, %18 : vector<1x12544xi32>
    %20 = vector.extract_strided_slice %0 {offsets = [0, 12431], sizes = [24, 113], strides = [1, 1]} : vector<24x12544xf32> to vector<24x113xf32>
    %21 = vector.extract_strided_slice %0 {offsets = [0, 0], sizes = [24, 12431], strides = [1, 1]} : vector<24x12544xf32> to vector<24x12431xf32>
    %22 = tpu.concatenate %20, %21 in 1 : vector<24x113xf32>, vector<24x12431xf32> -> vector<24x12544xf32>
    %23 = vector.extract_strided_slice %0 {offsets = [0, 12319], sizes = [24, 225], strides = [1, 1]} : vector<24x12544xf32> to vector<24x225xf32>
    %24 = vector.extract_strided_slice %0 {offsets = [0, 0], sizes = [24, 12319], strides = [1, 1]} : vector<24x12544xf32> to vector<24x12319xf32>
    %25 = tpu.concatenate %23, %24 in 1 : vector<24x225xf32>, vector<24x12319xf32> -> vector<24x12544xf32>
    %26 = vector.shape_cast %19 : vector<1x12544xi1> to vector<1x12544xi1>
    %27 = vector.broadcast %26 : vector<1x12544xi1> to vector<24x12544xi1>
    %28 = arith.select %27, %22, %25 : vector<24x12544xi1>, vector<24x12544xf32>
    %cst = arith.constant 0.000000e+00 : f32
    %29 = vector.broadcast %cst : f32 to vector<24x224xf32>
    %30 = vector.extract_strided_slice %28 {offsets = [0, 0], sizes = [24, 12320], strides = [1, 1]} : vector<24x12544xf32> to vector<24x12320xf32>
    %31 = tpu.concatenate %29, %30 in 1 : vector<24x224xf32>, vector<24x12320xf32> -> vector<24x12544xf32>
    %32 = vector.extract_strided_slice %28 {offsets = [0, 224], sizes = [24, 12320], strides = [1, 1]} : vector<24x12544xf32> to vector<24x12320xf32>
    %33 = tpu.concatenate %32, %29 in 1 : vector<24x12320xf32>, vector<24x224xf32> -> vector<24x12544xf32>
    %34 = tpu.concatenate %31, %28, %33 in 0 : vector<24x12544xf32>, vector<24x12544xf32>, vector<24x12544xf32> -> vector<72x12544xf32>
    %c0_5 = arith.constant 0 : index
    %c0_6 = arith.constant 0 : index
    %35 = vector.load %arg1[%c0_5, %c0_6] : memref<24x72xf32, #tpu.memory_space<vmem>>, vector<24x72xf32>
    %cst_7 = arith.constant dense<0.000000e+00> : vector<24x12544xf32>
    %36 = tpu.matmul %35, %34, %cst_7 {dimension_numbers = #tpu.dot_dimension_numbers<[1], [0], [0], [1], [0, 0, 1, 1], [], []>} : vector<24x72xf32>, vector<72x12544xf32>, vector<24x12544xf32> -> vector<24x12544xf32>
    %c0_8 = arith.constant 0 : index
    %c0_9 = arith.constant 0 : index
    %37 = vector.load %arg2[%c0_8, %c0_9] : memref<24x12544xf32, #tpu.memory_space<vmem>>, vector<24x12544xf32>
    tpu.vector_store %arg2[%c0_8, %c0_9], %36 {strides = array<i32>} : memref<24x12544xf32, #tpu.memory_space<vmem>>, vector<24x12544xf32>,
    return
  }
}

</mosaic_0001>

<llo_original>
// kernel: kernel_generated_0_forward.1
$region0: #{kernel_generated_0_forward.1}
  #allocation0 [shape = 'u32[]', space=smem, size = 0x4, offset = 0x4, fixed_abs, tag = 'smem constant byte address 0x4 - core index']
  #allocation1 [shape = 'u32[144,128]{1,0:T(1,128)}', space=vmem, size = 0x12000, scoped, tag = 'internal scratch']
  %s0 = inlined_call_operand.vmem [shape: f32[24,12544], index: 0, kind: input, shape index: {}]
  %s1 = inlined_call_operand.vmem [shape: f32[24,72], index: 1, kind: input, shape index: {}]
  %s2 = inlined_call_operand.vmem [shape: f32[24,12544], index: 2, kind: output, shape index: {}]
  %s3 = sld [smem:[#allocation0]]
  $region18: #{kernel_generated_0_forward.1} parent=0
    _
  %s5 = ssub.s32 1, %s3
  %s6 = scalar_select 0, %s5, %s3
  // Predicated region
  $region2: #{kernel_generated_0_forward.1} parent=0 // pred_check
    _
  $region3: #{kernel_generated_0_forward.1} parent=0 // pred_check_branch
    %8 = sbr.rel (0) target = $region5
  $region4: #{kernel_generated_0_forward.1} parent=0 // pred_region
    _
  $region5: #{kernel_generated_0_forward.1} parent=0 // pred_fallthru
    _
  // Predicated region
  $region6: #{kernel_generated_0_forward.1} parent=0 // pred_check
    _
  $region7: #{kernel_generated_0_forward.1} parent=0 // pred_check_branch
    %10 = sbr.rel (0) target = $region9
  $region8: #{kernel_generated_0_forward.1} parent=0 // pred_region
    _
  $region9: #{kernel_generated_0_forward.1} parent=0 // pred_fallthru
    _
  %v11 = vld [vmem:[%s0] sm:$0xff]
  %v12 = vld [vmem:[%s0 + $0x8] sm:$0xff]
  %v13 = vld [vmem:[%s0 + $0x10] sm:$0xff]
  %v14 = vld [vmem:[%s0 + $0x18] sm:$0xff]
  %v15 = vld [vmem:[%s0 + $0x20] sm:$0xff]
  %v16 = vld [vmem:[%s0 + $0x28] sm:$0xff]
  %v17 = vld [vmem:[%s0 + $0x30] sm:$0xff]
  %v18 = vld [vmem:[%s0 + $0x38] sm:$0xff]
  %v19 = vld [vmem:[%s0 + $0x40] sm:$0xff]
  %v20 = vld [vmem:[%s0 + $0x48] sm:$0xff]
  %v21 = vld [vmem:[%s0 + $0x50] sm:$0xff]
  %v22 = vld [vmem:[%s0 + $0x58] sm:$0xff]
  %v23 = vld [vmem:[%s0 + $0x60] sm:$0xff]
  %v24 = vld [vmem:[%s0 + $0x68] sm:$0xff]
  %v25 = vld [vmem:[%s0 + $0x70] sm:$0xff]
  %v26 = vld [vmem:[%s0 + $0x78] sm:$0xff]
  %v27 = vld [vmem:[%s0 + $0x80] sm:$0xff]
  %v28 = vld [vmem:[%s0 + $0x88] sm:$0xff]
  %v29 = vld [vmem:[%s0 + $0x90] sm:$0xff]
  %v30 = vld [vmem:[%s0 + $0x98] sm:$0xff]
  %v31 = vld [vmem:[%s0 + $0xa0] sm:$0xff]
  %v32 = vld [vmem:[%s0 + $0xa8] sm:$0xff]
  %v33 = vld [vmem:[%s0 + $0xb0] sm:$0xff]
  %v34 = vld [vmem:[%s0 + $0xb8] sm:$0xff]
  %v35 = vld [vmem:[%s0 + $0xc0] sm:$0xff]
  %v36 = vld [vmem:[%s0 + $0xc8] sm:$0xff]
  %v37 = vld [vmem:[%s0 + $0xd0] sm:$0xff]
  %v38 = vld [vmem:[%s0 + $0xd8] sm:$0xff]
  %v39 = vld [vmem:[%s0 + $0xe0] sm:$0xff]
  %v40 = vld [vmem:[%s0 + $0xe8] sm:$0xff]
  %v41 = vld [vmem:[%s0 + $0xf0] sm:$0xff]
  %v42 = vld [vmem:[%s0 + $0xf8] sm:$0xff]
  %v43 = vld [vmem:[%s0 + $0x100] sm:$0xff]
  %v44 = vld [vmem:[%s0 + $0x108] sm:$0xff]
  %v45 = vld [vmem:[%s0 + $0x110] sm:$0xff]
  %v46 = vld [vmem:[%s0 + $0x118] sm:$0xff]
  %v47 = vld [vmem:[%s0 + $0x120] sm:$0xff]
  %v48 = vld [vmem:[%s0 + $0x128] sm:$0xff]
  %v49 = vld [vmem:[%s0 + $0x130] sm:$0xff]
  %v50 = vld [vmem:[%s0 + $0x138] sm:$0xff]
  %v51 = vld [vmem:[%s0 + $0x140] sm:$0xff]
  %v52 = vld [vmem:[%s0 + $0x148] sm:$0xff]
  %v53 = vld [vmem:[%s0 + $0x150] sm:$0xff]
  %v54 = vld [vmem:[%s0 + $0x158] sm:$0xff]
  %v55 = vld [vmem:[%s0 + $0x160] sm:$0xff]
  %v56 = vld [vmem:[%s0 + $0x168] sm:$0xff]
  %v57 = vld [vmem:[%s0 + $0x170] sm:$0xff]
  %v58 = vld [vmem:[%s0 + $0x178] sm:$0xff]
  %v59 = vld [vmem:[%s0 + $0x180] sm:$0xff]
  %v60 = vld [vmem:[%s0 + $0x188] sm:$0xff]
  %v61 = vld [vmem:[%s0 + $0x190] sm:$0xff]
  %v62 = vld [vmem:[%s0 + $0x198] sm:$0xff]
  %v63 = vld [vmem:[%s0 + $0x1a0] sm:$0xff]
  %v64 = vld [vmem:[%s0 + $0x1a8] sm:$0xff]
  %v65 = vld [vmem:[%s0 + $0x1b0] sm:$0xff]
  %v66 = vld [vmem:[%s0 + $0x1b8] sm:$0xff]
  %v67 = vld [vmem:[%s0 + $0x1c0] sm:$0xff]
  %v68 = vld [vmem:[%s0 + $0x1c8] sm:$0xff]
  %v69 = vld [vmem:[%s0 + $0x1d0] sm:$0xff]
  %v70 = vld [vmem:[%s0 + $0x1d8] sm:$0xff]
  %v71 = vld [vmem:[%s0 + $0x1e0] sm:$0xff]
  %v72 = vld [vmem:[%s0 + $0x1e8] sm:$0xff]
  %v73 = vld [vmem:[%s0 + $0x1f0] sm:$0xff]
  %v74 = vld [vmem:[%s0 + $0x1f8] sm:$0xff]
  %v75 = vld [vmem:[%s0 + $0x200] sm:$0xff]
  %v76 = vld [vmem:[%s0 + $0x208] sm:$0xff]
  %v77 = vld [vmem:[%s0 + $0x210] sm:$0xff]
  %v78 = vld [vmem:[%s0 + $0x218] sm:$0xff]
  %v79 = vld [vmem:[%s0 + $0x220] sm:$0xff]
  %v80 = vld [vmem:[%s0 + $0x228] sm:$0xff]
  %v81 = vld [vmem:[%s0 + $0x230] sm:$0xff]
  %v82 = vld [vmem:[%s0 + $0x238] sm:$0xff]
  %v83 = vld [vmem:[%s0 + $0x240] sm:$0xff]
  %v84 = vld [vmem:[%s0 + $0x248] sm:$0xff]
  %v85 = vld [vmem:[%s0 + $0x250] sm:$0xff]
  %v86 = vld [vmem:[%s0 + $0x258] sm:$0xff]
  %v87 = vld [vmem:[%s0 + $0x260] sm:$0xff]
  %v88 = vld [vmem:[%s0 + $0x268] sm:$0xff]
  %v89 = vld [vmem:[%s0 + $0x270] sm:$0xff]
  %v90 = vld [vmem:[%s0 + $0x278] sm:$0xff]
  %v91 = vld [vmem:[%s0 + $0x280] sm:$0xff]
  %v92 = vld [vmem:[%s0 + $0x288] sm:$0xff]
  %v93 = vld [vmem:[%s0 + $0x290] sm:$0xff]
  %v94 = vld [vmem:[%s0 + $0x298] sm:$0xff]
  %v95 = vld [vmem:[%s0 + $0x2a0] sm:$0xff]
  %v96 = vld [vmem:[%s0 + $0x2a8] sm:$0xff]
  %v97 = vld [vmem:[%s0 + $0x2b0] sm:$0xff]
  %v98 = vld [vmem:[%s0 + $0x2b8] sm:$0xff]
  %v99 = vld [vmem:[%s0 + $0x2c0] sm:$0xff]
  %v100 = vld [vmem:[%s0 + $0x2c8] sm:$0xff]
  %v101 = vld [vmem:[%s0 + $0x2d0] sm:$0xff]
  %v102 = vld [vmem:[%s0 + $0x2d8] sm:$0xff]
  %v103 = vld [vmem:[%s0 + $0x2e0] sm:$0xff]
  %v104 = vld [vmem:[%s0 + $0x2e8] sm:$0xff]
  %v105 = vld [vmem:[%s0 + $0x2f0] sm:$0xff]
  %v106 = vld [vmem:[%s0 + $0x2f8] sm:$0xff]
  %v107 = vld [vmem:[%s0 + $0x300] sm:$0xff]
  %v108 = vld [vmem:[%s0 + $0x308] sm:$0xff]
  %v109 = vld [vmem:[%s0 + $0x310] sm:$0xff]
  %v110 = vld [vmem:[%s0 + $0x318] sm:$0xff]
  %v111 = vld [vmem:[%s0 + $0x320] sm:$0xff]
  %v112 = vld [vmem:[%s0 + $0x328] sm:$0xff]
  %v113 = vld [vmem:[%s0 + $0x330] sm:$0xff]
  %v114 = vld [vmem:[%s0 + $0x338] sm:$0xff]
  %v115 = vld [vmem:[%s0 + $0x340] sm:$0xff]
  %v116 = vld [vmem:[%s0 + $0x348] sm:$0xff]
  %v117 = vld [vmem:[%s0 + $0x350] sm:$0xff]
  %v118 = vld [vmem:[%s0 + $0x358] sm:$0xff]
  %v119 = vld [vmem:[%s0 + $0x360] sm:$0xff]
  %v120 = vld [vmem:[%s0 + $0x368] sm:$0xff]
  %v121 = vld [vmem:[%s0 + $0x370] sm:$0xff]
  %v122 = vld [vmem:[%s0 + $0x378] sm:$0xff]
  %v123 = vld [vmem:[%s0 + $0x380] sm:$0xff]
  %v124 = vld [vmem:[%s0 + $0x388] sm:$0xff]
  %v125 = vld [vmem:[%s0 + $0x390] sm:$0xff]
  %v126 = vld [vmem:[%s0 + $0x398] sm:$0xff]
  %v127 = vld [vmem:[%s0 + $0x3a0] sm:$0xff]
  %v128 = vld [vmem:[%s0 + $0x3a8] sm:$0xff]
  %v129 = vld [vmem:[%s0 + $0x3b0] sm:$0xff]
  %v130 = vld [vmem:[%s0 + $0x3b8] sm:$0xff]
  %v131 = vld [vmem:[%s0 + $0x3c0] sm:$0xff]
  %v132 = vld [vmem:[%s0 + $0x3c8] sm:$0xff]
  %v133 = vld [vmem:[%s0 + $0x3d0] sm:$0xff]
  %v134 = vld [vmem:[%s0 + $0x3d8] sm:$0xff]
  %v135 = vld [vmem:[%s0 + $0x3e0] sm:$0xff]
  %v136 = vld [vmem:[%s0 + $0x3e8] sm:$0xff]
  %v137 = vld [vmem:[%s0 + $0x3f0] sm:$0xff]
  %v138 = vld [vmem:[%s0 + $0x3f8] sm:$0xff]
  %v139 = vld [vmem:[%s0 + $0x400] sm:$0xff]
  %v140 = vld [vmem:[%s0 + $0x408] sm:$0xff]
  %v141 = vld [vmem:[%s0 + $0x410] sm:$0xff]
  %v142 = vld [vmem:[%s0 + $0x418] sm:$0xff]
  %v143 = vld [vmem:[%s0 + $0x420] sm:$0xff]
  %v144 = vld [vmem:[%s0 + $0x428] sm:$0xff]
  %v145 = vld [vmem:[%s0 + $0x430] sm:$0xff]
  %v146 = vld [vmem:[%s0 + $0x438] sm:$0xff]
  %v147 = vld [vmem:[%s0 + $0x440] sm:$0xff]
  %v148 = vld [vmem:[%s0 + $0x448] sm:$0xff]
  %v149 = vld [vmem:[%s0 + $0x450] sm:$0xff]
  %v150 = vld [vmem:[%s0 + $0x458] sm:$0xff]
  %v151 = vld [vmem:[%s0 + $0x460] sm:$0xff]
  %v152 = vld [vmem:[%s0 + $0x468] sm:$0xff]
  %v153 = vld [vmem:[%s0 + $0x470] sm:$0xff]
  %v154 = vld [vmem:[%s0 + $0x478] sm:$0xff]
  %v155 = vld [vmem:[%s0 + $0x480] sm:$0xff]
  %v156 = vld [vmem:[%s0 + $0x488] sm:$0xff]
  %v157 = vld [vmem:[%s0 + $0x490] sm:$0xff]
  %v158 = vld [vmem:[%s0 + $0x498] sm:$0xff]
  %v159 = vld [vmem:[%s0 + $0x4a0] sm:$0xff]
  %v160 = vld [vmem:[%s0 + $0x4a8] sm:$0xff]
  %v161 = vld [vmem:[%s0 + $0x4b0] sm:$0xff]
  %v162 = vld [vmem:[%s0 + $0x4b8] sm:$0xff]
  %v163 = vld [vmem:[%s0 + $0x4c0] sm:$0xff]
  %v164 = vld [vmem:[%s0 + $0x4c8] sm:$0xff]
  %v165 = vld [vmem:[%s0 + $0x4d0] sm:$0xff]
  %v166 = vld [vmem:[%s0 + $0x4d8] sm:$0xff]
  %v167 = vld [vmem:[%s0 + $0x4e0] sm:$0xff]
  %v168 = vld [vmem:[%s0 + $0x4e8] sm:$0xff]
  %v169 = vld [vmem:[%s0 + $0x4f0] sm:$0xff]
  %v170 = vld [vmem:[%s0 + $0x4f8] sm:$0xff]
  %v171 = vld [vmem:[%s0 + $0x500] sm:$0xff]
  %v172 = vld [vmem:[%s0 + $0x508] sm:$0xff]
  %v173 = vld [vmem:[%s0 + $0x510] sm:$0xff]
  %v174 = vld [vmem:[%s0 + $0x518] sm:$0xff]
  %v175 = vld [vmem:[%s0 + $0x520] sm:$0xff]
  %v176 = vld [vmem:[%s0 + $0x528] sm:$0xff]
  %v177 = vld [vmem:[%s0 + $0x530] sm:$0xff]
  %v178 = vld [vmem:[%s0 + $0x538] sm:$0xff]
  %v179 = vld [vmem:[%s0 + $0x540] sm:$0xff]
  %v180 = vld [vmem:[%s0 + $0x548] sm:$0xff]
  %v181 = vld [vmem:[%s0 + $0x550] sm:$0xff]
  %v182 = vld [vmem:[%s0 + $0x558] sm:$0xff]
  %v183 = vld [vmem:[%s0 + $0x560] sm:$0xff]
  %v184 = vld [vmem:[%s0 + $0x568] sm:$0xff]
  %v185 = vld [vmem:[%s0 + $0x570] sm:$0xff]
  %v186 = vld [vmem:[%s0 + $0x578] sm:$0xff]
  %v187 = vld [vmem:[%s0 + $0x580] sm:$0xff]
  %v188 = vld [vmem:[%s0 + $0x588] sm:$0xff]
  %v189 = vld [vmem:[%s0 + $0x590] sm:$0xff]
  %v190 = vld [vmem:[%s0 + $0x598] sm:$0xff]
  %v191 = vld [vmem:[%s0 + $0x5a0] sm:$0xff]
  %v192 = vld [vmem:[%s0 + $0x5a8] sm:$0xff]
  %v193 = vld [vmem:[%s0 + $0x5b0] sm:$0xff]
  %v194 = vld [vmem:[%s0 + $0x5b8] sm:$0xff]
  %v195 = vld [vmem:[%s0 + $0x5c0] sm:$0xff]
  %v196 = vld [vmem:[%s0 + $0x5c8] sm:$0xff]
  %v197 = vld [vmem:[%s0 + $0x5d0] sm:$0xff]
  %v198 = vld [vmem:[%s0 + $0x5d8] sm:$0xff]
  %v199 = vld [vmem:[%s0 + $0x5e0] sm:$0xff]
  %v200 = vld [vmem:[%s0 + $0x5e8] sm:$0xff]
  %v201 = vld [vmem:[%s0 + $0x5f0] sm:$0xff]
  %v202 = vld [vmem:[%s0 + $0x5f8] sm:$0xff]
  %v203 = vld [vmem:[%s0 + $0x600] sm:$0xff]
  %v204 = vld [vmem:[%s0 + $0x608] sm:$0xff]
  %v205 = vld [vmem:[%s0 + $0x610] sm:$0xff]
  %v206 = vld [vmem:[%s0 + $0x618] sm:$0xff]
  %v207 = vld [vmem:[%s0 + $0x620] sm:$0xff]
  %v208 = vld [vmem:[%s0 + $0x628] sm:$0xff]
  %v209 = vld [vmem:[%s0 + $0x630] sm:$0xff]
  %v210 = vld [vmem:[%s0 + $0x638] sm:$0xff]
  %v211 = vld [vmem:[%s0 + $0x640] sm:$0xff]
  %v212 = vld [vmem:[%s0 + $0x648] sm:$0xff]
  %v213 = vld [vmem:[%s0 + $0x650] sm:$0xff]
  %v214 = vld [vmem:[%s0 + $0x658] sm:$0xff]
  %v215 = vld [vmem:[%s0 + $0x660] sm:$0xff]
  %v216 = vld [vmem:[%s0 + $0x668] sm:$0xff]
  %v217 = vld [vmem:[%s0 + $0x670] sm:$0xff]
  %v218 = vld [vmem:[%s0 + $0x678] sm:$0xff]
  %v219 = vld [vmem:[%s0 + $0x680] sm:$0xff]
  %v220 = vld [vmem:[%s0 + $0x688] sm:$0xff]
  %v221 = vld [vmem:[%s0 + $0x690] sm:$0xff]
  %v222 = vld [vmem:[%s0 + $0x698] sm:$0xff]
  %v223 = vld [vmem:[%s0 + $0x6a0] sm:$0xff]
  %v224 = vld [vmem:[%s0 + $0x6a8] sm:$0xff]
  %v225 = vld [vmem:[%s0 + $0x6b0] sm:$0xff]
  %v226 = vld [vmem:[%s0 + $0x6b8] sm:$0xff]
  %v227 = vld [vmem:[%s0 + $0x6c0] sm:$0xff]
  %v228 = vld [vmem:[%s0 + $0x6c8] sm:$0xff]
  %v229 = vld [vmem:[%s0 + $0x6d0] sm:$0xff]
  %v230 = vld [vmem:[%s0 + $0x6d8] sm:$0xff]
  %v231 = vld [vmem:[%s0 + $0x6e0] sm:$0xff]
  %v232 = vld [vmem:[%s0 + $0x6e8] sm:$0xff]
  %v233 = vld [vmem:[%s0 + $0x6f0] sm:$0xff]
  %v234 = vld [vmem:[%s0 + $0x6f8] sm:$0xff]
  %v235 = vld [vmem:[%s0 + $0x700] sm:$0xff]
  %v236 = vld [vmem:[%s0 + $0x708] sm:$0xff]
  %v237 = vld [vmem:[%s0 + $0x710] sm:$0xff]
  %v238 = vld [vmem:[%s0 + $0x718] sm:$0xff]
  %v239 = vld [vmem:[%s0 + $0x720] sm:$0xff]
  %v240 = vld [vmem:[%s0 + $0x728] sm:$0xff]
  %v241 = vld [vmem:[%s0 + $0x730] sm:$0xff]
  %v242 = vld [vmem:[%s0 + $0x738] sm:$0xff]
  %v243 = vld [vmem:[%s0 + $0x740] sm:$0xff]
  %v244 = vld [vmem:[%s0 + $0x748] sm:$0xff]
  %v245 = vld [vmem:[%s0 + $0x750] sm:$0xff]
  %v246 = vld [vmem:[%s0 + $0x758] sm:$0xff]
  %v247 = vld [vmem:[%s0 + $0x760] sm:$0xff]
  %v248 = vld [vmem:[%s0 + $0x768] sm:$0xff]
  %v249 = vld [vmem:[%s0 + $0x770] sm:$0xff]
  %v250 = vld [vmem:[%s0 + $0x778] sm:$0xff]
  %v251 = vld [vmem:[%s0 + $0x780] sm:$0xff]
  %v252 = vld [vmem:[%s0 + $0x788] sm:$0xff]
  %v253 = vld [vmem:[%s0 + $0x790] sm:$0xff]
  %v254 = vld [vmem:[%s0 + $0x798] sm:$0xff]
  %v255 = vld [vmem:[%s0 + $0x7a0] sm:$0xff]
  %v256 = vld [vmem:[%s0 + $0x7a8] sm:$0xff]
  %v257 = vld [vmem:[%s0 + $0x7b0] sm:$0xff]
  %v258 = vld [vmem:[%s0 + $0x7b8] sm:$0xff]
  %v259 = vld [vmem:[%s0 + $0x7c0] sm:$0xff]
  %v260 = vld [vmem:[%s0 + $0x7c8] sm:$0xff]
  %v261 = vld [vmem:[%s0 + $0x7d0] sm:$0xff]
  %v262 = vld [vmem:[%s0 + $0x7d8] sm:$0xff]
  %v263 = vld [vmem:[%s0 + $0x7e0] sm:$0xff]
  %v264 = vld [vmem:[%s0 + $0x7e8] sm:$0xff]
  %v265 = vld [vmem:[%s0 + $0x7f0] sm:$0xff]
  %v266 = vld [vmem:[%s0 + $0x7f8] sm:$0xff]
  %v267 = vld [vmem:[%s0 + $0x800] sm:$0xff]
  %v268 = vld [vmem:[%s0 + $0x808] sm:$0xff]
  %v269 = vld [vmem:[%s0 + $0x810] sm:$0xff]
  %v270 = vld [vmem:[%s0 + $0x818] sm:$0xff]
  %v271 = vld [vmem:[%s0 + $0x820] sm:$0xff]
  %v272 = vld [vmem:[%s0 + $0x828] sm:$0xff]
  %v273 = vld [vmem:[%s0 + $0x830] sm:$0xff]
  %v274 = vld [vmem:[%s0 + $0x838] sm:$0xff]
  %v275 = vld [vmem:[%s0 + $0x840] sm:$0xff]
  %v276 = vld [vmem:[%s0 + $0x848] sm:$0xff]
  %v277 = vld [vmem:[%s0 + $0x850] sm:$0xff]
  %v278 = vld [vmem:[%s0 + $0x858] sm:$0xff]
  %v279 = vld [vmem:[%s0 + $0x860] sm:$0xff]
  %v280 = vld [vmem:[%s0 + $0x868] sm:$0xff]
  %v281 = vld [vmem:[%s0 + $0x870] sm:$0xff]
  %v282 = vld [vmem:[%s0 + $0x878] sm:$0xff]
  %v283 = vld [vmem:[%s0 + $0x880] sm:$0xff]
  %v284 = vld [vmem:[%s0 + $0x888] sm:$0xff]
  %v285 = vld [vmem:[%s0 + $0x890] sm:$0xff]
  %v286 = vld [vmem:[%s0 + $0x898] sm:$0xff]
  %v287 = vld [vmem:[%s0 + $0x8a0] sm:$0xff]
  %v288 = vld [vmem:[%s0 + $0x8a8] sm:$0xff]
  %v289 = vld [vmem:[%s0 + $0x8b0] sm:$0xff]
  %v290 = vld [vmem:[%s0 + $0x8b8] sm:$0xff]
  %v291 = vld [vmem:[%s0 + $0x8c0] sm:$0xff]
  %v292 = vld [vmem:[%s0 + $0x8c8] sm:$0xff]
  %v293 = vld [vmem:[%s0 + $0x8d0] sm:$0xff]
  %v294 = vld [vmem:[%s0 + $0x8d8] sm:$0xff]
  %v295 = vld [vmem:[%s0 + $0x8e0] sm:$0xff]
  %v296 = vld [vmem:[%s0 + $0x8e8] sm:$0xff]
  %v297 = vld [vmem:[%s0 + $0x8f0] sm:$0xff]
  %v298 = vld [vmem:[%s0 + $0x8f8] sm:$0xff]
  %v299 = vld [vmem:[%s0 + $0x900] sm:$0xff]
  %v300 = vld [vmem:[%s0 + $0x908] sm:$0xff]
  %v301 = vld [vmem:[%s0 + $0x910] sm:$0xff]
  %v302 = vld [vmem:[%s0 + $0x918] sm:$0xff]
  %v303 = vld [vmem:[%s0 + $0x920] sm:$0xff]
  %v304 = vld [vmem:[%s0 + $0x928] sm:$0xff]
  %v305 = vlaneseq
  %v306 = vand.u32 %v305, 127
  %v307 = vadd.s32 %v306, 128
  %v308 = vadd.s32 %v306, 256
  %v309 = vadd.s32 %v306, 384
  %v310 = vadd.s32 %v306, 512
  %v311 = vadd.s32 %v306, 640
  %v312 = vadd.s32 %v306, 768
  %v313 = vadd.s32 %v306, 896
  %v314 = vadd.s32 %v306, 1024
  %v315 = vadd.s32 %v306, 1152
  %v316 = vadd.s32 %v306, 1280
  %v317 = vadd.s32 %v306, 1408
  %v318 = vadd.s32 %v306, 1536
  %v319 = vadd.s32 %v306, 1664
  %v320 = vadd.s32 %v306, 1792
  %v321 = vadd.s32 %v306, 1920
  %v322 = vadd.s32 %v306, 2048
  %v323 = vadd.s32 %v306, 2176
  %v324 = vadd.s32 %v306, 2304
  %v325 = vadd.s32 %v306, 2432
  %v326 = vadd.s32 %v306, 2560
  %v327 = vadd.s32 %v306, 2688
  %v328 = vadd.s32 %v306, 2816
  %v329 = vadd.s32 %v306, 2944
  %v330 = vadd.s32 %v306, 3072
  %v331 = vadd.s32 %v306, 3200
  %v332 = vadd.s32 %v306, 3328
  %v333 = vadd.s32 %v306, 3456
  %v334 = vadd.s32 %v306, 3584
  %v335 = vadd.s32 %v306, 3712
  %v336 = vadd.s32 %v306, 3840
  %v337 = vadd.s32 %v306, 3968
  %v338 = vadd.s32 %v306, 4096
  %v339 = vadd.s32 %v306, 4224
  %v340 = vadd.s32 %v306, 4352
  %v341 = vadd.s32 %v306, 4480
  %v342 = vadd.s32 %v306, 4608
  %v343 = vadd.s32 %v306, 4736
  %v344 = vadd.s32 %v306, 4864
  %v345 = vadd.s32 %v306, 4992
  %v346 = vadd.s32 %v306, 5120
  %v347 = vadd.s32 %v306, 5248
  %v348 = vadd.s32 %v306, 5376
  %v349 = vadd.s32 %v306, 5504
  %v350 = vadd.s32 %v306, 5632
  %v351 = vadd.s32 %v306, 5760
  %v352 = vadd.s32 %v306, 5888
  %v353 = vadd.s32 %v306, 6016
  %v354 = vadd.s32 %v306, 6144
  %v355 = vadd.s32 %v306, 6272
  %v356 = vadd.s32 %v306, 6400
  %v357 = vadd.s32 %v306, 6528
  %v358 = vadd.s32 %v306, 6656
  %v359 = vadd.s32 %v306, 6784
  %v360 = vadd.s32 %v306, 6912
  %v361 = vadd.s32 %v306, 7040
  %v362 = vadd.s32 %v306, 7168
  %v363 = vadd.s32 %v306, 7296
  %v364 = vadd.s32 %v306, 7424
  %v365 = vadd.s32 %v306, 7552
  %v366 = vadd.s32 %v306, 7680
  %v367 = vadd.s32 %v306, 7808
  %v368 = vadd.s32 %v306, 7936
  %v369 = vadd.s32 %v306, 8064
  %v370 = vadd.s32 %v306, 8192
  %v371 = vadd.s32 %v306, 8320
  %v372 = vadd.s32 %v306, 8448
  %v373 = vadd.s32 %v306, 8576
  %v374 = vadd.s32 %v306, 8704
  %v375 = vadd.s32 %v306, 8832
  %v376 = vadd.s32 %v306, 8960
  %v377 = vadd.s32 %v306, 9088
  %v378 = vadd.s32 %v306, 9216
  %v379 = vadd.s32 %v306, 9344
  %v380 = vadd.s32 %v306, 9472
  %v381 = vadd.s32 %v306, 9600
  %v382 = vadd.s32 %v306, 9728
  %v383 = vadd.s32 %v306, 9856
  %v384 = vadd.s32 %v306, 9984
  %v385 = vadd.s32 %v306, 10112
  %v386 = vadd.s32 %v306, 10240
  %v387 = vadd.s32 %v306, 10368
  %v388 = vadd.s32 %v306, 10496
  %v389 = vadd.s32 %v306, 10624
  %v390 = vadd.s32 %v306, 10752
  %v391 = vadd.s32 %v306, 10880
  %v392 = vadd.s32 %v306, 11008
  %v393 = vadd.s32 %v306, 11136
  %v394 = vadd.s32 %v306, 11264
  %v395 = vadd.s32 %v306, 11392
  %v396 = vadd.s32 %v306, 11520
  %v397 = vadd.s32 %v306, 11648
  %v398 = vadd.s32 %v306, 11776
  %v399 = vadd.s32 %v306, 11904
  %v400 = vadd.s32 %v306, 12032
  %v401 = vadd.s32 %v306, 12160
  %v402 = vadd.s32 %v306, 12288
  %v403 = vadd.s32 %v306, 12416
  %vm404 = vcmp.lt.s32.totalorder %v306, 0
  %v405 = vsub.s32 0, %v306
  %v406 = vsel %vm404, %v405, %v306
  %v407 = vmul.u32.u64.compose %v406, 2454267026
  %v408 = vextract.low.u32 %v407
  %v409 = vextract.high.u32 %v407
  %vm410 = vc.u32 %v408, 2454267026
  %v411 = vsel %vm410, 1, 0
  %v412 = vadd.s32 %v409, %v411
  %v413 = vshrl.u32 %v412, 6
  %v414 = vmul.u32 %v413, 112
  %v415 = vsub.s32 %v406, %v414
  %v416 = vsub.s32 0, %v415
  %v417 = vsel %vm404, %v416, %v415
  %vm418 = vcmp.lt.s32.totalorder %v307, 0
  %v419 = vsub.s32 0, %v307
  %v420 = vsel %vm418, %v419, %v307
  %v421 = vmul.u32.u64.compose %v420, 2454267026
  %v422 = vextract.low.u32 %v421
  %v423 = vextract.high.u32 %v421
  %vm424 = vc.u32 %v422, 2454267026
  %v425 = vsel %vm424, 1, 0
  %v426 = vadd.s32 %v423, %v425
  %v427 = vshrl.u32 %v426, 6
  %v428 = vmul.u32 %v427, 112
  %v429 = vsub.s32 %v420, %v428
  %v430 = vsub.s32 0, %v429
  %v431 = vsel %vm418, %v430, %v429
  %vm432 = vcmp.lt.s32.totalorder %v308, 0
  %v433 = vsub.s32 0, %v308
  %v434 = vsel %vm432, %v433, %v308
  %v435 = vmul.u32.u64.compose %v434, 2454267026
  %v436 = vextract.low.u32 %v435
  %v437 = vextract.high.u32 %v435
  %vm438 = vc.u32 %v436, 2454267026
  %v439 = vsel %vm438, 1, 0
  %v440 = vadd.s32 %v437, %v439
  %v441 = vshrl.u32 %v440, 6
  %v442 = vmul.u32 %v441, 112
  %v443 = vsub.s32 %v434, %v442
  %v444 = vsub.s32 0, %v443
  %v445 = vsel %vm432, %v444, %v443
  %vm446 = vcmp.lt.s32.totalorder %v309, 0
  %v447 = vsub.s32 0, %v309
  %v448 = vsel %vm446, %v447, %v309
  %v449 = vmul.u32.u64.compose %v448, 2454267026
  %v450 = vextract.low.u32 %v449
  %v451 = vextract.high.u32 %v449
  %vm452 = vc.u32 %v450, 2454267026
  %v453 = vsel %vm452, 1, 0
  %v454 = vadd.s32 %v451, %v453
  %v455 = vshrl.u32 %v454, 6
  %v456 = vmul.u32 %v455, 112
  %v457 = vsub.s32 %v448, %v456
  %v458 = vsub.s32 0, %v457
  %v459 = vsel %vm446, %v458, %v457
  %vm460 = vcmp.lt.s32.totalorder %v310, 0
  %v461 = vsub.s32 0, %v310
  %v462 = vsel %vm460, %v461, %v310
  %v463 = vmul.u32.u64.compose %v462, 2454267026
  %v464 = vextract.low.u32 %v463
  %v465 = vextract.high.u32 %v463
  %vm466 = vc.u32 %v464, 2454267026
  %v467 = vsel %vm466, 1, 0
  %v468 = vadd.s32 %v465, %v467
  %v469 = vshrl.u32 %v468, 6
  %v470 = vmul.u32 %v469, 112
  %v471 = vsub.s32 %v462, %v470
  %v472 = vsub.s32 0, %v471
  %v473 = vsel %vm460, %v472, %v471
  %vm474 = vcmp.lt.s32.totalorder %v311, 0
  %v475 = vsub.s32 0, %v311
  %v476 = vsel %vm474, %v475, %v311
  %v477 = vmul.u32.u64.compose %v476, 2454267026
  %v478 = vextract.low.u32 %v477
  %v479 = vextract.high.u32 %v477
  %vm480 = vc.u32 %v478, 2454267026
  %v481 = vsel %vm480, 1, 0
  %v482 = vadd.s32 %v479, %v481
  %v483 = vshrl.u32 %v482, 6
  %v484 = vmul.u32 %v483, 112
  %v485 = vsub.s32 %v476, %v484
  %v486 = vsub.s32 0, %v485
  %v487 = vsel %vm474, %v486, %v485
  %vm488 = vcmp.lt.s32.totalorder %v312, 0
  %v489 = vsub.s32 0, %v312
  %v490 = vsel %vm488, %v489, %v312
  %v491 = vmul.u32.u64.compose %v490, 2454267026
  %v492 = vextract.low.u32 %v491
  %v493 = vextract.high.u32 %v491
  %vm494 = vc.u32 %v492, 2454267026
  %v495 = vsel %vm494, 1, 0
  %v496 = vadd.s32 %v493, %v495
  %v497 = vshrl.u32 %v496, 6
  %v498 = vmul.u32 %v497, 112
  %v499 = vsub.s32 %v490, %v498
  %v500 = vsub.s32 0, %v499
  %v501 = vsel %vm488, %v500, %v499
  %vm502 = vcmp.lt.s32.totalorder %v313, 0
  %v503 = vsub.s32 0, %v313
  %v504 = vsel %vm502, %v503, %v313
  %v505 = vmul.u32.u64.compose %v504, 2454267026
  %v506 = vextract.low.u32 %v505
  %v507 = vextract.high.u32 %v505
  %vm508 = vc.u32 %v506, 2454267026
  %v509 = vsel %vm508, 1, 0
  %v510 = vadd.s32 %v507, %v509
  %v511 = vshrl.u32 %v510, 6
  %v512 = vmul.u32 %v511, 112
  %v513 = vsub.s32 %v504, %v512
  %v514 = vsub.s32 0, %v513
  %v515 = vsel %vm502, %v514, %v513
  %vm516 = vcmp.lt.s32.totalorder %v314, 0
  %v517 = vsub.s32 0, %v314
  %v518 = vsel %vm516, %v517, %v314
  %v519 = vmul.u32.u64.compose %v518, 2454267026
  %v520 = vextract.low.u32 %v519
  %v521 = vextract.high.u32 %v519
  %vm522 = vc.u32 %v520, 2454267026
  %v523 = vsel %vm522, 1, 0
  %v524 = vadd.s32 %v521, %v523
  %v525 = vshrl.u32 %v524, 6
  %v526 = vmul.u32 %v525, 112
  %v527 = vsub.s32 %v518, %v526
  %v528 = vsub.s32 0, %v527
  %v529 = vsel %vm516, %v528, %v527
  %vm530 = vcmp.lt.s32.totalorder %v315, 0
  %v531 = vsub.s32 0, %v315
  %v532 = vsel %vm530, %v531, %v315
  %v533 = vmul.u32.u64.compose %v532, 2454267026
  %v534 = vextract.low.u32 %v533
  %v535 = vextract.high.u32 %v533
  %vm536 = vc.u32 %v534, 2454267026
  %v537 = vsel %vm536, 1, 0
  %v538 = vadd.s32 %v535, %v537
  %v539 = vshrl.u32 %v538, 6
  %v540 = vmul.u32 %v539, 112
  %v541 = vsub.s32 %v532, %v540
  %v542 = vsub.s32 0, %v541
  %v543 = vsel %vm530, %v542, %v541
  %vm544 = vcmp.lt.s32.totalorder %v316, 0
  %v545 = vsub.s32 0, %v316
  %v546 = vsel %vm544, %v545, %v316
  %v547 = vmul.u32.u64.compose %v546, 2454267026
  %v548 = vextract.low.u32 %v547
  %v549 = vextract.high.u32 %v547
  %vm550 = vc.u32 %v548, 2454267026
  %v551 = vsel %vm550, 1, 0
  %v552 = vadd.s32 %v549, %v551
  %v553 = vshrl.u32 %v552, 6
  %v554 = vmul.u32 %v553, 112
  %v555 = vsub.s32 %v546, %v554
  %v556 = vsub.s32 0, %v555
  %v557 = vsel %vm544, %v556, %v555
  %vm558 = vcmp.lt.s32.totalorder %v317, 0
  %v559 = vsub.s32 0, %v317
  %v560 = vsel %vm558, %v559, %v317
  %v561 = vmul.u32.u64.compose %v560, 2454267026
  %v562 = vextract.low.u32 %v561
  %v563 = vextract.high.u32 %v561
  %vm564 = vc.u32 %v562, 2454267026
  %v565 = vsel %vm564, 1, 0
  %v566 = vadd.s32 %v563, %v565
  %v567 = vshrl.u32 %v566, 6
  %v568 = vmul.u32 %v567, 112
  %v569 = vsub.s32 %v560, %v568
  %v570 = vsub.s32 0, %v569
  %v571 = vsel %vm558, %v570, %v569
  %vm572 = vcmp.lt.s32.totalorder %v318, 0
  %v573 = vsub.s32 0, %v318
  %v574 = vsel %vm572, %v573, %v318
  %v575 = vmul.u32.u64.compose %v574, 2454267026
  %v576 = vextract.low.u32 %v575
  %v577 = vextract.high.u32 %v575
  %vm578 = vc.u32 %v576, 2454267026
  %v579 = vsel %vm578, 1, 0
  %v580 = vadd.s32 %v577, %v579
  %v581 = vshrl.u32 %v580, 6
  %v582 = vmul.u32 %v581, 112
  %v583 = vsub.s32 %v574, %v582
  %v584 = vsub.s32 0, %v583
  %v585 = vsel %vm572, %v584, %v583
  %vm586 = vcmp.lt.s32.totalorder %v319, 0
  %v587 = vsub.s32 0, %v319
  %v588 = vsel %vm586, %v587, %v319
  %v589 = vmul.u32.u64.compose %v588, 2454267026
  %v590 = vextract.low.u32 %v589
  %v591 = vextract.high.u32 %v589
  %vm592 = vc.u32 %v590, 2454267026
  %v593 = vsel %vm592, 1, 0
  %v594 = vadd.s32 %v591, %v593
  %v595 = vshrl.u32 %v594, 6
  %v596 = vmul.u32 %v595, 112
  %v597 = vsub.s32 %v588, %v596
  %v598 = vsub.s32 0, %v597
  %v599 = vsel %vm586, %v598, %v597
  %vm600 = vcmp.lt.s32.totalorder %v320, 0
  %v601 = vsub.s32 0, %v320
  %v602 = vsel %vm600, %v601, %v320
  %v603 = vmul.u32.u64.compose %v602, 2454267026
  %v604 = vextract.low.u32 %v603
  %v605 = vextract.high.u32 %v603
  %vm606 = vc.u32 %v604, 2454267026
  %v607 = vsel %vm606, 1, 0
  %v608 = vadd.s32 %v605, %v607
  %v609 = vshrl.u32 %v608, 6
  %v610 = vmul.u32 %v609, 112
  %v611 = vsub.s32 %v602, %v610
  %v612 = vsub.s32 0, %v611
  %v613 = vsel %vm600, %v612, %v611
  %vm614 = vcmp.lt.s32.totalorder %v321, 0
  %v615 = vsub.s32 0, %v321
  %v616 = vsel %vm614, %v615, %v321
  %v617 = vmul.u32.u64.compose %v616, 2454267026
  %v618 = vextract.low.u32 %v617
  %v619 = vextract.high.u32 %v617
  %vm620 = vc.u32 %v618, 2454267026
  %v621 = vsel %vm620, 1, 0
  %v622 = vadd.s32 %v619, %v621
  %v623 = vshrl.u32 %v622, 6
  %v624 = vmul.u32 %v623, 112
  %v625 = vsub.s32 %v616, %v624
  %v626 = vsub.s32 0, %v625
  %v627 = vsel %vm614, %v626, %v625
  %vm628 = vcmp.lt.s32.totalorder %v322, 0
  %v629 = vsub.s32 0, %v322
  %v630 = vsel %vm628, %v629, %v322
  %v631 = vmul.u32.u64.compose %v630, 2454267026
  %v632 = vextract.low.u32 %v631
  %v633 = vextract.high.u32 %v631
  %vm634 = vc.u32 %v632, 2454267026
  %v635 = vsel %vm634, 1, 0
  %v636 = vadd.s32 %v633, %v635
  %v637 = vshrl.u32 %v636, 6
  %v638 = vmul.u32 %v637, 112
  %v639 = vsub.s32 %v630, %v638
  %v640 = vsub.s32 0, %v639
  %v641 = vsel %vm628, %v640, %v639
  %vm642 = vcmp.lt.s32.totalorder %v323, 0
  %v643 = vsub.s32 0, %v323
  %v644 = vsel %vm642, %v643, %v323
  %v645 = vmul.u32.u64.compose %v644, 2454267026
  %v646 = vextract.low.u32 %v645
  %v647 = vextract.high.u32 %v645
  %vm648 = vc.u32 %v646, 2454267026
  %v649 = vsel %vm648, 1, 0
  %v650 = vadd.s32 %v647, %v649
  %v651 = vshrl.u32 %v650, 6
  %v652 = vmul.u32 %v651, 112
  %v653 = vsub.s32 %v644, %v652
  %v654 = vsub.s32 0, %v653
  %v655 = vsel %vm642, %v654, %v653
  %vm656 = vcmp.lt.s32.totalorder %v324, 0
  %v657 = vsub.s32 0, %v324
  %v658 = vsel %vm656, %v657, %v324
  %v659 = vmul.u32.u64.compose %v658, 2454267026
  %v660 = vextract.low.u32 %v659
  %v661 = vextract.high.u32 %v659
  %vm662 = vc.u32 %v660, 2454267026
  %v663 = vsel %vm662, 1, 0
  %v664 = vadd.s32 %v661, %v663
  %v665 = vshrl.u32 %v664, 6
  %v666 = vmul.u32 %v665, 112
  %v667 = vsub.s32 %v658, %v666
  %v668 = vsub.s32 0, %v667
  %v669 = vsel %vm656, %v668, %v667
  %vm670 = vcmp.lt.s32.totalorder %v325, 0
  %v671 = vsub.s32 0, %v325
  %v672 = vsel %vm670, %v671, %v325
  %v673 = vmul.u32.u64.compose %v672, 2454267026
  %v674 = vextract.low.u32 %v673
  %v675 = vextract.high.u32 %v673
  %vm676 = vc.u32 %v674, 2454267026
  %v677 = vsel %vm676, 1, 0
  %v678 = vadd.s32 %v675, %v677
  %v679 = vshrl.u32 %v678, 6
  %v680 = vmul.u32 %v679, 112
  %v681 = vsub.s32 %v672, %v680
  %v682 = vsub.s32 0, %v681
  %v683 = vsel %vm670, %v682, %v681
  %vm684 = vcmp.lt.s32.totalorder %v326, 0
  %v685 = vsub.s32 0, %v326
  %v686 = vsel %vm684, %v685, %v326
  %v687 = vmul.u32.u64.compose %v686, 2454267026
  %v688 = vextract.low.u32 %v687
  %v689 = vextract.high.u32 %v687
  %vm690 = vc.u32 %v688, 2454267026
  %v691 = vsel %vm690, 1, 0
  %v692 = vadd.s32 %v689, %v691
  %v693 = vshrl.u32 %v692, 6
  %v694 = vmul.u32 %v693, 112
  %v695 = vsub.s32 %v686, %v694
  %v696 = vsub.s32 0, %v695
  %v697 = vsel %vm684, %v696, %v695
  %vm698 = vcmp.lt.s32.totalorder %v327, 0
  %v699 = vsub.s32 0, %v327
  %v700 = vsel %vm698, %v699, %v327
  %v701 = vmul.u32.u64.compose %v700, 2454267026
  %v702 = vextract.low.u32 %v701
  %v703 = vextract.high.u32 %v701
  %vm704 = vc.u32 %v702, 2454267026
  %v705 = vsel %vm704, 1, 0
  %v706 = vadd.s32 %v703, %v705
  %v707 = vshrl.u32 %v706, 6
  %v708 = vmul.u32 %v707, 112
  %v709 = vsub.s32 %v700, %v708
  %v710 = vsub.s32 0, %v709
  %v711 = vsel %vm698, %v710, %v709
  %vm712 = vcmp.lt.s32.totalorder %v328, 0
  %v713 = vsub.s32 0, %v328
  %v714 = vsel %vm712, %v713, %v328
  %v715 = vmul.u32.u64.compose %v714, 2454267026
  %v716 = vextract.low.u32 %v715
  %v717 = vextract.high.u32 %v715
  %vm718 = vc.u32 %v716, 2454267026
  %v719 = vsel %vm718, 1, 0
  %v720 = vadd.s32 %v717, %v719
  %v721 = vshrl.u32 %v720, 6
  %v722 = vmul.u32 %v721, 112
  %v723 = vsub.s32 %v714, %v722
  %v724 = vsub.s32 0, %v723
  %v725 = vsel %vm712, %v724, %v723
  %vm726 = vcmp.lt.s32.totalorder %v329, 0
  %v727 = vsub.s32 0, %v329
  %v728 = vsel %vm726, %v727, %v329
  %v729 = vmul.u32.u64.compose %v728, 2454267026
  %v730 = vextract.low.u32 %v729
  %v731 = vextract.high.u32 %v729
  %vm732 = vc.u32 %v730, 2454267026
  %v733 = vsel %vm732, 1, 0
  %v734 = vadd.s32 %v731, %v733
  %v735 = vshrl.u32 %v734, 6
  %v736 = vmul.u32 %v735, 112
  %v737 = vsub.s32 %v728, %v736
  %v738 = vsub.s32 0, %v737
  %v739 = vsel %vm726, %v738, %v737
  %vm740 = vcmp.lt.s32.totalorder %v330, 0
  %v741 = vsub.s32 0, %v330
  %v742 = vsel %vm740, %v741, %v330
  %v743 = vmul.u32.u64.compose %v742, 2454267026
  %v744 = vextract.low.u32 %v743
  %v745 = vextract.high.u32 %v743
  %vm746 = vc.u32 %v744, 2454267026
  %v747 = vsel %vm746, 1, 0
  %v748 = vadd.s32 %v745, %v747
  %v749 = vshrl.u32 %v748, 6
  %v750 = vmul.u32 %v749, 112
  %v751 = vsub.s32 %v742, %v750
  %v752 = vsub.s32 0, %v751
  %v753 = vsel %vm740, %v752, %v751
  %vm754 = vcmp.lt.s32.totalorder %v331, 0
  %v755 = vsub.s32 0, %v331
  %v756 = vsel %vm754, %v755, %v331
  %v757 = vmul.u32.u64.compose %v756, 2454267026
  %v758 = vextract.low.u32 %v757
  %v759 = vextract.high.u32 %v757
  %vm760 = vc.u32 %v758, 2454267026
  %v761 = vsel %vm760, 1, 0
  %v762 = vadd.s32 %v759, %v761
  %v763 = vshrl.u32 %v762, 6
  %v764 = vmul.u32 %v763, 112
  %v765 = vsub.s32 %v756, %v764
  %v766 = vsub.s32 0, %v765
  %v767 = vsel %vm754, %v766, %v765
  %vm768 = vcmp.lt.s32.totalorder %v332, 0
  %v769 = vsub.s32 0, %v332
  %v770 = vsel %vm768, %v769, %v332
  %v771 = vmul.u32.u64.compose %v770, 2454267026
  %v772 = vextract.low.u32 %v771
  %v773 = vextract.high.u32 %v771
  %vm774 = vc.u32 %v772, 2454267026
  %v775 = vsel %vm774, 1, 0
  %v776 = vadd.s32 %v773, %v775
  %v777 = vshrl.u32 %v776, 6
  %v778 = vmul.u32 %v777, 112
  %v779 = vsub.s32 %v770, %v778
  %v780 = vsub.s32 0, %v779
  %v781 = vsel %vm768, %v780, %v779
  %vm782 = vcmp.lt.s32.totalorder %v333, 0
  %v783 = vsub.s32 0, %v333
  %v784 = vsel %vm782, %v783, %v333
  %v785 = vmul.u32.u64.compose %v784, 2454267026
  %v786 = vextract.low.u32 %v785
  %v787 = vextract.high.u32 %v785
  %vm788 = vc.u32 %v786, 2454267026
  %v789 = vsel %vm788, 1, 0
  %v790 = vadd.s32 %v787, %v789
  %v791 = vshrl.u32 %v790, 6
  %v792 = vmul.u32 %v791, 112
  %v793 = vsub.s32 %v784, %v792
  %v794 = vsub.s32 0, %v793
  %v795 = vsel %vm782, %v794, %v793
  %vm796 = vcmp.lt.s32.totalorder %v334, 0
  %v797 = vsub.s32 0, %v334
  %v798 = vsel %vm796, %v797, %v334
  %v799 = vmul.u32.u64.compose %v798, 2454267026
  %v800 = vextract.low.u32 %v799
  %v801 = vextract.high.u32 %v799
  %vm802 = vc.u32 %v800, 2454267026
  %v803 = vsel %vm802, 1, 0
  %v804 = vadd.s32 %v801, %v803
  %v805 = vshrl.u32 %v804, 6
  %v806 = vmul.u32 %v805, 112
  %v807 = vsub.s32 %v798, %v806
  %v808 = vsub.s32 0, %v807
  %v809 = vsel %vm796, %v808, %v807
  %vm810 = vcmp.lt.s32.totalorder %v335, 0
  %v811 = vsub.s32 0, %v335
  %v812 = vsel %vm810, %v811, %v335
  %v813 = vmul.u32.u64.compose %v812, 2454267026
  %v814 = vextract.low.u32 %v813
  %v815 = vextract.high.u32 %v813
  %vm816 = vc.u32 %v814, 2454267026
  %v817 = vsel %vm816, 1, 0
  %v818 = vadd.s32 %v815, %v817
  %v819 = vshrl.u32 %v818, 6
  %v820 = vmul.u32 %v819, 112
  %v821 = vsub.s32 %v812, %v820
  %v822 = vsub.s32 0, %v821
  %v823 = vsel %vm810, %v822, %v821
  %vm824 = vcmp.lt.s32.totalorder %v336, 0
  %v825 = vsub.s32 0, %v336
  %v826 = vsel %vm824, %v825, %v336
  %v827 = vmul.u32.u64.compose %v826, 2454267026
  %v828 = vextract.low.u32 %v827
  %v829 = vextract.high.u32 %v827
  %vm830 = vc.u32 %v828, 2454267026
  %v831 = vsel %vm830, 1, 0
  %v832 = vadd.s32 %v829, %v831
  %v833 = vshrl.u32 %v832, 6
  %v834 = vmul.u32 %v833, 112
  %v835 = vsub.s32 %v826, %v834
  %v836 = vsub.s32 0, %v835
  %v837 = vsel %vm824, %v836, %v835
  %vm838 = vcmp.lt.s32.totalorder %v337, 0
  %v839 = vsub.s32 0, %v337
  %v840 = vsel %vm838, %v839, %v337
  %v841 = vmul.u32.u64.compose %v840, 2454267026
  %v842 = vextract.low.u32 %v841
  %v843 = vextract.high.u32 %v841
  %vm844 = vc.u32 %v842, 2454267026
  %v845 = vsel %vm844, 1, 0
  %v846 = vadd.s32 %v843, %v845
  %v847 = vshrl.u32 %v846, 6
  %v848 = vmul.u32 %v847, 112
  %v849 = vsub.s32 %v840, %v848
  %v850 = vsub.s32 0, %v849
  %v851 = vsel %vm838, %v850, %v849
  %vm852 = vcmp.lt.s32.totalorder %v338, 0
  %v853 = vsub.s32 0, %v338
  %v854 = vsel %vm852, %v853, %v338
  %v855 = vmul.u32.u64.compose %v854, 2454267026
  %v856 = vextract.low.u32 %v855
  %v857 = vextract.high.u32 %v855
  %vm858 = vc.u32 %v856, 2454267026
  %v859 = vsel %vm858, 1, 0
  %v860 = vadd.s32 %v857, %v859
  %v861 = vshrl.u32 %v860, 6
  %v862 = vmul.u32 %v861, 112
  %v863 = vsub.s32 %v854, %v862
  %v864 = vsub.s32 0, %v863
  %v865 = vsel %vm852, %v864, %v863
  %vm866 = vcmp.lt.s32.totalorder %v339, 0
  %v867 = vsub.s32 0, %v339
  %v868 = vsel %vm866, %v867, %v339
  %v869 = vmul.u32.u64.compose %v868, 2454267026
  %v870 = vextract.low.u32 %v869
  %v871 = vextract.high.u32 %v869
  %vm872 = vc.u32 %v870, 2454267026
  %v873 = vsel %vm872, 1, 0
  %v874 = vadd.s32 %v871, %v873
  %v875 = vshrl.u32 %v874, 6
  %v876 = vmul.u32 %v875, 112
  %v877 = vsub.s32 %v868, %v876
  %v878 = vsub.s32 0, %v877
  %v879 = vsel %vm866, %v878, %v877
  %vm880 = vcmp.lt.s32.totalorder %v340, 0
  %v881 = vsub.s32 0, %v340
  %v882 = vsel %vm880, %v881, %v340
  %v883 = vmul.u32.u64.compose %v882, 2454267026
  %v884 = vextract.low.u32 %v883
  %v885 = vextract.high.u32 %v883
  %vm886 = vc.u32 %v884, 2454267026
  %v887 = vsel %vm886, 1, 0
  %v888 = vadd.s32 %v885, %v887
  %v889 = vshrl.u32 %v888, 6
  %v890 = vmul.u32 %v889, 112
  %v891 = vsub.s32 %v882, %v890
  %v892 = vsub.s32 0, %v891
  %v893 = vsel %vm880, %v892, %v891
  %vm894 = vcmp.lt.s32.totalorder %v341, 0
  %v895 = vsub.s32 0, %v341
  %v896 = vsel %vm894, %v895, %v341
  %v897 = vmul.u32.u64.compose %v896, 2454267026
  %v898 = vextract.low.u32 %v897
  %v899 = vextract.high.u32 %v897
  %vm900 = vc.u32 %v898, 2454267026
  %v901 = vsel %vm900, 1, 0
  %v902 = vadd.s32 %v899, %v901
  %v903 = vshrl.u32 %v902, 6
  %v904 = vmul.u32 %v903, 112
  %v905 = vsub.s32 %v896, %v904
  %v906 = vsub.s32 0, %v905
  %v907 = vsel %vm894, %v906, %v905
  %vm908 = vcmp.lt.s32.totalorder %v342, 0
  %v909 = vsub.s32 0, %v342
  %v910 = vsel %vm908, %v909, %v342
  %v911 = vmul.u32.u64.compose %v910, 2454267026
  %v912 = vextract.low.u32 %v911
  %v913 = vextract.high.u32 %v911
  %vm914 = vc.u32 %v912, 2454267026
  %v915 = vsel %vm914, 1, 0
  %v916 = vadd.s32 %v913, %v915
  %v917 = vshrl.u32 %v916, 6
  %v918 = vmul.u32 %v917, 112
  %v919 = vsub.s32 %v910, %v918
  %v920 = vsub.s32 0, %v919
  %v921 = vsel %vm908, %v920, %v919
  %vm922 = vcmp.lt.s32.totalorder %v343, 0
  %v923 = vsub.s32 0, %v343
  %v924 = vsel %vm922, %v923, %v343
  %v925 = vmul.u32.u64.compose %v924, 2454267026
  %v926 = vextract.low.u32 %v925
  %v927 = vextract.high.u32 %v925
  %vm928 = vc.u32 %v926, 2454267026
  %v929 = vsel %vm928, 1, 0
  %v930 = vadd.s32 %v927, %v929
  %v931 = vshrl.u32 %v930, 6
  %v932 = vmul.u32 %v931, 112
  %v933 = vsub.s32 %v924, %v932
  %v934 = vsub.s32 0, %v933
  %v935 = vsel %vm922, %v934, %v933
  %vm936 = vcmp.lt.s32.totalorder %v344, 0
  %v937 = vsub.s32 0, %v344
  %v938 = vsel %vm936, %v937, %v344
  %v939 = vmul.u32.u64.compose %v938, 2454267026
  %v940 = vextract.low.u32 %v939
  %v941 = vextract.high.u32 %v939
  %vm942 = vc.u32 %v940, 2454267026
  %v943 = vsel %vm942, 1, 0
  %v944 = vadd.s32 %v941, %v943
  %v945 = vshrl.u32 %v944, 6
  %v946 = vmul.u32 %v945, 112
  %v947 = vsub.s32 %v938, %v946
  %v948 = vsub.s32 0, %v947
  %v949 = vsel %vm936, %v948, %v947
  %vm950 = vcmp.lt.s32.totalorder %v345, 0
  %v951 = vsub.s32 0, %v345
  %v952 = vsel %vm950, %v951, %v345
  %v953 = vmul.u32.u64.compose %v952, 2454267026
  %v954 = vextract.low.u32 %v953
  %v955 = vextract.high.u32 %v953
  %vm956 = vc.u32 %v954, 2454267026
  %v957 = vsel %vm956, 1, 0
  %v958 = vadd.s32 %v955, %v957
  %v959 = vshrl.u32 %v958, 6
  %v960 = vmul.u32 %v959, 112
  %v961 = vsub.s32 %v952, %v960
  %v962 = vsub.s32 0, %v961
  %v963 = vsel %vm950, %v962, %v961
  %vm964 = vcmp.lt.s32.totalorder %v346, 0
  %v965 = vsub.s32 0, %v346
  %v966 = vsel %vm964, %v965, %v346
  %v967 = vmul.u32.u64.compose %v966, 2454267026
  %v968 = vextract.low.u32 %v967
  %v969 = vextract.high.u32 %v967
  %vm970 = vc.u32 %v968, 2454267026
  %v971 = vsel %vm970, 1, 0
  %v972 = vadd.s32 %v969, %v971
  %v973 = vshrl.u32 %v972, 6
  %v974 = vmul.u32 %v973, 112
  %v975 = vsub.s32 %v966, %v974
  %v976 = vsub.s32 0, %v975
  %v977 = vsel %vm964, %v976, %v975
  %vm978 = vcmp.lt.s32.totalorder %v347, 0
  %v979 = vsub.s32 0, %v347
  %v980 = vsel %vm978, %v979, %v347
  %v981 = vmul.u32.u64.compose %v980, 2454267026
  %v982 = vextract.low.u32 %v981
  %v983 = vextract.high.u32 %v981
  %vm984 = vc.u32 %v982, 2454267026
  %v985 = vsel %vm984, 1, 0
  %v986 = vadd.s32 %v983, %v985
  %v987 = vshrl.u32 %v986, 6
  %v988 = vmul.u32 %v987, 112
  %v989 = vsub.s32 %v980, %v988
  %v990 = vsub.s32 0, %v989
  %v991 = vsel %vm978, %v990, %v989
  %vm992 = vcmp.lt.s32.totalorder %v348, 0
  %v993 = vsub.s32 0, %v348
  %v994 = vsel %vm992, %v993, %v348
  %v995 = vmul.u32.u64.compose %v994, 2454267026
  %v996 = vextract.low.u32 %v995
  %v997 = vextract.high.u32 %v995
  %vm998 = vc.u32 %v996, 2454267026
  %v999 = vsel %vm998, 1, 0
  %v1000 = vadd.s32 %v997, %v999
  %v1001 = vshrl.u32 %v1000, 6
  %v1002 = vmul.u32 %v1001, 112
  %v1003 = vsub.s32 %v994, %v1002
  %v1004 = vsub.s32 0, %v1003
  %v1005 = vsel %vm992, %v1004, %v1003
  %vm1006 = vcmp.lt.s32.totalorder %v349, 0
  %v1007 = vsub.s32 0, %v349
  %v1008 = vsel %vm1006, %v1007, %v349
  %v1009 = vmul.u32.u64.compose %v1008, 2454267026
  %v1010 = vextract.low.u32 %v1009
  %v1011 = vextract.high.u32 %v1009
  %vm1012 = vc.u32 %v1010, 2454267026
  %v1013 = vsel %vm1012, 1, 0
  %v1014 = vadd.s32 %v1011, %v1013
  %v1015 = vshrl.u32 %v1014, 6
  %v1016 = vmul.u32 %v1015, 112
  %v1017 = vsub.s32 %v1008, %v1016
  %v1018 = vsub.s32 0, %v1017
  %v1019 = vsel %vm1006, %v1018, %v1017
  %vm1020 = vcmp.lt.s32.totalorder %v350, 0
  %v1021 = vsub.s32 0, %v350
  %v1022 = vsel %vm1020, %v1021, %v350
  %v1023 = vmul.u32.u64.compose %v1022, 2454267026
  %v1024 = vextract.low.u32 %v1023
  %v1025 = vextract.high.u32 %v1023
  %vm1026 = vc.u32 %v1024, 2454267026
  %v1027 = vsel %vm1026, 1, 0
  %v1028 = vadd.s32 %v1025, %v1027
  %v1029 = vshrl.u32 %v1028, 6
  %v1030 = vmul.u32 %v1029, 112
  %v1031 = vsub.s32 %v1022, %v1030
  %v1032 = vsub.s32 0, %v1031
  %v1033 = vsel %vm1020, %v1032, %v1031
  %vm1034 = vcmp.lt.s32.totalorder %v351, 0
  %v1035 = vsub.s32 0, %v351
  %v1036 = vsel %vm1034, %v1035, %v351
  %v1037 = vmul.u32.u64.compose %v1036, 2454267026
  %v1038 = vextract.low.u32 %v1037
  %v1039 = vextract.high.u32 %v1037
  %vm1040 = vc.u32 %v1038, 2454267026
  %v1041 = vsel %vm1040, 1, 0
  %v1042 = vadd.s32 %v1039, %v1041
  %v1043 = vshrl.u32 %v1042, 6
  %v1044 = vmul.u32 %v1043, 112
  %v1045 = vsub.s32 %v1036, %v1044
  %v1046 = vsub.s32 0, %v1045
  %v1047 = vsel %vm1034, %v1046, %v1045
  %vm1048 = vcmp.lt.s32.totalorder %v352, 0
  %v1049 = vsub.s32 0, %v352
  %v1050 = vsel %vm1048, %v1049, %v352
  %v1051 = vmul.u32.u64.compose %v1050, 2454267026
  %v1052 = vextract.low.u32 %v1051
  %v1053 = vextract.high.u32 %v1051
  %vm1054 = vc.u32 %v1052, 2454267026
  %v1055 = vsel %vm1054, 1, 0
  %v1056 = vadd.s32 %v1053, %v1055
  %v1057 = vshrl.u32 %v1056, 6
  %v1058 = vmul.u32 %v1057, 112
  %v1059 = vsub.s32 %v1050, %v1058
  %v1060 = vsub.s32 0, %v1059
  %v1061 = vsel %vm1048, %v1060, %v1059
  %vm1062 = vcmp.lt.s32.totalorder %v353, 0
  %v1063 = vsub.s32 0, %v353
  %v1064 = vsel %vm1062, %v1063, %v353
  %v1065 = vmul.u32.u64.compose %v1064, 2454267026
  %v1066 = vextract.low.u32 %v1065
  %v1067 = vextract.high.u32 %v1065
  %vm1068 = vc.u32 %v1066, 2454267026
  %v1069 = vsel %vm1068, 1, 0
  %v1070 = vadd.s32 %v1067, %v1069
  %v1071 = vshrl.u32 %v1070, 6
  %v1072 = vmul.u32 %v1071, 112
  %v1073 = vsub.s32 %v1064, %v1072
  %v1074 = vsub.s32 0, %v1073
  %v1075 = vsel %vm1062, %v1074, %v1073
  %vm1076 = vcmp.lt.s32.totalorder %v354, 0
  %v1077 = vsub.s32 0, %v354
  %v1078 = vsel %vm1076, %v1077, %v354
  %v1079 = vmul.u32.u64.compose %v1078, 2454267026
  %v1080 = vextract.low.u32 %v1079
  %v1081 = vextract.high.u32 %v1079
  %vm1082 = vc.u32 %v1080, 2454267026
  %v1083 = vsel %vm1082, 1, 0
  %v1084 = vadd.s32 %v1081, %v1083
  %v1085 = vshrl.u32 %v1084, 6
  %v1086 = vmul.u32 %v1085, 112
  %v1087 = vsub.s32 %v1078, %v1086
  %v1088 = vsub.s32 0, %v1087
  %v1089 = vsel %vm1076, %v1088, %v1087
  %vm1090 = vcmp.lt.s32.totalorder %v355, 0
  %v1091 = vsub.s32 0, %v355
  %v1092 = vsel %vm1090, %v1091, %v355
  %v1093 = vmul.u32.u64.compose %v1092, 2454267026
  %v1094 = vextract.low.u32 %v1093
  %v1095 = vextract.high.u32 %v1093
  %vm1096 = vc.u32 %v1094, 2454267026
  %v1097 = vsel %vm1096, 1, 0
  %v1098 = vadd.s32 %v1095, %v1097
  %v1099 = vshrl.u32 %v1098, 6
  %v1100 = vmul.u32 %v1099, 112
  %v1101 = vsub.s32 %v1092, %v1100
  %v1102 = vsub.s32 0, %v1101
  %v1103 = vsel %vm1090, %v1102, %v1101
  %vm1104 = vcmp.lt.s32.totalorder %v356, 0
  %v1105 = vsub.s32 0, %v356
  %v1106 = vsel %vm1104, %v1105, %v356
  %v1107 = vmul.u32.u64.compose %v1106, 2454267026
  %v1108 = vextract.low.u32 %v1107
  %v1109 = vextract.high.u32 %v1107
  %vm1110 = vc.u32 %v1108, 2454267026
  %v1111 = vsel %vm1110, 1, 0
  %v1112 = vadd.s32 %v1109, %v1111
  %v1113 = vshrl.u32 %v1112, 6
  %v1114 = vmul.u32 %v1113, 112
  %v1115 = vsub.s32 %v1106, %v1114
  %v1116 = vsub.s32 0, %v1115
  %v1117 = vsel %vm1104, %v1116, %v1115
  %vm1118 = vcmp.lt.s32.totalorder %v357, 0
  %v1119 = vsub.s32 0, %v357
  %v1120 = vsel %vm1118, %v1119, %v357
  %v1121 = vmul.u32.u64.compose %v1120, 2454267026
  %v1122 = vextract.low.u32 %v1121
  %v1123 = vextract.high.u32 %v1121
  %vm1124 = vc.u32 %v1122, 2454267026
  %v1125 = vsel %vm1124, 1, 0
  %v1126 = vadd.s32 %v1123, %v1125
  %v1127 = vshrl.u32 %v1126, 6
  %v1128 = vmul.u32 %v1127, 112
  %v1129 = vsub.s32 %v1120, %v1128
  %v1130 = vsub.s32 0, %v1129
  %v1131 = vsel %vm1118, %v1130, %v1129
  %vm1132 = vcmp.lt.s32.totalorder %v358, 0
  %v1133 = vsub.s32 0, %v358
  %v1134 = vsel %vm1132, %v1133, %v358
  %v1135 = vmul.u32.u64.compose %v1134, 2454267026
  %v1136 = vextract.low.u32 %v1135
  %v1137 = vextract.high.u32 %v1135
  %vm1138 = vc.u32 %v1136, 2454267026
  %v1139 = vsel %vm1138, 1, 0
  %v1140 = vadd.s32 %v1137, %v1139
  %v1141 = vshrl.u32 %v1140, 6
  %v1142 = vmul.u32 %v1141, 112
  %v1143 = vsub.s32 %v1134, %v1142
  %v1144 = vsub.s32 0, %v1143
  %v1145 = vsel %vm1132, %v1144, %v1143
  %vm1146 = vcmp.lt.s32.totalorder %v359, 0
  %v1147 = vsub.s32 0, %v359
  %v1148 = vsel %vm1146, %v1147, %v359
  %v1149 = vmul.u32.u64.compose %v1148, 2454267026
  %v1150 = vextract.low.u32 %v1149
  %v1151 = vextract.high.u32 %v1149
  %vm1152 = vc.u32 %v1150, 2454267026
  %v1153 = vsel %vm1152, 1, 0
  %v1154 = vadd.s32 %v1151, %v1153
  %v1155 = vshrl.u32 %v1154, 6
  %v1156 = vmul.u32 %v1155, 112
  %v1157 = vsub.s32 %v1148, %v1156
  %v1158 = vsub.s32 0, %v1157
  %v1159 = vsel %vm1146, %v1158, %v1157
  %vm1160 = vcmp.lt.s32.totalorder %v360, 0
  %v1161 = vsub.s32 0, %v360
  %v1162 = vsel %vm1160, %v1161, %v360
  %v1163 = vmul.u32.u64.compose %v1162, 2454267026
  %v1164 = vextract.low.u32 %v1163
  %v1165 = vextract.high.u32 %v1163
  %vm1166 = vc.u32 %v1164, 2454267026
  %v1167 = vsel %vm1166, 1, 0
  %v1168 = vadd.s32 %v1165, %v1167
  %v1169 = vshrl.u32 %v1168, 6
  %v1170 = vmul.u32 %v1169, 112
  %v1171 = vsub.s32 %v1162, %v1170
  %v1172 = vsub.s32 0, %v1171
  %v1173 = vsel %vm1160, %v1172, %v1171
  %vm1174 = vcmp.lt.s32.totalorder %v361, 0
  %v1175 = vsub.s32 0, %v361
  %v1176 = vsel %vm1174, %v1175, %v361
  %v1177 = vmul.u32.u64.compose %v1176, 2454267026
  %v1178 = vextract.low.u32 %v1177
  %v1179 = vextract.high.u32 %v1177
  %vm1180 = vc.u32 %v1178, 2454267026
  %v1181 = vsel %vm1180, 1, 0
  %v1182 = vadd.s32 %v1179, %v1181
  %v1183 = vshrl.u32 %v1182, 6
  %v1184 = vmul.u32 %v1183, 112
  %v1185 = vsub.s32 %v1176, %v1184
  %v1186 = vsub.s32 0, %v1185
  %v1187 = vsel %vm1174, %v1186, %v1185
  %vm1188 = vcmp.lt.s32.totalorder %v362, 0
  %v1189 = vsub.s32 0, %v362
  %v1190 = vsel %vm1188, %v1189, %v362
  %v1191 = vmul.u32.u64.compose %v1190, 2454267026
  %v1192 = vextract.low.u32 %v1191
  %v1193 = vextract.high.u32 %v1191
  %vm1194 = vc.u32 %v1192, 2454267026
  %v1195 = vsel %vm1194, 1, 0
  %v1196 = vadd.s32 %v1193, %v1195
  %v1197 = vshrl.u32 %v1196, 6
  %v1198 = vmul.u32 %v1197, 112
  %v1199 = vsub.s32 %v1190, %v1198
  %v1200 = vsub.s32 0, %v1199
  %v1201 = vsel %vm1188, %v1200, %v1199
  %vm1202 = vcmp.lt.s32.totalorder %v363, 0
  %v1203 = vsub.s32 0, %v363
  %v1204 = vsel %vm1202, %v1203, %v363
  %v1205 = vmul.u32.u64.compose %v1204, 2454267026
  %v1206 = vextract.low.u32 %v1205
  %v1207 = vextract.high.u32 %v1205
  %vm1208 = vc.u32 %v1206, 2454267026
  %v1209 = vsel %vm1208, 1, 0
  %v1210 = vadd.s32 %v1207, %v1209
  %v1211 = vshrl.u32 %v1210, 6
  %v1212 = vmul.u32 %v1211, 112
  %v1213 = vsub.s32 %v1204, %v1212
  %v1214 = vsub.s32 0, %v1213
  %v1215 = vsel %vm1202, %v1214, %v1213
  %vm1216 = vcmp.lt.s32.totalorder %v364, 0
  %v1217 = vsub.s32 0, %v364
  %v1218 = vsel %vm1216, %v1217, %v364
  %v1219 = vmul.u32.u64.compose %v1218, 2454267026
  %v1220 = vextract.low.u32 %v1219
  %v1221 = vextract.high.u32 %v1219
  %vm1222 = vc.u32 %v1220, 2454267026
  %v1223 = vsel %vm1222, 1, 0
  %v1224 = vadd.s32 %v1221, %v1223
  %v1225 = vshrl.u32 %v1224, 6
  %v1226 = vmul.u32 %v1225, 112
  %v1227 = vsub.s32 %v1218, %v1226
  %v1228 = vsub.s32 0, %v1227
  %v1229 = vsel %vm1216, %v1228, %v1227
  %vm1230 = vcmp.lt.s32.totalorder %v365, 0
  %v1231 = vsub.s32 0, %v365
  %v1232 = vsel %vm1230, %v1231, %v365
  %v1233 = vmul.u32.u64.compose %v1232, 2454267026
  %v1234 = vextract.low.u32 %v1233
  %v1235 = vextract.high.u32 %v1233
  %vm1236 = vc.u32 %v1234, 2454267026
  %v1237 = vsel %vm1236, 1, 0
  %v1238 = vadd.s32 %v1235, %v1237
  %v1239 = vshrl.u32 %v1238, 6
  %v1240 = vmul.u32 %v1239, 112
  %v1241 = vsub.s32 %v1232, %v1240
  %v1242 = vsub.s32 0, %v1241
  %v1243 = vsel %vm1230, %v1242, %v1241
  %vm1244 = vcmp.lt.s32.totalorder %v366, 0
  %v1245 = vsub.s32 0, %v366
  %v1246 = vsel %vm1244, %v1245, %v366
  %v1247 = vmul.u32.u64.compose %v1246, 2454267026
  %v1248 = vextract.low.u32 %v1247
  %v1249 = vextract.high.u32 %v1247
  %vm1250 = vc.u32 %v1248, 2454267026
  %v1251 = vsel %vm1250, 1, 0
  %v1252 = vadd.s32 %v1249, %v1251
  %v1253 = vshrl.u32 %v1252, 6
  %v1254 = vmul.u32 %v1253, 112
  %v1255 = vsub.s32 %v1246, %v1254
  %v1256 = vsub.s32 0, %v1255
  %v1257 = vsel %vm1244, %v1256, %v1255
  %vm1258 = vcmp.lt.s32.totalorder %v367, 0
  %v1259 = vsub.s32 0, %v367
  %v1260 = vsel %vm1258, %v1259, %v367
  %v1261 = vmul.u32.u64.compose %v1260, 2454267026
  %v1262 = vextract.low.u32 %v1261
  %v1263 = vextract.high.u32 %v1261
  %vm1264 = vc.u32 %v1262, 2454267026
  %v1265 = vsel %vm1264, 1, 0
  %v1266 = vadd.s32 %v1263, %v1265
  %v1267 = vshrl.u32 %v1266, 6
  %v1268 = vmul.u32 %v1267, 112
  %v1269 = vsub.s32 %v1260, %v1268
  %v1270 = vsub.s32 0, %v1269
  %v1271 = vsel %vm1258, %v1270, %v1269
  %vm1272 = vcmp.lt.s32.totalorder %v368, 0
  %v1273 = vsub.s32 0, %v368
  %v1274 = vsel %vm1272, %v1273, %v368
  %v1275 = vmul.u32.u64.compose %v1274, 2454267026
  %v1276 = vextract.low.u32 %v1275
  %v1277 = vextract.high.u32 %v1275
  %vm1278 = vc.u32 %v1276, 2454267026
  %v1279 = vsel %vm1278, 1, 0
  %v1280 = vadd.s32 %v1277, %v1279
  %v1281 = vshrl.u32 %v1280, 6
  %v1282 = vmul.u32 %v1281, 112
  %v1283 = vsub.s32 %v1274, %v1282
  %v1284 = vsub.s32 0, %v1283
  %v1285 = vsel %vm1272, %v1284, %v1283
  %vm1286 = vcmp.lt.s32.totalorder %v369, 0
  %v1287 = vsub.s32 0, %v369
  %v1288 = vsel %vm1286, %v1287, %v369
  %v1289 = vmul.u32.u64.compose %v1288, 2454267026
  %v1290 = vextract.low.u32 %v1289
  %v1291 = vextract.high.u32 %v1289
  %vm1292 = vc.u32 %v1290, 2454267026
  %v1293 = vsel %vm1292, 1, 0
  %v1294 = vadd.s32 %v1291, %v1293
  %v1295 = vshrl.u32 %v1294, 6
  %v1296 = vmul.u32 %v1295, 112
  %v1297 = vsub.s32 %v1288, %v1296
  %v1298 = vsub.s32 0, %v1297
  %v1299 = vsel %vm1286, %v1298, %v1297
  %vm1300 = vcmp.lt.s32.totalorder %v370, 0
  %v1301 = vsub.s32 0, %v370
  %v1302 = vsel %vm1300, %v1301, %v370
  %v1303 = vmul.u32.u64.compose %v1302, 2454267026
  %v1304 = vextract.low.u32 %v1303
  %v1305 = vextract.high.u32 %v1303
  %vm1306 = vc.u32 %v1304, 2454267026
  %v1307 = vsel %vm1306, 1, 0
  %v1308 = vadd.s32 %v1305, %v1307
  %v1309 = vshrl.u32 %v1308, 6
  %v1310 = vmul.u32 %v1309, 112
  %v1311 = vsub.s32 %v1302, %v1310
  %v1312 = vsub.s32 0, %v1311
  %v1313 = vsel %vm1300, %v1312, %v1311
  %vm1314 = vcmp.lt.s32.totalorder %v371, 0
  %v1315 = vsub.s32 0, %v371
  %v1316 = vsel %vm1314, %v1315, %v371
  %v1317 = vmul.u32.u64.compose %v1316, 2454267026
  %v1318 = vextract.low.u32 %v1317
  %v1319 = vextract.high.u32 %v1317
  %vm1320 = vc.u32 %v1318, 2454267026
  %v1321 = vsel %vm1320, 1, 0
  %v1322 = vadd.s32 %v1319, %v1321
  %v1323 = vshrl.u32 %v1322, 6
  %v1324 = vmul.u32 %v1323, 112
  %v1325 = vsub.s32 %v1316, %v1324
  %v1326 = vsub.s32 0, %v1325
  %v1327 = vsel %vm1314, %v1326, %v1325
  %vm1328 = vcmp.lt.s32.totalorder %v372, 0
  %v1329 = vsub.s32 0, %v372
  %v1330 = vsel %vm1328, %v1329, %v372
  %v1331 = vmul.u32.u64.compose %v1330, 2454267026
  %v1332 = vextract.low.u32 %v1331
  %v1333 = vextract.high.u32 %v1331
  %vm1334 = vc.u32 %v1332, 2454267026
  %v1335 = vsel %vm1334, 1, 0
  %v1336 = vadd.s32 %v1333, %v1335
  %v1337 = vshrl.u32 %v1336, 6
  %v1338 = vmul.u32 %v1337, 112
  %v1339 = vsub.s32 %v1330, %v1338
  %v1340 = vsub.s32 0, %v1339
  %v1341 = vsel %vm1328, %v1340, %v1339
  %vm1342 = vcmp.lt.s32.totalorder %v373, 0
  %v1343 = vsub.s32 0, %v373
  %v1344 = vsel %vm1342, %v1343, %v373
  %v1345 = vmul.u32.u64.compose %v1344, 2454267026
  %v1346 = vextract.low.u32 %v1345
  %v1347 = vextract.high.u32 %v1345
  %vm1348 = vc.u32 %v1346, 2454267026
  %v1349 = vsel %vm1348, 1, 0
  %v1350 = vadd.s32 %v1347, %v1349
  %v1351 = vshrl.u32 %v1350, 6
  %v1352 = vmul.u32 %v1351, 112
  %v1353 = vsub.s32 %v1344, %v1352
  %v1354 = vsub.s32 0, %v1353
  %v1355 = vsel %vm1342, %v1354, %v1353
  %vm1356 = vcmp.lt.s32.totalorder %v374, 0
  %v1357 = vsub.s32 0, %v374
  %v1358 = vsel %vm1356, %v1357, %v374
  %v1359 = vmul.u32.u64.compose %v1358, 2454267026
  %v1360 = vextract.low.u32 %v1359
  %v1361 = vextract.high.u32 %v1359
  %vm1362 = vc.u32 %v1360, 2454267026
  %v1363 = vsel %vm1362, 1, 0
  %v1364 = vadd.s32 %v1361, %v1363
  %v1365 = vshrl.u32 %v1364, 6
  %v1366 = vmul.u32 %v1365, 112
  %v1367 = vsub.s32 %v1358, %v1366
  %v1368 = vsub.s32 0, %v1367
  %v1369 = vsel %vm1356, %v1368, %v1367
  %vm1370 = vcmp.lt.s32.totalorder %v375, 0
  %v1371 = vsub.s32 0, %v375
  %v1372 = vsel %vm1370, %v1371, %v375
  %v1373 = vmul.u32.u64.compose %v1372, 2454267026
  %v1374 = vextract.low.u32 %v1373
  %v1375 = vextract.high.u32 %v1373
  %vm1376 = vc.u32 %v1374, 2454267026
  %v1377 = vsel %vm1376, 1, 0
  %v1378 = vadd.s32 %v1375, %v1377
  %v1379 = vshrl.u32 %v1378, 6
  %v1380 = vmul.u32 %v1379, 112
  %v1381 = vsub.s32 %v1372, %v1380
  %v1382 = vsub.s32 0, %v1381
  %v1383 = vsel %vm1370, %v1382, %v1381
  %vm1384 = vcmp.lt.s32.totalorder %v376, 0
  %v1385 = vsub.s32 0, %v376
  %v1386 = vsel %vm1384, %v1385, %v376
  %v1387 = vmul.u32.u64.compose %v1386, 2454267026
  %v1388 = vextract.low.u32 %v1387
  %v1389 = vextract.high.u32 %v1387
  %vm1390 = vc.u32 %v1388, 2454267026
  %v1391 = vsel %vm1390, 1, 0
  %v1392 = vadd.s32 %v1389, %v1391
  %v1393 = vshrl.u32 %v1392, 6
  %v1394 = vmul.u32 %v1393, 112
  %v1395 = vsub.s32 %v1386, %v1394
  %v1396 = vsub.s32 0, %v1395
  %v1397 = vsel %vm1384, %v1396, %v1395
  %vm1398 = vcmp.lt.s32.totalorder %v377, 0
  %v1399 = vsub.s32 0, %v377
  %v1400 = vsel %vm1398, %v1399, %v377
  %v1401 = vmul.u32.u64.compose %v1400, 2454267026
  %v1402 = vextract.low.u32 %v1401
  %v1403 = vextract.high.u32 %v1401
  %vm1404 = vc.u32 %v1402, 2454267026
  %v1405 = vsel %vm1404, 1, 0
  %v1406 = vadd.s32 %v1403, %v1405
  %v1407 = vshrl.u32 %v1406, 6
  %v1408 = vmul.u32 %v1407, 112
  %v1409 = vsub.s32 %v1400, %v1408
  %v1410 = vsub.s32 0, %v1409
  %v1411 = vsel %vm1398, %v1410, %v1409
  %vm1412 = vcmp.lt.s32.totalorder %v378, 0
  %v1413 = vsub.s32 0, %v378
  %v1414 = vsel %vm1412, %v1413, %v378
  %v1415 = vmul.u32.u64.compose %v1414, 2454267026
  %v1416 = vextract.low.u32 %v1415
  %v1417 = vextract.high.u32 %v1415
  %vm1418 = vc.u32 %v1416, 2454267026
  %v1419 = vsel %vm1418, 1, 0
  %v1420 = vadd.s32 %v1417, %v1419
  %v1421 = vshrl.u32 %v1420, 6
  %v1422 = vmul.u32 %v1421, 112
  %v1423 = vsub.s32 %v1414, %v1422
  %v1424 = vsub.s32 0, %v1423
  %v1425 = vsel %vm1412, %v1424, %v1423
  %vm1426 = vcmp.lt.s32.totalorder %v379, 0
  %v1427 = vsub.s32 0, %v379
  %v1428 = vsel %vm1426, %v1427, %v379
  %v1429 = vmul.u32.u64.compose %v1428, 2454267026
  %v1430 = vextract.low.u32 %v1429
  %v1431 = vextract.high.u32 %v1429
  %vm1432 = vc.u32 %v1430, 2454267026
  %v1433 = vsel %vm1432, 1, 0
  %v1434 = vadd.s32 %v1431, %v1433
  %v1435 = vshrl.u32 %v1434, 6
  %v1436 = vmul.u32 %v1435, 112
  %v1437 = vsub.s32 %v1428, %v1436
  %v1438 = vsub.s32 0, %v1437
  %v1439 = vsel %vm1426, %v1438, %v1437
  %vm1440 = vcmp.lt.s32.totalorder %v380, 0
  %v1441 = vsub.s32 0, %v380
  %v1442 = vsel %vm1440, %v1441, %v380
  %v1443 = vmul.u32.u64.compose %v1442, 2454267026
  %v1444 = vextract.low.u32 %v1443
  %v1445 = vextract.high.u32 %v1443
  %vm1446 = vc.u32 %v1444, 2454267026
  %v1447 = vsel %vm1446, 1, 0
  %v1448 = vadd.s32 %v1445, %v1447
  %v1449 = vshrl.u32 %v1448, 6
  %v1450 = vmul.u32 %v1449, 112
  %v1451 = vsub.s32 %v1442, %v1450
  %v1452 = vsub.s32 0, %v1451
  %v1453 = vsel %vm1440, %v1452, %v1451
  %vm1454 = vcmp.lt.s32.totalorder %v381, 0
  %v1455 = vsub.s32 0, %v381
  %v1456 = vsel %vm1454, %v1455, %v381
  %v1457 = vmul.u32.u64.compose %v1456, 2454267026
  %v1458 = vextract.low.u32 %v1457
  %v1459 = vextract.high.u32 %v1457
  %vm1460 = vc.u32 %v1458, 2454267026
  %v1461 = vsel %vm1460, 1, 0
  %v1462 = vadd.s32 %v1459, %v1461
  %v1463 = vshrl.u32 %v1462, 6
  %v1464 = vmul.u32 %v1463, 112
  %v1465 = vsub.s32 %v1456, %v1464
  %v1466 = vsub.s32 0, %v1465
  %v1467 = vsel %vm1454, %v1466, %v1465
  %vm1468 = vcmp.lt.s32.totalorder %v382, 0
  %v1469 = vsub.s32 0, %v382
  %v1470 = vsel %vm1468, %v1469, %v382
  %v1471 = vmul.u32.u64.compose %v1470, 2454267026
  %v1472 = vextract.low.u32 %v1471
  %v1473 = vextract.high.u32 %v1471
  %vm1474 = vc.u32 %v1472, 2454267026
  %v1475 = vsel %vm1474, 1, 0
  %v1476 = vadd.s32 %v1473, %v1475
  %v1477 = vshrl.u32 %v1476, 6
  %v1478 = vmul.u32 %v1477, 112
  %v1479 = vsub.s32 %v1470, %v1478
  %v1480 = vsub.s32 0, %v1479
  %v1481 = vsel %vm1468, %v1480, %v1479
  %vm1482 = vcmp.lt.s32.totalorder %v383, 0
  %v1483 = vsub.s32 0, %v383
  %v1484 = vsel %vm1482, %v1483, %v383
  %v1485 = vmul.u32.u64.compose %v1484, 2454267026
  %v1486 = vextract.low.u32 %v1485
  %v1487 = vextract.high.u32 %v1485
  %vm1488 = vc.u32 %v1486, 2454267026
  %v1489 = vsel %vm1488, 1, 0
  %v1490 = vadd.s32 %v1487, %v1489
  %v1491 = vshrl.u32 %v1490, 6
  %v1492 = vmul.u32 %v1491, 112
  %v1493 = vsub.s32 %v1484, %v1492
  %v1494 = vsub.s32 0, %v1493
  %v1495 = vsel %vm1482, %v1494, %v1493
  %vm1496 = vcmp.lt.s32.totalorder %v384, 0
  %v1497 = vsub.s32 0, %v384
  %v1498 = vsel %vm1496, %v1497, %v384
  %v1499 = vmul.u32.u64.compose %v1498, 2454267026
  %v1500 = vextract.low.u32 %v1499
  %v1501 = vextract.high.u32 %v1499
  %vm1502 = vc.u32 %v1500, 2454267026
  %v1503 = vsel %vm1502, 1, 0
  %v1504 = vadd.s32 %v1501, %v1503
  %v1505 = vshrl.u32 %v1504, 6
  %v1506 = vmul.u32 %v1505, 112
  %v1507 = vsub.s32 %v1498, %v1506
  %v1508 = vsub.s32 0, %v1507
  %v1509 = vsel %vm1496, %v1508, %v1507
  %vm1510 = vcmp.lt.s32.totalorder %v385, 0
  %v1511 = vsub.s32 0, %v385
  %v1512 = vsel %vm1510, %v1511, %v385
  %v1513 = vmul.u32.u64.compose %v1512, 2454267026
  %v1514 = vextract.low.u32 %v1513
  %v1515 = vextract.high.u32 %v1513
  %vm1516 = vc.u32 %v1514, 2454267026
  %v1517 = vsel %vm1516, 1, 0
  %v1518 = vadd.s32 %v1515, %v1517
  %v1519 = vshrl.u32 %v1518, 6
  %v1520 = vmul.u32 %v1519, 112
  %v1521 = vsub.s32 %v1512, %v1520
  %v1522 = vsub.s32 0, %v1521
  %v1523 = vsel %vm1510, %v1522, %v1521
  %vm1524 = vcmp.lt.s32.totalorder %v386, 0
  %v1525 = vsub.s32 0, %v386
  %v1526 = vsel %vm1524, %v1525, %v386
  %v1527 = vmul.u32.u64.compose %v1526, 2454267026
  %v1528 = vextract.low.u32 %v1527
  %v1529 = vextract.high.u32 %v1527
  %vm1530 = vc.u32 %v1528, 2454267026
  %v1531 = vsel %vm1530, 1, 0
  %v1532 = vadd.s32 %v1529, %v1531
  %v1533 = vshrl.u32 %v1532, 6
  %v1534 = vmul.u32 %v1533, 112
  %v1535 = vsub.s32 %v1526, %v1534
  %v1536 = vsub.s32 0, %v1535
  %v1537 = vsel %vm1524, %v1536, %v1535
  %vm1538 = vcmp.lt.s32.totalorder %v387, 0
  %v1539 = vsub.s32 0, %v387
  %v1540 = vsel %vm1538, %v1539, %v387
  %v1541 = vmul.u32.u64.compose %v1540, 2454267026
  %v1542 = vextract.low.u32 %v1541
  %v1543 = vextract.high.u32 %v1541
  %vm1544 = vc.u32 %v1542, 2454267026
  %v1545 = vsel %vm1544, 1, 0
  %v1546 = vadd.s32 %v1543, %v1545
  %v1547 = vshrl.u32 %v1546, 6
  %v1548 = vmul.u32 %v1547, 112
  %v1549 = vsub.s32 %v1540, %v1548
  %v1550 = vsub.s32 0, %v1549
  %v1551 = vsel %vm1538, %v1550, %v1549
  %vm1552 = vcmp.lt.s32.totalorder %v388, 0
  %v1553 = vsub.s32 0, %v388
  %v1554 = vsel %vm1552, %v1553, %v388
  %v1555 = vmul.u32.u64.compose %v1554, 2454267026
  %v1556 = vextract.low.u32 %v1555
  %v1557 = vextract.high.u32 %v1555
  %vm1558 = vc.u32 %v1556, 2454267026
  %v1559 = vsel %vm1558, 1, 0
  %v1560 = vadd.s32 %v1557, %v1559
  %v1561 = vshrl.u32 %v1560, 6
  %v1562 = vmul.u32 %v1561, 112
  %v1563 = vsub.s32 %v1554, %v1562
  %v1564 = vsub.s32 0, %v1563
  %v1565 = vsel %vm1552, %v1564, %v1563
  %vm1566 = vcmp.lt.s32.totalorder %v389, 0
  %v1567 = vsub.s32 0, %v389
  %v1568 = vsel %vm1566, %v1567, %v389
  %v1569 = vmul.u32.u64.compose %v1568, 2454267026
  %v1570 = vextract.low.u32 %v1569
  %v1571 = vextract.high.u32 %v1569
  %vm1572 = vc.u32 %v1570, 2454267026
  %v1573 = vsel %vm1572, 1, 0
  %v1574 = vadd.s32 %v1571, %v1573
  %v1575 = vshrl.u32 %v1574, 6
  %v1576 = vmul.u32 %v1575, 112
  %v1577 = vsub.s32 %v1568, %v1576
  %v1578 = vsub.s32 0, %v1577
  %v1579 = vsel %vm1566, %v1578, %v1577
  %vm1580 = vcmp.lt.s32.totalorder %v390, 0
  %v1581 = vsub.s32 0, %v390
  %v1582 = vsel %vm1580, %v1581, %v390
  %v1583 = vmul.u32.u64.compose %v1582, 2454267026
  %v1584 = vextract.low.u32 %v1583
  %v1585 = vextract.high.u32 %v1583
  %vm1586 = vc.u32 %v1584, 2454267026
  %v1587 = vsel %vm1586, 1, 0
  %v1588 = vadd.s32 %v1585, %v1587
  %v1589 = vshrl.u32 %v1588, 6
  %v1590 = vmul.u32 %v1589, 112
  %v1591 = vsub.s32 %v1582, %v1590
  %v1592 = vsub.s32 0, %v1591
  %v1593 = vsel %vm1580, %v1592, %v1591
  %vm1594 = vcmp.lt.s32.totalorder %v391, 0
  %v1595 = vsub.s32 0, %v391
  %v1596 = vsel %vm1594, %v1595, %v391
  %v1597 = vmul.u32.u64.compose %v1596, 2454267026
  %v1598 = vextract.low.u32 %v1597
  %v1599 = vextract.high.u32 %v1597
  %vm1600 = vc.u32 %v1598, 2454267026
  %v1601 = vsel %vm1600, 1, 0
  %v1602 = vadd.s32 %v1599, %v1601
  %v1603 = vshrl.u32 %v1602, 6
  %v1604 = vmul.u32 %v1603, 112
  %v1605 = vsub.s32 %v1596, %v1604
  %v1606 = vsub.s32 0, %v1605
  %v1607 = vsel %vm1594, %v1606, %v1605
  %vm1608 = vcmp.lt.s32.totalorder %v392, 0
  %v1609 = vsub.s32 0, %v392
  %v1610 = vsel %vm1608, %v1609, %v392
  %v1611 = vmul.u32.u64.compose %v1610, 2454267026
  %v1612 = vextract.low.u32 %v1611
  %v1613 = vextract.high.u32 %v1611
  %vm1614 = vc.u32 %v1612, 2454267026
  %v1615 = vsel %vm1614, 1, 0
  %v1616 = vadd.s32 %v1613, %v1615
  %v1617 = vshrl.u32 %v1616, 6
  %v1618 = vmul.u32 %v1617, 112
  %v1619 = vsub.s32 %v1610, %v1618
  %v1620 = vsub.s32 0, %v1619
  %v1621 = vsel %vm1608, %v1620, %v1619
  %vm1622 = vcmp.lt.s32.totalorder %v393, 0
  %v1623 = vsub.s32 0, %v393
  %v1624 = vsel %vm1622, %v1623, %v393
  %v1625 = vmul.u32.u64.compose %v1624, 2454267026
  %v1626 = vextract.low.u32 %v1625
  %v1627 = vextract.high.u32 %v1625
  %vm1628 = vc.u32 %v1626, 2454267026
  %v1629 = vsel %vm1628, 1, 0
  %v1630 = vadd.s32 %v1627, %v1629
  %v1631 = vshrl.u32 %v1630, 6
  %v1632 = vmul.u32 %v1631, 112
  %v1633 = vsub.s32 %v1624, %v1632
  %v1634 = vsub.s32 0, %v1633
  %v1635 = vsel %vm1622, %v1634, %v1633
  %vm1636 = vcmp.lt.s32.totalorder %v394, 0
  %v1637 = vsub.s32 0, %v394
  %v1638 = vsel %vm1636, %v1637, %v394
  %v1639 = vmul.u32.u64.compose %v1638, 2454267026
  %v1640 = vextract.low.u32 %v1639
  %v1641 = vextract.high.u32 %v1639
  %vm1642 = vc.u32 %v1640, 2454267026
  %v1643 = vsel %vm1642, 1, 0
  %v1644 = vadd.s32 %v1641, %v1643
  %v1645 = vshrl.u32 %v1644, 6
  %v1646 = vmul.u32 %v1645, 112
  %v1647 = vsub.s32 %v1638, %v1646
  %v1648 = vsub.s32 0, %v1647
  %v1649 = vsel %vm1636, %v1648, %v1647
  %vm1650 = vcmp.lt.s32.totalorder %v395, 0
  %v1651 = vsub.s32 0, %v395
  %v1652 = vsel %vm1650, %v1651, %v395
  %v1653 = vmul.u32.u64.compose %v1652, 2454267026
  %v1654 = vextract.low.u32 %v1653
  %v1655 = vextract.high.u32 %v1653
  %vm1656 = vc.u32 %v1654, 2454267026
  %v1657 = vsel %vm1656, 1, 0
  %v1658 = vadd.s32 %v1655, %v1657
  %v1659 = vshrl.u32 %v1658, 6
  %v1660 = vmul.u32 %v1659, 112
  %v1661 = vsub.s32 %v1652, %v1660
  %v1662 = vsub.s32 0, %v1661
  %v1663 = vsel %vm1650, %v1662, %v1661
  %vm1664 = vcmp.lt.s32.totalorder %v396, 0
  %v1665 = vsub.s32 0, %v396
  %v1666 = vsel %vm1664, %v1665, %v396
  %v1667 = vmul.u32.u64.compose %v1666, 2454267026
  %v1668 = vextract.low.u32 %v1667
  %v1669 = vextract.high.u32 %v1667
  %vm1670 = vc.u32 %v1668, 2454267026
  %v1671 = vsel %vm1670, 1, 0
  %v1672 = vadd.s32 %v1669, %v1671
  %v1673 = vshrl.u32 %v1672, 6
  %v1674 = vmul.u32 %v1673, 112
  %v1675 = vsub.s32 %v1666, %v1674
  %v1676 = vsub.s32 0, %v1675
  %v1677 = vsel %vm1664, %v1676, %v1675
  %vm1678 = vcmp.lt.s32.totalorder %v397, 0
  %v1679 = vsub.s32 0, %v397
  %v1680 = vsel %vm1678, %v1679, %v397
  %v1681 = vmul.u32.u64.compose %v1680, 2454267026
  %v1682 = vextract.low.u32 %v1681
  %v1683 = vextract.high.u32 %v1681
  %vm1684 = vc.u32 %v1682, 2454267026
  %v1685 = vsel %vm1684, 1, 0
  %v1686 = vadd.s32 %v1683, %v1685
  %v1687 = vshrl.u32 %v1686, 6
  %v1688 = vmul.u32 %v1687, 112
  %v1689 = vsub.s32 %v1680, %v1688
  %v1690 = vsub.s32 0, %v1689
  %v1691 = vsel %vm1678, %v1690, %v1689
  %vm1692 = vcmp.lt.s32.totalorder %v398, 0
  %v1693 = vsub.s32 0, %v398
  %v1694 = vsel %vm1692, %v1693, %v398
  %v1695 = vmul.u32.u64.compose %v1694, 2454267026
  %v1696 = vextract.low.u32 %v1695
  %v1697 = vextract.high.u32 %v1695
  %vm1698 = vc.u32 %v1696, 2454267026
  %v1699 = vsel %vm1698, 1, 0
  %v1700 = vadd.s32 %v1697, %v1699
  %v1701 = vshrl.u32 %v1700, 6
  %v1702 = vmul.u32 %v1701, 112
  %v1703 = vsub.s32 %v1694, %v1702
  %v1704 = vsub.s32 0, %v1703
  %v1705 = vsel %vm1692, %v1704, %v1703
  %vm1706 = vcmp.lt.s32.totalorder %v399, 0
  %v1707 = vsub.s32 0, %v399
  %v1708 = vsel %vm1706, %v1707, %v399
  %v1709 = vmul.u32.u64.compose %v1708, 2454267026
  %v1710 = vextract.low.u32 %v1709
  %v1711 = vextract.high.u32 %v1709
  %vm1712 = vc.u32 %v1710, 2454267026
  %v1713 = vsel %vm1712, 1, 0
  %v1714 = vadd.s32 %v1711, %v1713
  %v1715 = vshrl.u32 %v1714, 6
  %v1716 = vmul.u32 %v1715, 112
  %v1717 = vsub.s32 %v1708, %v1716
  %v1718 = vsub.s32 0, %v1717
  %v1719 = vsel %vm1706, %v1718, %v1717
  %vm1720 = vcmp.lt.s32.totalorder %v400, 0
  %v1721 = vsub.s32 0, %v400
  %v1722 = vsel %vm1720, %v1721, %v400
  %v1723 = vmul.u32.u64.compose %v1722, 2454267026
  %v1724 = vextract.low.u32 %v1723
  %v1725 = vextract.high.u32 %v1723
  %vm1726 = vc.u32 %v1724, 2454267026
  %v1727 = vsel %vm1726, 1, 0
  %v1728 = vadd.s32 %v1725, %v1727
  %v1729 = vshrl.u32 %v1728, 6
  %v1730 = vmul.u32 %v1729, 112
  %v1731 = vsub.s32 %v1722, %v1730
  %v1732 = vsub.s32 0, %v1731
  %v1733 = vsel %vm1720, %v1732, %v1731
  %vm1734 = vcmp.lt.s32.totalorder %v401, 0
  %v1735 = vsub.s32 0, %v401
  %v1736 = vsel %vm1734, %v1735, %v401
  %v1737 = vmul.u32.u64.compose %v1736, 2454267026
  %v1738 = vextract.low.u32 %v1737
  %v1739 = vextract.high.u32 %v1737
  %vm1740 = vc.u32 %v1738, 2454267026
  %v1741 = vsel %vm1740, 1, 0
  %v1742 = vadd.s32 %v1739, %v1741
  %v1743 = vshrl.u32 %v1742, 6
  %v1744 = vmul.u32 %v1743, 112
  %v1745 = vsub.s32 %v1736, %v1744
  %v1746 = vsub.s32 0, %v1745
  %v1747 = vsel %vm1734, %v1746, %v1745
  %vm1748 = vcmp.lt.s32.totalorder %v402, 0
  %v1749 = vsub.s32 0, %v402
  %v1750 = vsel %vm1748, %v1749, %v402
  %v1751 = vmul.u32.u64.compose %v1750, 2454267026
  %v1752 = vextract.low.u32 %v1751
  %v1753 = vextract.high.u32 %v1751
  %vm1754 = vc.u32 %v1752, 2454267026
  %v1755 = vsel %vm1754, 1, 0
  %v1756 = vadd.s32 %v1753, %v1755
  %v1757 = vshrl.u32 %v1756, 6
  %v1758 = vmul.u32 %v1757, 112
  %v1759 = vsub.s32 %v1750, %v1758
  %v1760 = vsub.s32 0, %v1759
  %v1761 = vsel %vm1748, %v1760, %v1759
  %vm1762 = vcmp.lt.s32.totalorder %v403, 0
  %v1763 = vsub.s32 0, %v403
  %v1764 = vsel %vm1762, %v1763, %v403
  %v1765 = vmul.u32.u64.compose %v1764, 2454267026
  %v1766 = vextract.low.u32 %v1765
  %v1767 = vextract.high.u32 %v1765
  %vm1768 = vc.u32 %v1766, 2454267026
  %v1769 = vsel %vm1768, 1, 0
  %v1770 = vadd.s32 %v1767, %v1769
  %v1771 = vshrl.u32 %v1770, 6
  %v1772 = vmul.u32 %v1771, 112
  %v1773 = vsub.s32 %v1764, %v1772
  %v1774 = vsub.s32 0, %v1773
  %v1775 = vsel %vm1762, %v1774, %v1773
  %vm1776 = vcmp.ne.s32.totalorder %v417, 0
  %vm1777 = vcmp.ne.s32.totalorder %v431, 0
  %vm1778 = vcmp.ne.s32.totalorder %v445, 0
  %vm1779 = vcmp.ne.s32.totalorder %v459, 0
  %vm1780 = vcmp.ne.s32.totalorder %v473, 0
  %vm1781 = vcmp.ne.s32.totalorder %v487, 0
  %vm1782 = vcmp.ne.s32.totalorder %v501, 0
  %vm1783 = vcmp.ne.s32.totalorder %v515, 0
  %vm1784 = vcmp.ne.s32.totalorder %v529, 0
  %vm1785 = vcmp.ne.s32.totalorder %v543, 0
  %vm1786 = vcmp.ne.s32.totalorder %v557, 0
  %vm1787 = vcmp.ne.s32.totalorder %v571, 0
  %vm1788 = vcmp.ne.s32.totalorder %v585, 0
  %vm1789 = vcmp.ne.s32.totalorder %v599, 0
  %vm1790 = vcmp.ne.s32.totalorder %v613, 0
  %vm1791 = vcmp.ne.s32.totalorder %v627, 0
  %vm1792 = vcmp.ne.s32.totalorder %v641, 0
  %vm1793 = vcmp.ne.s32.totalorder %v655, 0
  %vm1794 = vcmp.ne.s32.totalorder %v669, 0
  %vm1795 = vcmp.ne.s32.totalorder %v683, 0
  %vm1796 = vcmp.ne.s32.totalorder %v697, 0
  %vm1797 = vcmp.ne.s32.totalorder %v711, 0
  %vm1798 = vcmp.ne.s32.totalorder %v725, 0
  %vm1799 = vcmp.ne.s32.totalorder %v739, 0
  %vm1800 = vcmp.ne.s32.totalorder %v753, 0
  %vm1801 = vcmp.ne.s32.totalorder %v767, 0
  %vm1802 = vcmp.ne.s32.totalorder %v781, 0
  %vm1803 = vcmp.ne.s32.totalorder %v795, 0
  %vm1804 = vcmp.ne.s32.totalorder %v809, 0
  %vm1805 = vcmp.ne.s32.totalorder %v823, 0
  %vm1806 = vcmp.ne.s32.totalorder %v837, 0
  %vm1807 = vcmp.ne.s32.totalorder %v851, 0
  %vm1808 = vcmp.ne.s32.totalorder %v865, 0
  %vm1809 = vcmp.ne.s32.totalorder %v879, 0
  %vm1810 = vcmp.ne.s32.totalorder %v893, 0
  %vm1811 = vcmp.ne.s32.totalorder %v907, 0
  %vm1812 = vcmp.ne.s32.totalorder %v921, 0
  %vm1813 = vcmp.ne.s32.totalorder %v935, 0
  %vm1814 = vcmp.ne.s32.totalorder %v949, 0
  %vm1815 = vcmp.ne.s32.totalorder %v963, 0
  %vm1816 = vcmp.ne.s32.totalorder %v977, 0
  %vm1817 = vcmp.ne.s32.totalorder %v991, 0
  %vm1818 = vcmp.ne.s32.totalorder %v1005, 0
  %vm1819 = vcmp.ne.s32.totalorder %v1019, 0
  %vm1820 = vcmp.ne.s32.totalorder %v1033, 0
  %vm1821 = vcmp.ne.s32.totalorder %v1047, 0
  %vm1822 = vcmp.ne.s32.totalorder %v1061, 0
  %vm1823 = vcmp.ne.s32.totalorder %v1075, 0
  %vm1824 = vcmp.ne.s32.totalorder %v1089, 0
  %vm1825 = vcmp.ne.s32.totalorder %v1103, 0
  %vm1826 = vcmp.ne.s32.totalorder %v1117, 0
  %vm1827 = vcmp.ne.s32.totalorder %v1131, 0
  %vm1828 = vcmp.ne.s32.totalorder %v1145, 0
  %vm1829 = vcmp.ne.s32.totalorder %v1159, 0
  %vm1830 = vcmp.ne.s32.totalorder %v1173, 0
  %vm1831 = vcmp.ne.s32.totalorder %v1187, 0
  %vm1832 = vcmp.ne.s32.totalorder %v1201, 0
  %vm1833 = vcmp.ne.s32.totalorder %v1215, 0
  %vm1834 = vcmp.ne.s32.totalorder %v1229, 0
  %vm1835 = vcmp.ne.s32.totalorder %v1243, 0
  %vm1836 = vcmp.ne.s32.totalorder %v1257, 0
  %vm1837 = vcmp.ne.s32.totalorder %v1271, 0
  %vm1838 = vcmp.ne.s32.totalorder %v1285, 0
  %vm1839 = vcmp.ne.s32.totalorder %v1299, 0
  %vm1840 = vcmp.ne.s32.totalorder %v1313, 0
  %vm1841 = vcmp.ne.s32.totalorder %v1327, 0
  %vm1842 = vcmp.ne.s32.totalorder %v1341, 0
  %vm1843 = vcmp.ne.s32.totalorder %v1355, 0
  %vm1844 = vcmp.ne.s32.totalorder %v1369, 0
  %vm1845 = vcmp.ne.s32.totalorder %v1383, 0
  %vm1846 = vcmp.ne.s32.totalorder %v1397, 0
  %vm1847 = vcmp.ne.s32.totalorder %v1411, 0
  %vm1848 = vcmp.ne.s32.totalorder %v1425, 0
  %vm1849 = vcmp.ne.s32.totalorder %v1439, 0
  %vm1850 = vcmp.ne.s32.totalorder %v1453, 0
  %vm1851 = vcmp.ne.s32.totalorder %v1467, 0
  %vm1852 = vcmp.ne.s32.totalorder %v1481, 0
  %vm1853 = vcmp.ne.s32.totalorder %v1495, 0
  %vm1854 = vcmp.ne.s32.totalorder %v1509, 0
  %vm1855 = vcmp.ne.s32.totalorder %v1523, 0
  %vm1856 = vcmp.ne.s32.totalorder %v1537, 0
  %vm1857 = vcmp.ne.s32.totalorder %v1551, 0
  %vm1858 = vcmp.ne.s32.totalorder %v1565, 0
  %vm1859 = vcmp.ne.s32.totalorder %v1579, 0
  %vm1860 = vcmp.ne.s32.totalorder %v1593, 0
  %vm1861 = vcmp.ne.s32.totalorder %v1607, 0
  %vm1862 = vcmp.ne.s32.totalorder %v1621, 0
  %vm1863 = vcmp.ne.s32.totalorder %v1635, 0
  %vm1864 = vcmp.ne.s32.totalorder %v1649, 0
  %vm1865 = vcmp.ne.s32.totalorder %v1663, 0
  %vm1866 = vcmp.ne.s32.totalorder %v1677, 0
  %vm1867 = vcmp.ne.s32.totalorder %v1691, 0
  %vm1868 = vcmp.ne.s32.totalorder %v1705, 0
  %vm1869 = vcmp.ne.s32.totalorder %v1719, 0
  %vm1870 = vcmp.ne.s32.totalorder %v1733, 0
  %vm1871 = vcmp.ne.s32.totalorder %v1747, 0
  %vm1872 = vcmp.ne.s32.totalorder %v1761, 0
  %vm1873 = vcmp.ne.s32.totalorder %v1775, 0
  %vm1874 = vcmp.lt.s32.totalorder %v417, 0
  %vm1875 = vcmp.lt.s32.totalorder %v431, 0
  %vm1876 = vcmp.lt.s32.totalorder %v445, 0
  %vm1877 = vcmp.lt.s32.totalorder %v459, 0
  %vm1878 = vcmp.lt.s32.totalorder %v473, 0
  %vm1879 = vcmp.lt.s32.totalorder %v487, 0
  %vm1880 = vcmp.lt.s32.totalorder %v501, 0
  %vm1881 = vcmp.lt.s32.totalorder %v515, 0
  %vm1882 = vcmp.lt.s32.totalorder %v529, 0
  %vm1883 = vcmp.lt.s32.totalorder %v543, 0
  %vm1884 = vcmp.lt.s32.totalorder %v557, 0
  %vm1885 = vcmp.lt.s32.totalorder %v571, 0
  %vm1886 = vcmp.lt.s32.totalorder %v585, 0
  %vm1887 = vcmp.lt.s32.totalorder %v599, 0
  %vm1888 = vcmp.lt.s32.totalorder %v613, 0
  %vm1889 = vcmp.lt.s32.totalorder %v627, 0
  %vm1890 = vcmp.lt.s32.totalorder %v641, 0
  %vm1891 = vcmp.lt.s32.totalorder %v655, 0
  %vm1892 = vcmp.lt.s32.totalorder %v669, 0
  %vm1893 = vcmp.lt.s32.totalorder %v683, 0
  %vm1894 = vcmp.lt.s32.totalorder %v697, 0
  %vm1895 = vcmp.lt.s32.totalorder %v711, 0
  %vm1896 = vcmp.lt.s32.totalorder %v725, 0
  %vm1897 = vcmp.lt.s32.totalorder %v739, 0
  %vm1898 = vcmp.lt.s32.totalorder %v753, 0
  %vm1899 = vcmp.lt.s32.totalorder %v767, 0
  %vm1900 = vcmp.lt.s32.totalorder %v781, 0
  %vm1901 = vcmp.lt.s32.totalorder %v795, 0
  %vm1902 = vcmp.lt.s32.totalorder %v809, 0
  %vm1903 = vcmp.lt.s32.totalorder %v823, 0
  %vm1904 = vcmp.lt.s32.totalorder %v837, 0
  %vm1905 = vcmp.lt.s32.totalorder %v851, 0
  %vm1906 = vcmp.lt.s32.totalorder %v865, 0
  %vm1907 = vcmp.lt.s32.totalorder %v879, 0
  %vm1908 = vcmp.lt.s32.totalorder %v893, 0
  %vm1909 = vcmp.lt.s32.totalorder %v907, 0
  %vm1910 = vcmp.lt.s32.totalorder %v921, 0
  %vm1911 = vcmp.lt.s32.totalorder %v935, 0
  %vm1912 = vcmp.lt.s32.totalorder %v949, 0
  %vm1913 = vcmp.lt.s32.totalorder %v963, 0
  %vm1914 = vcmp.lt.s32.totalorder %v977, 0
  %vm1915 = vcmp.lt.s32.totalorder %v991, 0
  %vm1916 = vcmp.lt.s32.totalorder %v1005, 0
  %vm1917 = vcmp.lt.s32.totalorder %v1019, 0
  %vm1918 = vcmp.lt.s32.totalorder %v1033, 0
  %vm1919 = vcmp.lt.s32.totalorder %v1047, 0
  %vm1920 = vcmp.lt.s32.totalorder %v1061, 0
  %vm1921 = vcmp.lt.s32.totalorder %v1075, 0
  %vm1922 = vcmp.lt.s32.totalorder %v1089, 0
  %vm1923 = vcmp.lt.s32.totalorder %v1103, 0
  %vm1924 = vcmp.lt.s32.totalorder %v1117, 0
  %vm1925 = vcmp.lt.s32.totalorder %v1131, 0
  %vm1926 = vcmp.lt.s32.totalorder %v1145, 0
  %vm1927 = vcmp.lt.s32.totalorder %v1159, 0
  %vm1928 = vcmp.lt.s32.totalorder %v1173, 0
  %vm1929 = vcmp.lt.s32.totalorder %v1187, 0
  %vm1930 = vcmp.lt.s32.totalorder %v1201, 0
  %vm1931 = vcmp.lt.s32.totalorder %v1215, 0
  %vm1932 = vcmp.lt.s32.totalorder %v1229, 0
  %vm1933 = vcmp.lt.s32.totalorder %v1243, 0
  %vm1934 = vcmp.lt.s32.totalorder %v1257, 0
  %vm1935 = vcmp.lt.s32.totalorder %v1271, 0
  %vm1936 = vcmp.lt.s32.totalorder %v1285, 0
  %vm1937 = vcmp.lt.s32.totalorder %v1299, 0
  %vm1938 = vcmp.lt.s32.totalorder %v1313, 0
  %vm1939 = vcmp.lt.s32.totalorder %v1327, 0
  %vm1940 = vcmp.lt.s32.totalorder %v1341, 0
  %vm1941 = vcmp.lt.s32.totalorder %v1355, 0
  %vm1942 = vcmp.lt.s32.totalorder %v1369, 0
  %vm1943 = vcmp.lt.s32.totalorder %v1383, 0
  %vm1944 = vcmp.lt.s32.totalorder %v1397, 0
  %vm1945 = vcmp.lt.s32.totalorder %v1411, 0
  %vm1946 = vcmp.lt.s32.totalorder %v1425, 0
  %vm1947 = vcmp.lt.s32.totalorder %v1439, 0
  %vm1948 = vcmp.lt.s32.totalorder %v1453, 0
  %vm1949 = vcmp.lt.s32.totalorder %v1467, 0
  %vm1950 = vcmp.lt.s32.totalorder %v1481, 0
  %vm1951 = vcmp.lt.s32.totalorder %v1495, 0
  %vm1952 = vcmp.lt.s32.totalorder %v1509, 0
  %vm1953 = vcmp.lt.s32.totalorder %v1523, 0
  %vm1954 = vcmp.lt.s32.totalorder %v1537, 0
  %vm1955 = vcmp.lt.s32.totalorder %v1551, 0
  %vm1956 = vcmp.lt.s32.totalorder %v1565, 0
  %vm1957 = vcmp.lt.s32.totalorder %v1579, 0
  %vm1958 = vcmp.lt.s32.totalorder %v1593, 0
  %vm1959 = vcmp.lt.s32.totalorder %v1607, 0
  %vm1960 = vcmp.lt.s32.totalorder %v1621, 0
  %vm1961 = vcmp.lt.s32.totalorder %v1635, 0
  %vm1962 = vcmp.lt.s32.totalorder %v1649, 0
  %vm1963 = vcmp.lt.s32.totalorder %v1663, 0
  %vm1964 = vcmp.lt.s32.totalorder %v1677, 0
  %vm1965 = vcmp.lt.s32.totalorder %v1691, 0
  %vm1966 = vcmp.lt.s32.totalorder %v1705, 0
  %vm1967 = vcmp.lt.s32.totalorder %v1719, 0
  %vm1968 = vcmp.lt.s32.totalorder %v1733, 0
  %vm1969 = vcmp.lt.s32.totalorder %v1747, 0
  %vm1970 = vcmp.lt.s32.totalorder %v1761, 0
  %vm1971 = vcmp.lt.s32.totalorder %v1775, 0
  %vm1972 = vmand %vm1874, %vm1776
  %vm1973 = vmand %vm1875, %vm1777
  %vm1974 = vmand %vm1876, %vm1778
  %vm1975 = vmand %vm1877, %vm1779
  %vm1976 = vmand %vm1878, %vm1780
  %vm1977 = vmand %vm1879, %vm1781
  %vm1978 = vmand %vm1880, %vm1782
  %vm1979 = vmand %vm1881, %vm1783
  %vm1980 = vmand %vm1882, %vm1784
  %vm1981 = vmand %vm1883, %vm1785
  %vm1982 = vmand %vm1884, %vm1786
  %vm1983 = vmand %vm1885, %vm1787
  %vm1984 = vmand %vm1886, %vm1788
  %vm1985 = vmand %vm1887, %vm1789
  %vm1986 = vmand %vm1888, %vm1790
  %vm1987 = vmand %vm1889, %vm1791
  %vm1988 = vmand %vm1890, %vm1792
  %vm1989 = vmand %vm1891, %vm1793
  %vm1990 = vmand %vm1892, %vm1794
  %vm1991 = vmand %vm1893, %vm1795
  %vm1992 = vmand %vm1894, %vm1796
  %vm1993 = vmand %vm1895, %vm1797
  %vm1994 = vmand %vm1896, %vm1798
  %vm1995 = vmand %vm1897, %vm1799
  %vm1996 = vmand %vm1898, %vm1800
  %vm1997 = vmand %vm1899, %vm1801
  %vm1998 = vmand %vm1900, %vm1802
  %vm1999 = vmand %vm1901, %vm1803
  %vm2000 = vmand %vm1902, %vm1804
  %vm2001 = vmand %vm1903, %vm1805
  %vm2002 = vmand %vm1904, %vm1806
  %vm2003 = vmand %vm1905, %vm1807
  %vm2004 = vmand %vm1906, %vm1808
  %vm2005 = vmand %vm1907, %vm1809
  %vm2006 = vmand %vm1908, %vm1810
  %vm2007 = vmand %vm1909, %vm1811
  %vm2008 = vmand %vm1910, %vm1812
  %vm2009 = vmand %vm1911, %vm1813
  %vm2010 = vmand %vm1912, %vm1814
  %vm2011 = vmand %vm1913, %vm1815
  %vm2012 = vmand %vm1914, %vm1816
  %vm2013 = vmand %vm1915, %vm1817
  %vm2014 = vmand %vm1916, %vm1818
  %vm2015 = vmand %vm1917, %vm1819
  %vm2016 = vmand %vm1918, %vm1820
  %vm2017 = vmand %vm1919, %vm1821
  %vm2018 = vmand %vm1920, %vm1822
  %vm2019 = vmand %vm1921, %vm1823
  %vm2020 = vmand %vm1922, %vm1824
  %vm2021 = vmand %vm1923, %vm1825
  %vm2022 = vmand %vm1924, %vm1826
  %vm2023 = vmand %vm1925, %vm1827
  %vm2024 = vmand %vm1926, %vm1828
  %vm2025 = vmand %vm1927, %vm1829
  %vm2026 = vmand %vm1928, %vm1830
  %vm2027 = vmand %vm1929, %vm1831
  %vm2028 = vmand %vm1930, %vm1832
  %vm2029 = vmand %vm1931, %vm1833
  %vm2030 = vmand %vm1932, %vm1834
  %vm2031 = vmand %vm1933, %vm1835
  %vm2032 = vmand %vm1934, %vm1836
  %vm2033 = vmand %vm1935, %vm1837
  %vm2034 = vmand %vm1936, %vm1838
  %vm2035 = vmand %vm1937, %vm1839
  %vm2036 = vmand %vm1938, %vm1840
  %vm2037 = vmand %vm1939, %vm1841
  %vm2038 = vmand %vm1940, %vm1842
  %vm2039 = vmand %vm1941, %vm1843
  %vm2040 = vmand %vm1942, %vm1844
  %vm2041 = vmand %vm1943, %vm1845
  %vm2042 = vmand %vm1944, %vm1846
  %vm2043 = vmand %vm1945, %vm1847
  %vm2044 = vmand %vm1946, %vm1848
  %vm2045 = vmand %vm1947, %vm1849
  %vm2046 = vmand %vm1948, %vm1850
  %vm2047 = vmand %vm1949, %vm1851
  %vm2048 = vmand %vm1950, %vm1852
  %vm2049 = vmand %vm1951, %vm1853
  %vm2050 = vmand %vm1952, %vm1854
  %vm2051 = vmand %vm1953, %vm1855
  %vm2052 = vmand %vm1954, %vm1856
  %vm2053 = vmand %vm1955, %vm1857
  %vm2054 = vmand %vm1956, %vm1858
  %vm2055 = vmand %vm1957, %vm1859
  %vm2056 = vmand %vm1958, %vm1860
  %vm2057 = vmand %vm1959, %vm1861
  %vm2058 = vmand %vm1960, %vm1862
  %vm2059 = vmand %vm1961, %vm1863
  %vm2060 = vmand %vm1962, %vm1864
  %vm2061 = vmand %vm1963, %vm1865
  %vm2062 = vmand %vm1964, %vm1866
  %vm2063 = vmand %vm1965, %vm1867
  %vm2064 = vmand %vm1966, %vm1868
  %vm2065 = vmand %vm1967, %vm1869
  %vm2066 = vmand %vm1968, %vm1870
  %vm2067 = vmand %vm1969, %vm1871
  %vm2068 = vmand %vm1970, %vm1872
  %vm2069 = vmand %vm1971, %vm1873
  %v2070 = vadd.s32 %v417, 112
  %v2071 = vadd.s32 %v431, 112
  %v2072 = vadd.s32 %v445, 112
  %v2073 = vadd.s32 %v459, 112
  %v2074 = vadd.s32 %v473, 112
  %v2075 = vadd.s32 %v487, 112
  %v2076 = vadd.s32 %v501, 112
  %v2077 = vadd.s32 %v515, 112
  %v2078 = vadd.s32 %v529, 112
  %v2079 = vadd.s32 %v543, 112
  %v2080 = vadd.s32 %v557, 112
  %v2081 = vadd.s32 %v571, 112
  %v2082 = vadd.s32 %v585, 112
  %v2083 = vadd.s32 %v599, 112
  %v2084 = vadd.s32 %v613, 112
  %v2085 = vadd.s32 %v627, 112
  %v2086 = vadd.s32 %v641, 112
  %v2087 = vadd.s32 %v655, 112
  %v2088 = vadd.s32 %v669, 112
  %v2089 = vadd.s32 %v683, 112
  %v2090 = vadd.s32 %v697, 112
  %v2091 = vadd.s32 %v711, 112
  %v2092 = vadd.s32 %v725, 112
  %v2093 = vadd.s32 %v739, 112
  %v2094 = vadd.s32 %v753, 112
  %v2095 = vadd.s32 %v767, 112
  %v2096 = vadd.s32 %v781, 112
  %v2097 = vadd.s32 %v795, 112
  %v2098 = vadd.s32 %v809, 112
  %v2099 = vadd.s32 %v823, 112
  %v2100 = vadd.s32 %v837, 112
  %v2101 = vadd.s32 %v851, 112
  %v2102 = vadd.s32 %v865, 112
  %v2103 = vadd.s32 %v879, 112
  %v2104 = vadd.s32 %v893, 112
  %v2105 = vadd.s32 %v907, 112
  %v2106 = vadd.s32 %v921, 112
  %v2107 = vadd.s32 %v935, 112
  %v2108 = vadd.s32 %v949, 112
  %v2109 = vadd.s32 %v963, 112
  %v2110 = vadd.s32 %v977, 112
  %v2111 = vadd.s32 %v991, 112
  %v2112 = vadd.s32 %v1005, 112
  %v2113 = vadd.s32 %v1019, 112
  %v2114 = vadd.s32 %v1033, 112
  %v2115 = vadd.s32 %v1047, 112
  %v2116 = vadd.s32 %v1061, 112
  %v2117 = vadd.s32 %v1075, 112
  %v2118 = vadd.s32 %v1089, 112
  %v2119 = vadd.s32 %v1103, 112
  %v2120 = vadd.s32 %v1117, 112
  %v2121 = vadd.s32 %v1131, 112
  %v2122 = vadd.s32 %v1145, 112
  %v2123 = vadd.s32 %v1159, 112
  %v2124 = vadd.s32 %v1173, 112
  %v2125 = vadd.s32 %v1187, 112
  %v2126 = vadd.s32 %v1201, 112
  %v2127 = vadd.s32 %v1215, 112
  %v2128 = vadd.s32 %v1229, 112
  %v2129 = vadd.s32 %v1243, 112
  %v2130 = vadd.s32 %v1257, 112
  %v2131 = vadd.s32 %v1271, 112
  %v2132 = vadd.s32 %v1285, 112
  %v2133 = vadd.s32 %v1299, 112
  %v2134 = vadd.s32 %v1313, 112
  %v2135 = vadd.s32 %v1327, 112
  %v2136 = vadd.s32 %v1341, 112
  %v2137 = vadd.s32 %v1355, 112
  %v2138 = vadd.s32 %v1369, 112
  %v2139 = vadd.s32 %v1383, 112
  %v2140 = vadd.s32 %v1397, 112
  %v2141 = vadd.s32 %v1411, 112
  %v2142 = vadd.s32 %v1425, 112
  %v2143 = vadd.s32 %v1439, 112
  %v2144 = vadd.s32 %v1453, 112
  %v2145 = vadd.s32 %v1467, 112
  %v2146 = vadd.s32 %v1481, 112
  %v2147 = vadd.s32 %v1495, 112
  %v2148 = vadd.s32 %v1509, 112
  %v2149 = vadd.s32 %v1523, 112
  %v2150 = vadd.s32 %v1537, 112
  %v2151 = vadd.s32 %v1551, 112
  %v2152 = vadd.s32 %v1565, 112
  %v2153 = vadd.s32 %v1579, 112
  %v2154 = vadd.s32 %v1593, 112
  %v2155 = vadd.s32 %v1607, 112
  %v2156 = vadd.s32 %v1621, 112
  %v2157 = vadd.s32 %v1635, 112
  %v2158 = vadd.s32 %v1649, 112
  %v2159 = vadd.s32 %v1663, 112
  %v2160 = vadd.s32 %v1677, 112
  %v2161 = vadd.s32 %v1691, 112
  %v2162 = vadd.s32 %v1705, 112
  %v2163 = vadd.s32 %v1719, 112
  %v2164 = vadd.s32 %v1733, 112
  %v2165 = vadd.s32 %v1747, 112
  %v2166 = vadd.s32 %v1761, 112
  %v2167 = vadd.s32 %v1775, 112
  %v2168 = vsel %vm1972, %v2070, %v417
  %v2169 = vsel %vm1973, %v2071, %v431
  %v2170 = vsel %vm1974, %v2072, %v445
  %v2171 = vsel %vm1975, %v2073, %v459
  %v2172 = vsel %vm1976, %v2074, %v473
  %v2173 = vsel %vm1977, %v2075, %v487
  %v2174 = vsel %vm1978, %v2076, %v501
  %v2175 = vsel %vm1979, %v2077, %v515
  %v2176 = vsel %vm1980, %v2078, %v529
  %v2177 = vsel %vm1981, %v2079, %v543
  %v2178 = vsel %vm1982, %v2080, %v557
  %v2179 = vsel %vm1983, %v2081, %v571
  %v2180 = vsel %vm1984, %v2082, %v585
  %v2181 = vsel %vm1985, %v2083, %v599
  %v2182 = vsel %vm1986, %v2084, %v613
  %v2183 = vsel %vm1987, %v2085, %v627
  %v2184 = vsel %vm1988, %v2086, %v641
  %v2185 = vsel %vm1989, %v2087, %v655
  %v2186 = vsel %vm1990, %v2088, %v669
  %v2187 = vsel %vm1991, %v2089, %v683
  %v2188 = vsel %vm1992, %v2090, %v697
  %v2189 = vsel %vm1993, %v2091, %v711
  %v2190 = vsel %vm1994, %v2092, %v725
  %v2191 = vsel %vm1995, %v2093, %v739
  %v2192 = vsel %vm1996, %v2094, %v753
  %v2193 = vsel %vm1997, %v2095, %v767
  %v2194 = vsel %vm1998, %v2096, %v781
  %v2195 = vsel %vm1999, %v2097, %v795
  %v2196 = vsel %vm2000, %v2098, %v809
  %v2197 = vsel %vm2001, %v2099, %v823
  %v2198 = vsel %vm2002, %v2100, %v837
  %v2199 = vsel %vm2003, %v2101, %v851
  %v2200 = vsel %vm2004, %v2102, %v865
  %v2201 = vsel %vm2005, %v2103, %v879
  %v2202 = vsel %vm2006, %v2104, %v893
  %v2203 = vsel %vm2007, %v2105, %v907
  %v2204 = vsel %vm2008, %v2106, %v921
  %v2205 = vsel %vm2009, %v2107, %v935
  %v2206 = vsel %vm2010, %v2108, %v949
  %v2207 = vsel %vm2011, %v2109, %v963
  %v2208 = vsel %vm2012, %v2110, %v977
  %v2209 = vsel %vm2013, %v2111, %v991
  %v2210 = vsel %vm2014, %v2112, %v1005
  %v2211 = vsel %vm2015, %v2113, %v1019
  %v2212 = vsel %vm2016, %v2114, %v1033
  %v2213 = vsel %vm2017, %v2115, %v1047
  %v2214 = vsel %vm2018, %v2116, %v1061
  %v2215 = vsel %vm2019, %v2117, %v1075
  %v2216 = vsel %vm2020, %v2118, %v1089
  %v2217 = vsel %vm2021, %v2119, %v1103
  %v2218 = vsel %vm2022, %v2120, %v1117
  %v2219 = vsel %vm2023, %v2121, %v1131
  %v2220 = vsel %vm2024, %v2122, %v1145
  %v2221 = vsel %vm2025, %v2123, %v1159
  %v2222 = vsel %vm2026, %v2124, %v1173
  %v2223 = vsel %vm2027, %v2125, %v1187
  %v2224 = vsel %vm2028, %v2126, %v1201
  %v2225 = vsel %vm2029, %v2127, %v1215
  %v2226 = vsel %vm2030, %v2128, %v1229
  %v2227 = vsel %vm2031, %v2129, %v1243
  %v2228 = vsel %vm2032, %v2130, %v1257
  %v2229 = vsel %vm2033, %v2131, %v1271
  %v2230 = vsel %vm2034, %v2132, %v1285
  %v2231 = vsel %vm2035, %v2133, %v1299
  %v2232 = vsel %vm2036, %v2134, %v1313
  %v2233 = vsel %vm2037, %v2135, %v1327
  %v2234 = vsel %vm2038, %v2136, %v1341
  %v2235 = vsel %vm2039, %v2137, %v1355
  %v2236 = vsel %vm2040, %v2138, %v1369
  %v2237 = vsel %vm2041, %v2139, %v1383
  %v2238 = vsel %vm2042, %v2140, %v1397
  %v2239 = vsel %vm2043, %v2141, %v1411
  %v2240 = vsel %vm2044, %v2142, %v1425
  %v2241 = vsel %vm2045, %v2143, %v1439
  %v2242 = vsel %vm2046, %v2144, %v1453
  %v2243 = vsel %vm2047, %v2145, %v1467
  %v2244 = vsel %vm2048, %v2146, %v1481
  %v2245 = vsel %vm2049, %v2147, %v1495
  %v2246 = vsel %vm2050, %v2148, %v1509
  %v2247 = vsel %vm2051, %v2149, %v1523
  %v2248 = vsel %vm2052, %v2150, %v1537
  %v2249 = vsel %vm2053, %v2151, %v1551
  %v2250 = vsel %vm2054, %v2152, %v1565
  %v2251 = vsel %vm2055, %v2153, %v1579
  %v2252 = vsel %vm2056, %v2154, %v1593
  %v2253 = vsel %vm2057, %v2155, %v1607
  %v2254 = vsel %vm2058, %v2156, %v1621
  %v2255 = vsel %vm2059, %v2157, %v1635
  %v2256 = vsel %vm2060, %v2158, %v1649
  %v2257 = vsel %vm2061, %v2159, %v1663
  %v2258 = vsel %vm2062, %v2160, %v1677
  %v2259 = vsel %vm2063, %v2161, %v1691
  %v2260 = vsel %vm2064, %v2162, %v1705
  %v2261 = vsel %vm2065, %v2163, %v1719
  %v2262 = vsel %vm2066, %v2164, %v1733
  %v2263 = vsel %vm2067, %v2165, %v1747
  %v2264 = vsel %vm2068, %v2166, %v1761
  %v2265 = vsel %vm2069, %v2167, %v1775
  %vm2266 = vcmp.eq.s32.totalorder %v2168, 0
  %vm2267 = vcmp.eq.s32.totalorder %v2169, 0
  %vm2268 = vcmp.eq.s32.totalorder %v2170, 0
  %vm2269 = vcmp.eq.s32.totalorder %v2171, 0
  %vm2270 = vcmp.eq.s32.totalorder %v2172, 0
  %vm2271 = vcmp.eq.s32.totalorder %v2173, 0
  %vm2272 = vcmp.eq.s32.totalorder %v2174, 0
  %vm2273 = vcmp.eq.s32.totalorder %v2175, 0
  %vm2274 = vcmp.eq.s32.totalorder %v2176, 0
  %vm2275 = vcmp.eq.s32.totalorder %v2177, 0
  %vm2276 = vcmp.eq.s32.totalorder %v2178, 0
  %vm2277 = vcmp.eq.s32.totalorder %v2179, 0
  %vm2278 = vcmp.eq.s32.totalorder %v2180, 0
  %vm2279 = vcmp.eq.s32.totalorder %v2181, 0
  %vm2280 = vcmp.eq.s32.totalorder %v2182, 0
  %vm2281 = vcmp.eq.s32.totalorder %v2183, 0
  %vm2282 = vcmp.eq.s32.totalorder %v2184, 0
  %vm2283 = vcmp.eq.s32.totalorder %v2185, 0
  %vm2284 = vcmp.eq.s32.totalorder %v2186, 0
  %vm2285 = vcmp.eq.s32.totalorder %v2187, 0
  %vm2286 = vcmp.eq.s32.totalorder %v2188, 0
  %vm2287 = vcmp.eq.s32.totalorder %v2189, 0
  %vm2288 = vcmp.eq.s32.totalorder %v2190, 0
  %vm2289 = vcmp.eq.s32.totalorder %v2191, 0
  %vm2290 = vcmp.eq.s32.totalorder %v2192, 0
  %vm2291 = vcmp.eq.s32.totalorder %v2193, 0
  %vm2292 = vcmp.eq.s32.totalorder %v2194, 0
  %vm2293 = vcmp.eq.s32.totalorder %v2195, 0
  %vm2294 = vcmp.eq.s32.totalorder %v2196, 0
  %vm2295 = vcmp.eq.s32.totalorder %v2197, 0
  %vm2296 = vcmp.eq.s32.totalorder %v2198, 0
  %vm2297 = vcmp.eq.s32.totalorder %v2199, 0
  %vm2298 = vcmp.eq.s32.totalorder %v2200, 0
  %vm2299 = vcmp.eq.s32.totalorder %v2201, 0
  %vm2300 = vcmp.eq.s32.totalorder %v2202, 0
  %vm2301 = vcmp.eq.s32.totalorder %v2203, 0
  %vm2302 = vcmp.eq.s32.totalorder %v2204, 0
  %vm2303 = vcmp.eq.s32.totalorder %v2205, 0
  %vm2304 = vcmp.eq.s32.totalorder %v2206, 0
  %vm2305 = vcmp.eq.s32.totalorder %v2207, 0
  %vm2306 = vcmp.eq.s32.totalorder %v2208, 0
  %vm2307 = vcmp.eq.s32.totalorder %v2209, 0
  %vm2308 = vcmp.eq.s32.totalorder %v2210, 0
  %vm2309 = vcmp.eq.s32.totalorder %v2211, 0
  %vm2310 = vcmp.eq.s32.totalorder %v2212, 0
  %vm2311 = vcmp.eq.s32.totalorder %v2213, 0
  %vm2312 = vcmp.eq.s32.totalorder %v2214, 0
  %vm2313 = vcmp.eq.s32.totalorder %v2215, 0
  %vm2314 = vcmp.eq.s32.totalorder %v2216, 0
  %vm2315 = vcmp.eq.s32.totalorder %v2217, 0
  %vm2316 = vcmp.eq.s32.totalorder %v2218, 0
  %vm2317 = vcmp.eq.s32.totalorder %v2219, 0
  %vm2318 = vcmp.eq.s32.totalorder %v2220, 0
  %vm2319 = vcmp.eq.s32.totalorder %v2221, 0
  %vm2320 = vcmp.eq.s32.totalorder %v2222, 0
  %vm2321 = vcmp.eq.s32.totalorder %v2223, 0
  %vm2322 = vcmp.eq.s32.totalorder %v2224, 0
  %vm2323 = vcmp.eq.s32.totalorder %v2225, 0
  %vm2324 = vcmp.eq.s32.totalorder %v2226, 0
  %vm2325 = vcmp.eq.s32.totalorder %v2227, 0
  %vm2326 = vcmp.eq.s32.totalorder %v2228, 0
  %vm2327 = vcmp.eq.s32.totalorder %v2229, 0
  %vm2328 = vcmp.eq.s32.totalorder %v2230, 0
  %vm2329 = vcmp.eq.s32.totalorder %v2231, 0
  %vm2330 = vcmp.eq.s32.totalorder %v2232, 0
  %vm2331 = vcmp.eq.s32.totalorder %v2233, 0
  %vm2332 = vcmp.eq.s32.totalorder %v2234, 0
  %vm2333 = vcmp.eq.s32.totalorder %v2235, 0
  %vm2334 = vcmp.eq.s32.totalorder %v2236, 0
  %vm2335 = vcmp.eq.s32.totalorder %v2237, 0
  %vm2336 = vcmp.eq.s32.totalorder %v2238, 0
  %vm2337 = vcmp.eq.s32.totalorder %v2239, 0
  %vm2338 = vcmp.eq.s32.totalorder %v2240, 0
  %vm2339 = vcmp.eq.s32.totalorder %v2241, 0
  %vm2340 = vcmp.eq.s32.totalorder %v2242, 0
  %vm2341 = vcmp.eq.s32.totalorder %v2243, 0
  %vm2342 = vcmp.eq.s32.totalorder %v2244, 0
  %vm2343 = vcmp.eq.s32.totalorder %v2245, 0
  %vm2344 = vcmp.eq.s32.totalorder %v2246, 0
  %vm2345 = vcmp.eq.s32.totalorder %v2247, 0
  %vm2346 = vcmp.eq.s32.totalorder %v2248, 0
  %vm2347 = vcmp.eq.s32.totalorder %v2249, 0
  %vm2348 = vcmp.eq.s32.totalorder %v2250, 0
  %vm2349 = vcmp.eq.s32.totalorder %v2251, 0
  %vm2350 = vcmp.eq.s32.totalorder %v2252, 0
  %vm2351 = vcmp.eq.s32.totalorder %v2253, 0
  %vm2352 = vcmp.eq.s32.totalorder %v2254, 0
  %vm2353 = vcmp.eq.s32.totalorder %v2255, 0
  %vm2354 = vcmp.eq.s32.totalorder %v2256, 0
  %vm2355 = vcmp.eq.s32.totalorder %v2257, 0
  %vm2356 = vcmp.eq.s32.totalorder %v2258, 0
  %vm2357 = vcmp.eq.s32.totalorder %v2259, 0
  %vm2358 = vcmp.eq.s32.totalorder %v2260, 0
  %vm2359 = vcmp.eq.s32.totalorder %v2261, 0
  %vm2360 = vcmp.eq.s32.totalorder %v2262, 0
  %vm2361 = vcmp.eq.s32.totalorder %v2263, 0
  %vm2362 = vcmp.eq.s32.totalorder %v2264, 0
  %vm2363 = vcmp.eq.s32.totalorder %v2265, 0
  %2367 = vrot.lane.b32.xlu0 %v108, 113
  %v2368 = vpop.permute.xlu0 %2367
  %2369 = vrot.lane.b32.xlu0 %v206, 113
  %v2370 = vpop.permute.xlu0 %2369
  %2371 = vrot.lane.b32.xlu0 %v304, 113
  %v2372 = vpop.permute.xlu0 %2371
  %2667 = vrot.lane.b32.xlu0 %v11, 113
  %v2668 = vpop.permute.xlu0 %2667
  %2669 = vrot.lane.b32.xlu0 %v12, 113
  %v2670 = vpop.permute.xlu0 %2669
  %2671 = vrot.lane.b32.xlu0 %v13, 113
  %v2672 = vpop.permute.xlu0 %2671
  %2673 = vrot.lane.b32.xlu0 %v14, 113
  %v2674 = vpop.permute.xlu0 %2673
  %2675 = vrot.lane.b32.xlu0 %v15, 113
  %v2676 = vpop.permute.xlu0 %2675
  %2677 = vrot.lane.b32.xlu0 %v16, 113
  %v2678 = vpop.permute.xlu0 %2677
  %2679 = vrot.lane.b32.xlu0 %v17, 113
  %v2680 = vpop.permute.xlu0 %2679
  %2681 = vrot.lane.b32.xlu0 %v18, 113
  %v2682 = vpop.permute.xlu0 %2681
  %2683 = vrot.lane.b32.xlu0 %v19, 113
  %v2684 = vpop.permute.xlu0 %2683
  %2685 = vrot.lane.b32.xlu0 %v20, 113
  %v2686 = vpop.permute.xlu0 %2685
  %2687 = vrot.lane.b32.xlu0 %v21, 113
  %v2688 = vpop.permute.xlu0 %2687
  %2689 = vrot.lane.b32.xlu0 %v22, 113
  %v2690 = vpop.permute.xlu0 %2689
  %2691 = vrot.lane.b32.xlu0 %v23, 113
  %v2692 = vpop.permute.xlu0 %2691
  %2693 = vrot.lane.b32.xlu0 %v24, 113
  %v2694 = vpop.permute.xlu0 %2693
  %2695 = vrot.lane.b32.xlu0 %v25, 113
  %v2696 = vpop.permute.xlu0 %2695
  %2697 = vrot.lane.b32.xlu0 %v26, 113
  %v2698 = vpop.permute.xlu0 %2697
  %2699 = vrot.lane.b32.xlu0 %v27, 113
  %v2700 = vpop.permute.xlu0 %2699
  %2701 = vrot.lane.b32.xlu0 %v28, 113
  %v2702 = vpop.permute.xlu0 %2701
  %2703 = vrot.lane.b32.xlu0 %v29, 113
  %v2704 = vpop.permute.xlu0 %2703
  %2705 = vrot.lane.b32.xlu0 %v30, 113
  %v2706 = vpop.permute.xlu0 %2705
  %2707 = vrot.lane.b32.xlu0 %v31, 113
  %v2708 = vpop.permute.xlu0 %2707
  %2709 = vrot.lane.b32.xlu0 %v32, 113
  %v2710 = vpop.permute.xlu0 %2709
  %2711 = vrot.lane.b32.xlu0 %v33, 113
  %v2712 = vpop.permute.xlu0 %2711
  %2713 = vrot.lane.b32.xlu0 %v34, 113
  %v2714 = vpop.permute.xlu0 %2713
  %2715 = vrot.lane.b32.xlu0 %v35, 113
  %v2716 = vpop.permute.xlu0 %2715
  %2717 = vrot.lane.b32.xlu0 %v36, 113
  %v2718 = vpop.permute.xlu0 %2717
  %2719 = vrot.lane.b32.xlu0 %v37, 113
  %v2720 = vpop.permute.xlu0 %2719
  %2721 = vrot.lane.b32.xlu0 %v38, 113
  %v2722 = vpop.permute.xlu0 %2721
  %2723 = vrot.lane.b32.xlu0 %v39, 113
  %v2724 = vpop.permute.xlu0 %2723
  %2725 = vrot.lane.b32.xlu0 %v40, 113
  %v2726 = vpop.permute.xlu0 %2725
  %2727 = vrot.lane.b32.xlu0 %v41, 113
  %v2728 = vpop.permute.xlu0 %2727
  %2729 = vrot.lane.b32.xlu0 %v42, 113
  %v2730 = vpop.permute.xlu0 %2729
  %2731 = vrot.lane.b32.xlu0 %v43, 113
  %v2732 = vpop.permute.xlu0 %2731
  %2733 = vrot.lane.b32.xlu0 %v44, 113
  %v2734 = vpop.permute.xlu0 %2733
  %2735 = vrot.lane.b32.xlu0 %v45, 113
  %v2736 = vpop.permute.xlu0 %2735
  %2737 = vrot.lane.b32.xlu0 %v46, 113
  %v2738 = vpop.permute.xlu0 %2737
  %2739 = vrot.lane.b32.xlu0 %v47, 113
  %v2740 = vpop.permute.xlu0 %2739
  %2741 = vrot.lane.b32.xlu0 %v48, 113
  %v2742 = vpop.permute.xlu0 %2741
  %2743 = vrot.lane.b32.xlu0 %v49, 113
  %v2744 = vpop.permute.xlu0 %2743
  %2745 = vrot.lane.b32.xlu0 %v50, 113
  %v2746 = vpop.permute.xlu0 %2745
  %2747 = vrot.lane.b32.xlu0 %v51, 113
  %v2748 = vpop.permute.xlu0 %2747
  %2749 = vrot.lane.b32.xlu0 %v52, 113
  %v2750 = vpop.permute.xlu0 %2749
  %2751 = vrot.lane.b32.xlu0 %v53, 113
  %v2752 = vpop.permute.xlu0 %2751
  %2753 = vrot.lane.b32.xlu0 %v54, 113
  %v2754 = vpop.permute.xlu0 %2753
  %2755 = vrot.lane.b32.xlu0 %v55, 113
  %v2756 = vpop.permute.xlu0 %2755
  %2757 = vrot.lane.b32.xlu0 %v56, 113
  %v2758 = vpop.permute.xlu0 %2757
  %2759 = vrot.lane.b32.xlu0 %v57, 113
  %v2760 = vpop.permute.xlu0 %2759
  %2761 = vrot.lane.b32.xlu0 %v58, 113
  %v2762 = vpop.permute.xlu0 %2761
  %2763 = vrot.lane.b32.xlu0 %v59, 113
  %v2764 = vpop.permute.xlu0 %2763
  %2765 = vrot.lane.b32.xlu0 %v60, 113
  %v2766 = vpop.permute.xlu0 %2765
  %2767 = vrot.lane.b32.xlu0 %v61, 113
  %v2768 = vpop.permute.xlu0 %2767
  %2769 = vrot.lane.b32.xlu0 %v62, 113
  %v2770 = vpop.permute.xlu0 %2769
  %2771 = vrot.lane.b32.xlu0 %v63, 113
  %v2772 = vpop.permute.xlu0 %2771
  %2773 = vrot.lane.b32.xlu0 %v64, 113
  %v2774 = vpop.permute.xlu0 %2773
  %2775 = vrot.lane.b32.xlu0 %v65, 113
  %v2776 = vpop.permute.xlu0 %2775
  %2777 = vrot.lane.b32.xlu0 %v66, 113
  %v2778 = vpop.permute.xlu0 %2777
  %2779 = vrot.lane.b32.xlu0 %v67, 113
  %v2780 = vpop.permute.xlu0 %2779
  %2781 = vrot.lane.b32.xlu0 %v68, 113
  %v2782 = vpop.permute.xlu0 %2781
  %2783 = vrot.lane.b32.xlu0 %v69, 113
  %v2784 = vpop.permute.xlu0 %2783
  %2785 = vrot.lane.b32.xlu0 %v70, 113
  %v2786 = vpop.permute.xlu0 %2785
  %2787 = vrot.lane.b32.xlu0 %v71, 113
  %v2788 = vpop.permute.xlu0 %2787
  %2789 = vrot.lane.b32.xlu0 %v72, 113
  %v2790 = vpop.permute.xlu0 %2789
  %2791 = vrot.lane.b32.xlu0 %v73, 113
  %v2792 = vpop.permute.xlu0 %2791
  %2793 = vrot.lane.b32.xlu0 %v74, 113
  %v2794 = vpop.permute.xlu0 %2793
  %2795 = vrot.lane.b32.xlu0 %v75, 113
  %v2796 = vpop.permute.xlu0 %2795
  %2797 = vrot.lane.b32.xlu0 %v76, 113
  %v2798 = vpop.permute.xlu0 %2797
  %2799 = vrot.lane.b32.xlu0 %v77, 113
  %v2800 = vpop.permute.xlu0 %2799
  %2801 = vrot.lane.b32.xlu0 %v78, 113
  %v2802 = vpop.permute.xlu0 %2801
  %2803 = vrot.lane.b32.xlu0 %v79, 113
  %v2804 = vpop.permute.xlu0 %2803
  %2805 = vrot.lane.b32.xlu0 %v80, 113
  %v2806 = vpop.permute.xlu0 %2805
  %2807 = vrot.lane.b32.xlu0 %v81, 113
  %v2808 = vpop.permute.xlu0 %2807
  %2809 = vrot.lane.b32.xlu0 %v82, 113
  %v2810 = vpop.permute.xlu0 %2809
  %2811 = vrot.lane.b32.xlu0 %v83, 113
  %v2812 = vpop.permute.xlu0 %2811
  %2813 = vrot.lane.b32.xlu0 %v84, 113
  %v2814 = vpop.permute.xlu0 %2813
  %2815 = vrot.lane.b32.xlu0 %v85, 113
  %v2816 = vpop.permute.xlu0 %2815
  %2817 = vrot.lane.b32.xlu0 %v86, 113
  %v2818 = vpop.permute.xlu0 %2817
  %2819 = vrot.lane.b32.xlu0 %v87, 113
  %v2820 = vpop.permute.xlu0 %2819
  %2821 = vrot.lane.b32.xlu0 %v88, 113
  %v2822 = vpop.permute.xlu0 %2821
  %2823 = vrot.lane.b32.xlu0 %v89, 113
  %v2824 = vpop.permute.xlu0 %2823
  %2825 = vrot.lane.b32.xlu0 %v90, 113
  %v2826 = vpop.permute.xlu0 %2825
  %2827 = vrot.lane.b32.xlu0 %v91, 113
  %v2828 = vpop.permute.xlu0 %2827
  %2829 = vrot.lane.b32.xlu0 %v92, 113
  %v2830 = vpop.permute.xlu0 %2829
  %2831 = vrot.lane.b32.xlu0 %v93, 113
  %v2832 = vpop.permute.xlu0 %2831
  %2833 = vrot.lane.b32.xlu0 %v94, 113
  %v2834 = vpop.permute.xlu0 %2833
  %2835 = vrot.lane.b32.xlu0 %v95, 113
  %v2836 = vpop.permute.xlu0 %2835
  %2837 = vrot.lane.b32.xlu0 %v96, 113
  %v2838 = vpop.permute.xlu0 %2837
  %2839 = vrot.lane.b32.xlu0 %v97, 113
  %v2840 = vpop.permute.xlu0 %2839
  %2841 = vrot.lane.b32.xlu0 %v98, 113
  %v2842 = vpop.permute.xlu0 %2841
  %2843 = vrot.lane.b32.xlu0 %v99, 113
  %v2844 = vpop.permute.xlu0 %2843
  %2845 = vrot.lane.b32.xlu0 %v100, 113
  %v2846 = vpop.permute.xlu0 %2845
  %2847 = vrot.lane.b32.xlu0 %v101, 113
  %v2848 = vpop.permute.xlu0 %2847
  %2849 = vrot.lane.b32.xlu0 %v102, 113
  %v2850 = vpop.permute.xlu0 %2849
  %2851 = vrot.lane.b32.xlu0 %v103, 113
  %v2852 = vpop.permute.xlu0 %2851
  %2853 = vrot.lane.b32.xlu0 %v104, 113
  %v2854 = vpop.permute.xlu0 %2853
  %2855 = vrot.lane.b32.xlu0 %v105, 113
  %v2856 = vpop.permute.xlu0 %2855
  %2857 = vrot.lane.b32.xlu0 %v106, 113
  %v2858 = vpop.permute.xlu0 %2857
  %2859 = vrot.lane.b32.xlu0 %v107, 113
  %v2860 = vpop.permute.xlu0 %2859
  %2861 = vrot.lane.b32.xlu0 %v109, 113
  %v2862 = vpop.permute.xlu0 %2861
  %2863 = vrot.lane.b32.xlu0 %v110, 113
  %v2864 = vpop.permute.xlu0 %2863
  %2865 = vrot.lane.b32.xlu0 %v111, 113
  %v2866 = vpop.permute.xlu0 %2865
  %2867 = vrot.lane.b32.xlu0 %v112, 113
  %v2868 = vpop.permute.xlu0 %2867
  %2869 = vrot.lane.b32.xlu0 %v113, 113
  %v2870 = vpop.permute.xlu0 %2869
  %2871 = vrot.lane.b32.xlu0 %v114, 113
  %v2872 = vpop.permute.xlu0 %2871
  %2873 = vrot.lane.b32.xlu0 %v115, 113
  %v2874 = vpop.permute.xlu0 %2873
  %2875 = vrot.lane.b32.xlu0 %v116, 113
  %v2876 = vpop.permute.xlu0 %2875
  %2877 = vrot.lane.b32.xlu0 %v117, 113
  %v2878 = vpop.permute.xlu0 %2877
  %2879 = vrot.lane.b32.xlu0 %v118, 113
  %v2880 = vpop.permute.xlu0 %2879
  %2881 = vrot.lane.b32.xlu0 %v119, 113
  %v2882 = vpop.permute.xlu0 %2881
  %2883 = vrot.lane.b32.xlu0 %v120, 113
  %v2884 = vpop.permute.xlu0 %2883
  %2885 = vrot.lane.b32.xlu0 %v121, 113
  %v2886 = vpop.permute.xlu0 %2885
  %2887 = vrot.lane.b32.xlu0 %v122, 113
  %v2888 = vpop.permute.xlu0 %2887
  %2889 = vrot.lane.b32.xlu0 %v123, 113
  %v2890 = vpop.permute.xlu0 %2889
  %2891 = vrot.lane.b32.xlu0 %v124, 113
  %v2892 = vpop.permute.xlu0 %2891
  %2893 = vrot.lane.b32.xlu0 %v125, 113
  %v2894 = vpop.permute.xlu0 %2893
  %2895 = vrot.lane.b32.xlu0 %v126, 113
  %v2896 = vpop.permute.xlu0 %2895
  %2897 = vrot.lane.b32.xlu0 %v127, 113
  %v2898 = vpop.permute.xlu0 %2897
  %2899 = vrot.lane.b32.xlu0 %v128, 113
  %v2900 = vpop.permute.xlu0 %2899
  %2901 = vrot.lane.b32.xlu0 %v129, 113
  %v2902 = vpop.permute.xlu0 %2901
  %2903 = vrot.lane.b32.xlu0 %v130, 113
  %v2904 = vpop.permute.xlu0 %2903
  %2905 = vrot.lane.b32.xlu0 %v131, 113
  %v2906 = vpop.permute.xlu0 %2905
  %2907 = vrot.lane.b32.xlu0 %v132, 113
  %v2908 = vpop.permute.xlu0 %2907
  %2909 = vrot.lane.b32.xlu0 %v133, 113
  %v2910 = vpop.permute.xlu0 %2909
  %2911 = vrot.lane.b32.xlu0 %v134, 113
  %v2912 = vpop.permute.xlu0 %2911
  %2913 = vrot.lane.b32.xlu0 %v135, 113
  %v2914 = vpop.permute.xlu0 %2913
  %2915 = vrot.lane.b32.xlu0 %v136, 113
  %v2916 = vpop.permute.xlu0 %2915
  %2917 = vrot.lane.b32.xlu0 %v137, 113
  %v2918 = vpop.permute.xlu0 %2917
  %2919 = vrot.lane.b32.xlu0 %v138, 113
  %v2920 = vpop.permute.xlu0 %2919
  %2921 = vrot.lane.b32.xlu0 %v139, 113
  %v2922 = vpop.permute.xlu0 %2921
  %2923 = vrot.lane.b32.xlu0 %v140, 113
  %v2924 = vpop.permute.xlu0 %2923
  %2925 = vrot.lane.b32.xlu0 %v141, 113
  %v2926 = vpop.permute.xlu0 %2925
  %2927 = vrot.lane.b32.xlu0 %v142, 113
  %v2928 = vpop.permute.xlu0 %2927
  %2929 = vrot.lane.b32.xlu0 %v143, 113
  %v2930 = vpop.permute.xlu0 %2929
  %2931 = vrot.lane.b32.xlu0 %v144, 113
  %v2932 = vpop.permute.xlu0 %2931
  %2933 = vrot.lane.b32.xlu0 %v145, 113
  %v2934 = vpop.permute.xlu0 %2933
  %2935 = vrot.lane.b32.xlu0 %v146, 113
  %v2936 = vpop.permute.xlu0 %2935
  %2937 = vrot.lane.b32.xlu0 %v147, 113
  %v2938 = vpop.permute.xlu0 %2937
  %2939 = vrot.lane.b32.xlu0 %v148, 113
  %v2940 = vpop.permute.xlu0 %2939
  %2941 = vrot.lane.b32.xlu0 %v149, 113
  %v2942 = vpop.permute.xlu0 %2941
  %2943 = vrot.lane.b32.xlu0 %v150, 113
  %v2944 = vpop.permute.xlu0 %2943
  %2945 = vrot.lane.b32.xlu0 %v151, 113
  %v2946 = vpop.permute.xlu0 %2945
  %2947 = vrot.lane.b32.xlu0 %v152, 113
  %v2948 = vpop.permute.xlu0 %2947
  %2949 = vrot.lane.b32.xlu0 %v153, 113
  %v2950 = vpop.permute.xlu0 %2949
  %2951 = vrot.lane.b32.xlu0 %v154, 113
  %v2952 = vpop.permute.xlu0 %2951
  %2953 = vrot.lane.b32.xlu0 %v155, 113
  %v2954 = vpop.permute.xlu0 %2953
  %2955 = vrot.lane.b32.xlu0 %v156, 113
  %v2956 = vpop.permute.xlu0 %2955
  %2957 = vrot.lane.b32.xlu0 %v157, 113
  %v2958 = vpop.permute.xlu0 %2957
  %2959 = vrot.lane.b32.xlu0 %v158, 113
  %v2960 = vpop.permute.xlu0 %2959
  %2961 = vrot.lane.b32.xlu0 %v159, 113
  %v2962 = vpop.permute.xlu0 %2961
  %2963 = vrot.lane.b32.xlu0 %v160, 113
  %v2964 = vpop.permute.xlu0 %2963
  %2965 = vrot.lane.b32.xlu0 %v161, 113
  %v2966 = vpop.permute.xlu0 %2965
  %2967 = vrot.lane.b32.xlu0 %v162, 113
  %v2968 = vpop.permute.xlu0 %2967
  %2969 = vrot.lane.b32.xlu0 %v163, 113
  %v2970 = vpop.permute.xlu0 %2969
  %2971 = vrot.lane.b32.xlu0 %v164, 113
  %v2972 = vpop.permute.xlu0 %2971
  %2973 = vrot.lane.b32.xlu0 %v165, 113
  %v2974 = vpop.permute.xlu0 %2973
  %2975 = vrot.lane.b32.xlu0 %v166, 113
  %v2976 = vpop.permute.xlu0 %2975
  %2977 = vrot.lane.b32.xlu0 %v167, 113
  %v2978 = vpop.permute.xlu0 %2977
  %2979 = vrot.lane.b32.xlu0 %v168, 113
  %v2980 = vpop.permute.xlu0 %2979
  %2981 = vrot.lane.b32.xlu0 %v169, 113
  %v2982 = vpop.permute.xlu0 %2981
  %2983 = vrot.lane.b32.xlu0 %v170, 113
  %v2984 = vpop.permute.xlu0 %2983
  %2985 = vrot.lane.b32.xlu0 %v171, 113
  %v2986 = vpop.permute.xlu0 %2985
  %2987 = vrot.lane.b32.xlu0 %v172, 113
  %v2988 = vpop.permute.xlu0 %2987
  %2989 = vrot.lane.b32.xlu0 %v173, 113
  %v2990 = vpop.permute.xlu0 %2989
  %2991 = vrot.lane.b32.xlu0 %v174, 113
  %v2992 = vpop.permute.xlu0 %2991
  %2993 = vrot.lane.b32.xlu0 %v175, 113
  %v2994 = vpop.permute.xlu0 %2993
  %2995 = vrot.lane.b32.xlu0 %v176, 113
  %v2996 = vpop.permute.xlu0 %2995
  %2997 = vrot.lane.b32.xlu0 %v177, 113
  %v2998 = vpop.permute.xlu0 %2997
  %2999 = vrot.lane.b32.xlu0 %v178, 113
  %v3000 = vpop.permute.xlu0 %2999
  %3001 = vrot.lane.b32.xlu0 %v179, 113
  %v3002 = vpop.permute.xlu0 %3001
  %3003 = vrot.lane.b32.xlu0 %v180, 113
  %v3004 = vpop.permute.xlu0 %3003
  %3005 = vrot.lane.b32.xlu0 %v181, 113
  %v3006 = vpop.permute.xlu0 %3005
  %3007 = vrot.lane.b32.xlu0 %v182, 113
  %v3008 = vpop.permute.xlu0 %3007
  %3009 = vrot.lane.b32.xlu0 %v183, 113
  %v3010 = vpop.permute.xlu0 %3009
  %3011 = vrot.lane.b32.xlu0 %v184, 113
  %v3012 = vpop.permute.xlu0 %3011
  %3013 = vrot.lane.b32.xlu0 %v185, 113
  %v3014 = vpop.permute.xlu0 %3013
  %3015 = vrot.lane.b32.xlu0 %v186, 113
  %v3016 = vpop.permute.xlu0 %3015
  %3017 = vrot.lane.b32.xlu0 %v187, 113
  %v3018 = vpop.permute.xlu0 %3017
  %3019 = vrot.lane.b32.xlu0 %v188, 113
  %v3020 = vpop.permute.xlu0 %3019
  %3021 = vrot.lane.b32.xlu0 %v189, 113
  %v3022 = vpop.permute.xlu0 %3021
  %3023 = vrot.lane.b32.xlu0 %v190, 113
  %v3024 = vpop.permute.xlu0 %3023
  %3025 = vrot.lane.b32.xlu0 %v191, 113
  %v3026 = vpop.permute.xlu0 %3025
  %3027 = vrot.lane.b32.xlu0 %v192, 113
  %v3028 = vpop.permute.xlu0 %3027
  %3029 = vrot.lane.b32.xlu0 %v193, 113
  %v3030 = vpop.permute.xlu0 %3029
  %3031 = vrot.lane.b32.xlu0 %v194, 113
  %v3032 = vpop.permute.xlu0 %3031
  %3033 = vrot.lane.b32.xlu0 %v195, 113
  %v3034 = vpop.permute.xlu0 %3033
  %3035 = vrot.lane.b32.xlu0 %v196, 113
  %v3036 = vpop.permute.xlu0 %3035
  %3037 = vrot.lane.b32.xlu0 %v197, 113
  %v3038 = vpop.permute.xlu0 %3037
  %3039 = vrot.lane.b32.xlu0 %v198, 113
  %v3040 = vpop.permute.xlu0 %3039
  %3041 = vrot.lane.b32.xlu0 %v199, 113
  %v3042 = vpop.permute.xlu0 %3041
  %3043 = vrot.lane.b32.xlu0 %v200, 113
  %v3044 = vpop.permute.xlu0 %3043
  %3045 = vrot.lane.b32.xlu0 %v201, 113
  %v3046 = vpop.permute.xlu0 %3045
  %3047 = vrot.lane.b32.xlu0 %v202, 113
  %v3048 = vpop.permute.xlu0 %3047
  %3049 = vrot.lane.b32.xlu0 %v203, 113
  %v3050 = vpop.permute.xlu0 %3049
  %3051 = vrot.lane.b32.xlu0 %v204, 113
  %v3052 = vpop.permute.xlu0 %3051
  %3053 = vrot.lane.b32.xlu0 %v205, 113
  %v3054 = vpop.permute.xlu0 %3053
  %3055 = vrot.lane.b32.xlu0 %v207, 113
  %v3056 = vpop.permute.xlu0 %3055
  %3057 = vrot.lane.b32.xlu0 %v208, 113
  %v3058 = vpop.permute.xlu0 %3057
  %3059 = vrot.lane.b32.xlu0 %v209, 113
  %v3060 = vpop.permute.xlu0 %3059
  %3061 = vrot.lane.b32.xlu0 %v210, 113
  %v3062 = vpop.permute.xlu0 %3061
  %3063 = vrot.lane.b32.xlu0 %v211, 113
  %v3064 = vpop.permute.xlu0 %3063
  %3065 = vrot.lane.b32.xlu0 %v212, 113
  %v3066 = vpop.permute.xlu0 %3065
  %3067 = vrot.lane.b32.xlu0 %v213, 113
  %v3068 = vpop.permute.xlu0 %3067
  %3069 = vrot.lane.b32.xlu0 %v214, 113
  %v3070 = vpop.permute.xlu0 %3069
  %3071 = vrot.lane.b32.xlu0 %v215, 113
  %v3072 = vpop.permute.xlu0 %3071
  %3073 = vrot.lane.b32.xlu0 %v216, 113
  %v3074 = vpop.permute.xlu0 %3073
  %3075 = vrot.lane.b32.xlu0 %v217, 113
  %v3076 = vpop.permute.xlu0 %3075
  %3077 = vrot.lane.b32.xlu0 %v218, 113
  %v3078 = vpop.permute.xlu0 %3077
  %3079 = vrot.lane.b32.xlu0 %v219, 113
  %v3080 = vpop.permute.xlu0 %3079
  %3081 = vrot.lane.b32.xlu0 %v220, 113
  %v3082 = vpop.permute.xlu0 %3081
  %3083 = vrot.lane.b32.xlu0 %v221, 113
  %v3084 = vpop.permute.xlu0 %3083
  %3085 = vrot.lane.b32.xlu0 %v222, 113
  %v3086 = vpop.permute.xlu0 %3085
  %3087 = vrot.lane.b32.xlu0 %v223, 113
  %v3088 = vpop.permute.xlu0 %3087
  %3089 = vrot.lane.b32.xlu0 %v224, 113
  %v3090 = vpop.permute.xlu0 %3089
  %3091 = vrot.lane.b32.xlu0 %v225, 113
  %v3092 = vpop.permute.xlu0 %3091
  %3093 = vrot.lane.b32.xlu0 %v226, 113
  %v3094 = vpop.permute.xlu0 %3093
  %3095 = vrot.lane.b32.xlu0 %v227, 113
  %v3096 = vpop.permute.xlu0 %3095
  %3097 = vrot.lane.b32.xlu0 %v228, 113
  %v3098 = vpop.permute.xlu0 %3097
  %3099 = vrot.lane.b32.xlu0 %v229, 113
  %v3100 = vpop.permute.xlu0 %3099
  %3101 = vrot.lane.b32.xlu0 %v230, 113
  %v3102 = vpop.permute.xlu0 %3101
  %3103 = vrot.lane.b32.xlu0 %v231, 113
  %v3104 = vpop.permute.xlu0 %3103
  %3105 = vrot.lane.b32.xlu0 %v232, 113
  %v3106 = vpop.permute.xlu0 %3105
  %3107 = vrot.lane.b32.xlu0 %v233, 113
  %v3108 = vpop.permute.xlu0 %3107
  %3109 = vrot.lane.b32.xlu0 %v234, 113
  %v3110 = vpop.permute.xlu0 %3109
  %3111 = vrot.lane.b32.xlu0 %v235, 113
  %v3112 = vpop.permute.xlu0 %3111
  %3113 = vrot.lane.b32.xlu0 %v236, 113
  %v3114 = vpop.permute.xlu0 %3113
  %3115 = vrot.lane.b32.xlu0 %v237, 113
  %v3116 = vpop.permute.xlu0 %3115
  %3117 = vrot.lane.b32.xlu0 %v238, 113
  %v3118 = vpop.permute.xlu0 %3117
  %3119 = vrot.lane.b32.xlu0 %v239, 113
  %v3120 = vpop.permute.xlu0 %3119
  %3121 = vrot.lane.b32.xlu0 %v240, 113
  %v3122 = vpop.permute.xlu0 %3121
  %3123 = vrot.lane.b32.xlu0 %v241, 113
  %v3124 = vpop.permute.xlu0 %3123
  %3125 = vrot.lane.b32.xlu0 %v242, 113
  %v3126 = vpop.permute.xlu0 %3125
  %3127 = vrot.lane.b32.xlu0 %v243, 113
  %v3128 = vpop.permute.xlu0 %3127
  %3129 = vrot.lane.b32.xlu0 %v244, 113
  %v3130 = vpop.permute.xlu0 %3129
  %3131 = vrot.lane.b32.xlu0 %v245, 113
  %v3132 = vpop.permute.xlu0 %3131
  %3133 = vrot.lane.b32.xlu0 %v246, 113
  %v3134 = vpop.permute.xlu0 %3133
  %3135 = vrot.lane.b32.xlu0 %v247, 113
  %v3136 = vpop.permute.xlu0 %3135
  %3137 = vrot.lane.b32.xlu0 %v248, 113
  %v3138 = vpop.permute.xlu0 %3137
  %3139 = vrot.lane.b32.xlu0 %v249, 113
  %v3140 = vpop.permute.xlu0 %3139
  %3141 = vrot.lane.b32.xlu0 %v250, 113
  %v3142 = vpop.permute.xlu0 %3141
  %3143 = vrot.lane.b32.xlu0 %v251, 113
  %v3144 = vpop.permute.xlu0 %3143
  %3145 = vrot.lane.b32.xlu0 %v252, 113
  %v3146 = vpop.permute.xlu0 %3145
  %3147 = vrot.lane.b32.xlu0 %v253, 113
  %v3148 = vpop.permute.xlu0 %3147
  %3149 = vrot.lane.b32.xlu0 %v254, 113
  %v3150 = vpop.permute.xlu0 %3149
  %3151 = vrot.lane.b32.xlu0 %v255, 113
  %v3152 = vpop.permute.xlu0 %3151
  %3153 = vrot.lane.b32.xlu0 %v256, 113
  %v3154 = vpop.permute.xlu0 %3153
  %3155 = vrot.lane.b32.xlu0 %v257, 113
  %v3156 = vpop.permute.xlu0 %3155
  %3157 = vrot.lane.b32.xlu0 %v258, 113
  %v3158 = vpop.permute.xlu0 %3157
  %3159 = vrot.lane.b32.xlu0 %v259, 113
  %v3160 = vpop.permute.xlu0 %3159
  %3161 = vrot.lane.b32.xlu0 %v260, 113
  %v3162 = vpop.permute.xlu0 %3161
  %3163 = vrot.lane.b32.xlu0 %v261, 113
  %v3164 = vpop.permute.xlu0 %3163
  %3165 = vrot.lane.b32.xlu0 %v262, 113
  %v3166 = vpop.permute.xlu0 %3165
  %3167 = vrot.lane.b32.xlu0 %v263, 113
  %v3168 = vpop.permute.xlu0 %3167
  %3169 = vrot.lane.b32.xlu0 %v264, 113
  %v3170 = vpop.permute.xlu0 %3169
  %3171 = vrot.lane.b32.xlu0 %v265, 113
  %v3172 = vpop.permute.xlu0 %3171
  %3173 = vrot.lane.b32.xlu0 %v266, 113
  %v3174 = vpop.permute.xlu0 %3173
  %3175 = vrot.lane.b32.xlu0 %v267, 113
  %v3176 = vpop.permute.xlu0 %3175
  %3177 = vrot.lane.b32.xlu0 %v268, 113
  %v3178 = vpop.permute.xlu0 %3177
  %3179 = vrot.lane.b32.xlu0 %v269, 113
  %v3180 = vpop.permute.xlu0 %3179
  %3181 = vrot.lane.b32.xlu0 %v270, 113
  %v3182 = vpop.permute.xlu0 %3181
  %3183 = vrot.lane.b32.xlu0 %v271, 113
  %v3184 = vpop.permute.xlu0 %3183
  %3185 = vrot.lane.b32.xlu0 %v272, 113
  %v3186 = vpop.permute.xlu0 %3185
  %3187 = vrot.lane.b32.xlu0 %v273, 113
  %v3188 = vpop.permute.xlu0 %3187
  %3189 = vrot.lane.b32.xlu0 %v274, 113
  %v3190 = vpop.permute.xlu0 %3189
  %3191 = vrot.lane.b32.xlu0 %v275, 113
  %v3192 = vpop.permute.xlu0 %3191
  %3193 = vrot.lane.b32.xlu0 %v276, 113
  %v3194 = vpop.permute.xlu0 %3193
  %3195 = vrot.lane.b32.xlu0 %v277, 113
  %v3196 = vpop.permute.xlu0 %3195
  %3197 = vrot.lane.b32.xlu0 %v278, 113
  %v3198 = vpop.permute.xlu0 %3197
  %3199 = vrot.lane.b32.xlu0 %v279, 113
  %v3200 = vpop.permute.xlu0 %3199
  %3201 = vrot.lane.b32.xlu0 %v280, 113
  %v3202 = vpop.permute.xlu0 %3201
  %3203 = vrot.lane.b32.xlu0 %v281, 113
  %v3204 = vpop.permute.xlu0 %3203
  %3205 = vrot.lane.b32.xlu0 %v282, 113
  %v3206 = vpop.permute.xlu0 %3205
  %3207 = vrot.lane.b32.xlu0 %v283, 113
  %v3208 = vpop.permute.xlu0 %3207
  %3209 = vrot.lane.b32.xlu0 %v284, 113
  %v3210 = vpop.permute.xlu0 %3209
  %3211 = vrot.lane.b32.xlu0 %v285, 113
  %v3212 = vpop.permute.xlu0 %3211
  %3213 = vrot.lane.b32.xlu0 %v286, 113
  %v3214 = vpop.permute.xlu0 %3213
  %3215 = vrot.lane.b32.xlu0 %v287, 113
  %v3216 = vpop.permute.xlu0 %3215
  %3217 = vrot.lane.b32.xlu0 %v288, 113
  %v3218 = vpop.permute.xlu0 %3217
  %3219 = vrot.lane.b32.xlu0 %v289, 113
  %v3220 = vpop.permute.xlu0 %3219
  %3221 = vrot.lane.b32.xlu0 %v290, 113
  %v3222 = vpop.permute.xlu0 %3221
  %3223 = vrot.lane.b32.xlu0 %v291, 113
  %v3224 = vpop.permute.xlu0 %3223
  %3225 = vrot.lane.b32.xlu0 %v292, 113
  %v3226 = vpop.permute.xlu0 %3225
  %3227 = vrot.lane.b32.xlu0 %v293, 113
  %v3228 = vpop.permute.xlu0 %3227
  %3229 = vrot.lane.b32.xlu0 %v294, 113
  %v3230 = vpop.permute.xlu0 %3229
  %3231 = vrot.lane.b32.xlu0 %v295, 113
  %v3232 = vpop.permute.xlu0 %3231
  %3233 = vrot.lane.b32.xlu0 %v296, 113
  %v3234 = vpop.permute.xlu0 %3233
  %3235 = vrot.lane.b32.xlu0 %v297, 113
  %v3236 = vpop.permute.xlu0 %3235
  %3237 = vrot.lane.b32.xlu0 %v298, 113
  %v3238 = vpop.permute.xlu0 %3237
  %3239 = vrot.lane.b32.xlu0 %v299, 113
  %v3240 = vpop.permute.xlu0 %3239
  %3241 = vrot.lane.b32.xlu0 %v300, 113
  %v3242 = vpop.permute.xlu0 %3241
  %3243 = vrot.lane.b32.xlu0 %v301, 113
  %v3244 = vpop.permute.xlu0 %3243
  %3245 = vrot.lane.b32.xlu0 %v302, 113
  %v3246 = vpop.permute.xlu0 %3245
  %3247 = vrot.lane.b32.xlu0 %v303, 113
  %v3248 = vpop.permute.xlu0 %3247
  %vm3249 = vcmask 924672
  %v3250 = vsel %vm3249, %v2668, %v2670
  %v3251 = vsel %vm3249, %v2670, %v2672
  %v3252 = vsel %vm3249, %v2672, %v2674
  %v3253 = vsel %vm3249, %v2674, %v2676
  %v3254 = vsel %vm3249, %v2676, %v2678
  %v3255 = vsel %vm3249, %v2678, %v2680
  %v3256 = vsel %vm3249, %v2680, %v2682
  %v3257 = vsel %vm3249, %v2682, %v2684
  %v3258 = vsel %vm3249, %v2684, %v2686
  %v3259 = vsel %vm3249, %v2686, %v2688
  %v3260 = vsel %vm3249, %v2688, %v2690
  %v3261 = vsel %vm3249, %v2690, %v2692
  %v3262 = vsel %vm3249, %v2692, %v2694
  %v3263 = vsel %vm3249, %v2694, %v2696
  %v3264 = vsel %vm3249, %v2696, %v2698
  %v3265 = vsel %vm3249, %v2698, %v2700
  %v3266 = vsel %vm3249, %v2700, %v2702
  %v3267 = vsel %vm3249, %v2702, %v2704
  %v3268 = vsel %vm3249, %v2704, %v2706
  %v3269 = vsel %vm3249, %v2706, %v2708
  %v3270 = vsel %vm3249, %v2708, %v2710
  %v3271 = vsel %vm3249, %v2710, %v2712
  %v3272 = vsel %vm3249, %v2712, %v2714
  %v3273 = vsel %vm3249, %v2714, %v2716
  %v3274 = vsel %vm3249, %v2716, %v2718
  %v3275 = vsel %vm3249, %v2718, %v2720
  %v3276 = vsel %vm3249, %v2720, %v2722
  %v3277 = vsel %vm3249, %v2722, %v2724
  %v3278 = vsel %vm3249, %v2724, %v2726
  %v3279 = vsel %vm3249, %v2726, %v2728
  %v3280 = vsel %vm3249, %v2728, %v2730
  %v3281 = vsel %vm3249, %v2730, %v2732
  %v3282 = vsel %vm3249, %v2732, %v2734
  %v3283 = vsel %vm3249, %v2734, %v2736
  %v3284 = vsel %vm3249, %v2736, %v2738
  %v3285 = vsel %vm3249, %v2738, %v2740
  %v3286 = vsel %vm3249, %v2740, %v2742
  %v3287 = vsel %vm3249, %v2742, %v2744
  %v3288 = vsel %vm3249, %v2744, %v2746
  %v3289 = vsel %vm3249, %v2746, %v2748
  %v3290 = vsel %vm3249, %v2748, %v2750
  %v3291 = vsel %vm3249, %v2750, %v2752
  %v3292 = vsel %vm3249, %v2752, %v2754
  %v3293 = vsel %vm3249, %v2754, %v2756
  %v3294 = vsel %vm3249, %v2756, %v2758
  %v3295 = vsel %vm3249, %v2758, %v2760
  %v3296 = vsel %vm3249, %v2760, %v2762
  %v3297 = vsel %vm3249, %v2762, %v2764
  %v3298 = vsel %vm3249, %v2764, %v2766
  %v3299 = vsel %vm3249, %v2766, %v2768
  %v3300 = vsel %vm3249, %v2768, %v2770
  %v3301 = vsel %vm3249, %v2770, %v2772
  %v3302 = vsel %vm3249, %v2772, %v2774
  %v3303 = vsel %vm3249, %v2774, %v2776
  %v3304 = vsel %vm3249, %v2776, %v2778
  %v3305 = vsel %vm3249, %v2778, %v2780
  %v3306 = vsel %vm3249, %v2780, %v2782
  %v3307 = vsel %vm3249, %v2782, %v2784
  %v3308 = vsel %vm3249, %v2784, %v2786
  %v3309 = vsel %vm3249, %v2786, %v2788
  %v3310 = vsel %vm3249, %v2788, %v2790
  %v3311 = vsel %vm3249, %v2790, %v2792
  %v3312 = vsel %vm3249, %v2792, %v2794
  %v3313 = vsel %vm3249, %v2794, %v2796
  %v3314 = vsel %vm3249, %v2796, %v2798
  %v3315 = vsel %vm3249, %v2798, %v2800
  %v3316 = vsel %vm3249, %v2800, %v2802
  %v3317 = vsel %vm3249, %v2802, %v2804
  %v3318 = vsel %vm3249, %v2804, %v2806
  %v3319 = vsel %vm3249, %v2806, %v2808
  %v3320 = vsel %vm3249, %v2808, %v2810
  %v3321 = vsel %vm3249, %v2810, %v2812
  %v3322 = vsel %vm3249, %v2812, %v2814
  %v3323 = vsel %vm3249, %v2814, %v2816
  %v3324 = vsel %vm3249, %v2816, %v2818
  %v3325 = vsel %vm3249, %v2818, %v2820
  %v3326 = vsel %vm3249, %v2820, %v2822
  %v3327 = vsel %vm3249, %v2822, %v2824
  %v3328 = vsel %vm3249, %v2824, %v2826
  %v3329 = vsel %vm3249, %v2826, %v2828
  %v3330 = vsel %vm3249, %v2828, %v2830
  %v3331 = vsel %vm3249, %v2830, %v2832
  %v3332 = vsel %vm3249, %v2832, %v2834
  %v3333 = vsel %vm3249, %v2834, %v2836
  %v3334 = vsel %vm3249, %v2836, %v2838
  %v3335 = vsel %vm3249, %v2838, %v2840
  %v3336 = vsel %vm3249, %v2840, %v2842
  %v3337 = vsel %vm3249, %v2842, %v2844
  %v3338 = vsel %vm3249, %v2844, %v2846
  %v3339 = vsel %vm3249, %v2846, %v2848
  %v3340 = vsel %vm3249, %v2848, %v2850
  %v3341 = vsel %vm3249, %v2850, %v2852
  %v3342 = vsel %vm3249, %v2852, %v2854
  %v3343 = vsel %vm3249, %v2854, %v2856
  %v3344 = vsel %vm3249, %v2856, %v2858
  %v3345 = vsel %vm3249, %v2858, %v2860
  %v3346 = vsel %vm3249, %v2860, %v2368
  %v3347 = vsel %vm3249, %v2862, %v2864
  %v3348 = vsel %vm3249, %v2864, %v2866
  %v3349 = vsel %vm3249, %v2866, %v2868
  %v3350 = vsel %vm3249, %v2868, %v2870
  %v3351 = vsel %vm3249, %v2870, %v2872
  %v3352 = vsel %vm3249, %v2872, %v2874
  %v3353 = vsel %vm3249, %v2874, %v2876
  %v3354 = vsel %vm3249, %v2876, %v2878
  %v3355 = vsel %vm3249, %v2878, %v2880
  %v3356 = vsel %vm3249, %v2880, %v2882
  %v3357 = vsel %vm3249, %v2882, %v2884
  %v3358 = vsel %vm3249, %v2884, %v2886
  %v3359 = vsel %vm3249, %v2886, %v2888
  %v3360 = vsel %vm3249, %v2888, %v2890
  %v3361 = vsel %vm3249, %v2890, %v2892
  %v3362 = vsel %vm3249, %v2892, %v2894
  %v3363 = vsel %vm3249, %v2894, %v2896
  %v3364 = vsel %vm3249, %v2896, %v2898
  %v3365 = vsel %vm3249, %v2898, %v2900
  %v3366 = vsel %vm3249, %v2900, %v2902
  %v3367 = vsel %vm3249, %v2902, %v2904
  %v3368 = vsel %vm3249, %v2904, %v2906
  %v3369 = vsel %vm3249, %v2906, %v2908
  %v3370 = vsel %vm3249, %v2908, %v2910
  %v3371 = vsel %vm3249, %v2910, %v2912
  %v3372 = vsel %vm3249, %v2912, %v2914
  %v3373 = vsel %vm3249, %v2914, %v2916
  %v3374 = vsel %vm3249, %v2916, %v2918
  %v3375 = vsel %vm3249, %v2918, %v2920
  %v3376 = vsel %vm3249, %v2920, %v2922
  %v3377 = vsel %vm3249, %v2922, %v2924
  %v3378 = vsel %vm3249, %v2924, %v2926
  %v3379 = vsel %vm3249, %v2926, %v2928
  %v3380 = vsel %vm3249, %v2928, %v2930
  %v3381 = vsel %vm3249, %v2930, %v2932
  %v3382 = vsel %vm3249, %v2932, %v2934
  %v3383 = vsel %vm3249, %v2934, %v2936
  %v3384 = vsel %vm3249, %v2936, %v2938
  %v3385 = vsel %vm3249, %v2938, %v2940
  %v3386 = vsel %vm3249, %v2940, %v2942
  %v3387 = vsel %vm3249, %v2942, %v2944
  %v3388 = vsel %vm3249, %v2944, %v2946
  %v3389 = vsel %vm3249, %v2946, %v2948
  %v3390 = vsel %vm3249, %v2948, %v2950
  %v3391 = vsel %vm3249, %v2950, %v2952
  %v3392 = vsel %vm3249, %v2952, %v2954
  %v3393 = vsel %vm3249, %v2954, %v2956
  %v3394 = vsel %vm3249, %v2956, %v2958
  %v3395 = vsel %vm3249, %v2958, %v2960
  %v3396 = vsel %vm3249, %v2960, %v2962
  %v3397 = vsel %vm3249, %v2962, %v2964
  %v3398 = vsel %vm3249, %v2964, %v2966
  %v3399 = vsel %vm3249, %v2966, %v2968
  %v3400 = vsel %vm3249, %v2968, %v2970
  %v3401 = vsel %vm3249, %v2970, %v2972
  %v3402 = vsel %vm3249, %v2972, %v2974
  %v3403 = vsel %vm3249, %v2974, %v2976
  %v3404 = vsel %vm3249, %v2976, %v2978
  %v3405 = vsel %vm3249, %v2978, %v2980
  %v3406 = vsel %vm3249, %v2980, %v2982
  %v3407 = vsel %vm3249, %v2982, %v2984
  %v3408 = vsel %vm3249, %v2984, %v2986
  %v3409 = vsel %vm3249, %v2986, %v2988
  %v3410 = vsel %vm3249, %v2988, %v2990
  %v3411 = vsel %vm3249, %v2990, %v2992
  %v3412 = vsel %vm3249, %v2992, %v2994
  %v3413 = vsel %vm3249, %v2994, %v2996
  %v3414 = vsel %vm3249, %v2996, %v2998
  %v3415 = vsel %vm3249, %v2998, %v3000
  %v3416 = vsel %vm3249, %v3000, %v3002
  %v3417 = vsel %vm3249, %v3002, %v3004
  %v3418 = vsel %vm3249, %v3004, %v3006
  %v3419 = vsel %vm3249, %v3006, %v3008
  %v3420 = vsel %vm3249, %v3008, %v3010
  %v3421 = vsel %vm3249, %v3010, %v3012
  %v3422 = vsel %vm3249, %v3012, %v3014
  %v3423 = vsel %vm3249, %v3014, %v3016
  %v3424 = vsel %vm3249, %v3016, %v3018
  %v3425 = vsel %vm3249, %v3018, %v3020
  %v3426 = vsel %vm3249, %v3020, %v3022
  %v3427 = vsel %vm3249, %v3022, %v3024
  %v3428 = vsel %vm3249, %v3024, %v3026
  %v3429 = vsel %vm3249, %v3026, %v3028
  %v3430 = vsel %vm3249, %v3028, %v3030
  %v3431 = vsel %vm3249, %v3030, %v3032
  %v3432 = vsel %vm3249, %v3032, %v3034
  %v3433 = vsel %vm3249, %v3034, %v3036
  %v3434 = vsel %vm3249, %v3036, %v3038
  %v3435 = vsel %vm3249, %v3038, %v3040
  %v3436 = vsel %vm3249, %v3040, %v3042
  %v3437 = vsel %vm3249, %v3042, %v3044
  %v3438 = vsel %vm3249, %v3044, %v3046
  %v3439 = vsel %vm3249, %v3046, %v3048
  %v3440 = vsel %vm3249, %v3048, %v3050
  %v3441 = vsel %vm3249, %v3050, %v3052
  %v3442 = vsel %vm3249, %v3052, %v3054
  %v3443 = vsel %vm3249, %v3054, %v2370
  %v3444 = vsel %vm3249, %v3056, %v3058
  %v3445 = vsel %vm3249, %v3058, %v3060
  %v3446 = vsel %vm3249, %v3060, %v3062
  %v3447 = vsel %vm3249, %v3062, %v3064
  %v3448 = vsel %vm3249, %v3064, %v3066
  %v3449 = vsel %vm3249, %v3066, %v3068
  %v3450 = vsel %vm3249, %v3068, %v3070
  %v3451 = vsel %vm3249, %v3070, %v3072
  %v3452 = vsel %vm3249, %v3072, %v3074
  %v3453 = vsel %vm3249, %v3074, %v3076
  %v3454 = vsel %vm3249, %v3076, %v3078
  %v3455 = vsel %vm3249, %v3078, %v3080
  %v3456 = vsel %vm3249, %v3080, %v3082
  %v3457 = vsel %vm3249, %v3082, %v3084
  %v3458 = vsel %vm3249, %v3084, %v3086
  %v3459 = vsel %vm3249, %v3086, %v3088
  %v3460 = vsel %vm3249, %v3088, %v3090
  %v3461 = vsel %vm3249, %v3090, %v3092
  %v3462 = vsel %vm3249, %v3092, %v3094
  %v3463 = vsel %vm3249, %v3094, %v3096
  %v3464 = vsel %vm3249, %v3096, %v3098
  %v3465 = vsel %vm3249, %v3098, %v3100
  %v3466 = vsel %vm3249, %v3100, %v3102
  %v3467 = vsel %vm3249, %v3102, %v3104
  %v3468 = vsel %vm3249, %v3104, %v3106
  %v3469 = vsel %vm3249, %v3106, %v3108
  %v3470 = vsel %vm3249, %v3108, %v3110
  %v3471 = vsel %vm3249, %v3110, %v3112
  %v3472 = vsel %vm3249, %v3112, %v3114
  %v3473 = vsel %vm3249, %v3114, %v3116
  %v3474 = vsel %vm3249, %v3116, %v3118
  %v3475 = vsel %vm3249, %v3118, %v3120
  %v3476 = vsel %vm3249, %v3120, %v3122
  %v3477 = vsel %vm3249, %v3122, %v3124
  %v3478 = vsel %vm3249, %v3124, %v3126
  %v3479 = vsel %vm3249, %v3126, %v3128
  %v3480 = vsel %vm3249, %v3128, %v3130
  %v3481 = vsel %vm3249, %v3130, %v3132
  %v3482 = vsel %vm3249, %v3132, %v3134
  %v3483 = vsel %vm3249, %v3134, %v3136
  %v3484 = vsel %vm3249, %v3136, %v3138
  %v3485 = vsel %vm3249, %v3138, %v3140
  %v3486 = vsel %vm3249, %v3140, %v3142
  %v3487 = vsel %vm3249, %v3142, %v3144
  %v3488 = vsel %vm3249, %v3144, %v3146
  %v3489 = vsel %vm3249, %v3146, %v3148
  %v3490 = vsel %vm3249, %v3148, %v3150
  %v3491 = vsel %vm3249, %v3150, %v3152
  %v3492 = vsel %vm3249, %v3152, %v3154
  %v3493 = vsel %vm3249, %v3154, %v3156
  %v3494 = vsel %vm3249, %v3156, %v3158
  %v3495 = vsel %vm3249, %v3158, %v3160
  %v3496 = vsel %vm3249, %v3160, %v3162
  %v3497 = vsel %vm3249, %v3162, %v3164
  %v3498 = vsel %vm3249, %v3164, %v3166
  %v3499 = vsel %vm3249, %v3166, %v3168
  %v3500 = vsel %vm3249, %v3168, %v3170
  %v3501 = vsel %vm3249, %v3170, %v3172
  %v3502 = vsel %vm3249, %v3172, %v3174
  %v3503 = vsel %vm3249, %v3174, %v3176
  %v3504 = vsel %vm3249, %v3176, %v3178
  %v3505 = vsel %vm3249, %v3178, %v3180
  %v3506 = vsel %vm3249, %v3180, %v3182
  %v3507 = vsel %vm3249, %v3182, %v3184
  %v3508 = vsel %vm3249, %v3184, %v3186
  %v3509 = vsel %vm3249, %v3186, %v3188
  %v3510 = vsel %vm3249, %v3188, %v3190
  %v3511 = vsel %vm3249, %v3190, %v3192
  %v3512 = vsel %vm3249, %v3192, %v3194
  %v3513 = vsel %vm3249, %v3194, %v3196
  %v3514 = vsel %vm3249, %v3196, %v3198
  %v3515 = vsel %vm3249, %v3198, %v3200
  %v3516 = vsel %vm3249, %v3200, %v3202
  %v3517 = vsel %vm3249, %v3202, %v3204
  %v3518 = vsel %vm3249, %v3204, %v3206
  %v3519 = vsel %vm3249, %v3206, %v3208
  %v3520 = vsel %vm3249, %v3208, %v3210
  %v3521 = vsel %vm3249, %v3210, %v3212
  %v3522 = vsel %vm3249, %v3212, %v3214
  %v3523 = vsel %vm3249, %v3214, %v3216
  %v3524 = vsel %vm3249, %v3216, %v3218
  %v3525 = vsel %vm3249, %v3218, %v3220
  %v3526 = vsel %vm3249, %v3220, %v3222
  %v3527 = vsel %vm3249, %v3222, %v3224
  %v3528 = vsel %vm3249, %v3224, %v3226
  %v3529 = vsel %vm3249, %v3226, %v3228
  %v3530 = vsel %vm3249, %v3228, %v3230
  %v3531 = vsel %vm3249, %v3230, %v3232
  %v3532 = vsel %vm3249, %v3232, %v3234
  %v3533 = vsel %vm3249, %v3234, %v3236
  %v3534 = vsel %vm3249, %v3236, %v3238
  %v3535 = vsel %vm3249, %v3238, %v3240
  %v3536 = vsel %vm3249, %v3240, %v3242
  %v3537 = vsel %vm3249, %v3242, %v3244
  %v3538 = vsel %vm3249, %v3244, %v3246
  %v3539 = vsel %vm3249, %v3246, %v3248
  %v3540 = vsel %vm3249, %v3248, %v2372
  %v3835 = vsel %vm3249, %v2368, %v2668
  %v3836 = vsel %vm3249, %v2370, %v2862
  %v3837 = vsel %vm3249, %v2372, %v3056
  %3838 = vrot.lane.b32.xlu0 %v107, 97
  %v3839 = vpop.permute.xlu0 %3838
  %3840 = vrot.lane.b32.xlu0 %v108, 97
  %v3841 = vpop.permute.xlu0 %3840
  %3842 = vrot.lane.b32.xlu0 %v205, 97
  %v3843 = vpop.permute.xlu0 %3842
  %3844 = vrot.lane.b32.xlu0 %v206, 97
  %v3845 = vpop.permute.xlu0 %3844
  %3846 = vrot.lane.b32.xlu0 %v303, 97
  %v3847 = vpop.permute.xlu0 %3846
  %3848 = vrot.lane.b32.xlu0 %v304, 97
  %v3849 = vpop.permute.xlu0 %3848
  %vm3850 = vcmask 793600
  %v3851 = vsel %vm3850, %v3839, %v3841
  %v3852 = vsel %vm3850, %v3843, %v3845
  %v3853 = vsel %vm3850, %v3847, %v3849
  %3860 = vrot.lane.b32.xlu0 %v11, 97
  %v3861 = vpop.permute.xlu0 %3860
  %3862 = vrot.lane.b32.xlu0 %v12, 97
  %v3863 = vpop.permute.xlu0 %3862
  %3864 = vrot.lane.b32.xlu0 %v13, 97
  %v3865 = vpop.permute.xlu0 %3864
  %3866 = vrot.lane.b32.xlu0 %v14, 97
  %v3867 = vpop.permute.xlu0 %3866
  %3868 = vrot.lane.b32.xlu0 %v15, 97
  %v3869 = vpop.permute.xlu0 %3868
  %3870 = vrot.lane.b32.xlu0 %v16, 97
  %v3871 = vpop.permute.xlu0 %3870
  %3872 = vrot.lane.b32.xlu0 %v17, 97
  %v3873 = vpop.permute.xlu0 %3872
  %3874 = vrot.lane.b32.xlu0 %v18, 97
  %v3875 = vpop.permute.xlu0 %3874
  %3876 = vrot.lane.b32.xlu0 %v19, 97
  %v3877 = vpop.permute.xlu0 %3876
  %3878 = vrot.lane.b32.xlu0 %v20, 97
  %v3879 = vpop.permute.xlu0 %3878
  %3880 = vrot.lane.b32.xlu0 %v21, 97
  %v3881 = vpop.permute.xlu0 %3880
  %3882 = vrot.lane.b32.xlu0 %v22, 97
  %v3883 = vpop.permute.xlu0 %3882
  %3884 = vrot.lane.b32.xlu0 %v23, 97
  %v3885 = vpop.permute.xlu0 %3884
  %3886 = vrot.lane.b32.xlu0 %v24, 97
  %v3887 = vpop.permute.xlu0 %3886
  %3888 = vrot.lane.b32.xlu0 %v25, 97
  %v3889 = vpop.permute.xlu0 %3888
  %3890 = vrot.lane.b32.xlu0 %v26, 97
  %v3891 = vpop.permute.xlu0 %3890
  %3892 = vrot.lane.b32.xlu0 %v27, 97
  %v3893 = vpop.permute.xlu0 %3892
  %3894 = vrot.lane.b32.xlu0 %v28, 97
  %v3895 = vpop.permute.xlu0 %3894
  %3896 = vrot.lane.b32.xlu0 %v29, 97
  %v3897 = vpop.permute.xlu0 %3896
  %3898 = vrot.lane.b32.xlu0 %v30, 97
  %v3899 = vpop.permute.xlu0 %3898
  %3900 = vrot.lane.b32.xlu0 %v31, 97
  %v3901 = vpop.permute.xlu0 %3900
  %3902 = vrot.lane.b32.xlu0 %v32, 97
  %v3903 = vpop.permute.xlu0 %3902
  %3904 = vrot.lane.b32.xlu0 %v33, 97
  %v3905 = vpop.permute.xlu0 %3904
  %3906 = vrot.lane.b32.xlu0 %v34, 97
  %v3907 = vpop.permute.xlu0 %3906
  %3908 = vrot.lane.b32.xlu0 %v35, 97
  %v3909 = vpop.permute.xlu0 %3908
  %3910 = vrot.lane.b32.xlu0 %v36, 97
  %v3911 = vpop.permute.xlu0 %3910
  %3912 = vrot.lane.b32.xlu0 %v37, 97
  %v3913 = vpop.permute.xlu0 %3912
  %3914 = vrot.lane.b32.xlu0 %v38, 97
  %v3915 = vpop.permute.xlu0 %3914
  %3916 = vrot.lane.b32.xlu0 %v39, 97
  %v3917 = vpop.permute.xlu0 %3916
  %3918 = vrot.lane.b32.xlu0 %v40, 97
  %v3919 = vpop.permute.xlu0 %3918
  %3920 = vrot.lane.b32.xlu0 %v41, 97
  %v3921 = vpop.permute.xlu0 %3920
  %3922 = vrot.lane.b32.xlu0 %v42, 97
  %v3923 = vpop.permute.xlu0 %3922
  %3924 = vrot.lane.b32.xlu0 %v43, 97
  %v3925 = vpop.permute.xlu0 %3924
  %3926 = vrot.lane.b32.xlu0 %v44, 97
  %v3927 = vpop.permute.xlu0 %3926
  %3928 = vrot.lane.b32.xlu0 %v45, 97
  %v3929 = vpop.permute.xlu0 %3928
  %3930 = vrot.lane.b32.xlu0 %v46, 97
  %v3931 = vpop.permute.xlu0 %3930
  %3932 = vrot.lane.b32.xlu0 %v47, 97
  %v3933 = vpop.permute.xlu0 %3932
  %3934 = vrot.lane.b32.xlu0 %v48, 97
  %v3935 = vpop.permute.xlu0 %3934
  %3936 = vrot.lane.b32.xlu0 %v49, 97
  %v3937 = vpop.permute.xlu0 %3936
  %3938 = vrot.lane.b32.xlu0 %v50, 97
  %v3939 = vpop.permute.xlu0 %3938
  %3940 = vrot.lane.b32.xlu0 %v51, 97
  %v3941 = vpop.permute.xlu0 %3940
  %3942 = vrot.lane.b32.xlu0 %v52, 97
  %v3943 = vpop.permute.xlu0 %3942
  %3944 = vrot.lane.b32.xlu0 %v53, 97
  %v3945 = vpop.permute.xlu0 %3944
  %3946 = vrot.lane.b32.xlu0 %v54, 97
  %v3947 = vpop.permute.xlu0 %3946
  %3948 = vrot.lane.b32.xlu0 %v55, 97
  %v3949 = vpop.permute.xlu0 %3948
  %3950 = vrot.lane.b32.xlu0 %v56, 97
  %v3951 = vpop.permute.xlu0 %3950
  %3952 = vrot.lane.b32.xlu0 %v57, 97
  %v3953 = vpop.permute.xlu0 %3952
  %3954 = vrot.lane.b32.xlu0 %v58, 97
  %v3955 = vpop.permute.xlu0 %3954
  %3956 = vrot.lane.b32.xlu0 %v59, 97
  %v3957 = vpop.permute.xlu0 %3956
  %3958 = vrot.lane.b32.xlu0 %v60, 97
  %v3959 = vpop.permute.xlu0 %3958
  %3960 = vrot.lane.b32.xlu0 %v61, 97
  %v3961 = vpop.permute.xlu0 %3960
  %3962 = vrot.lane.b32.xlu0 %v62, 97
  %v3963 = vpop.permute.xlu0 %3962
  %3964 = vrot.lane.b32.xlu0 %v63, 97
  %v3965 = vpop.permute.xlu0 %3964
  %3966 = vrot.lane.b32.xlu0 %v64, 97
  %v3967 = vpop.permute.xlu0 %3966
  %3968 = vrot.lane.b32.xlu0 %v65, 97
  %v3969 = vpop.permute.xlu0 %3968
  %3970 = vrot.lane.b32.xlu0 %v66, 97
  %v3971 = vpop.permute.xlu0 %3970
  %3972 = vrot.lane.b32.xlu0 %v67, 97
  %v3973 = vpop.permute.xlu0 %3972
  %3974 = vrot.lane.b32.xlu0 %v68, 97
  %v3975 = vpop.permute.xlu0 %3974
  %3976 = vrot.lane.b32.xlu0 %v69, 97
  %v3977 = vpop.permute.xlu0 %3976
  %3978 = vrot.lane.b32.xlu0 %v70, 97
  %v3979 = vpop.permute.xlu0 %3978
  %3980 = vrot.lane.b32.xlu0 %v71, 97
  %v3981 = vpop.permute.xlu0 %3980
  %3982 = vrot.lane.b32.xlu0 %v72, 97
  %v3983 = vpop.permute.xlu0 %3982
  %3984 = vrot.lane.b32.xlu0 %v73, 97
  %v3985 = vpop.permute.xlu0 %3984
  %3986 = vrot.lane.b32.xlu0 %v74, 97
  %v3987 = vpop.permute.xlu0 %3986
  %3988 = vrot.lane.b32.xlu0 %v75, 97
  %v3989 = vpop.permute.xlu0 %3988
  %3990 = vrot.lane.b32.xlu0 %v76, 97
  %v3991 = vpop.permute.xlu0 %3990
  %3992 = vrot.lane.b32.xlu0 %v77, 97
  %v3993 = vpop.permute.xlu0 %3992
  %3994 = vrot.lane.b32.xlu0 %v78, 97
  %v3995 = vpop.permute.xlu0 %3994
  %3996 = vrot.lane.b32.xlu0 %v79, 97
  %v3997 = vpop.permute.xlu0 %3996
  %3998 = vrot.lane.b32.xlu0 %v80, 97
  %v3999 = vpop.permute.xlu0 %3998
  %4000 = vrot.lane.b32.xlu0 %v81, 97
  %v4001 = vpop.permute.xlu0 %4000
  %4002 = vrot.lane.b32.xlu0 %v82, 97
  %v4003 = vpop.permute.xlu0 %4002
  %4004 = vrot.lane.b32.xlu0 %v83, 97
  %v4005 = vpop.permute.xlu0 %4004
  %4006 = vrot.lane.b32.xlu0 %v84, 97
  %v4007 = vpop.permute.xlu0 %4006
  %4008 = vrot.lane.b32.xlu0 %v85, 97
  %v4009 = vpop.permute.xlu0 %4008
  %4010 = vrot.lane.b32.xlu0 %v86, 97
  %v4011 = vpop.permute.xlu0 %4010
  %4012 = vrot.lane.b32.xlu0 %v87, 97
  %v4013 = vpop.permute.xlu0 %4012
  %4014 = vrot.lane.b32.xlu0 %v88, 97
  %v4015 = vpop.permute.xlu0 %4014
  %4016 = vrot.lane.b32.xlu0 %v89, 97
  %v4017 = vpop.permute.xlu0 %4016
  %4018 = vrot.lane.b32.xlu0 %v90, 97
  %v4019 = vpop.permute.xlu0 %4018
  %4020 = vrot.lane.b32.xlu0 %v91, 97
  %v4021 = vpop.permute.xlu0 %4020
  %4022 = vrot.lane.b32.xlu0 %v92, 97
  %v4023 = vpop.permute.xlu0 %4022
  %4024 = vrot.lane.b32.xlu0 %v93, 97
  %v4025 = vpop.permute.xlu0 %4024
  %4026 = vrot.lane.b32.xlu0 %v94, 97
  %v4027 = vpop.permute.xlu0 %4026
  %4028 = vrot.lane.b32.xlu0 %v95, 97
  %v4029 = vpop.permute.xlu0 %4028
  %4030 = vrot.lane.b32.xlu0 %v96, 97
  %v4031 = vpop.permute.xlu0 %4030
  %4032 = vrot.lane.b32.xlu0 %v97, 97
  %v4033 = vpop.permute.xlu0 %4032
  %4034 = vrot.lane.b32.xlu0 %v98, 97
  %v4035 = vpop.permute.xlu0 %4034
  %4036 = vrot.lane.b32.xlu0 %v99, 97
  %v4037 = vpop.permute.xlu0 %4036
  %4038 = vrot.lane.b32.xlu0 %v100, 97
  %v4039 = vpop.permute.xlu0 %4038
  %4040 = vrot.lane.b32.xlu0 %v101, 97
  %v4041 = vpop.permute.xlu0 %4040
  %4042 = vrot.lane.b32.xlu0 %v102, 97
  %v4043 = vpop.permute.xlu0 %4042
  %4044 = vrot.lane.b32.xlu0 %v103, 97
  %v4045 = vpop.permute.xlu0 %4044
  %4046 = vrot.lane.b32.xlu0 %v104, 97
  %v4047 = vpop.permute.xlu0 %4046
  %4048 = vrot.lane.b32.xlu0 %v105, 97
  %v4049 = vpop.permute.xlu0 %4048
  %4050 = vrot.lane.b32.xlu0 %v106, 97
  %v4051 = vpop.permute.xlu0 %4050
  %4052 = vrot.lane.b32.xlu0 %v109, 97
  %v4053 = vpop.permute.xlu0 %4052
  %4054 = vrot.lane.b32.xlu0 %v110, 97
  %v4055 = vpop.permute.xlu0 %4054
  %4056 = vrot.lane.b32.xlu0 %v111, 97
  %v4057 = vpop.permute.xlu0 %4056
  %4058 = vrot.lane.b32.xlu0 %v112, 97
  %v4059 = vpop.permute.xlu0 %4058
  %4060 = vrot.lane.b32.xlu0 %v113, 97
  %v4061 = vpop.permute.xlu0 %4060
  %4062 = vrot.lane.b32.xlu0 %v114, 97
  %v4063 = vpop.permute.xlu0 %4062
  %4064 = vrot.lane.b32.xlu0 %v115, 97
  %v4065 = vpop.permute.xlu0 %4064
  %4066 = vrot.lane.b32.xlu0 %v116, 97
  %v4067 = vpop.permute.xlu0 %4066
  %4068 = vrot.lane.b32.xlu0 %v117, 97
  %v4069 = vpop.permute.xlu0 %4068
  %4070 = vrot.lane.b32.xlu0 %v118, 97
  %v4071 = vpop.permute.xlu0 %4070
  %4072 = vrot.lane.b32.xlu0 %v119, 97
  %v4073 = vpop.permute.xlu0 %4072
  %4074 = vrot.lane.b32.xlu0 %v120, 97
  %v4075 = vpop.permute.xlu0 %4074
  %4076 = vrot.lane.b32.xlu0 %v121, 97
  %v4077 = vpop.permute.xlu0 %4076
  %4078 = vrot.lane.b32.xlu0 %v122, 97
  %v4079 = vpop.permute.xlu0 %4078
  %4080 = vrot.lane.b32.xlu0 %v123, 97
  %v4081 = vpop.permute.xlu0 %4080
  %4082 = vrot.lane.b32.xlu0 %v124, 97
  %v4083 = vpop.permute.xlu0 %4082
  %4084 = vrot.lane.b32.xlu0 %v125, 97
  %v4085 = vpop.permute.xlu0 %4084
  %4086 = vrot.lane.b32.xlu0 %v126, 97
  %v4087 = vpop.permute.xlu0 %4086
  %4088 = vrot.lane.b32.xlu0 %v127, 97
  %v4089 = vpop.permute.xlu0 %4088
  %4090 = vrot.lane.b32.xlu0 %v128, 97
  %v4091 = vpop.permute.xlu0 %4090
  %4092 = vrot.lane.b32.xlu0 %v129, 97
  %v4093 = vpop.permute.xlu0 %4092
  %4094 = vrot.lane.b32.xlu0 %v130, 97
  %v4095 = vpop.permute.xlu0 %4094
  %4096 = vrot.lane.b32.xlu0 %v131, 97
  %v4097 = vpop.permute.xlu0 %4096
  %4098 = vrot.lane.b32.xlu0 %v132, 97
  %v4099 = vpop.permute.xlu0 %4098
  %4100 = vrot.lane.b32.xlu0 %v133, 97
  %v4101 = vpop.permute.xlu0 %4100
  %4102 = vrot.lane.b32.xlu0 %v134, 97
  %v4103 = vpop.permute.xlu0 %4102
  %4104 = vrot.lane.b32.xlu0 %v135, 97
  %v4105 = vpop.permute.xlu0 %4104
  %4106 = vrot.lane.b32.xlu0 %v136, 97
  %v4107 = vpop.permute.xlu0 %4106
  %4108 = vrot.lane.b32.xlu0 %v137, 97
  %v4109 = vpop.permute.xlu0 %4108
  %4110 = vrot.lane.b32.xlu0 %v138, 97
  %v4111 = vpop.permute.xlu0 %4110
  %4112 = vrot.lane.b32.xlu0 %v139, 97
  %v4113 = vpop.permute.xlu0 %4112
  %4114 = vrot.lane.b32.xlu0 %v140, 97
  %v4115 = vpop.permute.xlu0 %4114
  %4116 = vrot.lane.b32.xlu0 %v141, 97
  %v4117 = vpop.permute.xlu0 %4116
  %4118 = vrot.lane.b32.xlu0 %v142, 97
  %v4119 = vpop.permute.xlu0 %4118
  %4120 = vrot.lane.b32.xlu0 %v143, 97
  %v4121 = vpop.permute.xlu0 %4120
  %4122 = vrot.lane.b32.xlu0 %v144, 97
  %v4123 = vpop.permute.xlu0 %4122
  %4124 = vrot.lane.b32.xlu0 %v145, 97
  %v4125 = vpop.permute.xlu0 %4124
  %4126 = vrot.lane.b32.xlu0 %v146, 97
  %v4127 = vpop.permute.xlu0 %4126
  %4128 = vrot.lane.b32.xlu0 %v147, 97
  %v4129 = vpop.permute.xlu0 %4128
  %4130 = vrot.lane.b32.xlu0 %v148, 97
  %v4131 = vpop.permute.xlu0 %4130
  %4132 = vrot.lane.b32.xlu0 %v149, 97
  %v4133 = vpop.permute.xlu0 %4132
  %4134 = vrot.lane.b32.xlu0 %v150, 97
  %v4135 = vpop.permute.xlu0 %4134
  %4136 = vrot.lane.b32.xlu0 %v151, 97
  %v4137 = vpop.permute.xlu0 %4136
  %4138 = vrot.lane.b32.xlu0 %v152, 97
  %v4139 = vpop.permute.xlu0 %4138
  %4140 = vrot.lane.b32.xlu0 %v153, 97
  %v4141 = vpop.permute.xlu0 %4140
  %4142 = vrot.lane.b32.xlu0 %v154, 97
  %v4143 = vpop.permute.xlu0 %4142
  %4144 = vrot.lane.b32.xlu0 %v155, 97
  %v4145 = vpop.permute.xlu0 %4144
  %4146 = vrot.lane.b32.xlu0 %v156, 97
  %v4147 = vpop.permute.xlu0 %4146
  %4148 = vrot.lane.b32.xlu0 %v157, 97
  %v4149 = vpop.permute.xlu0 %4148
  %4150 = vrot.lane.b32.xlu0 %v158, 97
  %v4151 = vpop.permute.xlu0 %4150
  %4152 = vrot.lane.b32.xlu0 %v159, 97
  %v4153 = vpop.permute.xlu0 %4152
  %4154 = vrot.lane.b32.xlu0 %v160, 97
  %v4155 = vpop.permute.xlu0 %4154
  %4156 = vrot.lane.b32.xlu0 %v161, 97
  %v4157 = vpop.permute.xlu0 %4156
  %4158 = vrot.lane.b32.xlu0 %v162, 97
  %v4159 = vpop.permute.xlu0 %4158
  %4160 = vrot.lane.b32.xlu0 %v163, 97
  %v4161 = vpop.permute.xlu0 %4160
  %4162 = vrot.lane.b32.xlu0 %v164, 97
  %v4163 = vpop.permute.xlu0 %4162
  %4164 = vrot.lane.b32.xlu0 %v165, 97
  %v4165 = vpop.permute.xlu0 %4164
  %4166 = vrot.lane.b32.xlu0 %v166, 97
  %v4167 = vpop.permute.xlu0 %4166
  %4168 = vrot.lane.b32.xlu0 %v167, 97
  %v4169 = vpop.permute.xlu0 %4168
  %4170 = vrot.lane.b32.xlu0 %v168, 97
  %v4171 = vpop.permute.xlu0 %4170
  %4172 = vrot.lane.b32.xlu0 %v169, 97
  %v4173 = vpop.permute.xlu0 %4172
  %4174 = vrot.lane.b32.xlu0 %v170, 97
  %v4175 = vpop.permute.xlu0 %4174
  %4176 = vrot.lane.b32.xlu0 %v171, 97
  %v4177 = vpop.permute.xlu0 %4176
  %4178 = vrot.lane.b32.xlu0 %v172, 97
  %v4179 = vpop.permute.xlu0 %4178
  %4180 = vrot.lane.b32.xlu0 %v173, 97
  %v4181 = vpop.permute.xlu0 %4180
  %4182 = vrot.lane.b32.xlu0 %v174, 97
  %v4183 = vpop.permute.xlu0 %4182
  %4184 = vrot.lane.b32.xlu0 %v175, 97
  %v4185 = vpop.permute.xlu0 %4184
  %4186 = vrot.lane.b32.xlu0 %v176, 97
  %v4187 = vpop.permute.xlu0 %4186
  %4188 = vrot.lane.b32.xlu0 %v177, 97
  %v4189 = vpop.permute.xlu0 %4188
  %4190 = vrot.lane.b32.xlu0 %v178, 97
  %v4191 = vpop.permute.xlu0 %4190
  %4192 = vrot.lane.b32.xlu0 %v179, 97
  %v4193 = vpop.permute.xlu0 %4192
  %4194 = vrot.lane.b32.xlu0 %v180, 97
  %v4195 = vpop.permute.xlu0 %4194
  %4196 = vrot.lane.b32.xlu0 %v181, 97
  %v4197 = vpop.permute.xlu0 %4196
  %4198 = vrot.lane.b32.xlu0 %v182, 97
  %v4199 = vpop.permute.xlu0 %4198
  %4200 = vrot.lane.b32.xlu0 %v183, 97
  %v4201 = vpop.permute.xlu0 %4200
  %4202 = vrot.lane.b32.xlu0 %v184, 97
  %v4203 = vpop.permute.xlu0 %4202
  %4204 = vrot.lane.b32.xlu0 %v185, 97
  %v4205 = vpop.permute.xlu0 %4204
  %4206 = vrot.lane.b32.xlu0 %v186, 97
  %v4207 = vpop.permute.xlu0 %4206
  %4208 = vrot.lane.b32.xlu0 %v187, 97
  %v4209 = vpop.permute.xlu0 %4208
  %4210 = vrot.lane.b32.xlu0 %v188, 97
  %v4211 = vpop.permute.xlu0 %4210
  %4212 = vrot.lane.b32.xlu0 %v189, 97
  %v4213 = vpop.permute.xlu0 %4212
  %4214 = vrot.lane.b32.xlu0 %v190, 97
  %v4215 = vpop.permute.xlu0 %4214
  %4216 = vrot.lane.b32.xlu0 %v191, 97
  %v4217 = vpop.permute.xlu0 %4216
  %4218 = vrot.lane.b32.xlu0 %v192, 97
  %v4219 = vpop.permute.xlu0 %4218
  %4220 = vrot.lane.b32.xlu0 %v193, 97
  %v4221 = vpop.permute.xlu0 %4220
  %4222 = vrot.lane.b32.xlu0 %v194, 97
  %v4223 = vpop.permute.xlu0 %4222
  %4224 = vrot.lane.b32.xlu0 %v195, 97
  %v4225 = vpop.permute.xlu0 %4224
  %4226 = vrot.lane.b32.xlu0 %v196, 97
  %v4227 = vpop.permute.xlu0 %4226
  %4228 = vrot.lane.b32.xlu0 %v197, 97
  %v4229 = vpop.permute.xlu0 %4228
  %4230 = vrot.lane.b32.xlu0 %v198, 97
  %v4231 = vpop.permute.xlu0 %4230
  %4232 = vrot.lane.b32.xlu0 %v199, 97
  %v4233 = vpop.permute.xlu0 %4232
  %4234 = vrot.lane.b32.xlu0 %v200, 97
  %v4235 = vpop.permute.xlu0 %4234
  %4236 = vrot.lane.b32.xlu0 %v201, 97
  %v4237 = vpop.permute.xlu0 %4236
  %4238 = vrot.lane.b32.xlu0 %v202, 97
  %v4239 = vpop.permute.xlu0 %4238
  %4240 = vrot.lane.b32.xlu0 %v203, 97
  %v4241 = vpop.permute.xlu0 %4240
  %4242 = vrot.lane.b32.xlu0 %v204, 97
  %v4243 = vpop.permute.xlu0 %4242
  %4244 = vrot.lane.b32.xlu0 %v207, 97
  %v4245 = vpop.permute.xlu0 %4244
  %4246 = vrot.lane.b32.xlu0 %v208, 97
  %v4247 = vpop.permute.xlu0 %4246
  %4248 = vrot.lane.b32.xlu0 %v209, 97
  %v4249 = vpop.permute.xlu0 %4248
  %4250 = vrot.lane.b32.xlu0 %v210, 97
  %v4251 = vpop.permute.xlu0 %4250
  %4252 = vrot.lane.b32.xlu0 %v211, 97
  %v4253 = vpop.permute.xlu0 %4252
  %4254 = vrot.lane.b32.xlu0 %v212, 97
  %v4255 = vpop.permute.xlu0 %4254
  %4256 = vrot.lane.b32.xlu0 %v213, 97
  %v4257 = vpop.permute.xlu0 %4256
  %4258 = vrot.lane.b32.xlu0 %v214, 97
  %v4259 = vpop.permute.xlu0 %4258
  %4260 = vrot.lane.b32.xlu0 %v215, 97
  %v4261 = vpop.permute.xlu0 %4260
  %4262 = vrot.lane.b32.xlu0 %v216, 97
  %v4263 = vpop.permute.xlu0 %4262
  %4264 = vrot.lane.b32.xlu0 %v217, 97
  %v4265 = vpop.permute.xlu0 %4264
  %4266 = vrot.lane.b32.xlu0 %v218, 97
  %v4267 = vpop.permute.xlu0 %4266
  %4268 = vrot.lane.b32.xlu0 %v219, 97
  %v4269 = vpop.permute.xlu0 %4268
  %4270 = vrot.lane.b32.xlu0 %v220, 97
  %v4271 = vpop.permute.xlu0 %4270
  %4272 = vrot.lane.b32.xlu0 %v221, 97
  %v4273 = vpop.permute.xlu0 %4272
  %4274 = vrot.lane.b32.xlu0 %v222, 97
  %v4275 = vpop.permute.xlu0 %4274
  %4276 = vrot.lane.b32.xlu0 %v223, 97
  %v4277 = vpop.permute.xlu0 %4276
  %4278 = vrot.lane.b32.xlu0 %v224, 97
  %v4279 = vpop.permute.xlu0 %4278
  %4280 = vrot.lane.b32.xlu0 %v225, 97
  %v4281 = vpop.permute.xlu0 %4280
  %4282 = vrot.lane.b32.xlu0 %v226, 97
  %v4283 = vpop.permute.xlu0 %4282
  %4284 = vrot.lane.b32.xlu0 %v227, 97
  %v4285 = vpop.permute.xlu0 %4284
  %4286 = vrot.lane.b32.xlu0 %v228, 97
  %v4287 = vpop.permute.xlu0 %4286
  %4288 = vrot.lane.b32.xlu0 %v229, 97
  %v4289 = vpop.permute.xlu0 %4288
  %4290 = vrot.lane.b32.xlu0 %v230, 97
  %v4291 = vpop.permute.xlu0 %4290
  %4292 = vrot.lane.b32.xlu0 %v231, 97
  %v4293 = vpop.permute.xlu0 %4292
  %4294 = vrot.lane.b32.xlu0 %v232, 97
  %v4295 = vpop.permute.xlu0 %4294
  %4296 = vrot.lane.b32.xlu0 %v233, 97
  %v4297 = vpop.permute.xlu0 %4296
  %4298 = vrot.lane.b32.xlu0 %v234, 97
  %v4299 = vpop.permute.xlu0 %4298
  %4300 = vrot.lane.b32.xlu0 %v235, 97
  %v4301 = vpop.permute.xlu0 %4300
  %4302 = vrot.lane.b32.xlu0 %v236, 97
  %v4303 = vpop.permute.xlu0 %4302
  %4304 = vrot.lane.b32.xlu0 %v237, 97
  %v4305 = vpop.permute.xlu0 %4304
  %4306 = vrot.lane.b32.xlu0 %v238, 97
  %v4307 = vpop.permute.xlu0 %4306
  %4308 = vrot.lane.b32.xlu0 %v239, 97
  %v4309 = vpop.permute.xlu0 %4308
  %4310 = vrot.lane.b32.xlu0 %v240, 97
  %v4311 = vpop.permute.xlu0 %4310
  %4312 = vrot.lane.b32.xlu0 %v241, 97
  %v4313 = vpop.permute.xlu0 %4312
  %4314 = vrot.lane.b32.xlu0 %v242, 97
  %v4315 = vpop.permute.xlu0 %4314
  %4316 = vrot.lane.b32.xlu0 %v243, 97
  %v4317 = vpop.permute.xlu0 %4316
  %4318 = vrot.lane.b32.xlu0 %v244, 97
  %v4319 = vpop.permute.xlu0 %4318
  %4320 = vrot.lane.b32.xlu0 %v245, 97
  %v4321 = vpop.permute.xlu0 %4320
  %4322 = vrot.lane.b32.xlu0 %v246, 97
  %v4323 = vpop.permute.xlu0 %4322
  %4324 = vrot.lane.b32.xlu0 %v247, 97
  %v4325 = vpop.permute.xlu0 %4324
  %4326 = vrot.lane.b32.xlu0 %v248, 97
  %v4327 = vpop.permute.xlu0 %4326
  %4328 = vrot.lane.b32.xlu0 %v249, 97
  %v4329 = vpop.permute.xlu0 %4328
  %4330 = vrot.lane.b32.xlu0 %v250, 97
  %v4331 = vpop.permute.xlu0 %4330
  %4332 = vrot.lane.b32.xlu0 %v251, 97
  %v4333 = vpop.permute.xlu0 %4332
  %4334 = vrot.lane.b32.xlu0 %v252, 97
  %v4335 = vpop.permute.xlu0 %4334
  %4336 = vrot.lane.b32.xlu0 %v253, 97
  %v4337 = vpop.permute.xlu0 %4336
  %4338 = vrot.lane.b32.xlu0 %v254, 97
  %v4339 = vpop.permute.xlu0 %4338
  %4340 = vrot.lane.b32.xlu0 %v255, 97
  %v4341 = vpop.permute.xlu0 %4340
  %4342 = vrot.lane.b32.xlu0 %v256, 97
  %v4343 = vpop.permute.xlu0 %4342
  %4344 = vrot.lane.b32.xlu0 %v257, 97
  %v4345 = vpop.permute.xlu0 %4344
  %4346 = vrot.lane.b32.xlu0 %v258, 97
  %v4347 = vpop.permute.xlu0 %4346
  %4348 = vrot.lane.b32.xlu0 %v259, 97
  %v4349 = vpop.permute.xlu0 %4348
  %4350 = vrot.lane.b32.xlu0 %v260, 97
  %v4351 = vpop.permute.xlu0 %4350
  %4352 = vrot.lane.b32.xlu0 %v261, 97
  %v4353 = vpop.permute.xlu0 %4352
  %4354 = vrot.lane.b32.xlu0 %v262, 97
  %v4355 = vpop.permute.xlu0 %4354
  %4356 = vrot.lane.b32.xlu0 %v263, 97
  %v4357 = vpop.permute.xlu0 %4356
  %4358 = vrot.lane.b32.xlu0 %v264, 97
  %v4359 = vpop.permute.xlu0 %4358
  %4360 = vrot.lane.b32.xlu0 %v265, 97
  %v4361 = vpop.permute.xlu0 %4360
  %4362 = vrot.lane.b32.xlu0 %v266, 97
  %v4363 = vpop.permute.xlu0 %4362
  %4364 = vrot.lane.b32.xlu0 %v267, 97
  %v4365 = vpop.permute.xlu0 %4364
  %4366 = vrot.lane.b32.xlu0 %v268, 97
  %v4367 = vpop.permute.xlu0 %4366
  %4368 = vrot.lane.b32.xlu0 %v269, 97
  %v4369 = vpop.permute.xlu0 %4368
  %4370 = vrot.lane.b32.xlu0 %v270, 97
  %v4371 = vpop.permute.xlu0 %4370
  %4372 = vrot.lane.b32.xlu0 %v271, 97
  %v4373 = vpop.permute.xlu0 %4372
  %4374 = vrot.lane.b32.xlu0 %v272, 97
  %v4375 = vpop.permute.xlu0 %4374
  %4376 = vrot.lane.b32.xlu0 %v273, 97
  %v4377 = vpop.permute.xlu0 %4376
  %4378 = vrot.lane.b32.xlu0 %v274, 97
  %v4379 = vpop.permute.xlu0 %4378
  %4380 = vrot.lane.b32.xlu0 %v275, 97
  %v4381 = vpop.permute.xlu0 %4380
  %4382 = vrot.lane.b32.xlu0 %v276, 97
  %v4383 = vpop.permute.xlu0 %4382
  %4384 = vrot.lane.b32.xlu0 %v277, 97
  %v4385 = vpop.permute.xlu0 %4384
  %4386 = vrot.lane.b32.xlu0 %v278, 97
  %v4387 = vpop.permute.xlu0 %4386
  %4388 = vrot.lane.b32.xlu0 %v279, 97
  %v4389 = vpop.permute.xlu0 %4388
  %4390 = vrot.lane.b32.xlu0 %v280, 97
  %v4391 = vpop.permute.xlu0 %4390
  %4392 = vrot.lane.b32.xlu0 %v281, 97
  %v4393 = vpop.permute.xlu0 %4392
  %4394 = vrot.lane.b32.xlu0 %v282, 97
  %v4395 = vpop.permute.xlu0 %4394
  %4396 = vrot.lane.b32.xlu0 %v283, 97
  %v4397 = vpop.permute.xlu0 %4396
  %4398 = vrot.lane.b32.xlu0 %v284, 97
  %v4399 = vpop.permute.xlu0 %4398
  %4400 = vrot.lane.b32.xlu0 %v285, 97
  %v4401 = vpop.permute.xlu0 %4400
  %4402 = vrot.lane.b32.xlu0 %v286, 97
  %v4403 = vpop.permute.xlu0 %4402
  %4404 = vrot.lane.b32.xlu0 %v287, 97
  %v4405 = vpop.permute.xlu0 %4404
  %4406 = vrot.lane.b32.xlu0 %v288, 97
  %v4407 = vpop.permute.xlu0 %4406
  %4408 = vrot.lane.b32.xlu0 %v289, 97
  %v4409 = vpop.permute.xlu0 %4408
  %4410 = vrot.lane.b32.xlu0 %v290, 97
  %v4411 = vpop.permute.xlu0 %4410
  %4412 = vrot.lane.b32.xlu0 %v291, 97
  %v4413 = vpop.permute.xlu0 %4412
  %4414 = vrot.lane.b32.xlu0 %v292, 97
  %v4415 = vpop.permute.xlu0 %4414
  %4416 = vrot.lane.b32.xlu0 %v293, 97
  %v4417 = vpop.permute.xlu0 %4416
  %4418 = vrot.lane.b32.xlu0 %v294, 97
  %v4419 = vpop.permute.xlu0 %4418
  %4420 = vrot.lane.b32.xlu0 %v295, 97
  %v4421 = vpop.permute.xlu0 %4420
  %4422 = vrot.lane.b32.xlu0 %v296, 97
  %v4423 = vpop.permute.xlu0 %4422
  %4424 = vrot.lane.b32.xlu0 %v297, 97
  %v4425 = vpop.permute.xlu0 %4424
  %4426 = vrot.lane.b32.xlu0 %v298, 97
  %v4427 = vpop.permute.xlu0 %4426
  %4428 = vrot.lane.b32.xlu0 %v299, 97
  %v4429 = vpop.permute.xlu0 %4428
  %4430 = vrot.lane.b32.xlu0 %v300, 97
  %v4431 = vpop.permute.xlu0 %4430
  %4432 = vrot.lane.b32.xlu0 %v301, 97
  %v4433 = vpop.permute.xlu0 %4432
  %4434 = vrot.lane.b32.xlu0 %v302, 97
  %v4435 = vpop.permute.xlu0 %4434
  %v4436 = vsel %vm3850, %v3861, %v3863
  %v4437 = vsel %vm3850, %v3863, %v3865
  %v4438 = vsel %vm3850, %v3865, %v3867
  %v4439 = vsel %vm3850, %v3867, %v3869
  %v4440 = vsel %vm3850, %v3869, %v3871
  %v4441 = vsel %vm3850, %v3871, %v3873
  %v4442 = vsel %vm3850, %v3873, %v3875
  %v4443 = vsel %vm3850, %v3875, %v3877
  %v4444 = vsel %vm3850, %v3877, %v3879
  %v4445 = vsel %vm3850, %v3879, %v3881
  %v4446 = vsel %vm3850, %v3881, %v3883
  %v4447 = vsel %vm3850, %v3883, %v3885
  %v4448 = vsel %vm3850, %v3885, %v3887
  %v4449 = vsel %vm3850, %v3887, %v3889
  %v4450 = vsel %vm3850, %v3889, %v3891
  %v4451 = vsel %vm3850, %v3891, %v3893
  %v4452 = vsel %vm3850, %v3893, %v3895
  %v4453 = vsel %vm3850, %v3895, %v3897
  %v4454 = vsel %vm3850, %v3897, %v3899
  %v4455 = vsel %vm3850, %v3899, %v3901
  %v4456 = vsel %vm3850, %v3901, %v3903
  %v4457 = vsel %vm3850, %v3903, %v3905
  %v4458 = vsel %vm3850, %v3905, %v3907
  %v4459 = vsel %vm3850, %v3907, %v3909
  %v4460 = vsel %vm3850, %v3909, %v3911
  %v4461 = vsel %vm3850, %v3911, %v3913
  %v4462 = vsel %vm3850, %v3913, %v3915
  %v4463 = vsel %vm3850, %v3915, %v3917
  %v4464 = vsel %vm3850, %v3917, %v3919
  %v4465 = vsel %vm3850, %v3919, %v3921
  %v4466 = vsel %vm3850, %v3921, %v3923
  %v4467 = vsel %vm3850, %v3923, %v3925
  %v4468 = vsel %vm3850, %v3925, %v3927
  %v4469 = vsel %vm3850, %v3927, %v3929
  %v4470 = vsel %vm3850, %v3929, %v3931
  %v4471 = vsel %vm3850, %v3931, %v3933
  %v4472 = vsel %vm3850, %v3933, %v3935
  %v4473 = vsel %vm3850, %v3935, %v3937
  %v4474 = vsel %vm3850, %v3937, %v3939
  %v4475 = vsel %vm3850, %v3939, %v3941
  %v4476 = vsel %vm3850, %v3941, %v3943
  %v4477 = vsel %vm3850, %v3943, %v3945
  %v4478 = vsel %vm3850, %v3945, %v3947
  %v4479 = vsel %vm3850, %v3947, %v3949
  %v4480 = vsel %vm3850, %v3949, %v3951
  %v4481 = vsel %vm3850, %v3951, %v3953
  %v4482 = vsel %vm3850, %v3953, %v3955
  %v4483 = vsel %vm3850, %v3955, %v3957
  %v4484 = vsel %vm3850, %v3957, %v3959
  %v4485 = vsel %vm3850, %v3959, %v3961
  %v4486 = vsel %vm3850, %v3961, %v3963
  %v4487 = vsel %vm3850, %v3963, %v3965
  %v4488 = vsel %vm3850, %v3965, %v3967
  %v4489 = vsel %vm3850, %v3967, %v3969
  %v4490 = vsel %vm3850, %v3969, %v3971
  %v4491 = vsel %vm3850, %v3971, %v3973
  %v4492 = vsel %vm3850, %v3973, %v3975
  %v4493 = vsel %vm3850, %v3975, %v3977
  %v4494 = vsel %vm3850, %v3977, %v3979
  %v4495 = vsel %vm3850, %v3979, %v3981
  %v4496 = vsel %vm3850, %v3981, %v3983
  %v4497 = vsel %vm3850, %v3983, %v3985
  %v4498 = vsel %vm3850, %v3985, %v3987
  %v4499 = vsel %vm3850, %v3987, %v3989
  %v4500 = vsel %vm3850, %v3989, %v3991
  %v4501 = vsel %vm3850, %v3991, %v3993
  %v4502 = vsel %vm3850, %v3993, %v3995
  %v4503 = vsel %vm3850, %v3995, %v3997
  %v4504 = vsel %vm3850, %v3997, %v3999
  %v4505 = vsel %vm3850, %v3999, %v4001
  %v4506 = vsel %vm3850, %v4001, %v4003
  %v4507 = vsel %vm3850, %v4003, %v4005
  %v4508 = vsel %vm3850, %v4005, %v4007
  %v4509 = vsel %vm3850, %v4007, %v4009
  %v4510 = vsel %vm3850, %v4009, %v4011
  %v4511 = vsel %vm3850, %v4011, %v4013
  %v4512 = vsel %vm3850, %v4013, %v4015
  %v4513 = vsel %vm3850, %v4015, %v4017
  %v4514 = vsel %vm3850, %v4017, %v4019
  %v4515 = vsel %vm3850, %v4019, %v4021
  %v4516 = vsel %vm3850, %v4021, %v4023
  %v4517 = vsel %vm3850, %v4023, %v4025
  %v4518 = vsel %vm3850, %v4025, %v4027
  %v4519 = vsel %vm3850, %v4027, %v4029
  %v4520 = vsel %vm3850, %v4029, %v4031
  %v4521 = vsel %vm3850, %v4031, %v4033
  %v4522 = vsel %vm3850, %v4033, %v4035
  %v4523 = vsel %vm3850, %v4035, %v4037
  %v4524 = vsel %vm3850, %v4037, %v4039
  %v4525 = vsel %vm3850, %v4039, %v4041
  %v4526 = vsel %vm3850, %v4041, %v4043
  %v4527 = vsel %vm3850, %v4043, %v4045
  %v4528 = vsel %vm3850, %v4045, %v4047
  %v4529 = vsel %vm3850, %v4047, %v4049
  %v4530 = vsel %vm3850, %v4049, %v4051
  %v4531 = vsel %vm3850, %v4051, %v3839
  %v4532 = vsel %vm3850, %v4053, %v4055
  %v4533 = vsel %vm3850, %v4055, %v4057
  %v4534 = vsel %vm3850, %v4057, %v4059
  %v4535 = vsel %vm3850, %v4059, %v4061
  %v4536 = vsel %vm3850, %v4061, %v4063
  %v4537 = vsel %vm3850, %v4063, %v4065
  %v4538 = vsel %vm3850, %v4065, %v4067
  %v4539 = vsel %vm3850, %v4067, %v4069
  %v4540 = vsel %vm3850, %v4069, %v4071
  %v4541 = vsel %vm3850, %v4071, %v4073
  %v4542 = vsel %vm3850, %v4073, %v4075
  %v4543 = vsel %vm3850, %v4075, %v4077
  %v4544 = vsel %vm3850, %v4077, %v4079
  %v4545 = vsel %vm3850, %v4079, %v4081
  %v4546 = vsel %vm3850, %v4081, %v4083
  %v4547 = vsel %vm3850, %v4083, %v4085
  %v4548 = vsel %vm3850, %v4085, %v4087
  %v4549 = vsel %vm3850, %v4087, %v4089
  %v4550 = vsel %vm3850, %v4089, %v4091
  %v4551 = vsel %vm3850, %v4091, %v4093
  %v4552 = vsel %vm3850, %v4093, %v4095
  %v4553 = vsel %vm3850, %v4095, %v4097
  %v4554 = vsel %vm3850, %v4097, %v4099
  %v4555 = vsel %vm3850, %v4099, %v4101
  %v4556 = vsel %vm3850, %v4101, %v4103
  %v4557 = vsel %vm3850, %v4103, %v4105
  %v4558 = vsel %vm3850, %v4105, %v4107
  %v4559 = vsel %vm3850, %v4107, %v4109
  %v4560 = vsel %vm3850, %v4109, %v4111
  %v4561 = vsel %vm3850, %v4111, %v4113
  %v4562 = vsel %vm3850, %v4113, %v4115
  %v4563 = vsel %vm3850, %v4115, %v4117
  %v4564 = vsel %vm3850, %v4117, %v4119
  %v4565 = vsel %vm3850, %v4119, %v4121
  %v4566 = vsel %vm3850, %v4121, %v4123
  %v4567 = vsel %vm3850, %v4123, %v4125
  %v4568 = vsel %vm3850, %v4125, %v4127
  %v4569 = vsel %vm3850, %v4127, %v4129
  %v4570 = vsel %vm3850, %v4129, %v4131
  %v4571 = vsel %vm3850, %v4131, %v4133
  %v4572 = vsel %vm3850, %v4133, %v4135
  %v4573 = vsel %vm3850, %v4135, %v4137
  %v4574 = vsel %vm3850, %v4137, %v4139
  %v4575 = vsel %vm3850, %v4139, %v4141
  %v4576 = vsel %vm3850, %v4141, %v4143
  %v4577 = vsel %vm3850, %v4143, %v4145
  %v4578 = vsel %vm3850, %v4145, %v4147
  %v4579 = vsel %vm3850, %v4147, %v4149
  %v4580 = vsel %vm3850, %v4149, %v4151
  %v4581 = vsel %vm3850, %v4151, %v4153
  %v4582 = vsel %vm3850, %v4153, %v4155
  %v4583 = vsel %vm3850, %v4155, %v4157
  %v4584 = vsel %vm3850, %v4157, %v4159
  %v4585 = vsel %vm3850, %v4159, %v4161
  %v4586 = vsel %vm3850, %v4161, %v4163
  %v4587 = vsel %vm3850, %v4163, %v4165
  %v4588 = vsel %vm3850, %v4165, %v4167
  %v4589 = vsel %vm3850, %v4167, %v4169
  %v4590 = vsel %vm3850, %v4169, %v4171
  %v4591 = vsel %vm3850, %v4171, %v4173
  %v4592 = vsel %vm3850, %v4173, %v4175
  %v4593 = vsel %vm3850, %v4175, %v4177
  %v4594 = vsel %vm3850, %v4177, %v4179
  %v4595 = vsel %vm3850, %v4179, %v4181
  %v4596 = vsel %vm3850, %v4181, %v4183
  %v4597 = vsel %vm3850, %v4183, %v4185
  %v4598 = vsel %vm3850, %v4185, %v4187
  %v4599 = vsel %vm3850, %v4187, %v4189
  %v4600 = vsel %vm3850, %v4189, %v4191
  %v4601 = vsel %vm3850, %v4191, %v4193
  %v4602 = vsel %vm3850, %v4193, %v4195
  %v4603 = vsel %vm3850, %v4195, %v4197
  %v4604 = vsel %vm3850, %v4197, %v4199
  %v4605 = vsel %vm3850, %v4199, %v4201
  %v4606 = vsel %vm3850, %v4201, %v4203
  %v4607 = vsel %vm3850, %v4203, %v4205
  %v4608 = vsel %vm3850, %v4205, %v4207
  %v4609 = vsel %vm3850, %v4207, %v4209
  %v4610 = vsel %vm3850, %v4209, %v4211
  %v4611 = vsel %vm3850, %v4211, %v4213
  %v4612 = vsel %vm3850, %v4213, %v4215
  %v4613 = vsel %vm3850, %v4215, %v4217
  %v4614 = vsel %vm3850, %v4217, %v4219
  %v4615 = vsel %vm3850, %v4219, %v4221
  %v4616 = vsel %vm3850, %v4221, %v4223
  %v4617 = vsel %vm3850, %v4223, %v4225
  %v4618 = vsel %vm3850, %v4225, %v4227
  %v4619 = vsel %vm3850, %v4227, %v4229
  %v4620 = vsel %vm3850, %v4229, %v4231
  %v4621 = vsel %vm3850, %v4231, %v4233
  %v4622 = vsel %vm3850, %v4233, %v4235
  %v4623 = vsel %vm3850, %v4235, %v4237
  %v4624 = vsel %vm3850, %v4237, %v4239
  %v4625 = vsel %vm3850, %v4239, %v4241
  %v4626 = vsel %vm3850, %v4241, %v4243
  %v4627 = vsel %vm3850, %v4243, %v3843
  %v4628 = vsel %vm3850, %v4245, %v4247
  %v4629 = vsel %vm3850, %v4247, %v4249
  %v4630 = vsel %vm3850, %v4249, %v4251
  %v4631 = vsel %vm3850, %v4251, %v4253
  %v4632 = vsel %vm3850, %v4253, %v4255
  %v4633 = vsel %vm3850, %v4255, %v4257
  %v4634 = vsel %vm3850, %v4257, %v4259
  %v4635 = vsel %vm3850, %v4259, %v4261
  %v4636 = vsel %vm3850, %v4261, %v4263
  %v4637 = vsel %vm3850, %v4263, %v4265
  %v4638 = vsel %vm3850, %v4265, %v4267
  %v4639 = vsel %vm3850, %v4267, %v4269
  %v4640 = vsel %vm3850, %v4269, %v4271
  %v4641 = vsel %vm3850, %v4271, %v4273
  %v4642 = vsel %vm3850, %v4273, %v4275
  %v4643 = vsel %vm3850, %v4275, %v4277
  %v4644 = vsel %vm3850, %v4277, %v4279
  %v4645 = vsel %vm3850, %v4279, %v4281
  %v4646 = vsel %vm3850, %v4281, %v4283
  %v4647 = vsel %vm3850, %v4283, %v4285
  %v4648 = vsel %vm3850, %v4285, %v4287
  %v4649 = vsel %vm3850, %v4287, %v4289
  %v4650 = vsel %vm3850, %v4289, %v4291
  %v4651 = vsel %vm3850, %v4291, %v4293
  %v4652 = vsel %vm3850, %v4293, %v4295
  %v4653 = vsel %vm3850, %v4295, %v4297
  %v4654 = vsel %vm3850, %v4297, %v4299
  %v4655 = vsel %vm3850, %v4299, %v4301
  %v4656 = vsel %vm3850, %v4301, %v4303
  %v4657 = vsel %vm3850, %v4303, %v4305
  %v4658 = vsel %vm3850, %v4305, %v4307
  %v4659 = vsel %vm3850, %v4307, %v4309
  %v4660 = vsel %vm3850, %v4309, %v4311
  %v4661 = vsel %vm3850, %v4311, %v4313
  %v4662 = vsel %vm3850, %v4313, %v4315
  %v4663 = vsel %vm3850, %v4315, %v4317
  %v4664 = vsel %vm3850, %v4317, %v4319
  %v4665 = vsel %vm3850, %v4319, %v4321
  %v4666 = vsel %vm3850, %v4321, %v4323
  %v4667 = vsel %vm3850, %v4323, %v4325
  %v4668 = vsel %vm3850, %v4325, %v4327
  %v4669 = vsel %vm3850, %v4327, %v4329
  %v4670 = vsel %vm3850, %v4329, %v4331
  %v4671 = vsel %vm3850, %v4331, %v4333
  %v4672 = vsel %vm3850, %v4333, %v4335
  %v4673 = vsel %vm3850, %v4335, %v4337
  %v4674 = vsel %vm3850, %v4337, %v4339
  %v4675 = vsel %vm3850, %v4339, %v4341
  %v4676 = vsel %vm3850, %v4341, %v4343
  %v4677 = vsel %vm3850, %v4343, %v4345
  %v4678 = vsel %vm3850, %v4345, %v4347
  %v4679 = vsel %vm3850, %v4347, %v4349
  %v4680 = vsel %vm3850, %v4349, %v4351
  %v4681 = vsel %vm3850, %v4351, %v4353
  %v4682 = vsel %vm3850, %v4353, %v4355
  %v4683 = vsel %vm3850, %v4355, %v4357
  %v4684 = vsel %vm3850, %v4357, %v4359
  %v4685 = vsel %vm3850, %v4359, %v4361
  %v4686 = vsel %vm3850, %v4361, %v4363
  %v4687 = vsel %vm3850, %v4363, %v4365
  %v4688 = vsel %vm3850, %v4365, %v4367
  %v4689 = vsel %vm3850, %v4367, %v4369
  %v4690 = vsel %vm3850, %v4369, %v4371
  %v4691 = vsel %vm3850, %v4371, %v4373
  %v4692 = vsel %vm3850, %v4373, %v4375
  %v4693 = vsel %vm3850, %v4375, %v4377
  %v4694 = vsel %vm3850, %v4377, %v4379
  %v4695 = vsel %vm3850, %v4379, %v4381
  %v4696 = vsel %vm3850, %v4381, %v4383
  %v4697 = vsel %vm3850, %v4383, %v4385
  %v4698 = vsel %vm3850, %v4385, %v4387
  %v4699 = vsel %vm3850, %v4387, %v4389
  %v4700 = vsel %vm3850, %v4389, %v4391
  %v4701 = vsel %vm3850, %v4391, %v4393
  %v4702 = vsel %vm3850, %v4393, %v4395
  %v4703 = vsel %vm3850, %v4395, %v4397
  %v4704 = vsel %vm3850, %v4397, %v4399
  %v4705 = vsel %vm3850, %v4399, %v4401
  %v4706 = vsel %vm3850, %v4401, %v4403
  %v4707 = vsel %vm3850, %v4403, %v4405
  %v4708 = vsel %vm3850, %v4405, %v4407
  %v4709 = vsel %vm3850, %v4407, %v4409
  %v4710 = vsel %vm3850, %v4409, %v4411
  %v4711 = vsel %vm3850, %v4411, %v4413
  %v4712 = vsel %vm3850, %v4413, %v4415
  %v4713 = vsel %vm3850, %v4415, %v4417
  %v4714 = vsel %vm3850, %v4417, %v4419
  %v4715 = vsel %vm3850, %v4419, %v4421
  %v4716 = vsel %vm3850, %v4421, %v4423
  %v4717 = vsel %vm3850, %v4423, %v4425
  %v4718 = vsel %vm3850, %v4425, %v4427
  %v4719 = vsel %vm3850, %v4427, %v4429
  %v4720 = vsel %vm3850, %v4429, %v4431
  %v4721 = vsel %vm3850, %v4431, %v4433
  %v4722 = vsel %vm3850, %v4433, %v4435
  %v4723 = vsel %vm3850, %v4435, %v3847
  %v5015 = vsel %vm3850, %v3841, %v3861
  %v5016 = vsel %vm3850, %v3845, %v4053
  %v5017 = vsel %vm3850, %v3849, %v4245
  %v5018 = vsel %vm2266, 1, 0
  %v5019 = vsel %vm2267, 1, 0
  %v5020 = vsel %vm2268, 1, 0
  %v5021 = vsel %vm2269, 1, 0
  %v5022 = vsel %vm2270, 1, 0
  %v5023 = vsel %vm2271, 1, 0
  %v5024 = vsel %vm2272, 1, 0
  %v5025 = vsel %vm2273, 1, 0
  %v5026 = vsel %vm2274, 1, 0
  %v5027 = vsel %vm2275, 1, 0
  %v5028 = vsel %vm2276, 1, 0
  %v5029 = vsel %vm2277, 1, 0
  %v5030 = vsel %vm2278, 1, 0
  %v5031 = vsel %vm2279, 1, 0
  %v5032 = vsel %vm2280, 1, 0
  %v5033 = vsel %vm2281, 1, 0
  %v5034 = vsel %vm2282, 1, 0
  %v5035 = vsel %vm2283, 1, 0
  %v5036 = vsel %vm2284, 1, 0
  %v5037 = vsel %vm2285, 1, 0
  %v5038 = vsel %vm2286, 1, 0
  %v5039 = vsel %vm2287, 1, 0
  %v5040 = vsel %vm2288, 1, 0
  %v5041 = vsel %vm2289, 1, 0
  %v5042 = vsel %vm2290, 1, 0
  %v5043 = vsel %vm2291, 1, 0
  %v5044 = vsel %vm2292, 1, 0
  %v5045 = vsel %vm2293, 1, 0
  %v5046 = vsel %vm2294, 1, 0
  %v5047 = vsel %vm2295, 1, 0
  %v5048 = vsel %vm2296, 1, 0
  %v5049 = vsel %vm2297, 1, 0
  %v5050 = vsel %vm2298, 1, 0
  %v5051 = vsel %vm2299, 1, 0
  %v5052 = vsel %vm2300, 1, 0
  %v5053 = vsel %vm2301, 1, 0
  %v5054 = vsel %vm2302, 1, 0
  %v5055 = vsel %vm2303, 1, 0
  %v5056 = vsel %vm2304, 1, 0
  %v5057 = vsel %vm2305, 1, 0
  %v5058 = vsel %vm2306, 1, 0
  %v5059 = vsel %vm2307, 1, 0
  %v5060 = vsel %vm2308, 1, 0
  %v5061 = vsel %vm2309, 1, 0
  %v5062 = vsel %vm2310, 1, 0
  %v5063 = vsel %vm2311, 1, 0
  %v5064 = vsel %vm2312, 1, 0
  %v5065 = vsel %vm2313, 1, 0
  %v5066 = vsel %vm2314, 1, 0
  %v5067 = vsel %vm2315, 1, 0
  %v5068 = vsel %vm2316, 1, 0
  %v5069 = vsel %vm2317, 1, 0
  %v5070 = vsel %vm2318, 1, 0
  %v5071 = vsel %vm2319, 1, 0
  %v5072 = vsel %vm2320, 1, 0
  %v5073 = vsel %vm2321, 1, 0
  %v5074 = vsel %vm2322, 1, 0
  %v5075 = vsel %vm2323, 1, 0
  %v5076 = vsel %vm2324, 1, 0
  %v5077 = vsel %vm2325, 1, 0
  %v5078 = vsel %vm2326, 1, 0
  %v5079 = vsel %vm2327, 1, 0
  %v5080 = vsel %vm2328, 1, 0
  %v5081 = vsel %vm2329, 1, 0
  %v5082 = vsel %vm2330, 1, 0
  %v5083 = vsel %vm2331, 1, 0
  %v5084 = vsel %vm2332, 1, 0
  %v5085 = vsel %vm2333, 1, 0
  %v5086 = vsel %vm2334, 1, 0
  %v5087 = vsel %vm2335, 1, 0
  %v5088 = vsel %vm2336, 1, 0
  %v5089 = vsel %vm2337, 1, 0
  %v5090 = vsel %vm2338, 1, 0
  %v5091 = vsel %vm2339, 1, 0
  %v5092 = vsel %vm2340, 1, 0
  %v5093 = vsel %vm2341, 1, 0
  %v5094 = vsel %vm2342, 1, 0
  %v5095 = vsel %vm2343, 1, 0
  %v5096 = vsel %vm2344, 1, 0
  %v5097 = vsel %vm2345, 1, 0
  %v5098 = vsel %vm2346, 1, 0
  %v5099 = vsel %vm2347, 1, 0
  %v5100 = vsel %vm2348, 1, 0
  %v5101 = vsel %vm2349, 1, 0
  %v5102 = vsel %vm2350, 1, 0
  %v5103 = vsel %vm2351, 1, 0
  %v5104 = vsel %vm2352, 1, 0
  %v5105 = vsel %vm2353, 1, 0
  %v5106 = vsel %vm2354, 1, 0
  %v5107 = vsel %vm2355, 1, 0
  %v5108 = vsel %vm2356, 1, 0
  %v5109 = vsel %vm2357, 1, 0
  %v5110 = vsel %vm2358, 1, 0
  %v5111 = vsel %vm2359, 1, 0
  %v5112 = vsel %vm2360, 1, 0
  %v5113 = vsel %vm2361, 1, 0
  %v5114 = vsel %vm2362, 1, 0
  %v5115 = vsel %vm2363, 1, 0
  %vm5116 = vcmp.eq.s32.totalorder %v5018, 1
  %vm5117 = vcmp.eq.s32.totalorder %v5019, 1
  %vm5118 = vcmp.eq.s32.totalorder %v5020, 1
  %vm5119 = vcmp.eq.s32.totalorder %v5021, 1
  %vm5120 = vcmp.eq.s32.totalorder %v5022, 1
  %vm5121 = vcmp.eq.s32.totalorder %v5023, 1
  %vm5122 = vcmp.eq.s32.totalorder %v5024, 1
  %vm5123 = vcmp.eq.s32.totalorder %v5025, 1
  %vm5124 = vcmp.eq.s32.totalorder %v5026, 1
  %vm5125 = vcmp.eq.s32.totalorder %v5027, 1
  %vm5126 = vcmp.eq.s32.totalorder %v5028, 1
  %vm5127 = vcmp.eq.s32.totalorder %v5029, 1
  %vm5128 = vcmp.eq.s32.totalorder %v5030, 1
  %vm5129 = vcmp.eq.s32.totalorder %v5031, 1
  %vm5130 = vcmp.eq.s32.totalorder %v5032, 1
  %vm5131 = vcmp.eq.s32.totalorder %v5033, 1
  %vm5132 = vcmp.eq.s32.totalorder %v5034, 1
  %vm5133 = vcmp.eq.s32.totalorder %v5035, 1
  %vm5134 = vcmp.eq.s32.totalorder %v5036, 1
  %vm5135 = vcmp.eq.s32.totalorder %v5037, 1
  %vm5136 = vcmp.eq.s32.totalorder %v5038, 1
  %vm5137 = vcmp.eq.s32.totalorder %v5039, 1
  %vm5138 = vcmp.eq.s32.totalorder %v5040, 1
  %vm5139 = vcmp.eq.s32.totalorder %v5041, 1
  %vm5140 = vcmp.eq.s32.totalorder %v5042, 1
  %vm5141 = vcmp.eq.s32.totalorder %v5043, 1
  %vm5142 = vcmp.eq.s32.totalorder %v5044, 1
  %vm5143 = vcmp.eq.s32.totalorder %v5045, 1
  %vm5144 = vcmp.eq.s32.totalorder %v5046, 1
  %vm5145 = vcmp.eq.s32.totalorder %v5047, 1
  %vm5146 = vcmp.eq.s32.totalorder %v5048, 1
  %vm5147 = vcmp.eq.s32.totalorder %v5049, 1
  %vm5148 = vcmp.eq.s32.totalorder %v5050, 1
  %vm5149 = vcmp.eq.s32.totalorder %v5051, 1
  %vm5150 = vcmp.eq.s32.totalorder %v5052, 1
  %vm5151 = vcmp.eq.s32.totalorder %v5053, 1
  %vm5152 = vcmp.eq.s32.totalorder %v5054, 1
  %vm5153 = vcmp.eq.s32.totalorder %v5055, 1
  %vm5154 = vcmp.eq.s32.totalorder %v5056, 1
  %vm5155 = vcmp.eq.s32.totalorder %v5057, 1
  %vm5156 = vcmp.eq.s32.totalorder %v5058, 1
  %vm5157 = vcmp.eq.s32.totalorder %v5059, 1
  %vm5158 = vcmp.eq.s32.totalorder %v5060, 1
  %vm5159 = vcmp.eq.s32.totalorder %v5061, 1
  %vm5160 = vcmp.eq.s32.totalorder %v5062, 1
  %vm5161 = vcmp.eq.s32.totalorder %v5063, 1
  %vm5162 = vcmp.eq.s32.totalorder %v5064, 1
  %vm5163 = vcmp.eq.s32.totalorder %v5065, 1
  %vm5164 = vcmp.eq.s32.totalorder %v5066, 1
  %vm5165 = vcmp.eq.s32.totalorder %v5067, 1
  %vm5166 = vcmp.eq.s32.totalorder %v5068, 1
  %vm5167 = vcmp.eq.s32.totalorder %v5069, 1
  %vm5168 = vcmp.eq.s32.totalorder %v5070, 1
  %vm5169 = vcmp.eq.s32.totalorder %v5071, 1
  %vm5170 = vcmp.eq.s32.totalorder %v5072, 1
  %vm5171 = vcmp.eq.s32.totalorder %v5073, 1
  %vm5172 = vcmp.eq.s32.totalorder %v5074, 1
  %vm5173 = vcmp.eq.s32.totalorder %v5075, 1
  %vm5174 = vcmp.eq.s32.totalorder %v5076, 1
  %vm5175 = vcmp.eq.s32.totalorder %v5077, 1
  %vm5176 = vcmp.eq.s32.totalorder %v5078, 1
  %vm5177 = vcmp.eq.s32.totalorder %v5079, 1
  %vm5178 = vcmp.eq.s32.totalorder %v5080, 1
  %vm5179 = vcmp.eq.s32.totalorder %v5081, 1
  %vm5180 = vcmp.eq.s32.totalorder %v5082, 1
  %vm5181 = vcmp.eq.s32.totalorder %v5083, 1
  %vm5182 = vcmp.eq.s32.totalorder %v5084, 1
  %vm5183 = vcmp.eq.s32.totalorder %v5085, 1
  %vm5184 = vcmp.eq.s32.totalorder %v5086, 1
  %vm5185 = vcmp.eq.s32.totalorder %v5087, 1
  %vm5186 = vcmp.eq.s32.totalorder %v5088, 1
  %vm5187 = vcmp.eq.s32.totalorder %v5089, 1
  %vm5188 = vcmp.eq.s32.totalorder %v5090, 1
  %vm5189 = vcmp.eq.s32.totalorder %v5091, 1
  %vm5190 = vcmp.eq.s32.totalorder %v5092, 1
  %vm5191 = vcmp.eq.s32.totalorder %v5093, 1
  %vm5192 = vcmp.eq.s32.totalorder %v5094, 1
  %vm5193 = vcmp.eq.s32.totalorder %v5095, 1
  %vm5194 = vcmp.eq.s32.totalorder %v5096, 1
  %vm5195 = vcmp.eq.s32.totalorder %v5097, 1
  %vm5196 = vcmp.eq.s32.totalorder %v5098, 1
  %vm5197 = vcmp.eq.s32.totalorder %v5099, 1
  %vm5198 = vcmp.eq.s32.totalorder %v5100, 1
  %vm5199 = vcmp.eq.s32.totalorder %v5101, 1
  %vm5200 = vcmp.eq.s32.totalorder %v5102, 1
  %vm5201 = vcmp.eq.s32.totalorder %v5103, 1
  %vm5202 = vcmp.eq.s32.totalorder %v5104, 1
  %vm5203 = vcmp.eq.s32.totalorder %v5105, 1
  %vm5204 = vcmp.eq.s32.totalorder %v5106, 1
  %vm5205 = vcmp.eq.s32.totalorder %v5107, 1
  %vm5206 = vcmp.eq.s32.totalorder %v5108, 1
  %vm5207 = vcmp.eq.s32.totalorder %v5109, 1
  %vm5208 = vcmp.eq.s32.totalorder %v5110, 1
  %vm5209 = vcmp.eq.s32.totalorder %v5111, 1
  %vm5210 = vcmp.eq.s32.totalorder %v5112, 1
  %vm5211 = vcmp.eq.s32.totalorder %v5113, 1
  %vm5212 = vcmp.eq.s32.totalorder %v5114, 1
  %vm5213 = vcmp.eq.s32.totalorder %v5115, 1
  %v5214 = vsel %vm5116, %v3835, %v3851
  %v5215 = vsel %vm5117, %v3250, %v5015
  %v5216 = vsel %vm5118, %v3251, %v4436
  %v5217 = vsel %vm5119, %v3252, %v4437
  %v5218 = vsel %vm5120, %v3253, %v4438
  %v5219 = vsel %vm5121, %v3254, %v4439
  %v5220 = vsel %vm5122, %v3255, %v4440
  %v5221 = vsel %vm5123, %v3256, %v4441
  %v5222 = vsel %vm5124, %v3257, %v4442
  %v5223 = vsel %vm5125, %v3258, %v4443
  %v5224 = vsel %vm5126, %v3259, %v4444
  %v5225 = vsel %vm5127, %v3260, %v4445
  %v5226 = vsel %vm5128, %v3261, %v4446
  %v5227 = vsel %vm5129, %v3262, %v4447
  %v5228 = vsel %vm5130, %v3263, %v4448
  %v5229 = vsel %vm5131, %v3264, %v4449
  %v5230 = vsel %vm5132, %v3265, %v4450
  %v5231 = vsel %vm5133, %v3266, %v4451
  %v5232 = vsel %vm5134, %v3267, %v4452
  %v5233 = vsel %vm5135, %v3268, %v4453
  %v5234 = vsel %vm5136, %v3269, %v4454
  %v5235 = vsel %vm5137, %v3270, %v4455
  %v5236 = vsel %vm5138, %v3271, %v4456
  %v5237 = vsel %vm5139, %v3272, %v4457
  %v5238 = vsel %vm5140, %v3273, %v4458
  %v5239 = vsel %vm5141, %v3274, %v4459
  %v5240 = vsel %vm5142, %v3275, %v4460
  %v5241 = vsel %vm5143, %v3276, %v4461
  %v5242 = vsel %vm5144, %v3277, %v4462
  %v5243 = vsel %vm5145, %v3278, %v4463
  %v5244 = vsel %vm5146, %v3279, %v4464
  %v5245 = vsel %vm5147, %v3280, %v4465
  %v5246 = vsel %vm5148, %v3281, %v4466
  %v5247 = vsel %vm5149, %v3282, %v4467
  %v5248 = vsel %vm5150, %v3283, %v4468
  %v5249 = vsel %vm5151, %v3284, %v4469
  %v5250 = vsel %vm5152, %v3285, %v4470
  %v5251 = vsel %vm5153, %v3286, %v4471
  %v5252 = vsel %vm5154, %v3287, %v4472
  %v5253 = vsel %vm5155, %v3288, %v4473
  %v5254 = vsel %vm5156, %v3289, %v4474
  %v5255 = vsel %vm5157, %v3290, %v4475
  %v5256 = vsel %vm5158, %v3291, %v4476
  %v5257 = vsel %vm5159, %v3292, %v4477
  %v5258 = vsel %vm5160, %v3293, %v4478
  %v5259 = vsel %vm5161, %v3294, %v4479
  %v5260 = vsel %vm5162, %v3295, %v4480
  %v5261 = vsel %vm5163, %v3296, %v4481
  %v5262 = vsel %vm5164, %v3297, %v4482
  %v5263 = vsel %vm5165, %v3298, %v4483
  %v5264 = vsel %vm5166, %v3299, %v4484
  %v5265 = vsel %vm5167, %v3300, %v4485
  %v5266 = vsel %vm5168, %v3301, %v4486
  %v5267 = vsel %vm5169, %v3302, %v4487
  %v5268 = vsel %vm5170, %v3303, %v4488
  %v5269 = vsel %vm5171, %v3304, %v4489
  %v5270 = vsel %vm5172, %v3305, %v4490
  %v5271 = vsel %vm5173, %v3306, %v4491
  %v5272 = vsel %vm5174, %v3307, %v4492
  %v5273 = vsel %vm5175, %v3308, %v4493
  %v5274 = vsel %vm5176, %v3309, %v4494
  %v5275 = vsel %vm5177, %v3310, %v4495
  %v5276 = vsel %vm5178, %v3311, %v4496
  %v5277 = vsel %vm5179, %v3312, %v4497
  %v5278 = vsel %vm5180, %v3313, %v4498
  %v5279 = vsel %vm5181, %v3314, %v4499
  %v5280 = vsel %vm5182, %v3315, %v4500
  %v5281 = vsel %vm5183, %v3316, %v4501
  %v5282 = vsel %vm5184, %v3317, %v4502
  %v5283 = vsel %vm5185, %v3318, %v4503
  %v5284 = vsel %vm5186, %v3319, %v4504
  %v5285 = vsel %vm5187, %v3320, %v4505
  %v5286 = vsel %vm5188, %v3321, %v4506
  %v5287 = vsel %vm5189, %v3322, %v4507
  %v5288 = vsel %vm5190, %v3323, %v4508
  %v5289 = vsel %vm5191, %v3324, %v4509
  %v5290 = vsel %vm5192, %v3325, %v4510
  %v5291 = vsel %vm5193, %v3326, %v4511
  %v5292 = vsel %vm5194, %v3327, %v4512
  %v5293 = vsel %vm5195, %v3328, %v4513
  %v5294 = vsel %vm5196, %v3329, %v4514
  %v5295 = vsel %vm5197, %v3330, %v4515
  %v5296 = vsel %vm5198, %v3331, %v4516
  %v5297 = vsel %vm5199, %v3332, %v4517
  %v5298 = vsel %vm5200, %v3333, %v4518
  %v5299 = vsel %vm5201, %v3334, %v4519
  %v5300 = vsel %vm5202, %v3335, %v4520
  %v5301 = vsel %vm5203, %v3336, %v4521
  %v5302 = vsel %vm5204, %v3337, %v4522
  %v5303 = vsel %vm5205, %v3338, %v4523
  %v5304 = vsel %vm5206, %v3339, %v4524
  %v5305 = vsel %vm5207, %v3340, %v4525
  %v5306 = vsel %vm5208, %v3341, %v4526
  %v5307 = vsel %vm5209, %v3342, %v4527
  %v5308 = vsel %vm5210, %v3343, %v4528
  %v5309 = vsel %vm5211, %v3344, %v4529
  %v5310 = vsel %vm5212, %v3345, %v4530
  %v5311 = vsel %vm5213, %v3346, %v4531
  %v5312 = vsel %vm5116, %v3836, %v3852
  %v5313 = vsel %vm5117, %v3347, %v5016
  %v5314 = vsel %vm5118, %v3348, %v4532
  %v5315 = vsel %vm5119, %v3349, %v4533
  %v5316 = vsel %vm5120, %v3350, %v4534
  %v5317 = vsel %vm5121, %v3351, %v4535
  %v5318 = vsel %vm5122, %v3352, %v4536
  %v5319 = vsel %vm5123, %v3353, %v4537
  %v5320 = vsel %vm5124, %v3354, %v4538
  %v5321 = vsel %vm5125, %v3355, %v4539
  %v5322 = vsel %vm5126, %v3356, %v4540
  %v5323 = vsel %vm5127, %v3357, %v4541
  %v5324 = vsel %vm5128, %v3358, %v4542
  %v5325 = vsel %vm5129, %v3359, %v4543
  %v5326 = vsel %vm5130, %v3360, %v4544
  %v5327 = vsel %vm5131, %v3361, %v4545
  %v5328 = vsel %vm5132, %v3362, %v4546
  %v5329 = vsel %vm5133, %v3363, %v4547
  %v5330 = vsel %vm5134, %v3364, %v4548
  %v5331 = vsel %vm5135, %v3365, %v4549
  %v5332 = vsel %vm5136, %v3366, %v4550
  %v5333 = vsel %vm5137, %v3367, %v4551
  %v5334 = vsel %vm5138, %v3368, %v4552
  %v5335 = vsel %vm5139, %v3369, %v4553
  %v5336 = vsel %vm5140, %v3370, %v4554
  %v5337 = vsel %vm5141, %v3371, %v4555
  %v5338 = vsel %vm5142, %v3372, %v4556
  %v5339 = vsel %vm5143, %v3373, %v4557
  %v5340 = vsel %vm5144, %v3374, %v4558
  %v5341 = vsel %vm5145, %v3375, %v4559
  %v5342 = vsel %vm5146, %v3376, %v4560
  %v5343 = vsel %vm5147, %v3377, %v4561
  %v5344 = vsel %vm5148, %v3378, %v4562
  %v5345 = vsel %vm5149, %v3379, %v4563
  %v5346 = vsel %vm5150, %v3380, %v4564
  %v5347 = vsel %vm5151, %v3381, %v4565
  %v5348 = vsel %vm5152, %v3382, %v4566
  %v5349 = vsel %vm5153, %v3383, %v4567
  %v5350 = vsel %vm5154, %v3384, %v4568
  %v5351 = vsel %vm5155, %v3385, %v4569
  %v5352 = vsel %vm5156, %v3386, %v4570
  %v5353 = vsel %vm5157, %v3387, %v4571
  %v5354 = vsel %vm5158, %v3388, %v4572
  %v5355 = vsel %vm5159, %v3389, %v4573
  %v5356 = vsel %vm5160, %v3390, %v4574
  %v5357 = vsel %vm5161, %v3391, %v4575
  %v5358 = vsel %vm5162, %v3392, %v4576
  %v5359 = vsel %vm5163, %v3393, %v4577
  %v5360 = vsel %vm5164, %v3394, %v4578
  %v5361 = vsel %vm5165, %v3395, %v4579
  %v5362 = vsel %vm5166, %v3396, %v4580
  %v5363 = vsel %vm5167, %v3397, %v4581
  %v5364 = vsel %vm5168, %v3398, %v4582
  %v5365 = vsel %vm5169, %v3399, %v4583
  %v5366 = vsel %vm5170, %v3400, %v4584
  %v5367 = vsel %vm5171, %v3401, %v4585
  %v5368 = vsel %vm5172, %v3402, %v4586
  %v5369 = vsel %vm5173, %v3403, %v4587
  %v5370 = vsel %vm5174, %v3404, %v4588
  %v5371 = vsel %vm5175, %v3405, %v4589
  %v5372 = vsel %vm5176, %v3406, %v4590
  %v5373 = vsel %vm5177, %v3407, %v4591
  %v5374 = vsel %vm5178, %v3408, %v4592
  %v5375 = vsel %vm5179, %v3409, %v4593
  %v5376 = vsel %vm5180, %v3410, %v4594
  %v5377 = vsel %vm5181, %v3411, %v4595
  %v5378 = vsel %vm5182, %v3412, %v4596
  %v5379 = vsel %vm5183, %v3413, %v4597
  %v5380 = vsel %vm5184, %v3414, %v4598
  %v5381 = vsel %vm5185, %v3415, %v4599
  %v5382 = vsel %vm5186, %v3416, %v4600
  %v5383 = vsel %vm5187, %v3417, %v4601
  %v5384 = vsel %vm5188, %v3418, %v4602
  %v5385 = vsel %vm5189, %v3419, %v4603
  %v5386 = vsel %vm5190, %v3420, %v4604
  %v5387 = vsel %vm5191, %v3421, %v4605
  %v5388 = vsel %vm5192, %v3422, %v4606
  %v5389 = vsel %vm5193, %v3423, %v4607
  %v5390 = vsel %vm5194, %v3424, %v4608
  %v5391 = vsel %vm5195, %v3425, %v4609
  %v5392 = vsel %vm5196, %v3426, %v4610
  %v5393 = vsel %vm5197, %v3427, %v4611
  %v5394 = vsel %vm5198, %v3428, %v4612
  %v5395 = vsel %vm5199, %v3429, %v4613
  %v5396 = vsel %vm5200, %v3430, %v4614
  %v5397 = vsel %vm5201, %v3431, %v4615
  %v5398 = vsel %vm5202, %v3432, %v4616
  %v5399 = vsel %vm5203, %v3433, %v4617
  %v5400 = vsel %vm5204, %v3434, %v4618
  %v5401 = vsel %vm5205, %v3435, %v4619
  %v5402 = vsel %vm5206, %v3436, %v4620
  %v5403 = vsel %vm5207, %v3437, %v4621
  %v5404 = vsel %vm5208, %v3438, %v4622
  %v5405 = vsel %vm5209, %v3439, %v4623
  %v5406 = vsel %vm5210, %v3440, %v4624
  %v5407 = vsel %vm5211, %v3441, %v4625
  %v5408 = vsel %vm5212, %v3442, %v4626
  %v5409 = vsel %vm5213, %v3443, %v4627
  %v5410 = vsel %vm5116, %v3837, %v3853
  %v5411 = vsel %vm5117, %v3444, %v5017
  %v5412 = vsel %vm5118, %v3445, %v4628
  %v5413 = vsel %vm5119, %v3446, %v4629
  %v5414 = vsel %vm5120, %v3447, %v4630
  %v5415 = vsel %vm5121, %v3448, %v4631
  %v5416 = vsel %vm5122, %v3449, %v4632
  %v5417 = vsel %vm5123, %v3450, %v4633
  %v5418 = vsel %vm5124, %v3451, %v4634
  %v5419 = vsel %vm5125, %v3452, %v4635
  %v5420 = vsel %vm5126, %v3453, %v4636
  %v5421 = vsel %vm5127, %v3454, %v4637
  %v5422 = vsel %vm5128, %v3455, %v4638
  %v5423 = vsel %vm5129, %v3456, %v4639
  %v5424 = vsel %vm5130, %v3457, %v4640
  %v5425 = vsel %vm5131, %v3458, %v4641
  %v5426 = vsel %vm5132, %v3459, %v4642
  %v5427 = vsel %vm5133, %v3460, %v4643
  %v5428 = vsel %vm5134, %v3461, %v4644
  %v5429 = vsel %vm5135, %v3462, %v4645
  %v5430 = vsel %vm5136, %v3463, %v4646
  %v5431 = vsel %vm5137, %v3464, %v4647
  %v5432 = vsel %vm5138, %v3465, %v4648
  %v5433 = vsel %vm5139, %v3466, %v4649
  %v5434 = vsel %vm5140, %v3467, %v4650
  %v5435 = vsel %vm5141, %v3468, %v4651
  %v5436 = vsel %vm5142, %v3469, %v4652
  %v5437 = vsel %vm5143, %v3470, %v4653
  %v5438 = vsel %vm5144, %v3471, %v4654
  %v5439 = vsel %vm5145, %v3472, %v4655
  %v5440 = vsel %vm5146, %v3473, %v4656
  %v5441 = vsel %vm5147, %v3474, %v4657
  %v5442 = vsel %vm5148, %v3475, %v4658
  %v5443 = vsel %vm5149, %v3476, %v4659
  %v5444 = vsel %vm5150, %v3477, %v4660
  %v5445 = vsel %vm5151, %v3478, %v4661
  %v5446 = vsel %vm5152, %v3479, %v4662
  %v5447 = vsel %vm5153, %v3480, %v4663
  %v5448 = vsel %vm5154, %v3481, %v4664
  %v5449 = vsel %vm5155, %v3482, %v4665
  %v5450 = vsel %vm5156, %v3483, %v4666
  %v5451 = vsel %vm5157, %v3484, %v4667
  %v5452 = vsel %vm5158, %v3485, %v4668
  %v5453 = vsel %vm5159, %v3486, %v4669
  %v5454 = vsel %vm5160, %v3487, %v4670
  %v5455 = vsel %vm5161, %v3488, %v4671
  %v5456 = vsel %vm5162, %v3489, %v4672
  %v5457 = vsel %vm5163, %v3490, %v4673
  %v5458 = vsel %vm5164, %v3491, %v4674
  %v5459 = vsel %vm5165, %v3492, %v4675
  %v5460 = vsel %vm5166, %v3493, %v4676
  %v5461 = vsel %vm5167, %v3494, %v4677
  %v5462 = vsel %vm5168, %v3495, %v4678
  %v5463 = vsel %vm5169, %v3496, %v4679
  %v5464 = vsel %vm5170, %v3497, %v4680
  %v5465 = vsel %vm5171, %v3498, %v4681
  %v5466 = vsel %vm5172, %v3499, %v4682
  %v5467 = vsel %vm5173, %v3500, %v4683
  %v5468 = vsel %vm5174, %v3501, %v4684
  %v5469 = vsel %vm5175, %v3502, %v4685
  %v5470 = vsel %vm5176, %v3503, %v4686
  %v5471 = vsel %vm5177, %v3504, %v4687
  %v5472 = vsel %vm5178, %v3505, %v4688
  %v5473 = vsel %vm5179, %v3506, %v4689
  %v5474 = vsel %vm5180, %v3507, %v4690
  %v5475 = vsel %vm5181, %v3508, %v4691
  %v5476 = vsel %vm5182, %v3509, %v4692
  %v5477 = vsel %vm5183, %v3510, %v4693
  %v5478 = vsel %vm5184, %v3511, %v4694
  %v5479 = vsel %vm5185, %v3512, %v4695
  %v5480 = vsel %vm5186, %v3513, %v4696
  %v5481 = vsel %vm5187, %v3514, %v4697
  %v5482 = vsel %vm5188, %v3515, %v4698
  %v5483 = vsel %vm5189, %v3516, %v4699
  %v5484 = vsel %vm5190, %v3517, %v4700
  %v5485 = vsel %vm5191, %v3518, %v4701
  %v5486 = vsel %vm5192, %v3519, %v4702
  %v5487 = vsel %vm5193, %v3520, %v4703
  %v5488 = vsel %vm5194, %v3521, %v4704
  %v5489 = vsel %vm5195, %v3522, %v4705
  %v5490 = vsel %vm5196, %v3523, %v4706
  %v5491 = vsel %vm5197, %v3524, %v4707
  %v5492 = vsel %vm5198, %v3525, %v4708
  %v5493 = vsel %vm5199, %v3526, %v4709
  %v5494 = vsel %vm5200, %v3527, %v4710
  %v5495 = vsel %vm5201, %v3528, %v4711
  %v5496 = vsel %vm5202, %v3529, %v4712
  %v5497 = vsel %vm5203, %v3530, %v4713
  %v5498 = vsel %vm5204, %v3531, %v4714
  %v5499 = vsel %vm5205, %v3532, %v4715
  %v5500 = vsel %vm5206, %v3533, %v4716
  %v5501 = vsel %vm5207, %v3534, %v4717
  %v5502 = vsel %vm5208, %v3535, %v4718
  %v5503 = vsel %vm5209, %v3536, %v4719
  %v5504 = vsel %vm5210, %v3537, %v4720
  %v5505 = vsel %vm5211, %v3538, %v4721
  %v5506 = vsel %vm5212, %v3539, %v4722
  %v5507 = vsel %vm5213, %v3540, %v4723
  %5799 = vrot.lane.b32.xlu0 %v5214, 96
  %v5800 = vpop.permute.xlu0 %5799
  %5801 = vrot.lane.b32.xlu0 %v5215, 96
  %v5802 = vpop.permute.xlu0 %5801
  %5803 = vrot.lane.b32.xlu0 %v5216, 96
  %v5804 = vpop.permute.xlu0 %5803
  %5805 = vrot.lane.b32.xlu0 %v5217, 96
  %v5806 = vpop.permute.xlu0 %5805
  %5807 = vrot.lane.b32.xlu0 %v5218, 96
  %v5808 = vpop.permute.xlu0 %5807
  %5809 = vrot.lane.b32.xlu0 %v5219, 96
  %v5810 = vpop.permute.xlu0 %5809
  %5811 = vrot.lane.b32.xlu0 %v5220, 96
  %v5812 = vpop.permute.xlu0 %5811
  %5813 = vrot.lane.b32.xlu0 %v5221, 96
  %v5814 = vpop.permute.xlu0 %5813
  %5815 = vrot.lane.b32.xlu0 %v5222, 96
  %v5816 = vpop.permute.xlu0 %5815
  %5817 = vrot.lane.b32.xlu0 %v5223, 96
  %v5818 = vpop.permute.xlu0 %5817
  %5819 = vrot.lane.b32.xlu0 %v5224, 96
  %v5820 = vpop.permute.xlu0 %5819
  %5821 = vrot.lane.b32.xlu0 %v5225, 96
  %v5822 = vpop.permute.xlu0 %5821
  %5823 = vrot.lane.b32.xlu0 %v5226, 96
  %v5824 = vpop.permute.xlu0 %5823
  %5825 = vrot.lane.b32.xlu0 %v5227, 96
  %v5826 = vpop.permute.xlu0 %5825
  %5827 = vrot.lane.b32.xlu0 %v5228, 96
  %v5828 = vpop.permute.xlu0 %5827
  %5829 = vrot.lane.b32.xlu0 %v5229, 96
  %v5830 = vpop.permute.xlu0 %5829
  %5831 = vrot.lane.b32.xlu0 %v5230, 96
  %v5832 = vpop.permute.xlu0 %5831
  %5833 = vrot.lane.b32.xlu0 %v5231, 96
  %v5834 = vpop.permute.xlu0 %5833
  %5835 = vrot.lane.b32.xlu0 %v5232, 96
  %v5836 = vpop.permute.xlu0 %5835
  %5837 = vrot.lane.b32.xlu0 %v5233, 96
  %v5838 = vpop.permute.xlu0 %5837
  %5839 = vrot.lane.b32.xlu0 %v5234, 96
  %v5840 = vpop.permute.xlu0 %5839
  %5841 = vrot.lane.b32.xlu0 %v5235, 96
  %v5842 = vpop.permute.xlu0 %5841
  %5843 = vrot.lane.b32.xlu0 %v5236, 96
  %v5844 = vpop.permute.xlu0 %5843
  %5845 = vrot.lane.b32.xlu0 %v5237, 96
  %v5846 = vpop.permute.xlu0 %5845
  %5847 = vrot.lane.b32.xlu0 %v5238, 96
  %v5848 = vpop.permute.xlu0 %5847
  %5849 = vrot.lane.b32.xlu0 %v5239, 96
  %v5850 = vpop.permute.xlu0 %5849
  %5851 = vrot.lane.b32.xlu0 %v5240, 96
  %v5852 = vpop.permute.xlu0 %5851
  %5853 = vrot.lane.b32.xlu0 %v5241, 96
  %v5854 = vpop.permute.xlu0 %5853
  %5855 = vrot.lane.b32.xlu0 %v5242, 96
  %v5856 = vpop.permute.xlu0 %5855
  %5857 = vrot.lane.b32.xlu0 %v5243, 96
  %v5858 = vpop.permute.xlu0 %5857
  %5859 = vrot.lane.b32.xlu0 %v5244, 96
  %v5860 = vpop.permute.xlu0 %5859
  %5861 = vrot.lane.b32.xlu0 %v5245, 96
  %v5862 = vpop.permute.xlu0 %5861
  %5863 = vrot.lane.b32.xlu0 %v5246, 96
  %v5864 = vpop.permute.xlu0 %5863
  %5865 = vrot.lane.b32.xlu0 %v5247, 96
  %v5866 = vpop.permute.xlu0 %5865
  %5867 = vrot.lane.b32.xlu0 %v5248, 96
  %v5868 = vpop.permute.xlu0 %5867
  %5869 = vrot.lane.b32.xlu0 %v5249, 96
  %v5870 = vpop.permute.xlu0 %5869
  %5871 = vrot.lane.b32.xlu0 %v5250, 96
  %v5872 = vpop.permute.xlu0 %5871
  %5873 = vrot.lane.b32.xlu0 %v5251, 96
  %v5874 = vpop.permute.xlu0 %5873
  %5875 = vrot.lane.b32.xlu0 %v5252, 96
  %v5876 = vpop.permute.xlu0 %5875
  %5877 = vrot.lane.b32.xlu0 %v5253, 96
  %v5878 = vpop.permute.xlu0 %5877
  %5879 = vrot.lane.b32.xlu0 %v5254, 96
  %v5880 = vpop.permute.xlu0 %5879
  %5881 = vrot.lane.b32.xlu0 %v5255, 96
  %v5882 = vpop.permute.xlu0 %5881
  %5883 = vrot.lane.b32.xlu0 %v5256, 96
  %v5884 = vpop.permute.xlu0 %5883
  %5885 = vrot.lane.b32.xlu0 %v5257, 96
  %v5886 = vpop.permute.xlu0 %5885
  %5887 = vrot.lane.b32.xlu0 %v5258, 96
  %v5888 = vpop.permute.xlu0 %5887
  %5889 = vrot.lane.b32.xlu0 %v5259, 96
  %v5890 = vpop.permute.xlu0 %5889
  %5891 = vrot.lane.b32.xlu0 %v5260, 96
  %v5892 = vpop.permute.xlu0 %5891
  %5893 = vrot.lane.b32.xlu0 %v5261, 96
  %v5894 = vpop.permute.xlu0 %5893
  %5895 = vrot.lane.b32.xlu0 %v5262, 96
  %v5896 = vpop.permute.xlu0 %5895
  %5897 = vrot.lane.b32.xlu0 %v5263, 96
  %v5898 = vpop.permute.xlu0 %5897
  %5899 = vrot.lane.b32.xlu0 %v5264, 96
  %v5900 = vpop.permute.xlu0 %5899
  %5901 = vrot.lane.b32.xlu0 %v5265, 96
  %v5902 = vpop.permute.xlu0 %5901
  %5903 = vrot.lane.b32.xlu0 %v5266, 96
  %v5904 = vpop.permute.xlu0 %5903
  %5905 = vrot.lane.b32.xlu0 %v5267, 96
  %v5906 = vpop.permute.xlu0 %5905
  %5907 = vrot.lane.b32.xlu0 %v5268, 96
  %v5908 = vpop.permute.xlu0 %5907
  %5909 = vrot.lane.b32.xlu0 %v5269, 96
  %v5910 = vpop.permute.xlu0 %5909
  %5911 = vrot.lane.b32.xlu0 %v5270, 96
  %v5912 = vpop.permute.xlu0 %5911
  %5913 = vrot.lane.b32.xlu0 %v5271, 96
  %v5914 = vpop.permute.xlu0 %5913
  %5915 = vrot.lane.b32.xlu0 %v5272, 96
  %v5916 = vpop.permute.xlu0 %5915
  %5917 = vrot.lane.b32.xlu0 %v5273, 96
  %v5918 = vpop.permute.xlu0 %5917
  %5919 = vrot.lane.b32.xlu0 %v5274, 96
  %v5920 = vpop.permute.xlu0 %5919
  %5921 = vrot.lane.b32.xlu0 %v5275, 96
  %v5922 = vpop.permute.xlu0 %5921
  %5923 = vrot.lane.b32.xlu0 %v5276, 96
  %v5924 = vpop.permute.xlu0 %5923
  %5925 = vrot.lane.b32.xlu0 %v5277, 96
  %v5926 = vpop.permute.xlu0 %5925
  %5927 = vrot.lane.b32.xlu0 %v5278, 96
  %v5928 = vpop.permute.xlu0 %5927
  %5929 = vrot.lane.b32.xlu0 %v5279, 96
  %v5930 = vpop.permute.xlu0 %5929
  %5931 = vrot.lane.b32.xlu0 %v5280, 96
  %v5932 = vpop.permute.xlu0 %5931
  %5933 = vrot.lane.b32.xlu0 %v5281, 96
  %v5934 = vpop.permute.xlu0 %5933
  %5935 = vrot.lane.b32.xlu0 %v5282, 96
  %v5936 = vpop.permute.xlu0 %5935
  %5937 = vrot.lane.b32.xlu0 %v5283, 96
  %v5938 = vpop.permute.xlu0 %5937
  %5939 = vrot.lane.b32.xlu0 %v5284, 96
  %v5940 = vpop.permute.xlu0 %5939
  %5941 = vrot.lane.b32.xlu0 %v5285, 96
  %v5942 = vpop.permute.xlu0 %5941
  %5943 = vrot.lane.b32.xlu0 %v5286, 96
  %v5944 = vpop.permute.xlu0 %5943
  %5945 = vrot.lane.b32.xlu0 %v5287, 96
  %v5946 = vpop.permute.xlu0 %5945
  %5947 = vrot.lane.b32.xlu0 %v5288, 96
  %v5948 = vpop.permute.xlu0 %5947
  %5949 = vrot.lane.b32.xlu0 %v5289, 96
  %v5950 = vpop.permute.xlu0 %5949
  %5951 = vrot.lane.b32.xlu0 %v5290, 96
  %v5952 = vpop.permute.xlu0 %5951
  %5953 = vrot.lane.b32.xlu0 %v5291, 96
  %v5954 = vpop.permute.xlu0 %5953
  %5955 = vrot.lane.b32.xlu0 %v5292, 96
  %v5956 = vpop.permute.xlu0 %5955
  %5957 = vrot.lane.b32.xlu0 %v5293, 96
  %v5958 = vpop.permute.xlu0 %5957
  %5959 = vrot.lane.b32.xlu0 %v5294, 96
  %v5960 = vpop.permute.xlu0 %5959
  %5961 = vrot.lane.b32.xlu0 %v5295, 96
  %v5962 = vpop.permute.xlu0 %5961
  %5963 = vrot.lane.b32.xlu0 %v5296, 96
  %v5964 = vpop.permute.xlu0 %5963
  %5965 = vrot.lane.b32.xlu0 %v5297, 96
  %v5966 = vpop.permute.xlu0 %5965
  %5967 = vrot.lane.b32.xlu0 %v5298, 96
  %v5968 = vpop.permute.xlu0 %5967
  %5969 = vrot.lane.b32.xlu0 %v5299, 96
  %v5970 = vpop.permute.xlu0 %5969
  %5971 = vrot.lane.b32.xlu0 %v5300, 96
  %v5972 = vpop.permute.xlu0 %5971
  %5973 = vrot.lane.b32.xlu0 %v5301, 96
  %v5974 = vpop.permute.xlu0 %5973
  %5975 = vrot.lane.b32.xlu0 %v5302, 96
  %v5976 = vpop.permute.xlu0 %5975
  %5977 = vrot.lane.b32.xlu0 %v5303, 96
  %v5978 = vpop.permute.xlu0 %5977
  %5979 = vrot.lane.b32.xlu0 %v5304, 96
  %v5980 = vpop.permute.xlu0 %5979
  %5981 = vrot.lane.b32.xlu0 %v5305, 96
  %v5982 = vpop.permute.xlu0 %5981
  %5983 = vrot.lane.b32.xlu0 %v5306, 96
  %v5984 = vpop.permute.xlu0 %5983
  %5985 = vrot.lane.b32.xlu0 %v5307, 96
  %v5986 = vpop.permute.xlu0 %5985
  %5987 = vrot.lane.b32.xlu0 %v5308, 96
  %v5988 = vpop.permute.xlu0 %5987
  %5989 = vrot.lane.b32.xlu0 %v5309, 96
  %v5990 = vpop.permute.xlu0 %5989
  %5991 = vrot.lane.b32.xlu0 %v5310, 96
  %v5992 = vpop.permute.xlu0 %5991
  %5993 = vrot.lane.b32.xlu0 %v5312, 96
  %v5994 = vpop.permute.xlu0 %5993
  %5995 = vrot.lane.b32.xlu0 %v5313, 96
  %v5996 = vpop.permute.xlu0 %5995
  %5997 = vrot.lane.b32.xlu0 %v5314, 96
  %v5998 = vpop.permute.xlu0 %5997
  %5999 = vrot.lane.b32.xlu0 %v5315, 96
  %v6000 = vpop.permute.xlu0 %5999
  %6001 = vrot.lane.b32.xlu0 %v5316, 96
  %v6002 = vpop.permute.xlu0 %6001
  %6003 = vrot.lane.b32.xlu0 %v5317, 96
  %v6004 = vpop.permute.xlu0 %6003
  %6005 = vrot.lane.b32.xlu0 %v5318, 96
  %v6006 = vpop.permute.xlu0 %6005
  %6007 = vrot.lane.b32.xlu0 %v5319, 96
  %v6008 = vpop.permute.xlu0 %6007
  %6009 = vrot.lane.b32.xlu0 %v5320, 96
  %v6010 = vpop.permute.xlu0 %6009
  %6011 = vrot.lane.b32.xlu0 %v5321, 96
  %v6012 = vpop.permute.xlu0 %6011
  %6013 = vrot.lane.b32.xlu0 %v5322, 96
  %v6014 = vpop.permute.xlu0 %6013
  %6015 = vrot.lane.b32.xlu0 %v5323, 96
  %v6016 = vpop.permute.xlu0 %6015
  %6017 = vrot.lane.b32.xlu0 %v5324, 96
  %v6018 = vpop.permute.xlu0 %6017
  %6019 = vrot.lane.b32.xlu0 %v5325, 96
  %v6020 = vpop.permute.xlu0 %6019
  %6021 = vrot.lane.b32.xlu0 %v5326, 96
  %v6022 = vpop.permute.xlu0 %6021
  %6023 = vrot.lane.b32.xlu0 %v5327, 96
  %v6024 = vpop.permute.xlu0 %6023
  %6025 = vrot.lane.b32.xlu0 %v5328, 96
  %v6026 = vpop.permute.xlu0 %6025
  %6027 = vrot.lane.b32.xlu0 %v5329, 96
  %v6028 = vpop.permute.xlu0 %6027
  %6029 = vrot.lane.b32.xlu0 %v5330, 96
  %v6030 = vpop.permute.xlu0 %6029
  %6031 = vrot.lane.b32.xlu0 %v5331, 96
  %v6032 = vpop.permute.xlu0 %6031
  %6033 = vrot.lane.b32.xlu0 %v5332, 96
  %v6034 = vpop.permute.xlu0 %6033
  %6035 = vrot.lane.b32.xlu0 %v5333, 96
  %v6036 = vpop.permute.xlu0 %6035
  %6037 = vrot.lane.b32.xlu0 %v5334, 96
  %v6038 = vpop.permute.xlu0 %6037
  %6039 = vrot.lane.b32.xlu0 %v5335, 96
  %v6040 = vpop.permute.xlu0 %6039
  %6041 = vrot.lane.b32.xlu0 %v5336, 96
  %v6042 = vpop.permute.xlu0 %6041
  %6043 = vrot.lane.b32.xlu0 %v5337, 96
  %v6044 = vpop.permute.xlu0 %6043
  %6045 = vrot.lane.b32.xlu0 %v5338, 96
  %v6046 = vpop.permute.xlu0 %6045
  %6047 = vrot.lane.b32.xlu0 %v5339, 96
  %v6048 = vpop.permute.xlu0 %6047
  %6049 = vrot.lane.b32.xlu0 %v5340, 96
  %v6050 = vpop.permute.xlu0 %6049
  %6051 = vrot.lane.b32.xlu0 %v5341, 96
  %v6052 = vpop.permute.xlu0 %6051
  %6053 = vrot.lane.b32.xlu0 %v5342, 96
  %v6054 = vpop.permute.xlu0 %6053
  %6055 = vrot.lane.b32.xlu0 %v5343, 96
  %v6056 = vpop.permute.xlu0 %6055
  %6057 = vrot.lane.b32.xlu0 %v5344, 96
  %v6058 = vpop.permute.xlu0 %6057
  %6059 = vrot.lane.b32.xlu0 %v5345, 96
  %v6060 = vpop.permute.xlu0 %6059
  %6061 = vrot.lane.b32.xlu0 %v5346, 96
  %v6062 = vpop.permute.xlu0 %6061
  %6063 = vrot.lane.b32.xlu0 %v5347, 96
  %v6064 = vpop.permute.xlu0 %6063
  %6065 = vrot.lane.b32.xlu0 %v5348, 96
  %v6066 = vpop.permute.xlu0 %6065
  %6067 = vrot.lane.b32.xlu0 %v5349, 96
  %v6068 = vpop.permute.xlu0 %6067
  %6069 = vrot.lane.b32.xlu0 %v5350, 96
  %v6070 = vpop.permute.xlu0 %6069
  %6071 = vrot.lane.b32.xlu0 %v5351, 96
  %v6072 = vpop.permute.xlu0 %6071
  %6073 = vrot.lane.b32.xlu0 %v5352, 96
  %v6074 = vpop.permute.xlu0 %6073
  %6075 = vrot.lane.b32.xlu0 %v5353, 96
  %v6076 = vpop.permute.xlu0 %6075
  %6077 = vrot.lane.b32.xlu0 %v5354, 96
  %v6078 = vpop.permute.xlu0 %6077
  %6079 = vrot.lane.b32.xlu0 %v5355, 96
  %v6080 = vpop.permute.xlu0 %6079
  %6081 = vrot.lane.b32.xlu0 %v5356, 96
  %v6082 = vpop.permute.xlu0 %6081
  %6083 = vrot.lane.b32.xlu0 %v5357, 96
  %v6084 = vpop.permute.xlu0 %6083
  %6085 = vrot.lane.b32.xlu0 %v5358, 96
  %v6086 = vpop.permute.xlu0 %6085
  %6087 = vrot.lane.b32.xlu0 %v5359, 96
  %v6088 = vpop.permute.xlu0 %6087
  %6089 = vrot.lane.b32.xlu0 %v5360, 96
  %v6090 = vpop.permute.xlu0 %6089
  %6091 = vrot.lane.b32.xlu0 %v5361, 96
  %v6092 = vpop.permute.xlu0 %6091
  %6093 = vrot.lane.b32.xlu0 %v5362, 96
  %v6094 = vpop.permute.xlu0 %6093
  %6095 = vrot.lane.b32.xlu0 %v5363, 96
  %v6096 = vpop.permute.xlu0 %6095
  %6097 = vrot.lane.b32.xlu0 %v5364, 96
  %v6098 = vpop.permute.xlu0 %6097
  %6099 = vrot.lane.b32.xlu0 %v5365, 96
  %v6100 = vpop.permute.xlu0 %6099
  %6101 = vrot.lane.b32.xlu0 %v5366, 96
  %v6102 = vpop.permute.xlu0 %6101
  %6103 = vrot.lane.b32.xlu0 %v5367, 96
  %v6104 = vpop.permute.xlu0 %6103
  %6105 = vrot.lane.b32.xlu0 %v5368, 96
  %v6106 = vpop.permute.xlu0 %6105
  %6107 = vrot.lane.b32.xlu0 %v5369, 96
  %v6108 = vpop.permute.xlu0 %6107
  %6109 = vrot.lane.b32.xlu0 %v5370, 96
  %v6110 = vpop.permute.xlu0 %6109
  %6111 = vrot.lane.b32.xlu0 %v5371, 96
  %v6112 = vpop.permute.xlu0 %6111
  %6113 = vrot.lane.b32.xlu0 %v5372, 96
  %v6114 = vpop.permute.xlu0 %6113
  %6115 = vrot.lane.b32.xlu0 %v5373, 96
  %v6116 = vpop.permute.xlu0 %6115
  %6117 = vrot.lane.b32.xlu0 %v5374, 96
  %v6118 = vpop.permute.xlu0 %6117
  %6119 = vrot.lane.b32.xlu0 %v5375, 96
  %v6120 = vpop.permute.xlu0 %6119
  %6121 = vrot.lane.b32.xlu0 %v5376, 96
  %v6122 = vpop.permute.xlu0 %6121
  %6123 = vrot.lane.b32.xlu0 %v5377, 96
  %v6124 = vpop.permute.xlu0 %6123
  %6125 = vrot.lane.b32.xlu0 %v5378, 96
  %v6126 = vpop.permute.xlu0 %6125
  %6127 = vrot.lane.b32.xlu0 %v5379, 96
  %v6128 = vpop.permute.xlu0 %6127
  %6129 = vrot.lane.b32.xlu0 %v5380, 96
  %v6130 = vpop.permute.xlu0 %6129
  %6131 = vrot.lane.b32.xlu0 %v5381, 96
  %v6132 = vpop.permute.xlu0 %6131
  %6133 = vrot.lane.b32.xlu0 %v5382, 96
  %v6134 = vpop.permute.xlu0 %6133
  %6135 = vrot.lane.b32.xlu0 %v5383, 96
  %v6136 = vpop.permute.xlu0 %6135
  %6137 = vrot.lane.b32.xlu0 %v5384, 96
  %v6138 = vpop.permute.xlu0 %6137
  %6139 = vrot.lane.b32.xlu0 %v5385, 96
  %v6140 = vpop.permute.xlu0 %6139
  %6141 = vrot.lane.b32.xlu0 %v5386, 96
  %v6142 = vpop.permute.xlu0 %6141
  %6143 = vrot.lane.b32.xlu0 %v5387, 96
  %v6144 = vpop.permute.xlu0 %6143
  %6145 = vrot.lane.b32.xlu0 %v5388, 96
  %v6146 = vpop.permute.xlu0 %6145
  %6147 = vrot.lane.b32.xlu0 %v5389, 96
  %v6148 = vpop.permute.xlu0 %6147
  %6149 = vrot.lane.b32.xlu0 %v5390, 96
  %v6150 = vpop.permute.xlu0 %6149
  %6151 = vrot.lane.b32.xlu0 %v5391, 96
  %v6152 = vpop.permute.xlu0 %6151
  %6153 = vrot.lane.b32.xlu0 %v5392, 96
  %v6154 = vpop.permute.xlu0 %6153
  %6155 = vrot.lane.b32.xlu0 %v5393, 96
  %v6156 = vpop.permute.xlu0 %6155
  %6157 = vrot.lane.b32.xlu0 %v5394, 96
  %v6158 = vpop.permute.xlu0 %6157
  %6159 = vrot.lane.b32.xlu0 %v5395, 96
  %v6160 = vpop.permute.xlu0 %6159
  %6161 = vrot.lane.b32.xlu0 %v5396, 96
  %v6162 = vpop.permute.xlu0 %6161
  %6163 = vrot.lane.b32.xlu0 %v5397, 96
  %v6164 = vpop.permute.xlu0 %6163
  %6165 = vrot.lane.b32.xlu0 %v5398, 96
  %v6166 = vpop.permute.xlu0 %6165
  %6167 = vrot.lane.b32.xlu0 %v5399, 96
  %v6168 = vpop.permute.xlu0 %6167
  %6169 = vrot.lane.b32.xlu0 %v5400, 96
  %v6170 = vpop.permute.xlu0 %6169
  %6171 = vrot.lane.b32.xlu0 %v5401, 96
  %v6172 = vpop.permute.xlu0 %6171
  %6173 = vrot.lane.b32.xlu0 %v5402, 96
  %v6174 = vpop.permute.xlu0 %6173
  %6175 = vrot.lane.b32.xlu0 %v5403, 96
  %v6176 = vpop.permute.xlu0 %6175
  %6177 = vrot.lane.b32.xlu0 %v5404, 96
  %v6178 = vpop.permute.xlu0 %6177
  %6179 = vrot.lane.b32.xlu0 %v5405, 96
  %v6180 = vpop.permute.xlu0 %6179
  %6181 = vrot.lane.b32.xlu0 %v5406, 96
  %v6182 = vpop.permute.xlu0 %6181
  %6183 = vrot.lane.b32.xlu0 %v5407, 96
  %v6184 = vpop.permute.xlu0 %6183
  %6185 = vrot.lane.b32.xlu0 %v5408, 96
  %v6186 = vpop.permute.xlu0 %6185
  %6187 = vrot.lane.b32.xlu0 %v5410, 96
  %v6188 = vpop.permute.xlu0 %6187
  %6189 = vrot.lane.b32.xlu0 %v5411, 96
  %v6190 = vpop.permute.xlu0 %6189
  %6191 = vrot.lane.b32.xlu0 %v5412, 96
  %v6192 = vpop.permute.xlu0 %6191
  %6193 = vrot.lane.b32.xlu0 %v5413, 96
  %v6194 = vpop.permute.xlu0 %6193
  %6195 = vrot.lane.b32.xlu0 %v5414, 96
  %v6196 = vpop.permute.xlu0 %6195
  %6197 = vrot.lane.b32.xlu0 %v5415, 96
  %v6198 = vpop.permute.xlu0 %6197
  %6199 = vrot.lane.b32.xlu0 %v5416, 96
  %v6200 = vpop.permute.xlu0 %6199
  %6201 = vrot.lane.b32.xlu0 %v5417, 96
  %v6202 = vpop.permute.xlu0 %6201
  %6203 = vrot.lane.b32.xlu0 %v5418, 96
  %v6204 = vpop.permute.xlu0 %6203
  %6205 = vrot.lane.b32.xlu0 %v5419, 96
  %v6206 = vpop.permute.xlu0 %6205
  %6207 = vrot.lane.b32.xlu0 %v5420, 96
  %v6208 = vpop.permute.xlu0 %6207
  %6209 = vrot.lane.b32.xlu0 %v5421, 96
  %v6210 = vpop.permute.xlu0 %6209
  %6211 = vrot.lane.b32.xlu0 %v5422, 96
  %v6212 = vpop.permute.xlu0 %6211
  %6213 = vrot.lane.b32.xlu0 %v5423, 96
  %v6214 = vpop.permute.xlu0 %6213
  %6215 = vrot.lane.b32.xlu0 %v5424, 96
  %v6216 = vpop.permute.xlu0 %6215
  %6217 = vrot.lane.b32.xlu0 %v5425, 96
  %v6218 = vpop.permute.xlu0 %6217
  %6219 = vrot.lane.b32.xlu0 %v5426, 96
  %v6220 = vpop.permute.xlu0 %6219
  %6221 = vrot.lane.b32.xlu0 %v5427, 96
  %v6222 = vpop.permute.xlu0 %6221
  %6223 = vrot.lane.b32.xlu0 %v5428, 96
  %v6224 = vpop.permute.xlu0 %6223
  %6225 = vrot.lane.b32.xlu0 %v5429, 96
  %v6226 = vpop.permute.xlu0 %6225
  %6227 = vrot.lane.b32.xlu0 %v5430, 96
  %v6228 = vpop.permute.xlu0 %6227
  %6229 = vrot.lane.b32.xlu0 %v5431, 96
  %v6230 = vpop.permute.xlu0 %6229
  %6231 = vrot.lane.b32.xlu0 %v5432, 96
  %v6232 = vpop.permute.xlu0 %6231
  %6233 = vrot.lane.b32.xlu0 %v5433, 96
  %v6234 = vpop.permute.xlu0 %6233
  %6235 = vrot.lane.b32.xlu0 %v5434, 96
  %v6236 = vpop.permute.xlu0 %6235
  %6237 = vrot.lane.b32.xlu0 %v5435, 96
  %v6238 = vpop.permute.xlu0 %6237
  %6239 = vrot.lane.b32.xlu0 %v5436, 96
  %v6240 = vpop.permute.xlu0 %6239
  %6241 = vrot.lane.b32.xlu0 %v5437, 96
  %v6242 = vpop.permute.xlu0 %6241
  %6243 = vrot.lane.b32.xlu0 %v5438, 96
  %v6244 = vpop.permute.xlu0 %6243
  %6245 = vrot.lane.b32.xlu0 %v5439, 96
  %v6246 = vpop.permute.xlu0 %6245
  %6247 = vrot.lane.b32.xlu0 %v5440, 96
  %v6248 = vpop.permute.xlu0 %6247
  %6249 = vrot.lane.b32.xlu0 %v5441, 96
  %v6250 = vpop.permute.xlu0 %6249
  %6251 = vrot.lane.b32.xlu0 %v5442, 96
  %v6252 = vpop.permute.xlu0 %6251
  %6253 = vrot.lane.b32.xlu0 %v5443, 96
  %v6254 = vpop.permute.xlu0 %6253
  %6255 = vrot.lane.b32.xlu0 %v5444, 96
  %v6256 = vpop.permute.xlu0 %6255
  %6257 = vrot.lane.b32.xlu0 %v5445, 96
  %v6258 = vpop.permute.xlu0 %6257
  %6259 = vrot.lane.b32.xlu0 %v5446, 96
  %v6260 = vpop.permute.xlu0 %6259
  %6261 = vrot.lane.b32.xlu0 %v5447, 96
  %v6262 = vpop.permute.xlu0 %6261
  %6263 = vrot.lane.b32.xlu0 %v5448, 96
  %v6264 = vpop.permute.xlu0 %6263
  %6265 = vrot.lane.b32.xlu0 %v5449, 96
  %v6266 = vpop.permute.xlu0 %6265
  %6267 = vrot.lane.b32.xlu0 %v5450, 96
  %v6268 = vpop.permute.xlu0 %6267
  %6269 = vrot.lane.b32.xlu0 %v5451, 96
  %v6270 = vpop.permute.xlu0 %6269
  %6271 = vrot.lane.b32.xlu0 %v5452, 96
  %v6272 = vpop.permute.xlu0 %6271
  %6273 = vrot.lane.b32.xlu0 %v5453, 96
  %v6274 = vpop.permute.xlu0 %6273
  %6275 = vrot.lane.b32.xlu0 %v5454, 96
  %v6276 = vpop.permute.xlu0 %6275
  %6277 = vrot.lane.b32.xlu0 %v5455, 96
  %v6278 = vpop.permute.xlu0 %6277
  %6279 = vrot.lane.b32.xlu0 %v5456, 96
  %v6280 = vpop.permute.xlu0 %6279
  %6281 = vrot.lane.b32.xlu0 %v5457, 96
  %v6282 = vpop.permute.xlu0 %6281
  %6283 = vrot.lane.b32.xlu0 %v5458, 96
  %v6284 = vpop.permute.xlu0 %6283
  %6285 = vrot.lane.b32.xlu0 %v5459, 96
  %v6286 = vpop.permute.xlu0 %6285
  %6287 = vrot.lane.b32.xlu0 %v5460, 96
  %v6288 = vpop.permute.xlu0 %6287
  %6289 = vrot.lane.b32.xlu0 %v5461, 96
  %v6290 = vpop.permute.xlu0 %6289
  %6291 = vrot.lane.b32.xlu0 %v5462, 96
  %v6292 = vpop.permute.xlu0 %6291
  %6293 = vrot.lane.b32.xlu0 %v5463, 96
  %v6294 = vpop.permute.xlu0 %6293
  %6295 = vrot.lane.b32.xlu0 %v5464, 96
  %v6296 = vpop.permute.xlu0 %6295
  %6297 = vrot.lane.b32.xlu0 %v5465, 96
  %v6298 = vpop.permute.xlu0 %6297
  %6299 = vrot.lane.b32.xlu0 %v5466, 96
  %v6300 = vpop.permute.xlu0 %6299
  %6301 = vrot.lane.b32.xlu0 %v5467, 96
  %v6302 = vpop.permute.xlu0 %6301
  %6303 = vrot.lane.b32.xlu0 %v5468, 96
  %v6304 = vpop.permute.xlu0 %6303
  %6305 = vrot.lane.b32.xlu0 %v5469, 96
  %v6306 = vpop.permute.xlu0 %6305
  %6307 = vrot.lane.b32.xlu0 %v5470, 96
  %v6308 = vpop.permute.xlu0 %6307
  %6309 = vrot.lane.b32.xlu0 %v5471, 96
  %v6310 = vpop.permute.xlu0 %6309
  %6311 = vrot.lane.b32.xlu0 %v5472, 96
  %v6312 = vpop.permute.xlu0 %6311
  %6313 = vrot.lane.b32.xlu0 %v5473, 96
  %v6314 = vpop.permute.xlu0 %6313
  %6315 = vrot.lane.b32.xlu0 %v5474, 96
  %v6316 = vpop.permute.xlu0 %6315
  %6317 = vrot.lane.b32.xlu0 %v5475, 96
  %v6318 = vpop.permute.xlu0 %6317
  %6319 = vrot.lane.b32.xlu0 %v5476, 96
  %v6320 = vpop.permute.xlu0 %6319
  %6321 = vrot.lane.b32.xlu0 %v5477, 96
  %v6322 = vpop.permute.xlu0 %6321
  %6323 = vrot.lane.b32.xlu0 %v5478, 96
  %v6324 = vpop.permute.xlu0 %6323
  %6325 = vrot.lane.b32.xlu0 %v5479, 96
  %v6326 = vpop.permute.xlu0 %6325
  %6327 = vrot.lane.b32.xlu0 %v5480, 96
  %v6328 = vpop.permute.xlu0 %6327
  %6329 = vrot.lane.b32.xlu0 %v5481, 96
  %v6330 = vpop.permute.xlu0 %6329
  %6331 = vrot.lane.b32.xlu0 %v5482, 96
  %v6332 = vpop.permute.xlu0 %6331
  %6333 = vrot.lane.b32.xlu0 %v5483, 96
  %v6334 = vpop.permute.xlu0 %6333
  %6335 = vrot.lane.b32.xlu0 %v5484, 96
  %v6336 = vpop.permute.xlu0 %6335
  %6337 = vrot.lane.b32.xlu0 %v5485, 96
  %v6338 = vpop.permute.xlu0 %6337
  %6339 = vrot.lane.b32.xlu0 %v5486, 96
  %v6340 = vpop.permute.xlu0 %6339
  %6341 = vrot.lane.b32.xlu0 %v5487, 96
  %v6342 = vpop.permute.xlu0 %6341
  %6343 = vrot.lane.b32.xlu0 %v5488, 96
  %v6344 = vpop.permute.xlu0 %6343
  %6345 = vrot.lane.b32.xlu0 %v5489, 96
  %v6346 = vpop.permute.xlu0 %6345
  %6347 = vrot.lane.b32.xlu0 %v5490, 96
  %v6348 = vpop.permute.xlu0 %6347
  %6349 = vrot.lane.b32.xlu0 %v5491, 96
  %v6350 = vpop.permute.xlu0 %6349
  %6351 = vrot.lane.b32.xlu0 %v5492, 96
  %v6352 = vpop.permute.xlu0 %6351
  %6353 = vrot.lane.b32.xlu0 %v5493, 96
  %v6354 = vpop.permute.xlu0 %6353
  %6355 = vrot.lane.b32.xlu0 %v5494, 96
  %v6356 = vpop.permute.xlu0 %6355
  %6357 = vrot.lane.b32.xlu0 %v5495, 96
  %v6358 = vpop.permute.xlu0 %6357
  %6359 = vrot.lane.b32.xlu0 %v5496, 96
  %v6360 = vpop.permute.xlu0 %6359
  %6361 = vrot.lane.b32.xlu0 %v5497, 96
  %v6362 = vpop.permute.xlu0 %6361
  %6363 = vrot.lane.b32.xlu0 %v5498, 96
  %v6364 = vpop.permute.xlu0 %6363
  %6365 = vrot.lane.b32.xlu0 %v5499, 96
  %v6366 = vpop.permute.xlu0 %6365
  %6367 = vrot.lane.b32.xlu0 %v5500, 96
  %v6368 = vpop.permute.xlu0 %6367
  %6369 = vrot.lane.b32.xlu0 %v5501, 96
  %v6370 = vpop.permute.xlu0 %6369
  %6371 = vrot.lane.b32.xlu0 %v5502, 96
  %v6372 = vpop.permute.xlu0 %6371
  %6373 = vrot.lane.b32.xlu0 %v5503, 96
  %v6374 = vpop.permute.xlu0 %6373
  %6375 = vrot.lane.b32.xlu0 %v5504, 96
  %v6376 = vpop.permute.xlu0 %6375
  %6377 = vrot.lane.b32.xlu0 %v5505, 96
  %v6378 = vpop.permute.xlu0 %6377
  %6379 = vrot.lane.b32.xlu0 %v5506, 96
  %v6380 = vpop.permute.xlu0 %6379
  %vm6381 = vcmask 785408
  %v6382 = vsel %vm6381, %v5800, %v5802
  %v6383 = vsel %vm6381, %v5802, %v5804
  %v6384 = vsel %vm6381, %v5804, %v5806
  %v6385 = vsel %vm6381, %v5806, %v5808
  %v6386 = vsel %vm6381, %v5808, %v5810
  %v6387 = vsel %vm6381, %v5810, %v5812
  %v6388 = vsel %vm6381, %v5812, %v5814
  %v6389 = vsel %vm6381, %v5814, %v5816
  %v6390 = vsel %vm6381, %v5816, %v5818
  %v6391 = vsel %vm6381, %v5818, %v5820
  %v6392 = vsel %vm6381, %v5820, %v5822
  %v6393 = vsel %vm6381, %v5822, %v5824
  %v6394 = vsel %vm6381, %v5824, %v5826
  %v6395 = vsel %vm6381, %v5826, %v5828
  %v6396 = vsel %vm6381, %v5828, %v5830
  %v6397 = vsel %vm6381, %v5830, %v5832
  %v6398 = vsel %vm6381, %v5832, %v5834
  %v6399 = vsel %vm6381, %v5834, %v5836
  %v6400 = vsel %vm6381, %v5836, %v5838
  %v6401 = vsel %vm6381, %v5838, %v5840
  %v6402 = vsel %vm6381, %v5840, %v5842
  %v6403 = vsel %vm6381, %v5842, %v5844
  %v6404 = vsel %vm6381, %v5844, %v5846
  %v6405 = vsel %vm6381, %v5846, %v5848
  %v6406 = vsel %vm6381, %v5848, %v5850
  %v6407 = vsel %vm6381, %v5850, %v5852
  %v6408 = vsel %vm6381, %v5852, %v5854
  %v6409 = vsel %vm6381, %v5854, %v5856
  %v6410 = vsel %vm6381, %v5856, %v5858
  %v6411 = vsel %vm6381, %v5858, %v5860
  %v6412 = vsel %vm6381, %v5860, %v5862
  %v6413 = vsel %vm6381, %v5862, %v5864
  %v6414 = vsel %vm6381, %v5864, %v5866
  %v6415 = vsel %vm6381, %v5866, %v5868
  %v6416 = vsel %vm6381, %v5868, %v5870
  %v6417 = vsel %vm6381, %v5870, %v5872
  %v6418 = vsel %vm6381, %v5872, %v5874
  %v6419 = vsel %vm6381, %v5874, %v5876
  %v6420 = vsel %vm6381, %v5876, %v5878
  %v6421 = vsel %vm6381, %v5878, %v5880
  %v6422 = vsel %vm6381, %v5880, %v5882
  %v6423 = vsel %vm6381, %v5882, %v5884
  %v6424 = vsel %vm6381, %v5884, %v5886
  %v6425 = vsel %vm6381, %v5886, %v5888
  %v6426 = vsel %vm6381, %v5888, %v5890
  %v6427 = vsel %vm6381, %v5890, %v5892
  %v6428 = vsel %vm6381, %v5892, %v5894
  %v6429 = vsel %vm6381, %v5894, %v5896
  %v6430 = vsel %vm6381, %v5896, %v5898
  %v6431 = vsel %vm6381, %v5898, %v5900
  %v6432 = vsel %vm6381, %v5900, %v5902
  %v6433 = vsel %vm6381, %v5902, %v5904
  %v6434 = vsel %vm6381, %v5904, %v5906
  %v6435 = vsel %vm6381, %v5906, %v5908
  %v6436 = vsel %vm6381, %v5908, %v5910
  %v6437 = vsel %vm6381, %v5910, %v5912
  %v6438 = vsel %vm6381, %v5912, %v5914
  %v6439 = vsel %vm6381, %v5914, %v5916
  %v6440 = vsel %vm6381, %v5916, %v5918
  %v6441 = vsel %vm6381, %v5918, %v5920
  %v6442 = vsel %vm6381, %v5920, %v5922
  %v6443 = vsel %vm6381, %v5922, %v5924
  %v6444 = vsel %vm6381, %v5924, %v5926
  %v6445 = vsel %vm6381, %v5926, %v5928
  %v6446 = vsel %vm6381, %v5928, %v5930
  %v6447 = vsel %vm6381, %v5930, %v5932
  %v6448 = vsel %vm6381, %v5932, %v5934
  %v6449 = vsel %vm6381, %v5934, %v5936
  %v6450 = vsel %vm6381, %v5936, %v5938
  %v6451 = vsel %vm6381, %v5938, %v5940
  %v6452 = vsel %vm6381, %v5940, %v5942
  %v6453 = vsel %vm6381, %v5942, %v5944
  %v6454 = vsel %vm6381, %v5944, %v5946
  %v6455 = vsel %vm6381, %v5946, %v5948
  %v6456 = vsel %vm6381, %v5948, %v5950
  %v6457 = vsel %vm6381, %v5950, %v5952
  %v6458 = vsel %vm6381, %v5952, %v5954
  %v6459 = vsel %vm6381, %v5954, %v5956
  %v6460 = vsel %vm6381, %v5956, %v5958
  %v6461 = vsel %vm6381, %v5958, %v5960
  %v6462 = vsel %vm6381, %v5960, %v5962
  %v6463 = vsel %vm6381, %v5962, %v5964
  %v6464 = vsel %vm6381, %v5964, %v5966
  %v6465 = vsel %vm6381, %v5966, %v5968
  %v6466 = vsel %vm6381, %v5968, %v5970
  %v6467 = vsel %vm6381, %v5970, %v5972
  %v6468 = vsel %vm6381, %v5972, %v5974
  %v6469 = vsel %vm6381, %v5974, %v5976
  %v6470 = vsel %vm6381, %v5976, %v5978
  %v6471 = vsel %vm6381, %v5978, %v5980
  %v6472 = vsel %vm6381, %v5980, %v5982
  %v6473 = vsel %vm6381, %v5982, %v5984
  %v6474 = vsel %vm6381, %v5984, %v5986
  %v6475 = vsel %vm6381, %v5986, %v5988
  %v6476 = vsel %vm6381, %v5988, %v5990
  %v6477 = vsel %vm6381, %v5990, %v5992
  %v6478 = vsel %vm6381, %v5994, %v5996
  %v6479 = vsel %vm6381, %v5996, %v5998
  %v6480 = vsel %vm6381, %v5998, %v6000
  %v6481 = vsel %vm6381, %v6000, %v6002
  %v6482 = vsel %vm6381, %v6002, %v6004
  %v6483 = vsel %vm6381, %v6004, %v6006
  %v6484 = vsel %vm6381, %v6006, %v6008
  %v6485 = vsel %vm6381, %v6008, %v6010
  %v6486 = vsel %vm6381, %v6010, %v6012
  %v6487 = vsel %vm6381, %v6012, %v6014
  %v6488 = vsel %vm6381, %v6014, %v6016
  %v6489 = vsel %vm6381, %v6016, %v6018
  %v6490 = vsel %vm6381, %v6018, %v6020
  %v6491 = vsel %vm6381, %v6020, %v6022
  %v6492 = vsel %vm6381, %v6022, %v6024
  %v6493 = vsel %vm6381, %v6024, %v6026
  %v6494 = vsel %vm6381, %v6026, %v6028
  %v6495 = vsel %vm6381, %v6028, %v6030
  %v6496 = vsel %vm6381, %v6030, %v6032
  %v6497 = vsel %vm6381, %v6032, %v6034
  %v6498 = vsel %vm6381, %v6034, %v6036
  %v6499 = vsel %vm6381, %v6036, %v6038
  %v6500 = vsel %vm6381, %v6038, %v6040
  %v6501 = vsel %vm6381, %v6040, %v6042
  %v6502 = vsel %vm6381, %v6042, %v6044
  %v6503 = vsel %vm6381, %v6044, %v6046
  %v6504 = vsel %vm6381, %v6046, %v6048
  %v6505 = vsel %vm6381, %v6048, %v6050
  %v6506 = vsel %vm6381, %v6050, %v6052
  %v6507 = vsel %vm6381, %v6052, %v6054
  %v6508 = vsel %vm6381, %v6054, %v6056
  %v6509 = vsel %vm6381, %v6056, %v6058
  %v6510 = vsel %vm6381, %v6058, %v6060
  %v6511 = vsel %vm6381, %v6060, %v6062
  %v6512 = vsel %vm6381, %v6062, %v6064
  %v6513 = vsel %vm6381, %v6064, %v6066
  %v6514 = vsel %vm6381, %v6066, %v6068
  %v6515 = vsel %vm6381, %v6068, %v6070
  %v6516 = vsel %vm6381, %v6070, %v6072
  %v6517 = vsel %vm6381, %v6072, %v6074
  %v6518 = vsel %vm6381, %v6074, %v6076
  %v6519 = vsel %vm6381, %v6076, %v6078
  %v6520 = vsel %vm6381, %v6078, %v6080
  %v6521 = vsel %vm6381, %v6080, %v6082
  %v6522 = vsel %vm6381, %v6082, %v6084
  %v6523 = vsel %vm6381, %v6084, %v6086
  %v6524 = vsel %vm6381, %v6086, %v6088
  %v6525 = vsel %vm6381, %v6088, %v6090
  %v6526 = vsel %vm6381, %v6090, %v6092
  %v6527 = vsel %vm6381, %v6092, %v6094
  %v6528 = vsel %vm6381, %v6094, %v6096
  %v6529 = vsel %vm6381, %v6096, %v6098
  %v6530 = vsel %vm6381, %v6098, %v6100
  %v6531 = vsel %vm6381, %v6100, %v6102
  %v6532 = vsel %vm6381, %v6102, %v6104
  %v6533 = vsel %vm6381, %v6104, %v6106
  %v6534 = vsel %vm6381, %v6106, %v6108
  %v6535 = vsel %vm6381, %v6108, %v6110
  %v6536 = vsel %vm6381, %v6110, %v6112
  %v6537 = vsel %vm6381, %v6112, %v6114
  %v6538 = vsel %vm6381, %v6114, %v6116
  %v6539 = vsel %vm6381, %v6116, %v6118
  %v6540 = vsel %vm6381, %v6118, %v6120
  %v6541 = vsel %vm6381, %v6120, %v6122
  %v6542 = vsel %vm6381, %v6122, %v6124
  %v6543 = vsel %vm6381, %v6124, %v6126
  %v6544 = vsel %vm6381, %v6126, %v6128
  %v6545 = vsel %vm6381, %v6128, %v6130
  %v6546 = vsel %vm6381, %v6130, %v6132
  %v6547 = vsel %vm6381, %v6132, %v6134
  %v6548 = vsel %vm6381, %v6134, %v6136
  %v6549 = vsel %vm6381, %v6136, %v6138
  %v6550 = vsel %vm6381, %v6138, %v6140
  %v6551 = vsel %vm6381, %v6140, %v6142
  %v6552 = vsel %vm6381, %v6142, %v6144
  %v6553 = vsel %vm6381, %v6144, %v6146
  %v6554 = vsel %vm6381, %v6146, %v6148
  %v6555 = vsel %vm6381, %v6148, %v6150
  %v6556 = vsel %vm6381, %v6150, %v6152
  %v6557 = vsel %vm6381, %v6152, %v6154
  %v6558 = vsel %vm6381, %v6154, %v6156
  %v6559 = vsel %vm6381, %v6156, %v6158
  %v6560 = vsel %vm6381, %v6158, %v6160
  %v6561 = vsel %vm6381, %v6160, %v6162
  %v6562 = vsel %vm6381, %v6162, %v6164
  %v6563 = vsel %vm6381, %v6164, %v6166
  %v6564 = vsel %vm6381, %v6166, %v6168
  %v6565 = vsel %vm6381, %v6168, %v6170
  %v6566 = vsel %vm6381, %v6170, %v6172
  %v6567 = vsel %vm6381, %v6172, %v6174
  %v6568 = vsel %vm6381, %v6174, %v6176
  %v6569 = vsel %vm6381, %v6176, %v6178
  %v6570 = vsel %vm6381, %v6178, %v6180
  %v6571 = vsel %vm6381, %v6180, %v6182
  %v6572 = vsel %vm6381, %v6182, %v6184
  %v6573 = vsel %vm6381, %v6184, %v6186
  %v6574 = vsel %vm6381, %v6188, %v6190
  %v6575 = vsel %vm6381, %v6190, %v6192
  %v6576 = vsel %vm6381, %v6192, %v6194
  %v6577 = vsel %vm6381, %v6194, %v6196
  %v6578 = vsel %vm6381, %v6196, %v6198
  %v6579 = vsel %vm6381, %v6198, %v6200
  %v6580 = vsel %vm6381, %v6200, %v6202
  %v6581 = vsel %vm6381, %v6202, %v6204
  %v6582 = vsel %vm6381, %v6204, %v6206
  %v6583 = vsel %vm6381, %v6206, %v6208
  %v6584 = vsel %vm6381, %v6208, %v6210
  %v6585 = vsel %vm6381, %v6210, %v6212
  %v6586 = vsel %vm6381, %v6212, %v6214
  %v6587 = vsel %vm6381, %v6214, %v6216
  %v6588 = vsel %vm6381, %v6216, %v6218
  %v6589 = vsel %vm6381, %v6218, %v6220
  %v6590 = vsel %vm6381, %v6220, %v6222
  %v6591 = vsel %vm6381, %v6222, %v6224
  %v6592 = vsel %vm6381, %v6224, %v6226
  %v6593 = vsel %vm6381, %v6226, %v6228
  %v6594 = vsel %vm6381, %v6228, %v6230
  %v6595 = vsel %vm6381, %v6230, %v6232
  %v6596 = vsel %vm6381, %v6232, %v6234
  %v6597 = vsel %vm6381, %v6234, %v6236
  %v6598 = vsel %vm6381, %v6236, %v6238
  %v6599 = vsel %vm6381, %v6238, %v6240
  %v6600 = vsel %vm6381, %v6240, %v6242
  %v6601 = vsel %vm6381, %v6242, %v6244
  %v6602 = vsel %vm6381, %v6244, %v6246
  %v6603 = vsel %vm6381, %v6246, %v6248
  %v6604 = vsel %vm6381, %v6248, %v6250
  %v6605 = vsel %vm6381, %v6250, %v6252
  %v6606 = vsel %vm6381, %v6252, %v6254
  %v6607 = vsel %vm6381, %v6254, %v6256
  %v6608 = vsel %vm6381, %v6256, %v6258
  %v6609 = vsel %vm6381, %v6258, %v6260
  %v6610 = vsel %vm6381, %v6260, %v6262
  %v6611 = vsel %vm6381, %v6262, %v6264
  %v6612 = vsel %vm6381, %v6264, %v6266
  %v6613 = vsel %vm6381, %v6266, %v6268
  %v6614 = vsel %vm6381, %v6268, %v6270
  %v6615 = vsel %vm6381, %v6270, %v6272
  %v6616 = vsel %vm6381, %v6272, %v6274
  %v6617 = vsel %vm6381, %v6274, %v6276
  %v6618 = vsel %vm6381, %v6276, %v6278
  %v6619 = vsel %vm6381, %v6278, %v6280
  %v6620 = vsel %vm6381, %v6280, %v6282
  %v6621 = vsel %vm6381, %v6282, %v6284
  %v6622 = vsel %vm6381, %v6284, %v6286
  %v6623 = vsel %vm6381, %v6286, %v6288
  %v6624 = vsel %vm6381, %v6288, %v6290
  %v6625 = vsel %vm6381, %v6290, %v6292
  %v6626 = vsel %vm6381, %v6292, %v6294
  %v6627 = vsel %vm6381, %v6294, %v6296
  %v6628 = vsel %vm6381, %v6296, %v6298
  %v6629 = vsel %vm6381, %v6298, %v6300
  %v6630 = vsel %vm6381, %v6300, %v6302
  %v6631 = vsel %vm6381, %v6302, %v6304
  %v6632 = vsel %vm6381, %v6304, %v6306
  %v6633 = vsel %vm6381, %v6306, %v6308
  %v6634 = vsel %vm6381, %v6308, %v6310
  %v6635 = vsel %vm6381, %v6310, %v6312
  %v6636 = vsel %vm6381, %v6312, %v6314
  %v6637 = vsel %vm6381, %v6314, %v6316
  %v6638 = vsel %vm6381, %v6316, %v6318
  %v6639 = vsel %vm6381, %v6318, %v6320
  %v6640 = vsel %vm6381, %v6320, %v6322
  %v6641 = vsel %vm6381, %v6322, %v6324
  %v6642 = vsel %vm6381, %v6324, %v6326
  %v6643 = vsel %vm6381, %v6326, %v6328
  %v6644 = vsel %vm6381, %v6328, %v6330
  %v6645 = vsel %vm6381, %v6330, %v6332
  %v6646 = vsel %vm6381, %v6332, %v6334
  %v6647 = vsel %vm6381, %v6334, %v6336
  %v6648 = vsel %vm6381, %v6336, %v6338
  %v6649 = vsel %vm6381, %v6338, %v6340
  %v6650 = vsel %vm6381, %v6340, %v6342
  %v6651 = vsel %vm6381, %v6342, %v6344
  %v6652 = vsel %vm6381, %v6344, %v6346
  %v6653 = vsel %vm6381, %v6346, %v6348
  %v6654 = vsel %vm6381, %v6348, %v6350
  %v6655 = vsel %vm6381, %v6350, %v6352
  %v6656 = vsel %vm6381, %v6352, %v6354
  %v6657 = vsel %vm6381, %v6354, %v6356
  %v6658 = vsel %vm6381, %v6356, %v6358
  %v6659 = vsel %vm6381, %v6358, %v6360
  %v6660 = vsel %vm6381, %v6360, %v6362
  %v6661 = vsel %vm6381, %v6362, %v6364
  %v6662 = vsel %vm6381, %v6364, %v6366
  %v6663 = vsel %vm6381, %v6366, %v6368
  %v6664 = vsel %vm6381, %v6368, %v6370
  %v6665 = vsel %vm6381, %v6370, %v6372
  %v6666 = vsel %vm6381, %v6372, %v6374
  %v6667 = vsel %vm6381, %v6374, %v6376
  %v6668 = vsel %vm6381, %v6376, %v6378
  %v6669 = vsel %vm6381, %v6378, %v6380
  %v6961 = vsel %vm6381, 0.0, %v5800
  %v6962 = vsel %vm6381, 0.0, %v5994
  %v6963 = vsel %vm6381, 0.0, %v6188
  %6967 = vrot.lane.b32.xlu0 %v5215, 32
  %v6968 = vpop.permute.xlu0 %6967
  %6969 = vrot.lane.b32.xlu0 %v5216, 32
  %v6970 = vpop.permute.xlu0 %6969
  %6971 = vrot.lane.b32.xlu0 %v5217, 32
  %v6972 = vpop.permute.xlu0 %6971
  %6973 = vrot.lane.b32.xlu0 %v5218, 32
  %v6974 = vpop.permute.xlu0 %6973
  %6975 = vrot.lane.b32.xlu0 %v5219, 32
  %v6976 = vpop.permute.xlu0 %6975
  %6977 = vrot.lane.b32.xlu0 %v5220, 32
  %v6978 = vpop.permute.xlu0 %6977
  %6979 = vrot.lane.b32.xlu0 %v5221, 32
  %v6980 = vpop.permute.xlu0 %6979
  %6981 = vrot.lane.b32.xlu0 %v5222, 32
  %v6982 = vpop.permute.xlu0 %6981
  %6983 = vrot.lane.b32.xlu0 %v5223, 32
  %v6984 = vpop.permute.xlu0 %6983
  %6985 = vrot.lane.b32.xlu0 %v5224, 32
  %v6986 = vpop.permute.xlu0 %6985
  %6987 = vrot.lane.b32.xlu0 %v5225, 32
  %v6988 = vpop.permute.xlu0 %6987
  %6989 = vrot.lane.b32.xlu0 %v5226, 32
  %v6990 = vpop.permute.xlu0 %6989
  %6991 = vrot.lane.b32.xlu0 %v5227, 32
  %v6992 = vpop.permute.xlu0 %6991
  %6993 = vrot.lane.b32.xlu0 %v5228, 32
  %v6994 = vpop.permute.xlu0 %6993
  %6995 = vrot.lane.b32.xlu0 %v5229, 32
  %v6996 = vpop.permute.xlu0 %6995
  %6997 = vrot.lane.b32.xlu0 %v5230, 32
  %v6998 = vpop.permute.xlu0 %6997
  %6999 = vrot.lane.b32.xlu0 %v5231, 32
  %v7000 = vpop.permute.xlu0 %6999
  %7001 = vrot.lane.b32.xlu0 %v5232, 32
  %v7002 = vpop.permute.xlu0 %7001
  %7003 = vrot.lane.b32.xlu0 %v5233, 32
  %v7004 = vpop.permute.xlu0 %7003
  %7005 = vrot.lane.b32.xlu0 %v5234, 32
  %v7006 = vpop.permute.xlu0 %7005
  %7007 = vrot.lane.b32.xlu0 %v5235, 32
  %v7008 = vpop.permute.xlu0 %7007
  %7009 = vrot.lane.b32.xlu0 %v5236, 32
  %v7010 = vpop.permute.xlu0 %7009
  %7011 = vrot.lane.b32.xlu0 %v5237, 32
  %v7012 = vpop.permute.xlu0 %7011
  %7013 = vrot.lane.b32.xlu0 %v5238, 32
  %v7014 = vpop.permute.xlu0 %7013
  %7015 = vrot.lane.b32.xlu0 %v5239, 32
  %v7016 = vpop.permute.xlu0 %7015
  %7017 = vrot.lane.b32.xlu0 %v5240, 32
  %v7018 = vpop.permute.xlu0 %7017
  %7019 = vrot.lane.b32.xlu0 %v5241, 32
  %v7020 = vpop.permute.xlu0 %7019
  %7021 = vrot.lane.b32.xlu0 %v5242, 32
  %v7022 = vpop.permute.xlu0 %7021
  %7023 = vrot.lane.b32.xlu0 %v5243, 32
  %v7024 = vpop.permute.xlu0 %7023
  %7025 = vrot.lane.b32.xlu0 %v5244, 32
  %v7026 = vpop.permute.xlu0 %7025
  %7027 = vrot.lane.b32.xlu0 %v5245, 32
  %v7028 = vpop.permute.xlu0 %7027
  %7029 = vrot.lane.b32.xlu0 %v5246, 32
  %v7030 = vpop.permute.xlu0 %7029
  %7031 = vrot.lane.b32.xlu0 %v5247, 32
  %v7032 = vpop.permute.xlu0 %7031
  %7033 = vrot.lane.b32.xlu0 %v5248, 32
  %v7034 = vpop.permute.xlu0 %7033
  %7035 = vrot.lane.b32.xlu0 %v5249, 32
  %v7036 = vpop.permute.xlu0 %7035
  %7037 = vrot.lane.b32.xlu0 %v5250, 32
  %v7038 = vpop.permute.xlu0 %7037
  %7039 = vrot.lane.b32.xlu0 %v5251, 32
  %v7040 = vpop.permute.xlu0 %7039
  %7041 = vrot.lane.b32.xlu0 %v5252, 32
  %v7042 = vpop.permute.xlu0 %7041
  %7043 = vrot.lane.b32.xlu0 %v5253, 32
  %v7044 = vpop.permute.xlu0 %7043
  %7045 = vrot.lane.b32.xlu0 %v5254, 32
  %v7046 = vpop.permute.xlu0 %7045
  %7047 = vrot.lane.b32.xlu0 %v5255, 32
  %v7048 = vpop.permute.xlu0 %7047
  %7049 = vrot.lane.b32.xlu0 %v5256, 32
  %v7050 = vpop.permute.xlu0 %7049
  %7051 = vrot.lane.b32.xlu0 %v5257, 32
  %v7052 = vpop.permute.xlu0 %7051
  %7053 = vrot.lane.b32.xlu0 %v5258, 32
  %v7054 = vpop.permute.xlu0 %7053
  %7055 = vrot.lane.b32.xlu0 %v5259, 32
  %v7056 = vpop.permute.xlu0 %7055
  %7057 = vrot.lane.b32.xlu0 %v5260, 32
  %v7058 = vpop.permute.xlu0 %7057
  %7059 = vrot.lane.b32.xlu0 %v5261, 32
  %v7060 = vpop.permute.xlu0 %7059
  %7061 = vrot.lane.b32.xlu0 %v5262, 32
  %v7062 = vpop.permute.xlu0 %7061
  %7063 = vrot.lane.b32.xlu0 %v5263, 32
  %v7064 = vpop.permute.xlu0 %7063
  %7065 = vrot.lane.b32.xlu0 %v5264, 32
  %v7066 = vpop.permute.xlu0 %7065
  %7067 = vrot.lane.b32.xlu0 %v5265, 32
  %v7068 = vpop.permute.xlu0 %7067
  %7069 = vrot.lane.b32.xlu0 %v5266, 32
  %v7070 = vpop.permute.xlu0 %7069
  %7071 = vrot.lane.b32.xlu0 %v5267, 32
  %v7072 = vpop.permute.xlu0 %7071
  %7073 = vrot.lane.b32.xlu0 %v5268, 32
  %v7074 = vpop.permute.xlu0 %7073
  %7075 = vrot.lane.b32.xlu0 %v5269, 32
  %v7076 = vpop.permute.xlu0 %7075
  %7077 = vrot.lane.b32.xlu0 %v5270, 32
  %v7078 = vpop.permute.xlu0 %7077
  %7079 = vrot.lane.b32.xlu0 %v5271, 32
  %v7080 = vpop.permute.xlu0 %7079
  %7081 = vrot.lane.b32.xlu0 %v5272, 32
  %v7082 = vpop.permute.xlu0 %7081
  %7083 = vrot.lane.b32.xlu0 %v5273, 32
  %v7084 = vpop.permute.xlu0 %7083
  %7085 = vrot.lane.b32.xlu0 %v5274, 32
  %v7086 = vpop.permute.xlu0 %7085
  %7087 = vrot.lane.b32.xlu0 %v5275, 32
  %v7088 = vpop.permute.xlu0 %7087
  %7089 = vrot.lane.b32.xlu0 %v5276, 32
  %v7090 = vpop.permute.xlu0 %7089
  %7091 = vrot.lane.b32.xlu0 %v5277, 32
  %v7092 = vpop.permute.xlu0 %7091
  %7093 = vrot.lane.b32.xlu0 %v5278, 32
  %v7094 = vpop.permute.xlu0 %7093
  %7095 = vrot.lane.b32.xlu0 %v5279, 32
  %v7096 = vpop.permute.xlu0 %7095
  %7097 = vrot.lane.b32.xlu0 %v5280, 32
  %v7098 = vpop.permute.xlu0 %7097
  %7099 = vrot.lane.b32.xlu0 %v5281, 32
  %v7100 = vpop.permute.xlu0 %7099
  %7101 = vrot.lane.b32.xlu0 %v5282, 32
  %v7102 = vpop.permute.xlu0 %7101
  %7103 = vrot.lane.b32.xlu0 %v5283, 32
  %v7104 = vpop.permute.xlu0 %7103
  %7105 = vrot.lane.b32.xlu0 %v5284, 32
  %v7106 = vpop.permute.xlu0 %7105
  %7107 = vrot.lane.b32.xlu0 %v5285, 32
  %v7108 = vpop.permute.xlu0 %7107
  %7109 = vrot.lane.b32.xlu0 %v5286, 32
  %v7110 = vpop.permute.xlu0 %7109
  %7111 = vrot.lane.b32.xlu0 %v5287, 32
  %v7112 = vpop.permute.xlu0 %7111
  %7113 = vrot.lane.b32.xlu0 %v5288, 32
  %v7114 = vpop.permute.xlu0 %7113
  %7115 = vrot.lane.b32.xlu0 %v5289, 32
  %v7116 = vpop.permute.xlu0 %7115
  %7117 = vrot.lane.b32.xlu0 %v5290, 32
  %v7118 = vpop.permute.xlu0 %7117
  %7119 = vrot.lane.b32.xlu0 %v5291, 32
  %v7120 = vpop.permute.xlu0 %7119
  %7121 = vrot.lane.b32.xlu0 %v5292, 32
  %v7122 = vpop.permute.xlu0 %7121
  %7123 = vrot.lane.b32.xlu0 %v5293, 32
  %v7124 = vpop.permute.xlu0 %7123
  %7125 = vrot.lane.b32.xlu0 %v5294, 32
  %v7126 = vpop.permute.xlu0 %7125
  %7127 = vrot.lane.b32.xlu0 %v5295, 32
  %v7128 = vpop.permute.xlu0 %7127
  %7129 = vrot.lane.b32.xlu0 %v5296, 32
  %v7130 = vpop.permute.xlu0 %7129
  %7131 = vrot.lane.b32.xlu0 %v5297, 32
  %v7132 = vpop.permute.xlu0 %7131
  %7133 = vrot.lane.b32.xlu0 %v5298, 32
  %v7134 = vpop.permute.xlu0 %7133
  %7135 = vrot.lane.b32.xlu0 %v5299, 32
  %v7136 = vpop.permute.xlu0 %7135
  %7137 = vrot.lane.b32.xlu0 %v5300, 32
  %v7138 = vpop.permute.xlu0 %7137
  %7139 = vrot.lane.b32.xlu0 %v5301, 32
  %v7140 = vpop.permute.xlu0 %7139
  %7141 = vrot.lane.b32.xlu0 %v5302, 32
  %v7142 = vpop.permute.xlu0 %7141
  %7143 = vrot.lane.b32.xlu0 %v5303, 32
  %v7144 = vpop.permute.xlu0 %7143
  %7145 = vrot.lane.b32.xlu0 %v5304, 32
  %v7146 = vpop.permute.xlu0 %7145
  %7147 = vrot.lane.b32.xlu0 %v5305, 32
  %v7148 = vpop.permute.xlu0 %7147
  %7149 = vrot.lane.b32.xlu0 %v5306, 32
  %v7150 = vpop.permute.xlu0 %7149
  %7151 = vrot.lane.b32.xlu0 %v5307, 32
  %v7152 = vpop.permute.xlu0 %7151
  %7153 = vrot.lane.b32.xlu0 %v5308, 32
  %v7154 = vpop.permute.xlu0 %7153
  %7155 = vrot.lane.b32.xlu0 %v5309, 32
  %v7156 = vpop.permute.xlu0 %7155
  %7157 = vrot.lane.b32.xlu0 %v5310, 32
  %v7158 = vpop.permute.xlu0 %7157
  %7159 = vrot.lane.b32.xlu0 %v5311, 32
  %v7160 = vpop.permute.xlu0 %7159
  %7161 = vrot.lane.b32.xlu0 %v5313, 32
  %v7162 = vpop.permute.xlu0 %7161
  %7163 = vrot.lane.b32.xlu0 %v5314, 32
  %v7164 = vpop.permute.xlu0 %7163
  %7165 = vrot.lane.b32.xlu0 %v5315, 32
  %v7166 = vpop.permute.xlu0 %7165
  %7167 = vrot.lane.b32.xlu0 %v5316, 32
  %v7168 = vpop.permute.xlu0 %7167
  %7169 = vrot.lane.b32.xlu0 %v5317, 32
  %v7170 = vpop.permute.xlu0 %7169
  %7171 = vrot.lane.b32.xlu0 %v5318, 32
  %v7172 = vpop.permute.xlu0 %7171
  %7173 = vrot.lane.b32.xlu0 %v5319, 32
  %v7174 = vpop.permute.xlu0 %7173
  %7175 = vrot.lane.b32.xlu0 %v5320, 32
  %v7176 = vpop.permute.xlu0 %7175
  %7177 = vrot.lane.b32.xlu0 %v5321, 32
  %v7178 = vpop.permute.xlu0 %7177
  %7179 = vrot.lane.b32.xlu0 %v5322, 32
  %v7180 = vpop.permute.xlu0 %7179
  %7181 = vrot.lane.b32.xlu0 %v5323, 32
  %v7182 = vpop.permute.xlu0 %7181
  %7183 = vrot.lane.b32.xlu0 %v5324, 32
  %v7184 = vpop.permute.xlu0 %7183
  %7185 = vrot.lane.b32.xlu0 %v5325, 32
  %v7186 = vpop.permute.xlu0 %7185
  %7187 = vrot.lane.b32.xlu0 %v5326, 32
  %v7188 = vpop.permute.xlu0 %7187
  %7189 = vrot.lane.b32.xlu0 %v5327, 32
  %v7190 = vpop.permute.xlu0 %7189
  %7191 = vrot.lane.b32.xlu0 %v5328, 32
  %v7192 = vpop.permute.xlu0 %7191
  %7193 = vrot.lane.b32.xlu0 %v5329, 32
  %v7194 = vpop.permute.xlu0 %7193
  %7195 = vrot.lane.b32.xlu0 %v5330, 32
  %v7196 = vpop.permute.xlu0 %7195
  %7197 = vrot.lane.b32.xlu0 %v5331, 32
  %v7198 = vpop.permute.xlu0 %7197
  %7199 = vrot.lane.b32.xlu0 %v5332, 32
  %v7200 = vpop.permute.xlu0 %7199
  %7201 = vrot.lane.b32.xlu0 %v5333, 32
  %v7202 = vpop.permute.xlu0 %7201
  %7203 = vrot.lane.b32.xlu0 %v5334, 32
  %v7204 = vpop.permute.xlu0 %7203
  %7205 = vrot.lane.b32.xlu0 %v5335, 32
  %v7206 = vpop.permute.xlu0 %7205
  %7207 = vrot.lane.b32.xlu0 %v5336, 32
  %v7208 = vpop.permute.xlu0 %7207
  %7209 = vrot.lane.b32.xlu0 %v5337, 32
  %v7210 = vpop.permute.xlu0 %7209
  %7211 = vrot.lane.b32.xlu0 %v5338, 32
  %v7212 = vpop.permute.xlu0 %7211
  %7213 = vrot.lane.b32.xlu0 %v5339, 32
  %v7214 = vpop.permute.xlu0 %7213
  %7215 = vrot.lane.b32.xlu0 %v5340, 32
  %v7216 = vpop.permute.xlu0 %7215
  %7217 = vrot.lane.b32.xlu0 %v5341, 32
  %v7218 = vpop.permute.xlu0 %7217
  %7219 = vrot.lane.b32.xlu0 %v5342, 32
  %v7220 = vpop.permute.xlu0 %7219
  %7221 = vrot.lane.b32.xlu0 %v5343, 32
  %v7222 = vpop.permute.xlu0 %7221
  %7223 = vrot.lane.b32.xlu0 %v5344, 32
  %v7224 = vpop.permute.xlu0 %7223
  %7225 = vrot.lane.b32.xlu0 %v5345, 32
  %v7226 = vpop.permute.xlu0 %7225
  %7227 = vrot.lane.b32.xlu0 %v5346, 32
  %v7228 = vpop.permute.xlu0 %7227
  %7229 = vrot.lane.b32.xlu0 %v5347, 32
  %v7230 = vpop.permute.xlu0 %7229
  %7231 = vrot.lane.b32.xlu0 %v5348, 32
  %v7232 = vpop.permute.xlu0 %7231
  %7233 = vrot.lane.b32.xlu0 %v5349, 32
  %v7234 = vpop.permute.xlu0 %7233
  %7235 = vrot.lane.b32.xlu0 %v5350, 32
  %v7236 = vpop.permute.xlu0 %7235
  %7237 = vrot.lane.b32.xlu0 %v5351, 32
  %v7238 = vpop.permute.xlu0 %7237
  %7239 = vrot.lane.b32.xlu0 %v5352, 32
  %v7240 = vpop.permute.xlu0 %7239
  %7241 = vrot.lane.b32.xlu0 %v5353, 32
  %v7242 = vpop.permute.xlu0 %7241
  %7243 = vrot.lane.b32.xlu0 %v5354, 32
  %v7244 = vpop.permute.xlu0 %7243
  %7245 = vrot.lane.b32.xlu0 %v5355, 32
  %v7246 = vpop.permute.xlu0 %7245
  %7247 = vrot.lane.b32.xlu0 %v5356, 32
  %v7248 = vpop.permute.xlu0 %7247
  %7249 = vrot.lane.b32.xlu0 %v5357, 32
  %v7250 = vpop.permute.xlu0 %7249
  %7251 = vrot.lane.b32.xlu0 %v5358, 32
  %v7252 = vpop.permute.xlu0 %7251
  %7253 = vrot.lane.b32.xlu0 %v5359, 32
  %v7254 = vpop.permute.xlu0 %7253
  %7255 = vrot.lane.b32.xlu0 %v5360, 32
  %v7256 = vpop.permute.xlu0 %7255
  %7257 = vrot.lane.b32.xlu0 %v5361, 32
  %v7258 = vpop.permute.xlu0 %7257
  %7259 = vrot.lane.b32.xlu0 %v5362, 32
  %v7260 = vpop.permute.xlu0 %7259
  %7261 = vrot.lane.b32.xlu0 %v5363, 32
  %v7262 = vpop.permute.xlu0 %7261
  %7263 = vrot.lane.b32.xlu0 %v5364, 32
  %v7264 = vpop.permute.xlu0 %7263
  %7265 = vrot.lane.b32.xlu0 %v5365, 32
  %v7266 = vpop.permute.xlu0 %7265
  %7267 = vrot.lane.b32.xlu0 %v5366, 32
  %v7268 = vpop.permute.xlu0 %7267
  %7269 = vrot.lane.b32.xlu0 %v5367, 32
  %v7270 = vpop.permute.xlu0 %7269
  %7271 = vrot.lane.b32.xlu0 %v5368, 32
  %v7272 = vpop.permute.xlu0 %7271
  %7273 = vrot.lane.b32.xlu0 %v5369, 32
  %v7274 = vpop.permute.xlu0 %7273
  %7275 = vrot.lane.b32.xlu0 %v5370, 32
  %v7276 = vpop.permute.xlu0 %7275
  %7277 = vrot.lane.b32.xlu0 %v5371, 32
  %v7278 = vpop.permute.xlu0 %7277
  %7279 = vrot.lane.b32.xlu0 %v5372, 32
  %v7280 = vpop.permute.xlu0 %7279
  %7281 = vrot.lane.b32.xlu0 %v5373, 32
  %v7282 = vpop.permute.xlu0 %7281
  %7283 = vrot.lane.b32.xlu0 %v5374, 32
  %v7284 = vpop.permute.xlu0 %7283
  %7285 = vrot.lane.b32.xlu0 %v5375, 32
  %v7286 = vpop.permute.xlu0 %7285
  %7287 = vrot.lane.b32.xlu0 %v5376, 32
  %v7288 = vpop.permute.xlu0 %7287
  %7289 = vrot.lane.b32.xlu0 %v5377, 32
  %v7290 = vpop.permute.xlu0 %7289
  %7291 = vrot.lane.b32.xlu0 %v5378, 32
  %v7292 = vpop.permute.xlu0 %7291
  %7293 = vrot.lane.b32.xlu0 %v5379, 32
  %v7294 = vpop.permute.xlu0 %7293
  %7295 = vrot.lane.b32.xlu0 %v5380, 32
  %v7296 = vpop.permute.xlu0 %7295
  %7297 = vrot.lane.b32.xlu0 %v5381, 32
  %v7298 = vpop.permute.xlu0 %7297
  %7299 = vrot.lane.b32.xlu0 %v5382, 32
  %v7300 = vpop.permute.xlu0 %7299
  %7301 = vrot.lane.b32.xlu0 %v5383, 32
  %v7302 = vpop.permute.xlu0 %7301
  %7303 = vrot.lane.b32.xlu0 %v5384, 32
  %v7304 = vpop.permute.xlu0 %7303
  %7305 = vrot.lane.b32.xlu0 %v5385, 32
  %v7306 = vpop.permute.xlu0 %7305
  %7307 = vrot.lane.b32.xlu0 %v5386, 32
  %v7308 = vpop.permute.xlu0 %7307
  %7309 = vrot.lane.b32.xlu0 %v5387, 32
  %v7310 = vpop.permute.xlu0 %7309
  %7311 = vrot.lane.b32.xlu0 %v5388, 32
  %v7312 = vpop.permute.xlu0 %7311
  %7313 = vrot.lane.b32.xlu0 %v5389, 32
  %v7314 = vpop.permute.xlu0 %7313
  %7315 = vrot.lane.b32.xlu0 %v5390, 32
  %v7316 = vpop.permute.xlu0 %7315
  %7317 = vrot.lane.b32.xlu0 %v5391, 32
  %v7318 = vpop.permute.xlu0 %7317
  %7319 = vrot.lane.b32.xlu0 %v5392, 32
  %v7320 = vpop.permute.xlu0 %7319
  %7321 = vrot.lane.b32.xlu0 %v5393, 32
  %v7322 = vpop.permute.xlu0 %7321
  %7323 = vrot.lane.b32.xlu0 %v5394, 32
  %v7324 = vpop.permute.xlu0 %7323
  %7325 = vrot.lane.b32.xlu0 %v5395, 32
  %v7326 = vpop.permute.xlu0 %7325
  %7327 = vrot.lane.b32.xlu0 %v5396, 32
  %v7328 = vpop.permute.xlu0 %7327
  %7329 = vrot.lane.b32.xlu0 %v5397, 32
  %v7330 = vpop.permute.xlu0 %7329
  %7331 = vrot.lane.b32.xlu0 %v5398, 32
  %v7332 = vpop.permute.xlu0 %7331
  %7333 = vrot.lane.b32.xlu0 %v5399, 32
  %v7334 = vpop.permute.xlu0 %7333
  %7335 = vrot.lane.b32.xlu0 %v5400, 32
  %v7336 = vpop.permute.xlu0 %7335
  %7337 = vrot.lane.b32.xlu0 %v5401, 32
  %v7338 = vpop.permute.xlu0 %7337
  %7339 = vrot.lane.b32.xlu0 %v5402, 32
  %v7340 = vpop.permute.xlu0 %7339
  %7341 = vrot.lane.b32.xlu0 %v5403, 32
  %v7342 = vpop.permute.xlu0 %7341
  %7343 = vrot.lane.b32.xlu0 %v5404, 32
  %v7344 = vpop.permute.xlu0 %7343
  %7345 = vrot.lane.b32.xlu0 %v5405, 32
  %v7346 = vpop.permute.xlu0 %7345
  %7347 = vrot.lane.b32.xlu0 %v5406, 32
  %v7348 = vpop.permute.xlu0 %7347
  %7349 = vrot.lane.b32.xlu0 %v5407, 32
  %v7350 = vpop.permute.xlu0 %7349
  %7351 = vrot.lane.b32.xlu0 %v5408, 32
  %v7352 = vpop.permute.xlu0 %7351
  %7353 = vrot.lane.b32.xlu0 %v5409, 32
  %v7354 = vpop.permute.xlu0 %7353
  %7355 = vrot.lane.b32.xlu0 %v5411, 32
  %v7356 = vpop.permute.xlu0 %7355
  %7357 = vrot.lane.b32.xlu0 %v5412, 32
  %v7358 = vpop.permute.xlu0 %7357
  %7359 = vrot.lane.b32.xlu0 %v5413, 32
  %v7360 = vpop.permute.xlu0 %7359
  %7361 = vrot.lane.b32.xlu0 %v5414, 32
  %v7362 = vpop.permute.xlu0 %7361
  %7363 = vrot.lane.b32.xlu0 %v5415, 32
  %v7364 = vpop.permute.xlu0 %7363
  %7365 = vrot.lane.b32.xlu0 %v5416, 32
  %v7366 = vpop.permute.xlu0 %7365
  %7367 = vrot.lane.b32.xlu0 %v5417, 32
  %v7368 = vpop.permute.xlu0 %7367
  %7369 = vrot.lane.b32.xlu0 %v5418, 32
  %v7370 = vpop.permute.xlu0 %7369
  %7371 = vrot.lane.b32.xlu0 %v5419, 32
  %v7372 = vpop.permute.xlu0 %7371
  %7373 = vrot.lane.b32.xlu0 %v5420, 32
  %v7374 = vpop.permute.xlu0 %7373
  %7375 = vrot.lane.b32.xlu0 %v5421, 32
  %v7376 = vpop.permute.xlu0 %7375
  %7377 = vrot.lane.b32.xlu0 %v5422, 32
  %v7378 = vpop.permute.xlu0 %7377
  %7379 = vrot.lane.b32.xlu0 %v5423, 32
  %v7380 = vpop.permute.xlu0 %7379
  %7381 = vrot.lane.b32.xlu0 %v5424, 32
  %v7382 = vpop.permute.xlu0 %7381
  %7383 = vrot.lane.b32.xlu0 %v5425, 32
  %v7384 = vpop.permute.xlu0 %7383
  %7385 = vrot.lane.b32.xlu0 %v5426, 32
  %v7386 = vpop.permute.xlu0 %7385
  %7387 = vrot.lane.b32.xlu0 %v5427, 32
  %v7388 = vpop.permute.xlu0 %7387
  %7389 = vrot.lane.b32.xlu0 %v5428, 32
  %v7390 = vpop.permute.xlu0 %7389
  %7391 = vrot.lane.b32.xlu0 %v5429, 32
  %v7392 = vpop.permute.xlu0 %7391
  %7393 = vrot.lane.b32.xlu0 %v5430, 32
  %v7394 = vpop.permute.xlu0 %7393
  %7395 = vrot.lane.b32.xlu0 %v5431, 32
  %v7396 = vpop.permute.xlu0 %7395
  %7397 = vrot.lane.b32.xlu0 %v5432, 32
  %v7398 = vpop.permute.xlu0 %7397
  %7399 = vrot.lane.b32.xlu0 %v5433, 32
  %v7400 = vpop.permute.xlu0 %7399
  %7401 = vrot.lane.b32.xlu0 %v5434, 32
  %v7402 = vpop.permute.xlu0 %7401
  %7403 = vrot.lane.b32.xlu0 %v5435, 32
  %v7404 = vpop.permute.xlu0 %7403
  %7405 = vrot.lane.b32.xlu0 %v5436, 32
  %v7406 = vpop.permute.xlu0 %7405
  %7407 = vrot.lane.b32.xlu0 %v5437, 32
  %v7408 = vpop.permute.xlu0 %7407
  %7409 = vrot.lane.b32.xlu0 %v5438, 32
  %v7410 = vpop.permute.xlu0 %7409
  %7411 = vrot.lane.b32.xlu0 %v5439, 32
  %v7412 = vpop.permute.xlu0 %7411
  %7413 = vrot.lane.b32.xlu0 %v5440, 32
  %v7414 = vpop.permute.xlu0 %7413
  %7415 = vrot.lane.b32.xlu0 %v5441, 32
  %v7416 = vpop.permute.xlu0 %7415
  %7417 = vrot.lane.b32.xlu0 %v5442, 32
  %v7418 = vpop.permute.xlu0 %7417
  %7419 = vrot.lane.b32.xlu0 %v5443, 32
  %v7420 = vpop.permute.xlu0 %7419
  %7421 = vrot.lane.b32.xlu0 %v5444, 32
  %v7422 = vpop.permute.xlu0 %7421
  %7423 = vrot.lane.b32.xlu0 %v5445, 32
  %v7424 = vpop.permute.xlu0 %7423
  %7425 = vrot.lane.b32.xlu0 %v5446, 32
  %v7426 = vpop.permute.xlu0 %7425
  %7427 = vrot.lane.b32.xlu0 %v5447, 32
  %v7428 = vpop.permute.xlu0 %7427
  %7429 = vrot.lane.b32.xlu0 %v5448, 32
  %v7430 = vpop.permute.xlu0 %7429
  %7431 = vrot.lane.b32.xlu0 %v5449, 32
  %v7432 = vpop.permute.xlu0 %7431
  %7433 = vrot.lane.b32.xlu0 %v5450, 32
  %v7434 = vpop.permute.xlu0 %7433
  %7435 = vrot.lane.b32.xlu0 %v5451, 32
  %v7436 = vpop.permute.xlu0 %7435
  %7437 = vrot.lane.b32.xlu0 %v5452, 32
  %v7438 = vpop.permute.xlu0 %7437
  %7439 = vrot.lane.b32.xlu0 %v5453, 32
  %v7440 = vpop.permute.xlu0 %7439
  %7441 = vrot.lane.b32.xlu0 %v5454, 32
  %v7442 = vpop.permute.xlu0 %7441
  %7443 = vrot.lane.b32.xlu0 %v5455, 32
  %v7444 = vpop.permute.xlu0 %7443
  %7445 = vrot.lane.b32.xlu0 %v5456, 32
  %v7446 = vpop.permute.xlu0 %7445
  %7447 = vrot.lane.b32.xlu0 %v5457, 32
  %v7448 = vpop.permute.xlu0 %7447
  %7449 = vrot.lane.b32.xlu0 %v5458, 32
  %v7450 = vpop.permute.xlu0 %7449
  %7451 = vrot.lane.b32.xlu0 %v5459, 32
  %v7452 = vpop.permute.xlu0 %7451
  %7453 = vrot.lane.b32.xlu0 %v5460, 32
  %v7454 = vpop.permute.xlu0 %7453
  %7455 = vrot.lane.b32.xlu0 %v5461, 32
  %v7456 = vpop.permute.xlu0 %7455
  %7457 = vrot.lane.b32.xlu0 %v5462, 32
  %v7458 = vpop.permute.xlu0 %7457
  %7459 = vrot.lane.b32.xlu0 %v5463, 32
  %v7460 = vpop.permute.xlu0 %7459
  %7461 = vrot.lane.b32.xlu0 %v5464, 32
  %v7462 = vpop.permute.xlu0 %7461
  %7463 = vrot.lane.b32.xlu0 %v5465, 32
  %v7464 = vpop.permute.xlu0 %7463
  %7465 = vrot.lane.b32.xlu0 %v5466, 32
  %v7466 = vpop.permute.xlu0 %7465
  %7467 = vrot.lane.b32.xlu0 %v5467, 32
  %v7468 = vpop.permute.xlu0 %7467
  %7469 = vrot.lane.b32.xlu0 %v5468, 32
  %v7470 = vpop.permute.xlu0 %7469
  %7471 = vrot.lane.b32.xlu0 %v5469, 32
  %v7472 = vpop.permute.xlu0 %7471
  %7473 = vrot.lane.b32.xlu0 %v5470, 32
  %v7474 = vpop.permute.xlu0 %7473
  %7475 = vrot.lane.b32.xlu0 %v5471, 32
  %v7476 = vpop.permute.xlu0 %7475
  %7477 = vrot.lane.b32.xlu0 %v5472, 32
  %v7478 = vpop.permute.xlu0 %7477
  %7479 = vrot.lane.b32.xlu0 %v5473, 32
  %v7480 = vpop.permute.xlu0 %7479
  %7481 = vrot.lane.b32.xlu0 %v5474, 32
  %v7482 = vpop.permute.xlu0 %7481
  %7483 = vrot.lane.b32.xlu0 %v5475, 32
  %v7484 = vpop.permute.xlu0 %7483
  %7485 = vrot.lane.b32.xlu0 %v5476, 32
  %v7486 = vpop.permute.xlu0 %7485
  %7487 = vrot.lane.b32.xlu0 %v5477, 32
  %v7488 = vpop.permute.xlu0 %7487
  %7489 = vrot.lane.b32.xlu0 %v5478, 32
  %v7490 = vpop.permute.xlu0 %7489
  %7491 = vrot.lane.b32.xlu0 %v5479, 32
  %v7492 = vpop.permute.xlu0 %7491
  %7493 = vrot.lane.b32.xlu0 %v5480, 32
  %v7494 = vpop.permute.xlu0 %7493
  %7495 = vrot.lane.b32.xlu0 %v5481, 32
  %v7496 = vpop.permute.xlu0 %7495
  %7497 = vrot.lane.b32.xlu0 %v5482, 32
  %v7498 = vpop.permute.xlu0 %7497
  %7499 = vrot.lane.b32.xlu0 %v5483, 32
  %v7500 = vpop.permute.xlu0 %7499
  %7501 = vrot.lane.b32.xlu0 %v5484, 32
  %v7502 = vpop.permute.xlu0 %7501
  %7503 = vrot.lane.b32.xlu0 %v5485, 32
  %v7504 = vpop.permute.xlu0 %7503
  %7505 = vrot.lane.b32.xlu0 %v5486, 32
  %v7506 = vpop.permute.xlu0 %7505
  %7507 = vrot.lane.b32.xlu0 %v5487, 32
  %v7508 = vpop.permute.xlu0 %7507
  %7509 = vrot.lane.b32.xlu0 %v5488, 32
  %v7510 = vpop.permute.xlu0 %7509
  %7511 = vrot.lane.b32.xlu0 %v5489, 32
  %v7512 = vpop.permute.xlu0 %7511
  %7513 = vrot.lane.b32.xlu0 %v5490, 32
  %v7514 = vpop.permute.xlu0 %7513
  %7515 = vrot.lane.b32.xlu0 %v5491, 32
  %v7516 = vpop.permute.xlu0 %7515
  %7517 = vrot.lane.b32.xlu0 %v5492, 32
  %v7518 = vpop.permute.xlu0 %7517
  %7519 = vrot.lane.b32.xlu0 %v5493, 32
  %v7520 = vpop.permute.xlu0 %7519
  %7521 = vrot.lane.b32.xlu0 %v5494, 32
  %v7522 = vpop.permute.xlu0 %7521
  %7523 = vrot.lane.b32.xlu0 %v5495, 32
  %v7524 = vpop.permute.xlu0 %7523
  %7525 = vrot.lane.b32.xlu0 %v5496, 32
  %v7526 = vpop.permute.xlu0 %7525
  %7527 = vrot.lane.b32.xlu0 %v5497, 32
  %v7528 = vpop.permute.xlu0 %7527
  %7529 = vrot.lane.b32.xlu0 %v5498, 32
  %v7530 = vpop.permute.xlu0 %7529
  %7531 = vrot.lane.b32.xlu0 %v5499, 32
  %v7532 = vpop.permute.xlu0 %7531
  %7533 = vrot.lane.b32.xlu0 %v5500, 32
  %v7534 = vpop.permute.xlu0 %7533
  %7535 = vrot.lane.b32.xlu0 %v5501, 32
  %v7536 = vpop.permute.xlu0 %7535
  %7537 = vrot.lane.b32.xlu0 %v5502, 32
  %v7538 = vpop.permute.xlu0 %7537
  %7539 = vrot.lane.b32.xlu0 %v5503, 32
  %v7540 = vpop.permute.xlu0 %7539
  %7541 = vrot.lane.b32.xlu0 %v5504, 32
  %v7542 = vpop.permute.xlu0 %7541
  %7543 = vrot.lane.b32.xlu0 %v5505, 32
  %v7544 = vpop.permute.xlu0 %7543
  %7545 = vrot.lane.b32.xlu0 %v5506, 32
  %v7546 = vpop.permute.xlu0 %7545
  %7547 = vrot.lane.b32.xlu0 %v5507, 32
  %v7548 = vpop.permute.xlu0 %7547
  %vm7549 = vcmask 261120
  %v7550 = vsel %vm7549, %v6968, %v6970
  %v7551 = vsel %vm7549, %v6970, %v6972
  %v7552 = vsel %vm7549, %v6972, %v6974
  %v7553 = vsel %vm7549, %v6974, %v6976
  %v7554 = vsel %vm7549, %v6976, %v6978
  %v7555 = vsel %vm7549, %v6978, %v6980
  %v7556 = vsel %vm7549, %v6980, %v6982
  %v7557 = vsel %vm7549, %v6982, %v6984
  %v7558 = vsel %vm7549, %v6984, %v6986
  %v7559 = vsel %vm7549, %v6986, %v6988
  %v7560 = vsel %vm7549, %v6988, %v6990
  %v7561 = vsel %vm7549, %v6990, %v6992
  %v7562 = vsel %vm7549, %v6992, %v6994
  %v7563 = vsel %vm7549, %v6994, %v6996
  %v7564 = vsel %vm7549, %v6996, %v6998
  %v7565 = vsel %vm7549, %v6998, %v7000
  %v7566 = vsel %vm7549, %v7000, %v7002
  %v7567 = vsel %vm7549, %v7002, %v7004
  %v7568 = vsel %vm7549, %v7004, %v7006
  %v7569 = vsel %vm7549, %v7006, %v7008
  %v7570 = vsel %vm7549, %v7008, %v7010
  %v7571 = vsel %vm7549, %v7010, %v7012
  %v7572 = vsel %vm7549, %v7012, %v7014
  %v7573 = vsel %vm7549, %v7014, %v7016
  %v7574 = vsel %vm7549, %v7016, %v7018
  %v7575 = vsel %vm7549, %v7018, %v7020
  %v7576 = vsel %vm7549, %v7020, %v7022
  %v7577 = vsel %vm7549, %v7022, %v7024
  %v7578 = vsel %vm7549, %v7024, %v7026
  %v7579 = vsel %vm7549, %v7026, %v7028
  %v7580 = vsel %vm7549, %v7028, %v7030
  %v7581 = vsel %vm7549, %v7030, %v7032
  %v7582 = vsel %vm7549, %v7032, %v7034
  %v7583 = vsel %vm7549, %v7034, %v7036
  %v7584 = vsel %vm7549, %v7036, %v7038
  %v7585 = vsel %vm7549, %v7038, %v7040
  %v7586 = vsel %vm7549, %v7040, %v7042
  %v7587 = vsel %vm7549, %v7042, %v7044
  %v7588 = vsel %vm7549, %v7044, %v7046
  %v7589 = vsel %vm7549, %v7046, %v7048
  %v7590 = vsel %vm7549, %v7048, %v7050
  %v7591 = vsel %vm7549, %v7050, %v7052
  %v7592 = vsel %vm7549, %v7052, %v7054
  %v7593 = vsel %vm7549, %v7054, %v7056
  %v7594 = vsel %vm7549, %v7056, %v7058
  %v7595 = vsel %vm7549, %v7058, %v7060
  %v7596 = vsel %vm7549, %v7060, %v7062
  %v7597 = vsel %vm7549, %v7062, %v7064
  %v7598 = vsel %vm7549, %v7064, %v7066
  %v7599 = vsel %vm7549, %v7066, %v7068
  %v7600 = vsel %vm7549, %v7068, %v7070
  %v7601 = vsel %vm7549, %v7070, %v7072
  %v7602 = vsel %vm7549, %v7072, %v7074
  %v7603 = vsel %vm7549, %v7074, %v7076
  %v7604 = vsel %vm7549, %v7076, %v7078
  %v7605 = vsel %vm7549, %v7078, %v7080
  %v7606 = vsel %vm7549, %v7080, %v7082
  %v7607 = vsel %vm7549, %v7082, %v7084
  %v7608 = vsel %vm7549, %v7084, %v7086
  %v7609 = vsel %vm7549, %v7086, %v7088
  %v7610 = vsel %vm7549, %v7088, %v7090
  %v7611 = vsel %vm7549, %v7090, %v7092
  %v7612 = vsel %vm7549, %v7092, %v7094
  %v7613 = vsel %vm7549, %v7094, %v7096
  %v7614 = vsel %vm7549, %v7096, %v7098
  %v7615 = vsel %vm7549, %v7098, %v7100
  %v7616 = vsel %vm7549, %v7100, %v7102
  %v7617 = vsel %vm7549, %v7102, %v7104
  %v7618 = vsel %vm7549, %v7104, %v7106
  %v7619 = vsel %vm7549, %v7106, %v7108
  %v7620 = vsel %vm7549, %v7108, %v7110
  %v7621 = vsel %vm7549, %v7110, %v7112
  %v7622 = vsel %vm7549, %v7112, %v7114
  %v7623 = vsel %vm7549, %v7114, %v7116
  %v7624 = vsel %vm7549, %v7116, %v7118
  %v7625 = vsel %vm7549, %v7118, %v7120
  %v7626 = vsel %vm7549, %v7120, %v7122
  %v7627 = vsel %vm7549, %v7122, %v7124
  %v7628 = vsel %vm7549, %v7124, %v7126
  %v7629 = vsel %vm7549, %v7126, %v7128
  %v7630 = vsel %vm7549, %v7128, %v7130
  %v7631 = vsel %vm7549, %v7130, %v7132
  %v7632 = vsel %vm7549, %v7132, %v7134
  %v7633 = vsel %vm7549, %v7134, %v7136
  %v7634 = vsel %vm7549, %v7136, %v7138
  %v7635 = vsel %vm7549, %v7138, %v7140
  %v7636 = vsel %vm7549, %v7140, %v7142
  %v7637 = vsel %vm7549, %v7142, %v7144
  %v7638 = vsel %vm7549, %v7144, %v7146
  %v7639 = vsel %vm7549, %v7146, %v7148
  %v7640 = vsel %vm7549, %v7148, %v7150
  %v7641 = vsel %vm7549, %v7150, %v7152
  %v7642 = vsel %vm7549, %v7152, %v7154
  %v7643 = vsel %vm7549, %v7154, %v7156
  %v7644 = vsel %vm7549, %v7156, %v7158
  %v7645 = vsel %vm7549, %v7158, %v7160
  %v7646 = vsel %vm7549, %v7162, %v7164
  %v7647 = vsel %vm7549, %v7164, %v7166
  %v7648 = vsel %vm7549, %v7166, %v7168
  %v7649 = vsel %vm7549, %v7168, %v7170
  %v7650 = vsel %vm7549, %v7170, %v7172
  %v7651 = vsel %vm7549, %v7172, %v7174
  %v7652 = vsel %vm7549, %v7174, %v7176
  %v7653 = vsel %vm7549, %v7176, %v7178
  %v7654 = vsel %vm7549, %v7178, %v7180
  %v7655 = vsel %vm7549, %v7180, %v7182
  %v7656 = vsel %vm7549, %v7182, %v7184
  %v7657 = vsel %vm7549, %v7184, %v7186
  %v7658 = vsel %vm7549, %v7186, %v7188
  %v7659 = vsel %vm7549, %v7188, %v7190
  %v7660 = vsel %vm7549, %v7190, %v7192
  %v7661 = vsel %vm7549, %v7192, %v7194
  %v7662 = vsel %vm7549, %v7194, %v7196
  %v7663 = vsel %vm7549, %v7196, %v7198
  %v7664 = vsel %vm7549, %v7198, %v7200
  %v7665 = vsel %vm7549, %v7200, %v7202
  %v7666 = vsel %vm7549, %v7202, %v7204
  %v7667 = vsel %vm7549, %v7204, %v7206
  %v7668 = vsel %vm7549, %v7206, %v7208
  %v7669 = vsel %vm7549, %v7208, %v7210
  %v7670 = vsel %vm7549, %v7210, %v7212
  %v7671 = vsel %vm7549, %v7212, %v7214
  %v7672 = vsel %vm7549, %v7214, %v7216
  %v7673 = vsel %vm7549, %v7216, %v7218
  %v7674 = vsel %vm7549, %v7218, %v7220
  %v7675 = vsel %vm7549, %v7220, %v7222
  %v7676 = vsel %vm7549, %v7222, %v7224
  %v7677 = vsel %vm7549, %v7224, %v7226
  %v7678 = vsel %vm7549, %v7226, %v7228
  %v7679 = vsel %vm7549, %v7228, %v7230
  %v7680 = vsel %vm7549, %v7230, %v7232
  %v7681 = vsel %vm7549, %v7232, %v7234
  %v7682 = vsel %vm7549, %v7234, %v7236
  %v7683 = vsel %vm7549, %v7236, %v7238
  %v7684 = vsel %vm7549, %v7238, %v7240
  %v7685 = vsel %vm7549, %v7240, %v7242
  %v7686 = vsel %vm7549, %v7242, %v7244
  %v7687 = vsel %vm7549, %v7244, %v7246
  %v7688 = vsel %vm7549, %v7246, %v7248
  %v7689 = vsel %vm7549, %v7248, %v7250
  %v7690 = vsel %vm7549, %v7250, %v7252
  %v7691 = vsel %vm7549, %v7252, %v7254
  %v7692 = vsel %vm7549, %v7254, %v7256
  %v7693 = vsel %vm7549, %v7256, %v7258
  %v7694 = vsel %vm7549, %v7258, %v7260
  %v7695 = vsel %vm7549, %v7260, %v7262
  %v7696 = vsel %vm7549, %v7262, %v7264
  %v7697 = vsel %vm7549, %v7264, %v7266
  %v7698 = vsel %vm7549, %v7266, %v7268
  %v7699 = vsel %vm7549, %v7268, %v7270
  %v7700 = vsel %vm7549, %v7270, %v7272
  %v7701 = vsel %vm7549, %v7272, %v7274
  %v7702 = vsel %vm7549, %v7274, %v7276
  %v7703 = vsel %vm7549, %v7276, %v7278
  %v7704 = vsel %vm7549, %v7278, %v7280
  %v7705 = vsel %vm7549, %v7280, %v7282
  %v7706 = vsel %vm7549, %v7282, %v7284
  %v7707 = vsel %vm7549, %v7284, %v7286
  %v7708 = vsel %vm7549, %v7286, %v7288
  %v7709 = vsel %vm7549, %v7288, %v7290
  %v7710 = vsel %vm7549, %v7290, %v7292
  %v7711 = vsel %vm7549, %v7292, %v7294
  %v7712 = vsel %vm7549, %v7294, %v7296
  %v7713 = vsel %vm7549, %v7296, %v7298
  %v7714 = vsel %vm7549, %v7298, %v7300
  %v7715 = vsel %vm7549, %v7300, %v7302
  %v7716 = vsel %vm7549, %v7302, %v7304
  %v7717 = vsel %vm7549, %v7304, %v7306
  %v7718 = vsel %vm7549, %v7306, %v7308
  %v7719 = vsel %vm7549, %v7308, %v7310
  %v7720 = vsel %vm7549, %v7310, %v7312
  %v7721 = vsel %vm7549, %v7312, %v7314
  %v7722 = vsel %vm7549, %v7314, %v7316
  %v7723 = vsel %vm7549, %v7316, %v7318
  %v7724 = vsel %vm7549, %v7318, %v7320
  %v7725 = vsel %vm7549, %v7320, %v7322
  %v7726 = vsel %vm7549, %v7322, %v7324
  %v7727 = vsel %vm7549, %v7324, %v7326
  %v7728 = vsel %vm7549, %v7326, %v7328
  %v7729 = vsel %vm7549, %v7328, %v7330
  %v7730 = vsel %vm7549, %v7330, %v7332
  %v7731 = vsel %vm7549, %v7332, %v7334
  %v7732 = vsel %vm7549, %v7334, %v7336
  %v7733 = vsel %vm7549, %v7336, %v7338
  %v7734 = vsel %vm7549, %v7338, %v7340
  %v7735 = vsel %vm7549, %v7340, %v7342
  %v7736 = vsel %vm7549, %v7342, %v7344
  %v7737 = vsel %vm7549, %v7344, %v7346
  %v7738 = vsel %vm7549, %v7346, %v7348
  %v7739 = vsel %vm7549, %v7348, %v7350
  %v7740 = vsel %vm7549, %v7350, %v7352
  %v7741 = vsel %vm7549, %v7352, %v7354
  %v7742 = vsel %vm7549, %v7356, %v7358
  %v7743 = vsel %vm7549, %v7358, %v7360
  %v7744 = vsel %vm7549, %v7360, %v7362
  %v7745 = vsel %vm7549, %v7362, %v7364
  %v7746 = vsel %vm7549, %v7364, %v7366
  %v7747 = vsel %vm7549, %v7366, %v7368
  %v7748 = vsel %vm7549, %v7368, %v7370
  %v7749 = vsel %vm7549, %v7370, %v7372
  %v7750 = vsel %vm7549, %v7372, %v7374
  %v7751 = vsel %vm7549, %v7374, %v7376
  %v7752 = vsel %vm7549, %v7376, %v7378
  %v7753 = vsel %vm7549, %v7378, %v7380
  %v7754 = vsel %vm7549, %v7380, %v7382
  %v7755 = vsel %vm7549, %v7382, %v7384
  %v7756 = vsel %vm7549, %v7384, %v7386
  %v7757 = vsel %vm7549, %v7386, %v7388
  %v7758 = vsel %vm7549, %v7388, %v7390
  %v7759 = vsel %vm7549, %v7390, %v7392
  %v7760 = vsel %vm7549, %v7392, %v7394
  %v7761 = vsel %vm7549, %v7394, %v7396
  %v7762 = vsel %vm7549, %v7396, %v7398
  %v7763 = vsel %vm7549, %v7398, %v7400
  %v7764 = vsel %vm7549, %v7400, %v7402
  %v7765 = vsel %vm7549, %v7402, %v7404
  %v7766 = vsel %vm7549, %v7404, %v7406
  %v7767 = vsel %vm7549, %v7406, %v7408
  %v7768 = vsel %vm7549, %v7408, %v7410
  %v7769 = vsel %vm7549, %v7410, %v7412
  %v7770 = vsel %vm7549, %v7412, %v7414
  %v7771 = vsel %vm7549, %v7414, %v7416
  %v7772 = vsel %vm7549, %v7416, %v7418
  %v7773 = vsel %vm7549, %v7418, %v7420
  %v7774 = vsel %vm7549, %v7420, %v7422
  %v7775 = vsel %vm7549, %v7422, %v7424
  %v7776 = vsel %vm7549, %v7424, %v7426
  %v7777 = vsel %vm7549, %v7426, %v7428
  %v7778 = vsel %vm7549, %v7428, %v7430
  %v7779 = vsel %vm7549, %v7430, %v7432
  %v7780 = vsel %vm7549, %v7432, %v7434
  %v7781 = vsel %vm7549, %v7434, %v7436
  %v7782 = vsel %vm7549, %v7436, %v7438
  %v7783 = vsel %vm7549, %v7438, %v7440
  %v7784 = vsel %vm7549, %v7440, %v7442
  %v7785 = vsel %vm7549, %v7442, %v7444
  %v7786 = vsel %vm7549, %v7444, %v7446
  %v7787 = vsel %vm7549, %v7446, %v7448
  %v7788 = vsel %vm7549, %v7448, %v7450
  %v7789 = vsel %vm7549, %v7450, %v7452
  %v7790 = vsel %vm7549, %v7452, %v7454
  %v7791 = vsel %vm7549, %v7454, %v7456
  %v7792 = vsel %vm7549, %v7456, %v7458
  %v7793 = vsel %vm7549, %v7458, %v7460
  %v7794 = vsel %vm7549, %v7460, %v7462
  %v7795 = vsel %vm7549, %v7462, %v7464
  %v7796 = vsel %vm7549, %v7464, %v7466
  %v7797 = vsel %vm7549, %v7466, %v7468
  %v7798 = vsel %vm7549, %v7468, %v7470
  %v7799 = vsel %vm7549, %v7470, %v7472
  %v7800 = vsel %vm7549, %v7472, %v7474
  %v7801 = vsel %vm7549, %v7474, %v7476
  %v7802 = vsel %vm7549, %v7476, %v7478
  %v7803 = vsel %vm7549, %v7478, %v7480
  %v7804 = vsel %vm7549, %v7480, %v7482
  %v7805 = vsel %vm7549, %v7482, %v7484
  %v7806 = vsel %vm7549, %v7484, %v7486
  %v7807 = vsel %vm7549, %v7486, %v7488
  %v7808 = vsel %vm7549, %v7488, %v7490
  %v7809 = vsel %vm7549, %v7490, %v7492
  %v7810 = vsel %vm7549, %v7492, %v7494
  %v7811 = vsel %vm7549, %v7494, %v7496
  %v7812 = vsel %vm7549, %v7496, %v7498
  %v7813 = vsel %vm7549, %v7498, %v7500
  %v7814 = vsel %vm7549, %v7500, %v7502
  %v7815 = vsel %vm7549, %v7502, %v7504
  %v7816 = vsel %vm7549, %v7504, %v7506
  %v7817 = vsel %vm7549, %v7506, %v7508
  %v7818 = vsel %vm7549, %v7508, %v7510
  %v7819 = vsel %vm7549, %v7510, %v7512
  %v7820 = vsel %vm7549, %v7512, %v7514
  %v7821 = vsel %vm7549, %v7514, %v7516
  %v7822 = vsel %vm7549, %v7516, %v7518
  %v7823 = vsel %vm7549, %v7518, %v7520
  %v7824 = vsel %vm7549, %v7520, %v7522
  %v7825 = vsel %vm7549, %v7522, %v7524
  %v7826 = vsel %vm7549, %v7524, %v7526
  %v7827 = vsel %vm7549, %v7526, %v7528
  %v7828 = vsel %vm7549, %v7528, %v7530
  %v7829 = vsel %vm7549, %v7530, %v7532
  %v7830 = vsel %vm7549, %v7532, %v7534
  %v7831 = vsel %vm7549, %v7534, %v7536
  %v7832 = vsel %vm7549, %v7536, %v7538
  %v7833 = vsel %vm7549, %v7538, %v7540
  %v7834 = vsel %vm7549, %v7540, %v7542
  %v7835 = vsel %vm7549, %v7542, %v7544
  %v7836 = vsel %vm7549, %v7544, %v7546
  %v7837 = vsel %vm7549, %v7546, %v7548
  %v8129 = vsel %vm7549, %v7160, 0.0
  %v8130 = vsel %vm7549, %v7354, 0.0
  %v8131 = vsel %vm7549, %v7548, 0.0
  %v8132 = vld [vmem:[%s1] sm:$0xff]
  %v8133 = vld [vmem:[%s1 + $0x8] sm:$0xff]
  %v8134 = vld [vmem:[%s1 + $0x10] sm:$0xff]
  %vm8135 = vcmask 588800
  %v8137 = vsel %vm8135, %v8132, 0
  %v8140 = vsel %vm8135, %v8133, 0
  %v8143 = vsel %vm8135, %v8134, 0
  %8145 = vmatprep.subr.mxu0 0.0
  %8146 = vmatpush1.msra.mxu0 0.0
  %8147 = vmatprep.subr.mxu0 0.0
  %8148 = vmatpush1.msra.mxu0 0.0
  %8149 = vmatprep.subr.mxu0 0.0
  %8150 = vmatpush1.msra.mxu0 0.0
  %8151 = vmatprep.subr.mxu0 0.0
  %8152 = vmatpush1.msra.mxu0 0.0
  %8153 = vmatprep.subr.mxu0 0.0
  %8154 = vmatpush1.msra.mxu0 0.0
  %8155 = vmatprep.subr.mxu0 0.0
  %8156 = vmatpush1.msra.mxu0 0.0
  %8157 = vmatprep.subr.mxu0 0.0
  %8158 = vmatpush1.msra.mxu0 0.0
  %8159 = vmatprep.subr.mxu0 %v7743
  %8160 = vmatpush1.msra.mxu0 %v7742
  %8161 = vmatprep.subr.mxu0 %v7647
  %8162 = vmatpush1.msra.mxu0 %v7646
  %8163 = vmatprep.subr.mxu0 %v7551
  %8164 = vmatpush1.msra.mxu0 %v7550
  %8165 = vmatprep.subr.mxu0 %v5411
  %8166 = vmatpush1.msra.mxu0 %v5410
  %8167 = vmatprep.subr.mxu0 %v5313
  %8168 = vmatpush1.msra.mxu0 %v5312
  %8169 = vmatprep.subr.mxu0 %v5215
  %8170 = vmatpush1.msra.mxu0 %v5214
  %8171 = vmatprep.subr.mxu0 %v6963
  %8172 = vmatpush1.msra.mxu0 0.0
  %8173 = vmatprep.subr.mxu0 %v6962
  %8174 = vmatpush1.msra.mxu0 0.0
  %8175 = vmatprep.subr.mxu0 %v6961
  %8176 = vmatpush1.msra.mxu0 0.0
  %8177 = vmatprep.subr.mxu0 0.0
  %8178 = vmatpush2.msra.mxu0 0.0
  %8179 = vmatprep.subr.mxu0 0.0
  %8180 = vmatpush2.msra.mxu0 0.0
  %8181 = vmatprep.subr.mxu0 0.0
  %8182 = vmatpush2.msra.mxu0 0.0
  %8183 = vmatprep.subr.mxu0 0.0
  %8184 = vmatpush2.msra.mxu0 0.0
  %8185 = vmatprep.subr.mxu0 0.0
  %8186 = vmatpush2.msra.mxu0 0.0
  %8187 = vmatprep.subr.mxu0 0.0
  %8188 = vmatpush2.msra.mxu0 0.0
  %8189 = vmatprep.subr.mxu0 0.0
  %8190 = vmatpush2.msra.mxu0 0.0
  %8191 = vmatprep.subr.mxu0 0.0
  %8192 = vmatpush2.msra.mxu0 0.0
  %8193 = vmatprep.subr.mxu0 0.0
  %8194 = vmatpush2.msra.mxu0 0.0
  %8195 = vmatprep.subr.mxu0 0.0
  %8196 = vmatpush2.msra.mxu0 0.0
  %8197 = vmatprep.subr.mxu0 0.0
  %8198 = vmatpush2.msra.mxu0 0.0
  %8199 = vmatprep.subr.mxu0 0.0
  %8200 = vmatpush2.msra.mxu0 0.0
  %8201 = vmatprep.subr.mxu0 0.0
  %8202 = vmatpush2.msra.mxu0 0.0
  %8203 = vmatprep.subr.mxu0 0.0
  %8204 = vmatpush2.msra.mxu0 0.0
  %8205 = vmatprep.subr.mxu0 0.0
  %8206 = vmatpush2.msra.mxu0 0.0
  %8207 = vmatprep.subr.mxu0 0.0
  %8208 = vmatpush2.msra.mxu0 0.0
  %8209 = vmatprep.mubr.f32.mxu0 0.0
  %8210 = vmatmul.mubr.f32.gmra.mxu0 %v8137
  %v8211 = vpop.f32.mrf.mxu0
  %v8212 = vadd.f32 0.0, %v8211
  %v8213 = vpop.f32.mrf.mxu0
  %v8214 = vadd.f32 0.0, %v8213
  %8215 = vmatprep.mubr.f32.mxu0 0.0
  %8216 = vmatmul.mubr.f32.gmra.mxu0 %v8140
  %v8217 = vpop.f32.mrf.mxu0
  %v8218 = vadd.f32 0.0, %v8217
  %v8219 = vpop.f32.mrf.mxu0
  %v8220 = vadd.f32 0.0, %v8219
  %8221 = vmatprep.mubr.f32.mxu0 0.0
  %8222 = vmatmul.mubr.f32.gmra.mxu0 %v8143
  %v8223 = vpop.f32.mrf.mxu0
  %v8224 = vadd.f32 0.0, %v8223
  %v8225 = vpop.f32.mrf.mxu0
  %v8226 = vadd.f32 0.0, %v8225
  %8227 = vdwg.mxu0
  %8228 = vmatprep.subr.mxu0 0.0
  %8229 = vmatpush1.msra.mxu0 0.0
  %8230 = vmatprep.subr.mxu0 0.0
  %8231 = vmatpush1.msra.mxu0 0.0
  %8232 = vmatprep.subr.mxu0 0.0
  %8233 = vmatpush1.msra.mxu0 0.0
  %8234 = vmatprep.subr.mxu0 0.0
  %8235 = vmatpush1.msra.mxu0 0.0
  %8236 = vmatprep.subr.mxu0 0.0
  %8237 = vmatpush1.msra.mxu0 0.0
  %8238 = vmatprep.subr.mxu0 0.0
  %8239 = vmatpush1.msra.mxu0 0.0
  %8240 = vmatprep.subr.mxu0 0.0
  %8241 = vmatpush1.msra.mxu0 0.0
  %8242 = vmatprep.subr.mxu0 %v7745
  %8243 = vmatpush1.msra.mxu0 %v7744
  %8244 = vmatprep.subr.mxu0 %v7649
  %8245 = vmatpush1.msra.mxu0 %v7648
  %8246 = vmatprep.subr.mxu0 %v7553
  %8247 = vmatpush1.msra.mxu0 %v7552
  %8248 = vmatprep.subr.mxu0 %v5413
  %8249 = vmatpush1.msra.mxu0 %v5412
  %8250 = vmatprep.subr.mxu0 %v5315
  %8251 = vmatpush1.msra.mxu0 %v5314
  %8252 = vmatprep.subr.mxu0 %v5217
  %8253 = vmatpush1.msra.mxu0 %v5216
  %8254 = vmatprep.subr.mxu0 %v6575
  %8255 = vmatpush1.msra.mxu0 %v6574
  %8256 = vmatprep.subr.mxu0 %v6479
  %8257 = vmatpush1.msra.mxu0 %v6478
  %8258 = vmatprep.subr.mxu0 %v6383
  %8259 = vmatpush1.msra.mxu0 %v6382
  %8260 = vmatprep.subr.mxu0 0.0
  %8261 = vmatpush2.msra.mxu0 0.0
  %8262 = vmatprep.subr.mxu0 0.0
  %8263 = vmatpush2.msra.mxu0 0.0
  %8264 = vmatprep.subr.mxu0 0.0
  %8265 = vmatpush2.msra.mxu0 0.0
  %8266 = vmatprep.subr.mxu0 0.0
  %8267 = vmatpush2.msra.mxu0 0.0
  %8268 = vmatprep.subr.mxu0 0.0
  %8269 = vmatpush2.msra.mxu0 0.0
  %8270 = vmatprep.subr.mxu0 0.0
  %8271 = vmatpush2.msra.mxu0 0.0
  %8272 = vmatprep.subr.mxu0 0.0
  %8273 = vmatpush2.msra.mxu0 0.0
  %8274 = vmatprep.subr.mxu0 0.0
  %8275 = vmatpush2.msra.mxu0 0.0
  %8276 = vmatprep.subr.mxu0 0.0
  %8277 = vmatpush2.msra.mxu0 0.0
  %8278 = vmatprep.subr.mxu0 0.0
  %8279 = vmatpush2.msra.mxu0 0.0
  %8280 = vmatprep.subr.mxu0 0.0
  %8281 = vmatpush2.msra.mxu0 0.0
  %8282 = vmatprep.subr.mxu0 0.0
  %8283 = vmatpush2.msra.mxu0 0.0
  %8284 = vmatprep.subr.mxu0 0.0
  %8285 = vmatpush2.msra.mxu0 0.0
  %8286 = vmatprep.subr.mxu0 0.0
  %8287 = vmatpush2.msra.mxu0 0.0
  %8288 = vmatprep.subr.mxu0 0.0
  %8289 = vmatpush2.msra.mxu0 0.0
  %8290 = vmatprep.subr.mxu0 0.0
  %8291 = vmatpush2.msra.mxu0 0.0
  %8292 = vmatprep.mubr.f32.mxu0 0.0
  %8293 = vmatmul.mubr.f32.gmra.mxu0 %v8137
  %v8294 = vpop.f32.mrf.mxu0
  %v8295 = vadd.f32 0.0, %v8294
  %v8296 = vpop.f32.mrf.mxu0
  %v8297 = vadd.f32 0.0, %v8296
  %8298 = vmatprep.mubr.f32.mxu0 0.0
  %8299 = vmatmul.mubr.f32.gmra.mxu0 %v8140
  %v8300 = vpop.f32.mrf.mxu0
  %v8301 = vadd.f32 0.0, %v8300
  %v8302 = vpop.f32.mrf.mxu0
  %v8303 = vadd.f32 0.0, %v8302
  %8304 = vmatprep.mubr.f32.mxu0 0.0
  %8305 = vmatmul.mubr.f32.gmra.mxu0 %v8143
  %v8306 = vpop.f32.mrf.mxu0
  %v8307 = vadd.f32 0.0, %v8306
  %v8308 = vpop.f32.mrf.mxu0
  %v8309 = vadd.f32 0.0, %v8308
  %8310 = vdwg.mxu0
  %8311 = vmatprep.subr.mxu0 0.0
  %8312 = vmatpush1.msra.mxu0 0.0
  %8313 = vmatprep.subr.mxu0 0.0
  %8314 = vmatpush1.msra.mxu0 0.0
  %8315 = vmatprep.subr.mxu0 0.0
  %8316 = vmatpush1.msra.mxu0 0.0
  %8317 = vmatprep.subr.mxu0 0.0
  %8318 = vmatpush1.msra.mxu0 0.0
  %8319 = vmatprep.subr.mxu0 0.0
  %8320 = vmatpush1.msra.mxu0 0.0
  %8321 = vmatprep.subr.mxu0 0.0
  %8322 = vmatpush1.msra.mxu0 0.0
  %8323 = vmatprep.subr.mxu0 0.0
  %8324 = vmatpush1.msra.mxu0 0.0
  %8325 = vmatprep.subr.mxu0 %v7747
  %8326 = vmatpush1.msra.mxu0 %v7746
  %8327 = vmatprep.subr.mxu0 %v7651
  %8328 = vmatpush1.msra.mxu0 %v7650
  %8329 = vmatprep.subr.mxu0 %v7555
  %8330 = vmatpush1.msra.mxu0 %v7554
  %8331 = vmatprep.subr.mxu0 %v5415
  %8332 = vmatpush1.msra.mxu0 %v5414
  %8333 = vmatprep.subr.mxu0 %v5317
  %8334 = vmatpush1.msra.mxu0 %v5316
  %8335 = vmatprep.subr.mxu0 %v5219
  %8336 = vmatpush1.msra.mxu0 %v5218
  %8337 = vmatprep.subr.mxu0 %v6577
  %8338 = vmatpush1.msra.mxu0 %v6576
  %8339 = vmatprep.subr.mxu0 %v6481
  %8340 = vmatpush1.msra.mxu0 %v6480
  %8341 = vmatprep.subr.mxu0 %v6385
  %8342 = vmatpush1.msra.mxu0 %v6384
  %8343 = vmatprep.subr.mxu0 0.0
  %8344 = vmatpush2.msra.mxu0 0.0
  %8345 = vmatprep.subr.mxu0 0.0
  %8346 = vmatpush2.msra.mxu0 0.0
  %8347 = vmatprep.subr.mxu0 0.0
  %8348 = vmatpush2.msra.mxu0 0.0
  %8349 = vmatprep.subr.mxu0 0.0
  %8350 = vmatpush2.msra.mxu0 0.0
  %8351 = vmatprep.subr.mxu0 0.0
  %8352 = vmatpush2.msra.mxu0 0.0
  %8353 = vmatprep.subr.mxu0 0.0
  %8354 = vmatpush2.msra.mxu0 0.0
  %8355 = vmatprep.subr.mxu0 0.0
  %8356 = vmatpush2.msra.mxu0 0.0
  %8357 = vmatprep.subr.mxu0 0.0
  %8358 = vmatpush2.msra.mxu0 0.0
  %8359 = vmatprep.subr.mxu0 0.0
  %8360 = vmatpush2.msra.mxu0 0.0
  %8361 = vmatprep.subr.mxu0 0.0
  %8362 = vmatpush2.msra.mxu0 0.0
  %8363 = vmatprep.subr.mxu0 0.0
  %8364 = vmatpush2.msra.mxu0 0.0
  %8365 = vmatprep.subr.mxu0 0.0
  %8366 = vmatpush2.msra.mxu0 0.0
  %8367 = vmatprep.subr.mxu0 0.0
  %8368 = vmatpush2.msra.mxu0 0.0
  %8369 = vmatprep.subr.mxu0 0.0
  %8370 = vmatpush2.msra.mxu0 0.0
  %8371 = vmatprep.subr.mxu0 0.0
  %8372 = vmatpush2.msra.mxu0 0.0
  %8373 = vmatprep.subr.mxu0 0.0
  %8374 = vmatpush2.msra.mxu0 0.0
  %8375 = vmatprep.mubr.f32.mxu0 0.0
  %8376 = vmatmul.mubr.f32.gmra.mxu0 %v8137
  %v8377 = vpop.f32.mrf.mxu0
  %v8378 = vadd.f32 0.0, %v8377
  %v8379 = vpop.f32.mrf.mxu0
  %v8380 = vadd.f32 0.0, %v8379
  %8381 = vmatprep.mubr.f32.mxu0 0.0
  %8382 = vmatmul.mubr.f32.gmra.mxu0 %v8140
  %v8383 = vpop.f32.mrf.mxu0
  %v8384 = vadd.f32 0.0, %v8383
  %v8385 = vpop.f32.mrf.mxu0
  %v8386 = vadd.f32 0.0, %v8385
  %8387 = vmatprep.mubr.f32.mxu0 0.0
  %8388 = vmatmul.mubr.f32.gmra.mxu0 %v8143
  %v8389 = vpop.f32.mrf.mxu0
  %v8390 = vadd.f32 0.0, %v8389
  %v8391 = vpop.f32.mrf.mxu0
  %v8392 = vadd.f32 0.0, %v8391
  %8393 = vdwg.mxu0
  %8394 = vmatprep.subr.mxu0 0.0
  %8395 = vmatpush1.msra.mxu0 0.0
  %8396 = vmatprep.subr.mxu0 0.0
  %8397 = vmatpush1.msra.mxu0 0.0
  %8398 = vmatprep.subr.mxu0 0.0
  %8399 = vmatpush1.msra.mxu0 0.0
  %8400 = vmatprep.subr.mxu0 0.0
  %8401 = vmatpush1.msra.mxu0 0.0
  %8402 = vmatprep.subr.mxu0 0.0
  %8403 = vmatpush1.msra.mxu0 0.0
  %8404 = vmatprep.subr.mxu0 0.0
  %8405 = vmatpush1.msra.mxu0 0.0
  %8406 = vmatprep.subr.mxu0 0.0
  %8407 = vmatpush1.msra.mxu0 0.0
  %8408 = vmatprep.subr.mxu0 %v7749
  %8409 = vmatpush1.msra.mxu0 %v7748
  %8410 = vmatprep.subr.mxu0 %v7653
  %8411 = vmatpush1.msra.mxu0 %v7652
  %8412 = vmatprep.subr.mxu0 %v7557
  %8413 = vmatpush1.msra.mxu0 %v7556
  %8414 = vmatprep.subr.mxu0 %v5417
  %8415 = vmatpush1.msra.mxu0 %v5416
  %8416 = vmatprep.subr.mxu0 %v5319
  %8417 = vmatpush1.msra.mxu0 %v5318
  %8418 = vmatprep.subr.mxu0 %v5221
  %8419 = vmatpush1.msra.mxu0 %v5220
  %8420 = vmatprep.subr.mxu0 %v6579
  %8421 = vmatpush1.msra.mxu0 %v6578
  %8422 = vmatprep.subr.mxu0 %v6483
  %8423 = vmatpush1.msra.mxu0 %v6482
  %8424 = vmatprep.subr.mxu0 %v6387
  %8425 = vmatpush1.msra.mxu0 %v6386
  %8426 = vmatprep.subr.mxu0 0.0
  %8427 = vmatpush2.msra.mxu0 0.0
  %8428 = vmatprep.subr.mxu0 0.0
  %8429 = vmatpush2.msra.mxu0 0.0
  %8430 = vmatprep.subr.mxu0 0.0
  %8431 = vmatpush2.msra.mxu0 0.0
  %8432 = vmatprep.subr.mxu0 0.0
  %8433 = vmatpush2.msra.mxu0 0.0
  %8434 = vmatprep.subr.mxu0 0.0
  %8435 = vmatpush2.msra.mxu0 0.0
  %8436 = vmatprep.subr.mxu0 0.0
  %8437 = vmatpush2.msra.mxu0 0.0
  %8438 = vmatprep.subr.mxu0 0.0
  %8439 = vmatpush2.msra.mxu0 0.0
  %8440 = vmatprep.subr.mxu0 0.0
  %8441 = vmatpush2.msra.mxu0 0.0
  %8442 = vmatprep.subr.mxu0 0.0
  %8443 = vmatpush2.msra.mxu0 0.0
  %8444 = vmatprep.subr.mxu0 0.0
  %8445 = vmatpush2.msra.mxu0 0.0
  %8446 = vmatprep.subr.mxu0 0.0
  %8447 = vmatpush2.msra.mxu0 0.0
  %8448 = vmatprep.subr.mxu0 0.0
  %8449 = vmatpush2.msra.mxu0 0.0
  %8450 = vmatprep.subr.mxu0 0.0
  %8451 = vmatpush2.msra.mxu0 0.0
  %8452 = vmatprep.subr.mxu0 0.0
  %8453 = vmatpush2.msra.mxu0 0.0
  %8454 = vmatprep.subr.mxu0 0.0
  %8455 = vmatpush2.msra.mxu0 0.0
  %8456 = vmatprep.subr.mxu0 0.0
  %8457 = vmatpush2.msra.mxu0 0.0
  %8458 = vmatprep.mubr.f32.mxu0 0.0
  %8459 = vmatmul.mubr.f32.gmra.mxu0 %v8137
  %v8460 = vpop.f32.mrf.mxu0
  %v8461 = vadd.f32 0.0, %v8460
  %v8462 = vpop.f32.mrf.mxu0
  %v8463 = vadd.f32 0.0, %v8462
  %8464 = vmatprep.mubr.f32.mxu0 0.0
  %8465 = vmatmul.mubr.f32.gmra.mxu0 %v8140
  %v8466 = vpop.f32.mrf.mxu0
  %v8467 = vadd.f32 0.0, %v8466
  %v8468 = vpop.f32.mrf.mxu0
  %v8469 = vadd.f32 0.0, %v8468
  %8470 = vmatprep.mubr.f32.mxu0 0.0
  %8471 = vmatmul.mubr.f32.gmra.mxu0 %v8143
  %v8472 = vpop.f32.mrf.mxu0
  %v8473 = vadd.f32 0.0, %v8472
  %v8474 = vpop.f32.mrf.mxu0
  %v8475 = vadd.f32 0.0, %v8474
  %8476 = vdwg.mxu0
  %8477 = vmatprep.subr.mxu0 0.0
  %8478 = vmatpush1.msra.mxu0 0.0
  %8479 = vmatprep.subr.mxu0 0.0
  %8480 = vmatpush1.msra.mxu0 0.0
  %8481 = vmatprep.subr.mxu0 0.0
  %8482 = vmatpush1.msra.mxu0 0.0
  %8483 = vmatprep.subr.mxu0 0.0
  %8484 = vmatpush1.msra.mxu0 0.0
  %8485 = vmatprep.subr.mxu0 0.0
  %8486 = vmatpush1.msra.mxu0 0.0
  %8487 = vmatprep.subr.mxu0 0.0
  %8488 = vmatpush1.msra.mxu0 0.0
  %8489 = vmatprep.subr.mxu0 0.0
  %8490 = vmatpush1.msra.mxu0 0.0
  %8491 = vmatprep.subr.mxu0 %v7751
  %8492 = vmatpush1.msra.mxu0 %v7750
  %8493 = vmatprep.subr.mxu0 %v7655
  %8494 = vmatpush1.msra.mxu0 %v7654
  %8495 = vmatprep.subr.mxu0 %v7559
  %8496 = vmatpush1.msra.mxu0 %v7558
  %8497 = vmatprep.subr.mxu0 %v5419
  %8498 = vmatpush1.msra.mxu0 %v5418
  %8499 = vmatprep.subr.mxu0 %v5321
  %8500 = vmatpush1.msra.mxu0 %v5320
  %8501 = vmatprep.subr.mxu0 %v5223
  %8502 = vmatpush1.msra.mxu0 %v5222
  %8503 = vmatprep.subr.mxu0 %v6581
  %8504 = vmatpush1.msra.mxu0 %v6580
  %8505 = vmatprep.subr.mxu0 %v6485
  %8506 = vmatpush1.msra.mxu0 %v6484
  %8507 = vmatprep.subr.mxu0 %v6389
  %8508 = vmatpush1.msra.mxu0 %v6388
  %8509 = vmatprep.subr.mxu0 0.0
  %8510 = vmatpush2.msra.mxu0 0.0
  %8511 = vmatprep.subr.mxu0 0.0
  %8512 = vmatpush2.msra.mxu0 0.0
  %8513 = vmatprep.subr.mxu0 0.0
  %8514 = vmatpush2.msra.mxu0 0.0
  %8515 = vmatprep.subr.mxu0 0.0
  %8516 = vmatpush2.msra.mxu0 0.0
  %8517 = vmatprep.subr.mxu0 0.0
  %8518 = vmatpush2.msra.mxu0 0.0
  %8519 = vmatprep.subr.mxu0 0.0
  %8520 = vmatpush2.msra.mxu0 0.0
  %8521 = vmatprep.subr.mxu0 0.0
  %8522 = vmatpush2.msra.mxu0 0.0
  %8523 = vmatprep.subr.mxu0 0.0
  %8524 = vmatpush2.msra.mxu0 0.0
  %8525 = vmatprep.subr.mxu0 0.0
  %8526 = vmatpush2.msra.mxu0 0.0
  %8527 = vmatprep.subr.mxu0 0.0
  %8528 = vmatpush2.msra.mxu0 0.0
  %8529 = vmatprep.subr.mxu0 0.0
  %8530 = vmatpush2.msra.mxu0 0.0
  %8531 = vmatprep.subr.mxu0 0.0
  %8532 = vmatpush2.msra.mxu0 0.0
  %8533 = vmatprep.subr.mxu0 0.0
  %8534 = vmatpush2.msra.mxu0 0.0
  %8535 = vmatprep.subr.mxu0 0.0
  %8536 = vmatpush2.msra.mxu0 0.0
  %8537 = vmatprep.subr.mxu0 0.0
  %8538 = vmatpush2.msra.mxu0 0.0
  %8539 = vmatprep.subr.mxu0 0.0
  %8540 = vmatpush2.msra.mxu0 0.0
  %8541 = vmatprep.mubr.f32.mxu0 0.0
  %8542 = vmatmul.mubr.f32.gmra.mxu0 %v8137
  %v8543 = vpop.f32.mrf.mxu0
  %v8544 = vadd.f32 0.0, %v8543
  %v8545 = vpop.f32.mrf.mxu0
  %v8546 = vadd.f32 0.0, %v8545
  %8547 = vmatprep.mubr.f32.mxu0 0.0
  %8548 = vmatmul.mubr.f32.gmra.mxu0 %v8140
  %v8549 = vpop.f32.mrf.mxu0
  %v8550 = vadd.f32 0.0, %v8549
  %v8551 = vpop.f32.mrf.mxu0
  %v8552 = vadd.f32 0.0, %v8551
  %8553 = vmatprep.mubr.f32.mxu0 0.0
  %8554 = vmatmul.mubr.f32.gmra.mxu0 %v8143
  %v8555 = vpop.f32.mrf.mxu0
  %v8556 = vadd.f32 0.0, %v8555
  %v8557 = vpop.f32.mrf.mxu0
  %v8558 = vadd.f32 0.0, %v8557
  %8559 = vdwg.mxu0
  %8560 = vmatprep.subr.mxu0 0.0
  %8561 = vmatpush1.msra.mxu0 0.0
  %8562 = vmatprep.subr.mxu0 0.0
  %8563 = vmatpush1.msra.mxu0 0.0
  %8564 = vmatprep.subr.mxu0 0.0
  %8565 = vmatpush1.msra.mxu0 0.0
  %8566 = vmatprep.subr.mxu0 0.0
  %8567 = vmatpush1.msra.mxu0 0.0
  %8568 = vmatprep.subr.mxu0 0.0
  %8569 = vmatpush1.msra.mxu0 0.0
  %8570 = vmatprep.subr.mxu0 0.0
  %8571 = vmatpush1.msra.mxu0 0.0
  %8572 = vmatprep.subr.mxu0 0.0
  %8573 = vmatpush1.msra.mxu0 0.0
  %8574 = vmatprep.subr.mxu0 %v7753
  %8575 = vmatpush1.msra.mxu0 %v7752
  %8576 = vmatprep.subr.mxu0 %v7657
  %8577 = vmatpush1.msra.mxu0 %v7656
  %8578 = vmatprep.subr.mxu0 %v7561
  %8579 = vmatpush1.msra.mxu0 %v7560
  %8580 = vmatprep.subr.mxu0 %v5421
  %8581 = vmatpush1.msra.mxu0 %v5420
  %8582 = vmatprep.subr.mxu0 %v5323
  %8583 = vmatpush1.msra.mxu0 %v5322
  %8584 = vmatprep.subr.mxu0 %v5225
  %8585 = vmatpush1.msra.mxu0 %v5224
  %8586 = vmatprep.subr.mxu0 %v6583
  %8587 = vmatpush1.msra.mxu0 %v6582
  %8588 = vmatprep.subr.mxu0 %v6487
  %8589 = vmatpush1.msra.mxu0 %v6486
  %8590 = vmatprep.subr.mxu0 %v6391
  %8591 = vmatpush1.msra.mxu0 %v6390
  %8592 = vmatprep.subr.mxu0 0.0
  %8593 = vmatpush2.msra.mxu0 0.0
  %8594 = vmatprep.subr.mxu0 0.0
  %8595 = vmatpush2.msra.mxu0 0.0
  %8596 = vmatprep.subr.mxu0 0.0
  %8597 = vmatpush2.msra.mxu0 0.0
  %8598 = vmatprep.subr.mxu0 0.0
  %8599 = vmatpush2.msra.mxu0 0.0
  %8600 = vmatprep.subr.mxu0 0.0
  %8601 = vmatpush2.msra.mxu0 0.0
  %8602 = vmatprep.subr.mxu0 0.0
  %8603 = vmatpush2.msra.mxu0 0.0
  %8604 = vmatprep.subr.mxu0 0.0
  %8605 = vmatpush2.msra.mxu0 0.0
  %8606 = vmatprep.subr.mxu0 0.0
  %8607 = vmatpush2.msra.mxu0 0.0
  %8608 = vmatprep.subr.mxu0 0.0
  %8609 = vmatpush2.msra.mxu0 0.0
  %8610 = vmatprep.subr.mxu0 0.0
  %8611 = vmatpush2.msra.mxu0 0.0
  %8612 = vmatprep.subr.mxu0 0.0
  %8613 = vmatpush2.msra.mxu0 0.0
  %8614 = vmatprep.subr.mxu0 0.0
  %8615 = vmatpush2.msra.mxu0 0.0
  %8616 = vmatprep.subr.mxu0 0.0
  %8617 = vmatpush2.msra.mxu0 0.0
  %8618 = vmatprep.subr.mxu0 0.0
  %8619 = vmatpush2.msra.mxu0 0.0
  %8620 = vmatprep.subr.mxu0 0.0
  %8621 = vmatpush2.msra.mxu0 0.0
  %8622 = vmatprep.subr.mxu0 0.0
  %8623 = vmatpush2.msra.mxu0 0.0
  %8624 = vmatprep.mubr.f32.mxu0 0.0
  %8625 = vmatmul.mubr.f32.gmra.mxu0 %v8137
  %v8626 = vpop.f32.mrf.mxu0
  %v8627 = vadd.f32 0.0, %v8626
  %v8628 = vpop.f32.mrf.mxu0
  %v8629 = vadd.f32 0.0, %v8628
  %8630 = vmatprep.mubr.f32.mxu0 0.0
  %8631 = vmatmul.mubr.f32.gmra.mxu0 %v8140
  %v8632 = vpop.f32.mrf.mxu0
  %v8633 = vadd.f32 0.0, %v8632
  %v8634 = vpop.f32.mrf.mxu0
  %v8635 = vadd.f32 0.0, %v8634
  %8636 = vmatprep.mubr.f32.mxu0 0.0
  %8637 = vmatmul.mubr.f32.gmra.mxu0 %v8143
  %v8638 = vpop.f32.mrf.mxu0
  %v8639 = vadd.f32 0.0, %v8638
  %v8640 = vpop.f32.mrf.mxu0
  %v8641 = vadd.f32 0.0, %v8640
  %8642 = vdwg.mxu0
  %8643 = vmatprep.subr.mxu0 0.0
  %8644 = vmatpush1.msra.mxu0 0.0
  %8645 = vmatprep.subr.mxu0 0.0
  %8646 = vmatpush1.msra.mxu0 0.0
  %8647 = vmatprep.subr.mxu0 0.0
  %8648 = vmatpush1.msra.mxu0 0.0
  %8649 = vmatprep.subr.mxu0 0.0
  %8650 = vmatpush1.msra.mxu0 0.0
  %8651 = vmatprep.subr.mxu0 0.0
  %8652 = vmatpush1.msra.mxu0 0.0
  %8653 = vmatprep.subr.mxu0 0.0
  %8654 = vmatpush1.msra.mxu0 0.0
  %8655 = vmatprep.subr.mxu0 0.0
  %8656 = vmatpush1.msra.mxu0 0.0
  %8657 = vmatprep.subr.mxu0 %v7755
  %8658 = vmatpush1.msra.mxu0 %v7754
  %8659 = vmatprep.subr.mxu0 %v7659
  %8660 = vmatpush1.msra.mxu0 %v7658
  %8661 = vmatprep.subr.mxu0 %v7563
  %8662 = vmatpush1.msra.mxu0 %v7562
  %8663 = vmatprep.subr.mxu0 %v5423
  %8664 = vmatpush1.msra.mxu0 %v5422
  %8665 = vmatprep.subr.mxu0 %v5325
  %8666 = vmatpush1.msra.mxu0 %v5324
  %8667 = vmatprep.subr.mxu0 %v5227
  %8668 = vmatpush1.msra.mxu0 %v5226
  %8669 = vmatprep.subr.mxu0 %v6585
  %8670 = vmatpush1.msra.mxu0 %v6584
  %8671 = vmatprep.subr.mxu0 %v6489
  %8672 = vmatpush1.msra.mxu0 %v6488
  %8673 = vmatprep.subr.mxu0 %v6393
  %8674 = vmatpush1.msra.mxu0 %v6392
  %8675 = vmatprep.subr.mxu0 0.0
  %8676 = vmatpush2.msra.mxu0 0.0
  %8677 = vmatprep.subr.mxu0 0.0
  %8678 = vmatpush2.msra.mxu0 0.0
  %8679 = vmatprep.subr.mxu0 0.0
  %8680 = vmatpush2.msra.mxu0 0.0
  %8681 = vmatprep.subr.mxu0 0.0
  %8682 = vmatpush2.msra.mxu0 0.0
  %8683 = vmatprep.subr.mxu0 0.0
  %8684 = vmatpush2.msra.mxu0 0.0
  %8685 = vmatprep.subr.mxu0 0.0
  %8686 = vmatpush2.msra.mxu0 0.0
  %8687 = vmatprep.subr.mxu0 0.0
  %8688 = vmatpush2.msra.mxu0 0.0
  %8689 = vmatprep.subr.mxu0 0.0
  %8690 = vmatpush2.msra.mxu0 0.0
  %8691 = vmatprep.subr.mxu0 0.0
  %8692 = vmatpush2.msra.mxu0 0.0
  %8693 = vmatprep.subr.mxu0 0.0
  %8694 = vmatpush2.msra.mxu0 0.0
  %8695 = vmatprep.subr.mxu0 0.0
  %8696 = vmatpush2.msra.mxu0 0.0
  %8697 = vmatprep.subr.mxu0 0.0
  %8698 = vmatpush2.msra.mxu0 0.0
  %8699 = vmatprep.subr.mxu0 0.0
  %8700 = vmatpush2.msra.mxu0 0.0
  %8701 = vmatprep.subr.mxu0 0.0
  %8702 = vmatpush2.msra.mxu0 0.0
  %8703 = vmatprep.subr.mxu0 0.0
  %8704 = vmatpush2.msra.mxu0 0.0
  %8705 = vmatprep.subr.mxu0 0.0
  %8706 = vmatpush2.msra.mxu0 0.0
  %8707 = vmatprep.mubr.f32.mxu0 0.0
  %8708 = vmatmul.mubr.f32.gmra.mxu0 %v8137
  %v8709 = vpop.f32.mrf.mxu0
  %v8710 = vadd.f32 0.0, %v8709
  %v8711 = vpop.f32.mrf.mxu0
  %v8712 = vadd.f32 0.0, %v8711
  %8713 = vmatprep.mubr.f32.mxu0 0.0
  %8714 = vmatmul.mubr.f32.gmra.mxu0 %v8140
  %v8715 = vpop.f32.mrf.mxu0
  %v8716 = vadd.f32 0.0, %v8715
  %v8717 = vpop.f32.mrf.mxu0
  %v8718 = vadd.f32 0.0, %v8717
  %8719 = vmatprep.mubr.f32.mxu0 0.0
  %8720 = vmatmul.mubr.f32.gmra.mxu0 %v8143
  %v8721 = vpop.f32.mrf.mxu0
  %v8722 = vadd.f32 0.0, %v8721
  %v8723 = vpop.f32.mrf.mxu0
  %v8724 = vadd.f32 0.0, %v8723
  %8725 = vdwg.mxu0
  %8726 = vmatprep.subr.mxu0 0.0
  %8727 = vmatpush1.msra.mxu0 0.0
  %8728 = vmatprep.subr.mxu0 0.0
  %8729 = vmatpush1.msra.mxu0 0.0
  %8730 = vmatprep.subr.mxu0 0.0
  %8731 = vmatpush1.msra.mxu0 0.0
  %8732 = vmatprep.subr.mxu0 0.0
  %8733 = vmatpush1.msra.mxu0 0.0
  %8734 = vmatprep.subr.mxu0 0.0
  %8735 = vmatpush1.msra.mxu0 0.0
  %8736 = vmatprep.subr.mxu0 0.0
  %8737 = vmatpush1.msra.mxu0 0.0
  %8738 = vmatprep.subr.mxu0 0.0
  %8739 = vmatpush1.msra.mxu0 0.0
  %8740 = vmatprep.subr.mxu0 %v7757
  %8741 = vmatpush1.msra.mxu0 %v7756
  %8742 = vmatprep.subr.mxu0 %v7661
  %8743 = vmatpush1.msra.mxu0 %v7660
  %8744 = vmatprep.subr.mxu0 %v7565
  %8745 = vmatpush1.msra.mxu0 %v7564
  %8746 = vmatprep.subr.mxu0 %v5425
  %8747 = vmatpush1.msra.mxu0 %v5424
  %8748 = vmatprep.subr.mxu0 %v5327
  %8749 = vmatpush1.msra.mxu0 %v5326
  %8750 = vmatprep.subr.mxu0 %v5229
  %8751 = vmatpush1.msra.mxu0 %v5228
  %8752 = vmatprep.subr.mxu0 %v6587
  %8753 = vmatpush1.msra.mxu0 %v6586
  %8754 = vmatprep.subr.mxu0 %v6491
  %8755 = vmatpush1.msra.mxu0 %v6490
  %8756 = vmatprep.subr.mxu0 %v6395
  %8757 = vmatpush1.msra.mxu0 %v6394
  %8758 = vmatprep.subr.mxu0 0.0
  %8759 = vmatpush2.msra.mxu0 0.0
  %8760 = vmatprep.subr.mxu0 0.0
  %8761 = vmatpush2.msra.mxu0 0.0
  %8762 = vmatprep.subr.mxu0 0.0
  %8763 = vmatpush2.msra.mxu0 0.0
  %8764 = vmatprep.subr.mxu0 0.0
  %8765 = vmatpush2.msra.mxu0 0.0
  %8766 = vmatprep.subr.mxu0 0.0
  %8767 = vmatpush2.msra.mxu0 0.0
  %8768 = vmatprep.subr.mxu0 0.0
  %8769 = vmatpush2.msra.mxu0 0.0
  %8770 = vmatprep.subr.mxu0 0.0
  %8771 = vmatpush2.msra.mxu0 0.0
  %8772 = vmatprep.subr.mxu0 0.0
  %8773 = vmatpush2.msra.mxu0 0.0
  %8774 = vmatprep.subr.mxu0 0.0
  %8775 = vmatpush2.msra.mxu0 0.0
  %8776 = vmatprep.subr.mxu0 0.0
  %8777 = vmatpush2.msra.mxu0 0.0
  %8778 = vmatprep.subr.mxu0 0.0
  %8779 = vmatpush2.msra.mxu0 0.0
  %8780 = vmatprep.subr.mxu0 0.0
  %8781 = vmatpush2.msra.mxu0 0.0
  %8782 = vmatprep.subr.mxu0 0.0
  %8783 = vmatpush2.msra.mxu0 0.0
  %8784 = vmatprep.subr.mxu0 0.0
  %8785 = vmatpush2.msra.mxu0 0.0
  %8786 = vmatprep.subr.mxu0 0.0
  %8787 = vmatpush2.msra.mxu0 0.0
  %8788 = vmatprep.subr.mxu0 0.0
  %8789 = vmatpush2.msra.mxu0 0.0
  %8790 = vmatprep.mubr.f32.mxu0 0.0
  %8791 = vmatmul.mubr.f32.gmra.mxu0 %v8137
  %v8792 = vpop.f32.mrf.mxu0
  %v8793 = vadd.f32 0.0, %v8792
  %v8794 = vpop.f32.mrf.mxu0
  %v8795 = vadd.f32 0.0, %v8794
  %8796 = vmatprep.mubr.f32.mxu0 0.0
  %8797 = vmatmul.mubr.f32.gmra.mxu0 %v8140
  %v8798 = vpop.f32.mrf.mxu0
  %v8799 = vadd.f32 0.0, %v8798
  %v8800 = vpop.f32.mrf.mxu0
  %v8801 = vadd.f32 0.0, %v8800
  %8802 = vmatprep.mubr.f32.mxu0 0.0
  %8803 = vmatmul.mubr.f32.gmra.mxu0 %v8143
  %v8804 = vpop.f32.mrf.mxu0
  %v8805 = vadd.f32 0.0, %v8804
  %v8806 = vpop.f32.mrf.mxu0
  %v8807 = vadd.f32 0.0, %v8806
  %8808 = vdwg.mxu0
  %8809 = vmatprep.subr.mxu0 0.0
  %8810 = vmatpush1.msra.mxu0 0.0
  %8811 = vmatprep.subr.mxu0 0.0
  %8812 = vmatpush1.msra.mxu0 0.0
  %8813 = vmatprep.subr.mxu0 0.0
  %8814 = vmatpush1.msra.mxu0 0.0
  %8815 = vmatprep.subr.mxu0 0.0
  %8816 = vmatpush1.msra.mxu0 0.0
  %8817 = vmatprep.subr.mxu0 0.0
  %8818 = vmatpush1.msra.mxu0 0.0
  %8819 = vmatprep.subr.mxu0 0.0
  %8820 = vmatpush1.msra.mxu0 0.0
  %8821 = vmatprep.subr.mxu0 0.0
  %8822 = vmatpush1.msra.mxu0 0.0
  %8823 = vmatprep.subr.mxu0 %v7759
  %8824 = vmatpush1.msra.mxu0 %v7758
  %8825 = vmatprep.subr.mxu0 %v7663
  %8826 = vmatpush1.msra.mxu0 %v7662
  %8827 = vmatprep.subr.mxu0 %v7567
  %8828 = vmatpush1.msra.mxu0 %v7566
  %8829 = vmatprep.subr.mxu0 %v5427
  %8830 = vmatpush1.msra.mxu0 %v5426
  %8831 = vmatprep.subr.mxu0 %v5329
  %8832 = vmatpush1.msra.mxu0 %v5328
  %8833 = vmatprep.subr.mxu0 %v5231
  %8834 = vmatpush1.msra.mxu0 %v5230
  %8835 = vmatprep.subr.mxu0 %v6589
  %8836 = vmatpush1.msra.mxu0 %v6588
  %8837 = vmatprep.subr.mxu0 %v6493
  %8838 = vmatpush1.msra.mxu0 %v6492
  %8839 = vmatprep.subr.mxu0 %v6397
  %8840 = vmatpush1.msra.mxu0 %v6396
  %8841 = vmatprep.subr.mxu0 0.0
  %8842 = vmatpush2.msra.mxu0 0.0
  %8843 = vmatprep.subr.mxu0 0.0
  %8844 = vmatpush2.msra.mxu0 0.0
  %8845 = vmatprep.subr.mxu0 0.0
  %8846 = vmatpush2.msra.mxu0 0.0
  %8847 = vmatprep.subr.mxu0 0.0
  %8848 = vmatpush2.msra.mxu0 0.0
  %8849 = vmatprep.subr.mxu0 0.0
  %8850 = vmatpush2.msra.mxu0 0.0
  %8851 = vmatprep.subr.mxu0 0.0
  %8852 = vmatpush2.msra.mxu0 0.0
  %8853 = vmatprep.subr.mxu0 0.0
  %8854 = vmatpush2.msra.mxu0 0.0
  %8855 = vmatprep.subr.mxu0 0.0
  %8856 = vmatpush2.msra.mxu0 0.0
  %8857 = vmatprep.subr.mxu0 0.0
  %8858 = vmatpush2.msra.mxu0 0.0
  %8859 = vmatprep.subr.mxu0 0.0
  %8860 = vmatpush2.msra.mxu0 0.0
  %8861 = vmatprep.subr.mxu0 0.0
  %8862 = vmatpush2.msra.mxu0 0.0
  %8863 = vmatprep.subr.mxu0 0.0
  %8864 = vmatpush2.msra.mxu0 0.0
  %8865 = vmatprep.subr.mxu0 0.0
  %8866 = vmatpush2.msra.mxu0 0.0
  %8867 = vmatprep.subr.mxu0 0.0
  %8868 = vmatpush2.msra.mxu0 0.0
  %8869 = vmatprep.subr.mxu0 0.0
  %8870 = vmatpush2.msra.mxu0 0.0
  %8871 = vmatprep.subr.mxu0 0.0
  %8872 = vmatpush2.msra.mxu0 0.0
  %8873 = vmatprep.mubr.f32.mxu0 0.0
  %8874 = vmatmul.mubr.f32.gmra.mxu0 %v8137
  %v8875 = vpop.f32.mrf.mxu0
  %v8876 = vadd.f32 0.0, %v8875
  %v8877 = vpop.f32.mrf.mxu0
  %v8878 = vadd.f32 0.0, %v8877
  %8879 = vmatprep.mubr.f32.mxu0 0.0
  %8880 = vmatmul.mubr.f32.gmra.mxu0 %v8140
  %v8881 = vpop.f32.mrf.mxu0
  %v8882 = vadd.f32 0.0, %v8881
  %v8883 = vpop.f32.mrf.mxu0
  %v8884 = vadd.f32 0.0, %v8883
  %8885 = vmatprep.mubr.f32.mxu0 0.0
  %8886 = vmatmul.mubr.f32.gmra.mxu0 %v8143
  %v8887 = vpop.f32.mrf.mxu0
  %v8888 = vadd.f32 0.0, %v8887
  %v8889 = vpop.f32.mrf.mxu0
  %v8890 = vadd.f32 0.0, %v8889
  %8891 = vdwg.mxu0
  %8892 = vmatprep.subr.mxu0 0.0
  %8893 = vmatpush1.msra.mxu0 0.0
  %8894 = vmatprep.subr.mxu0 0.0
  %8895 = vmatpush1.msra.mxu0 0.0
  %8896 = vmatprep.subr.mxu0 0.0
  %8897 = vmatpush1.msra.mxu0 0.0
  %8898 = vmatprep.subr.mxu0 0.0
  %8899 = vmatpush1.msra.mxu0 0.0
  %8900 = vmatprep.subr.mxu0 0.0
  %8901 = vmatpush1.msra.mxu0 0.0
  %8902 = vmatprep.subr.mxu0 0.0
  %8903 = vmatpush1.msra.mxu0 0.0
  %8904 = vmatprep.subr.mxu0 0.0
  %8905 = vmatpush1.msra.mxu0 0.0
  %8906 = vmatprep.subr.mxu0 %v7761
  %8907 = vmatpush1.msra.mxu0 %v7760
  %8908 = vmatprep.subr.mxu0 %v7665
  %8909 = vmatpush1.msra.mxu0 %v7664
  %8910 = vmatprep.subr.mxu0 %v7569
  %8911 = vmatpush1.msra.mxu0 %v7568
  %8912 = vmatprep.subr.mxu0 %v5429
  %8913 = vmatpush1.msra.mxu0 %v5428
  %8914 = vmatprep.subr.mxu0 %v5331
  %8915 = vmatpush1.msra.mxu0 %v5330
  %8916 = vmatprep.subr.mxu0 %v5233
  %8917 = vmatpush1.msra.mxu0 %v5232
  %8918 = vmatprep.subr.mxu0 %v6591
  %8919 = vmatpush1.msra.mxu0 %v6590
  %8920 = vmatprep.subr.mxu0 %v6495
  %8921 = vmatpush1.msra.mxu0 %v6494
  %8922 = vmatprep.subr.mxu0 %v6399
  %8923 = vmatpush1.msra.mxu0 %v6398
  %8924 = vmatprep.subr.mxu0 0.0
  %8925 = vmatpush2.msra.mxu0 0.0
  %8926 = vmatprep.subr.mxu0 0.0
  %8927 = vmatpush2.msra.mxu0 0.0
  %8928 = vmatprep.subr.mxu0 0.0
  %8929 = vmatpush2.msra.mxu0 0.0
  %8930 = vmatprep.subr.mxu0 0.0
  %8931 = vmatpush2.msra.mxu0 0.0
  %8932 = vmatprep.subr.mxu0 0.0
  %8933 = vmatpush2.msra.mxu0 0.0
  %8934 = vmatprep.subr.mxu0 0.0
  %8935 = vmatpush2.msra.mxu0 0.0
  %8936 = vmatprep.subr.mxu0 0.0
  %8937 = vmatpush2.msra.mxu0 0.0
  %8938 = vmatprep.subr.mxu0 0.0
  %8939 = vmatpush2.msra.mxu0 0.0
  %8940 = vmatprep.subr.mxu0 0.0
  %8941 = vmatpush2.msra.mxu0 0.0
  %8942 = vmatprep.subr.mxu0 0.0
  %8943 = vmatpush2.msra.mxu0 0.0
  %8944 = vmatprep.subr.mxu0 0.0
  %8945 = vmatpush2.msra.mxu0 0.0
  %8946 = vmatprep.subr.mxu0 0.0
  %8947 = vmatpush2.msra.mxu0 0.0
  %8948 = vmatprep.subr.mxu0 0.0
  %8949 = vmatpush2.msra.mxu0 0.0
  %8950 = vmatprep.subr.mxu0 0.0
  %8951 = vmatpush2.msra.mxu0 0.0
  %8952 = vmatprep.subr.mxu0 0.0
  %8953 = vmatpush2.msra.mxu0 0.0
  %8954 = vmatprep.subr.mxu0 0.0
  %8955 = vmatpush2.msra.mxu0 0.0
  %8956 = vmatprep.mubr.f32.mxu0 0.0
  %8957 = vmatmul.mubr.f32.gmra.mxu0 %v8137
  %v8958 = vpop.f32.mrf.mxu0
  %v8959 = vadd.f32 0.0, %v8958
  %v8960 = vpop.f32.mrf.mxu0
  %v8961 = vadd.f32 0.0, %v8960
  %8962 = vmatprep.mubr.f32.mxu0 0.0
  %8963 = vmatmul.mubr.f32.gmra.mxu0 %v8140
  %v8964 = vpop.f32.mrf.mxu0
  %v8965 = vadd.f32 0.0, %v8964
  %v8966 = vpop.f32.mrf.mxu0
  %v8967 = vadd.f32 0.0, %v8966
  %8968 = vmatprep.mubr.f32.mxu0 0.0
  %8969 = vmatmul.mubr.f32.gmra.mxu0 %v8143
  %v8970 = vpop.f32.mrf.mxu0
  %v8971 = vadd.f32 0.0, %v8970
  %v8972 = vpop.f32.mrf.mxu0
  %v8973 = vadd.f32 0.0, %v8972
  %8974 = vdwg.mxu0
  %8975 = vmatprep.subr.mxu0 0.0
  %8976 = vmatpush1.msra.mxu0 0.0
  %8977 = vmatprep.subr.mxu0 0.0
  %8978 = vmatpush1.msra.mxu0 0.0
  %8979 = vmatprep.subr.mxu0 0.0
  %8980 = vmatpush1.msra.mxu0 0.0
  %8981 = vmatprep.subr.mxu0 0.0
  %8982 = vmatpush1.msra.mxu0 0.0
  %8983 = vmatprep.subr.mxu0 0.0
  %8984 = vmatpush1.msra.mxu0 0.0
  %8985 = vmatprep.subr.mxu0 0.0
  %8986 = vmatpush1.msra.mxu0 0.0
  %8987 = vmatprep.subr.mxu0 0.0
  %8988 = vmatpush1.msra.mxu0 0.0
  %8989 = vmatprep.subr.mxu0 %v7763
  %8990 = vmatpush1.msra.mxu0 %v7762
  %8991 = vmatprep.subr.mxu0 %v7667
  %8992 = vmatpush1.msra.mxu0 %v7666
  %8993 = vmatprep.subr.mxu0 %v7571
  %8994 = vmatpush1.msra.mxu0 %v7570
  %8995 = vmatprep.subr.mxu0 %v5431
  %8996 = vmatpush1.msra.mxu0 %v5430
  %8997 = vmatprep.subr.mxu0 %v5333
  %8998 = vmatpush1.msra.mxu0 %v5332
  %8999 = vmatprep.subr.mxu0 %v5235
  %9000 = vmatpush1.msra.mxu0 %v5234
  %9001 = vmatprep.subr.mxu0 %v6593
  %9002 = vmatpush1.msra.mxu0 %v6592
  %9003 = vmatprep.subr.mxu0 %v6497
  %9004 = vmatpush1.msra.mxu0 %v6496
  %9005 = vmatprep.subr.mxu0 %v6401
  %9006 = vmatpush1.msra.mxu0 %v6400
  %9007 = vmatprep.subr.mxu0 0.0
  %9008 = vmatpush2.msra.mxu0 0.0
  %9009 = vmatprep.subr.mxu0 0.0
  %9010 = vmatpush2.msra.mxu0 0.0
  %9011 = vmatprep.subr.mxu0 0.0
  %9012 = vmatpush2.msra.mxu0 0.0
  %9013 = vmatprep.subr.mxu0 0.0
  %9014 = vmatpush2.msra.mxu0 0.0
  %9015 = vmatprep.subr.mxu0 0.0
  %9016 = vmatpush2.msra.mxu0 0.0
  %9017 = vmatprep.subr.mxu0 0.0
  %9018 = vmatpush2.msra.mxu0 0.0
  %9019 = vmatprep.subr.mxu0 0.0
  %9020 = vmatpush2.msra.mxu0 0.0
  %9021 = vmatprep.subr.mxu0 0.0
  %9022 = vmatpush2.msra.mxu0 0.0
  %9023 = vmatprep.subr.mxu0 0.0
  %9024 = vmatpush2.msra.mxu0 0.0
  %9025 = vmatprep.subr.mxu0 0.0
  %9026 = vmatpush2.msra.mxu0 0.0
  %9027 = vmatprep.subr.mxu0 0.0
  %9028 = vmatpush2.msra.mxu0 0.0
  %9029 = vmatprep.subr.mxu0 0.0
  %9030 = vmatpush2.msra.mxu0 0.0
  %9031 = vmatprep.subr.mxu0 0.0
  %9032 = vmatpush2.msra.mxu0 0.0
  %9033 = vmatprep.subr.mxu0 0.0
  %9034 = vmatpush2.msra.mxu0 0.0
  %9035 = vmatprep.subr.mxu0 0.0
  %9036 = vmatpush2.msra.mxu0 0.0
  %9037 = vmatprep.subr.mxu0 0.0
  %9038 = vmatpush2.msra.mxu0 0.0
  %9039 = vmatprep.mubr.f32.mxu0 0.0
  %9040 = vmatmul.mubr.f32.gmra.mxu0 %v8137
  %v9041 = vpop.f32.mrf.mxu0
  %v9042 = vadd.f32 0.0, %v9041
  %v9043 = vpop.f32.mrf.mxu0
  %v9044 = vadd.f32 0.0, %v9043
  %9045 = vmatprep.mubr.f32.mxu0 0.0
  %9046 = vmatmul.mubr.f32.gmra.mxu0 %v8140
  %v9047 = vpop.f32.mrf.mxu0
  %v9048 = vadd.f32 0.0, %v9047
  %v9049 = vpop.f32.mrf.mxu0
  %v9050 = vadd.f32 0.0, %v9049
  %9051 = vmatprep.mubr.f32.mxu0 0.0
  %9052 = vmatmul.mubr.f32.gmra.mxu0 %v8143
  %v9053 = vpop.f32.mrf.mxu0
  %v9054 = vadd.f32 0.0, %v9053
  %v9055 = vpop.f32.mrf.mxu0
  %v9056 = vadd.f32 0.0, %v9055
  %9057 = vdwg.mxu0
  %9058 = vmatprep.subr.mxu0 0.0
  %9059 = vmatpush1.msra.mxu0 0.0
  %9060 = vmatprep.subr.mxu0 0.0
  %9061 = vmatpush1.msra.mxu0 0.0
  %9062 = vmatprep.subr.mxu0 0.0
  %9063 = vmatpush1.msra.mxu0 0.0
  %9064 = vmatprep.subr.mxu0 0.0
  %9065 = vmatpush1.msra.mxu0 0.0
  %9066 = vmatprep.subr.mxu0 0.0
  %9067 = vmatpush1.msra.mxu0 0.0
  %9068 = vmatprep.subr.mxu0 0.0
  %9069 = vmatpush1.msra.mxu0 0.0
  %9070 = vmatprep.subr.mxu0 0.0
  %9071 = vmatpush1.msra.mxu0 0.0
  %9072 = vmatprep.subr.mxu0 %v7765
  %9073 = vmatpush1.msra.mxu0 %v7764
  %9074 = vmatprep.subr.mxu0 %v7669
  %9075 = vmatpush1.msra.mxu0 %v7668
  %9076 = vmatprep.subr.mxu0 %v7573
  %9077 = vmatpush1.msra.mxu0 %v7572
  %9078 = vmatprep.subr.mxu0 %v5433
  %9079 = vmatpush1.msra.mxu0 %v5432
  %9080 = vmatprep.subr.mxu0 %v5335
  %9081 = vmatpush1.msra.mxu0 %v5334
  %9082 = vmatprep.subr.mxu0 %v5237
  %9083 = vmatpush1.msra.mxu0 %v5236
  %9084 = vmatprep.subr.mxu0 %v6595
  %9085 = vmatpush1.msra.mxu0 %v6594
  %9086 = vmatprep.subr.mxu0 %v6499
  %9087 = vmatpush1.msra.mxu0 %v6498
  %9088 = vmatprep.subr.mxu0 %v6403
  %9089 = vmatpush1.msra.mxu0 %v6402
  %9090 = vmatprep.subr.mxu0 0.0
  %9091 = vmatpush2.msra.mxu0 0.0
  %9092 = vmatprep.subr.mxu0 0.0
  %9093 = vmatpush2.msra.mxu0 0.0
  %9094 = vmatprep.subr.mxu0 0.0
  %9095 = vmatpush2.msra.mxu0 0.0
  %9096 = vmatprep.subr.mxu0 0.0
  %9097 = vmatpush2.msra.mxu0 0.0
  %9098 = vmatprep.subr.mxu0 0.0
  %9099 = vmatpush2.msra.mxu0 0.0
  %9100 = vmatprep.subr.mxu0 0.0
  %9101 = vmatpush2.msra.mxu0 0.0
  %9102 = vmatprep.subr.mxu0 0.0
  %9103 = vmatpush2.msra.mxu0 0.0
  %9104 = vmatprep.subr.mxu0 0.0
  %9105 = vmatpush2.msra.mxu0 0.0
  %9106 = vmatprep.subr.mxu0 0.0
  %9107 = vmatpush2.msra.mxu0 0.0
  %9108 = vmatprep.subr.mxu0 0.0
  %9109 = vmatpush2.msra.mxu0 0.0
  %9110 = vmatprep.subr.mxu0 0.0
  %9111 = vmatpush2.msra.mxu0 0.0
  %9112 = vmatprep.subr.mxu0 0.0
  %9113 = vmatpush2.msra.mxu0 0.0
  %9114 = vmatprep.subr.mxu0 0.0
  %9115 = vmatpush2.msra.mxu0 0.0
  %9116 = vmatprep.subr.mxu0 0.0
  %9117 = vmatpush2.msra.mxu0 0.0
  %9118 = vmatprep.subr.mxu0 0.0
  %9119 = vmatpush2.msra.mxu0 0.0
  %9120 = vmatprep.subr.mxu0 0.0
  %9121 = vmatpush2.msra.mxu0 0.0
  %9122 = vmatprep.mubr.f32.mxu0 0.0
  %9123 = vmatmul.mubr.f32.gmra.mxu0 %v8137
  %v9124 = vpop.f32.mrf.mxu0
  %v9125 = vadd.f32 0.0, %v9124
  %v9126 = vpop.f32.mrf.mxu0
  %v9127 = vadd.f32 0.0, %v9126
  %9128 = vmatprep.mubr.f32.mxu0 0.0
  %9129 = vmatmul.mubr.f32.gmra.mxu0 %v8140
  %v9130 = vpop.f32.mrf.mxu0
  %v9131 = vadd.f32 0.0, %v9130
  %v9132 = vpop.f32.mrf.mxu0
  %v9133 = vadd.f32 0.0, %v9132
  %9134 = vmatprep.mubr.f32.mxu0 0.0
  %9135 = vmatmul.mubr.f32.gmra.mxu0 %v8143
  %v9136 = vpop.f32.mrf.mxu0
  %v9137 = vadd.f32 0.0, %v9136
  %v9138 = vpop.f32.mrf.mxu0
  %v9139 = vadd.f32 0.0, %v9138
  %9140 = vdwg.mxu0
  %9141 = vmatprep.subr.mxu0 0.0
  %9142 = vmatpush1.msra.mxu0 0.0
  %9143 = vmatprep.subr.mxu0 0.0
  %9144 = vmatpush1.msra.mxu0 0.0
  %9145 = vmatprep.subr.mxu0 0.0
  %9146 = vmatpush1.msra.mxu0 0.0
  %9147 = vmatprep.subr.mxu0 0.0
  %9148 = vmatpush1.msra.mxu0 0.0
  %9149 = vmatprep.subr.mxu0 0.0
  %9150 = vmatpush1.msra.mxu0 0.0
  %9151 = vmatprep.subr.mxu0 0.0
  %9152 = vmatpush1.msra.mxu0 0.0
  %9153 = vmatprep.subr.mxu0 0.0
  %9154 = vmatpush1.msra.mxu0 0.0
  %9155 = vmatprep.subr.mxu0 %v7767
  %9156 = vmatpush1.msra.mxu0 %v7766
  %9157 = vmatprep.subr.mxu0 %v7671
  %9158 = vmatpush1.msra.mxu0 %v7670
  %9159 = vmatprep.subr.mxu0 %v7575
  %9160 = vmatpush1.msra.mxu0 %v7574
  %9161 = vmatprep.subr.mxu0 %v5435
  %9162 = vmatpush1.msra.mxu0 %v5434
  %9163 = vmatprep.subr.mxu0 %v5337
  %9164 = vmatpush1.msra.mxu0 %v5336
  %9165 = vmatprep.subr.mxu0 %v5239
  %9166 = vmatpush1.msra.mxu0 %v5238
  %9167 = vmatprep.subr.mxu0 %v6597
  %9168 = vmatpush1.msra.mxu0 %v6596
  %9169 = vmatprep.subr.mxu0 %v6501
  %9170 = vmatpush1.msra.mxu0 %v6500
  %9171 = vmatprep.subr.mxu0 %v6405
  %9172 = vmatpush1.msra.mxu0 %v6404
  %9173 = vmatprep.subr.mxu0 0.0
  %9174 = vmatpush2.msra.mxu0 0.0
  %9175 = vmatprep.subr.mxu0 0.0
  %9176 = vmatpush2.msra.mxu0 0.0
  %9177 = vmatprep.subr.mxu0 0.0
  %9178 = vmatpush2.msra.mxu0 0.0
  %9179 = vmatprep.subr.mxu0 0.0
  %9180 = vmatpush2.msra.mxu0 0.0
  %9181 = vmatprep.subr.mxu0 0.0
  %9182 = vmatpush2.msra.mxu0 0.0
  %9183 = vmatprep.subr.mxu0 0.0
  %9184 = vmatpush2.msra.mxu0 0.0
  %9185 = vmatprep.subr.mxu0 0.0
  %9186 = vmatpush2.msra.mxu0 0.0
  %9187 = vmatprep.subr.mxu0 0.0
  %9188 = vmatpush2.msra.mxu0 0.0
  %9189 = vmatprep.subr.mxu0 0.0
  %9190 = vmatpush2.msra.mxu0 0.0
  %9191 = vmatprep.subr.mxu0 0.0
  %9192 = vmatpush2.msra.mxu0 0.0
  %9193 = vmatprep.subr.mxu0 0.0
  %9194 = vmatpush2.msra.mxu0 0.0
  %9195 = vmatprep.subr.mxu0 0.0
  %9196 = vmatpush2.msra.mxu0 0.0
  %9197 = vmatprep.subr.mxu0 0.0
  %9198 = vmatpush2.msra.mxu0 0.0
  %9199 = vmatprep.subr.mxu0 0.0
  %9200 = vmatpush2.msra.mxu0 0.0
  %9201 = vmatprep.subr.mxu0 0.0
  %9202 = vmatpush2.msra.mxu0 0.0
  %9203 = vmatprep.subr.mxu0 0.0
  %9204 = vmatpush2.msra.mxu0 0.0
  %9205 = vmatprep.mubr.f32.mxu0 0.0
  %9206 = vmatmul.mubr.f32.gmra.mxu0 %v8137
  %v9207 = vpop.f32.mrf.mxu0
  %v9208 = vadd.f32 0.0, %v9207
  %v9209 = vpop.f32.mrf.mxu0
  %v9210 = vadd.f32 0.0, %v9209
  %9211 = vmatprep.mubr.f32.mxu0 0.0
  %9212 = vmatmul.mubr.f32.gmra.mxu0 %v8140
  %v9213 = vpop.f32.mrf.mxu0
  %v9214 = vadd.f32 0.0, %v9213
  %v9215 = vpop.f32.mrf.mxu0
  %v9216 = vadd.f32 0.0, %v9215
  %9217 = vmatprep.mubr.f32.mxu0 0.0
  %9218 = vmatmul.mubr.f32.gmra.mxu0 %v8143
  %v9219 = vpop.f32.mrf.mxu0
  %v9220 = vadd.f32 0.0, %v9219
  %v9221 = vpop.f32.mrf.mxu0
  %v9222 = vadd.f32 0.0, %v9221
  %9223 = vdwg.mxu0
  %9224 = vmatprep.subr.mxu0 0.0
  %9225 = vmatpush1.msra.mxu0 0.0
  %9226 = vmatprep.subr.mxu0 0.0
  %9227 = vmatpush1.msra.mxu0 0.0
  %9228 = vmatprep.subr.mxu0 0.0
  %9229 = vmatpush1.msra.mxu0 0.0
  %9230 = vmatprep.subr.mxu0 0.0
  %9231 = vmatpush1.msra.mxu0 0.0
  %9232 = vmatprep.subr.mxu0 0.0
  %9233 = vmatpush1.msra.mxu0 0.0
  %9234 = vmatprep.subr.mxu0 0.0
  %9235 = vmatpush1.msra.mxu0 0.0
  %9236 = vmatprep.subr.mxu0 0.0
  %9237 = vmatpush1.msra.mxu0 0.0
  %9238 = vmatprep.subr.mxu0 %v7769
  %9239 = vmatpush1.msra.mxu0 %v7768
  %9240 = vmatprep.subr.mxu0 %v7673
  %9241 = vmatpush1.msra.mxu0 %v7672
  %9242 = vmatprep.subr.mxu0 %v7577
  %9243 = vmatpush1.msra.mxu0 %v7576
  %9244 = vmatprep.subr.mxu0 %v5437
  %9245 = vmatpush1.msra.mxu0 %v5436
  %9246 = vmatprep.subr.mxu0 %v5339
  %9247 = vmatpush1.msra.mxu0 %v5338
  %9248 = vmatprep.subr.mxu0 %v5241
  %9249 = vmatpush1.msra.mxu0 %v5240
  %9250 = vmatprep.subr.mxu0 %v6599
  %9251 = vmatpush1.msra.mxu0 %v6598
  %9252 = vmatprep.subr.mxu0 %v6503
  %9253 = vmatpush1.msra.mxu0 %v6502
  %9254 = vmatprep.subr.mxu0 %v6407
  %9255 = vmatpush1.msra.mxu0 %v6406
  %9256 = vmatprep.subr.mxu0 0.0
  %9257 = vmatpush2.msra.mxu0 0.0
  %9258 = vmatprep.subr.mxu0 0.0
  %9259 = vmatpush2.msra.mxu0 0.0
  %9260 = vmatprep.subr.mxu0 0.0
  %9261 = vmatpush2.msra.mxu0 0.0
  %9262 = vmatprep.subr.mxu0 0.0
  %9263 = vmatpush2.msra.mxu0 0.0
  %9264 = vmatprep.subr.mxu0 0.0
  %9265 = vmatpush2.msra.mxu0 0.0
  %9266 = vmatprep.subr.mxu0 0.0
  %9267 = vmatpush2.msra.mxu0 0.0
  %9268 = vmatprep.subr.mxu0 0.0
  %9269 = vmatpush2.msra.mxu0 0.0
  %9270 = vmatprep.subr.mxu0 0.0
  %9271 = vmatpush2.msra.mxu0 0.0
  %9272 = vmatprep.subr.mxu0 0.0
  %9273 = vmatpush2.msra.mxu0 0.0
  %9274 = vmatprep.subr.mxu0 0.0
  %9275 = vmatpush2.msra.mxu0 0.0
  %9276 = vmatprep.subr.mxu0 0.0
  %9277 = vmatpush2.msra.mxu0 0.0
  %9278 = vmatprep.subr.mxu0 0.0
  %9279 = vmatpush2.msra.mxu0 0.0
  %9280 = vmatprep.subr.mxu0 0.0
  %9281 = vmatpush2.msra.mxu0 0.0
  %9282 = vmatprep.subr.mxu0 0.0
  %9283 = vmatpush2.msra.mxu0 0.0
  %9284 = vmatprep.subr.mxu0 0.0
  %9285 = vmatpush2.msra.mxu0 0.0
  %9286 = vmatprep.subr.mxu0 0.0
  %9287 = vmatpush2.msra.mxu0 0.0
  %9288 = vmatprep.mubr.f32.mxu0 0.0
  %9289 = vmatmul.mubr.f32.gmra.mxu0 %v8137
  %v9290 = vpop.f32.mrf.mxu0
  %v9291 = vadd.f32 0.0, %v9290
  %v9292 = vpop.f32.mrf.mxu0
  %v9293 = vadd.f32 0.0, %v9292
  %9294 = vmatprep.mubr.f32.mxu0 0.0
  %9295 = vmatmul.mubr.f32.gmra.mxu0 %v8140
  %v9296 = vpop.f32.mrf.mxu0
  %v9297 = vadd.f32 0.0, %v9296
  %v9298 = vpop.f32.mrf.mxu0
  %v9299 = vadd.f32 0.0, %v9298
  %9300 = vmatprep.mubr.f32.mxu0 0.0
  %9301 = vmatmul.mubr.f32.gmra.mxu0 %v8143
  %v9302 = vpop.f32.mrf.mxu0
  %v9303 = vadd.f32 0.0, %v9302
  %v9304 = vpop.f32.mrf.mxu0
  %v9305 = vadd.f32 0.0, %v9304
  %9306 = vdwg.mxu0
  %9307 = vmatprep.subr.mxu0 0.0
  %9308 = vmatpush1.msra.mxu0 0.0
  %9309 = vmatprep.subr.mxu0 0.0
  %9310 = vmatpush1.msra.mxu0 0.0
  %9311 = vmatprep.subr.mxu0 0.0
  %9312 = vmatpush1.msra.mxu0 0.0
  %9313 = vmatprep.subr.mxu0 0.0
  %9314 = vmatpush1.msra.mxu0 0.0
  %9315 = vmatprep.subr.mxu0 0.0
  %9316 = vmatpush1.msra.mxu0 0.0
  %9317 = vmatprep.subr.mxu0 0.0
  %9318 = vmatpush1.msra.mxu0 0.0
  %9319 = vmatprep.subr.mxu0 0.0
  %9320 = vmatpush1.msra.mxu0 0.0
  %9321 = vmatprep.subr.mxu0 %v7771
  %9322 = vmatpush1.msra.mxu0 %v7770
  %9323 = vmatprep.subr.mxu0 %v7675
  %9324 = vmatpush1.msra.mxu0 %v7674
  %9325 = vmatprep.subr.mxu0 %v7579
  %9326 = vmatpush1.msra.mxu0 %v7578
  %9327 = vmatprep.subr.mxu0 %v5439
  %9328 = vmatpush1.msra.mxu0 %v5438
  %9329 = vmatprep.subr.mxu0 %v5341
  %9330 = vmatpush1.msra.mxu0 %v5340
  %9331 = vmatprep.subr.mxu0 %v5243
  %9332 = vmatpush1.msra.mxu0 %v5242
  %9333 = vmatprep.subr.mxu0 %v6601
  %9334 = vmatpush1.msra.mxu0 %v6600
  %9335 = vmatprep.subr.mxu0 %v6505
  %9336 = vmatpush1.msra.mxu0 %v6504
  %9337 = vmatprep.subr.mxu0 %v6409
  %9338 = vmatpush1.msra.mxu0 %v6408
  %9339 = vmatprep.subr.mxu0 0.0
  %9340 = vmatpush2.msra.mxu0 0.0
  %9341 = vmatprep.subr.mxu0 0.0
  %9342 = vmatpush2.msra.mxu0 0.0
  %9343 = vmatprep.subr.mxu0 0.0
  %9344 = vmatpush2.msra.mxu0 0.0
  %9345 = vmatprep.subr.mxu0 0.0
  %9346 = vmatpush2.msra.mxu0 0.0
  %9347 = vmatprep.subr.mxu0 0.0
  %9348 = vmatpush2.msra.mxu0 0.0
  %9349 = vmatprep.subr.mxu0 0.0
  %9350 = vmatpush2.msra.mxu0 0.0
  %9351 = vmatprep.subr.mxu0 0.0
  %9352 = vmatpush2.msra.mxu0 0.0
  %9353 = vmatprep.subr.mxu0 0.0
  %9354 = vmatpush2.msra.mxu0 0.0
  %9355 = vmatprep.subr.mxu0 0.0
  %9356 = vmatpush2.msra.mxu0 0.0
  %9357 = vmatprep.subr.mxu0 0.0
  %9358 = vmatpush2.msra.mxu0 0.0
  %9359 = vmatprep.subr.mxu0 0.0
  %9360 = vmatpush2.msra.mxu0 0.0
  %9361 = vmatprep.subr.mxu0 0.0
  %9362 = vmatpush2.msra.mxu0 0.0
  %9363 = vmatprep.subr.mxu0 0.0
  %9364 = vmatpush2.msra.mxu0 0.0
  %9365 = vmatprep.subr.mxu0 0.0
  %9366 = vmatpush2.msra.mxu0 0.0
  %9367 = vmatprep.subr.mxu0 0.0
  %9368 = vmatpush2.msra.mxu0 0.0
  %9369 = vmatprep.subr.mxu0 0.0
  %9370 = vmatpush2.msra.mxu0 0.0
  %9371 = vmatprep.mubr.f32.mxu0 0.0
  %9372 = vmatmul.mubr.f32.gmra.mxu0 %v8137
  %v9373 = vpop.f32.mrf.mxu0
  %v9374 = vadd.f32 0.0, %v9373
  %v9375 = vpop.f32.mrf.mxu0
  %v9376 = vadd.f32 0.0, %v9375
  %9377 = vmatprep.mubr.f32.mxu0 0.0
  %9378 = vmatmul.mubr.f32.gmra.mxu0 %v8140
  %v9379 = vpop.f32.mrf.mxu0
  %v9380 = vadd.f32 0.0, %v9379
  %v9381 = vpop.f32.mrf.mxu0
  %v9382 = vadd.f32 0.0, %v9381
  %9383 = vmatprep.mubr.f32.mxu0 0.0
  %9384 = vmatmul.mubr.f32.gmra.mxu0 %v8143
  %v9385 = vpop.f32.mrf.mxu0
  %v9386 = vadd.f32 0.0, %v9385
  %v9387 = vpop.f32.mrf.mxu0
  %v9388 = vadd.f32 0.0, %v9387
  %9389 = vdwg.mxu0
  %9390 = vmatprep.subr.mxu0 0.0
  %9391 = vmatpush1.msra.mxu0 0.0
  %9392 = vmatprep.subr.mxu0 0.0
  %9393 = vmatpush1.msra.mxu0 0.0
  %9394 = vmatprep.subr.mxu0 0.0
  %9395 = vmatpush1.msra.mxu0 0.0
  %9396 = vmatprep.subr.mxu0 0.0
  %9397 = vmatpush1.msra.mxu0 0.0
  %9398 = vmatprep.subr.mxu0 0.0
  %9399 = vmatpush1.msra.mxu0 0.0
  %9400 = vmatprep.subr.mxu0 0.0
  %9401 = vmatpush1.msra.mxu0 0.0
  %9402 = vmatprep.subr.mxu0 0.0
  %9403 = vmatpush1.msra.mxu0 0.0
  %9404 = vmatprep.subr.mxu0 %v7773
  %9405 = vmatpush1.msra.mxu0 %v7772
  %9406 = vmatprep.subr.mxu0 %v7677
  %9407 = vmatpush1.msra.mxu0 %v7676
  %9408 = vmatprep.subr.mxu0 %v7581
  %9409 = vmatpush1.msra.mxu0 %v7580
  %9410 = vmatprep.subr.mxu0 %v5441
  %9411 = vmatpush1.msra.mxu0 %v5440
  %9412 = vmatprep.subr.mxu0 %v5343
  %9413 = vmatpush1.msra.mxu0 %v5342
  %9414 = vmatprep.subr.mxu0 %v5245
  %9415 = vmatpush1.msra.mxu0 %v5244
  %9416 = vmatprep.subr.mxu0 %v6603
  %9417 = vmatpush1.msra.mxu0 %v6602
  %9418 = vmatprep.subr.mxu0 %v6507
  %9419 = vmatpush1.msra.mxu0 %v6506
  %9420 = vmatprep.subr.mxu0 %v6411
  %9421 = vmatpush1.msra.mxu0 %v6410
  %9422 = vmatprep.subr.mxu0 0.0
  %9423 = vmatpush2.msra.mxu0 0.0
  %9424 = vmatprep.subr.mxu0 0.0
  %9425 = vmatpush2.msra.mxu0 0.0
  %9426 = vmatprep.subr.mxu0 0.0
  %9427 = vmatpush2.msra.mxu0 0.0
  %9428 = vmatprep.subr.mxu0 0.0
  %9429 = vmatpush2.msra.mxu0 0.0
  %9430 = vmatprep.subr.mxu0 0.0
  %9431 = vmatpush2.msra.mxu0 0.0
  %9432 = vmatprep.subr.mxu0 0.0
  %9433 = vmatpush2.msra.mxu0 0.0
  %9434 = vmatprep.subr.mxu0 0.0
  %9435 = vmatpush2.msra.mxu0 0.0
  %9436 = vmatprep.subr.mxu0 0.0
  %9437 = vmatpush2.msra.mxu0 0.0
  %9438 = vmatprep.subr.mxu0 0.0
  %9439 = vmatpush2.msra.mxu0 0.0
  %9440 = vmatprep.subr.mxu0 0.0
  %9441 = vmatpush2.msra.mxu0 0.0
  %9442 = vmatprep.subr.mxu0 0.0
  %9443 = vmatpush2.msra.mxu0 0.0
  %9444 = vmatprep.subr.mxu0 0.0
  %9445 = vmatpush2.msra.mxu0 0.0
  %9446 = vmatprep.subr.mxu0 0.0
  %9447 = vmatpush2.msra.mxu0 0.0
  %9448 = vmatprep.subr.mxu0 0.0
  %9449 = vmatpush2.msra.mxu0 0.0
  %9450 = vmatprep.subr.mxu0 0.0
  %9451 = vmatpush2.msra.mxu0 0.0
  %9452 = vmatprep.subr.mxu0 0.0
  %9453 = vmatpush2.msra.mxu0 0.0
  %9454 = vmatprep.mubr.f32.mxu0 0.0
  %9455 = vmatmul.mubr.f32.gmra.mxu0 %v8137
  %v9456 = vpop.f32.mrf.mxu0
  %v9457 = vadd.f32 0.0, %v9456
  %v9458 = vpop.f32.mrf.mxu0
  %v9459 = vadd.f32 0.0, %v9458
  %9460 = vmatprep.mubr.f32.mxu0 0.0
  %9461 = vmatmul.mubr.f32.gmra.mxu0 %v8140
  %v9462 = vpop.f32.mrf.mxu0
  %v9463 = vadd.f32 0.0, %v9462
  %v9464 = vpop.f32.mrf.mxu0
  %v9465 = vadd.f32 0.0, %v9464
  %9466 = vmatprep.mubr.f32.mxu0 0.0
  %9467 = vmatmul.mubr.f32.gmra.mxu0 %v8143
  %v9468 = vpop.f32.mrf.mxu0
  %v9469 = vadd.f32 0.0, %v9468
  %v9470 = vpop.f32.mrf.mxu0
  %v9471 = vadd.f32 0.0, %v9470
  %9472 = vdwg.mxu0
  %9473 = vmatprep.subr.mxu0 0.0
  %9474 = vmatpush1.msra.mxu0 0.0
  %9475 = vmatprep.subr.mxu0 0.0
  %9476 = vmatpush1.msra.mxu0 0.0
  %9477 = vmatprep.subr.mxu0 0.0
  %9478 = vmatpush1.msra.mxu0 0.0
  %9479 = vmatprep.subr.mxu0 0.0
  %9480 = vmatpush1.msra.mxu0 0.0
  %9481 = vmatprep.subr.mxu0 0.0
  %9482 = vmatpush1.msra.mxu0 0.0
  %9483 = vmatprep.subr.mxu0 0.0
  %9484 = vmatpush1.msra.mxu0 0.0
  %9485 = vmatprep.subr.mxu0 0.0
  %9486 = vmatpush1.msra.mxu0 0.0
  %9487 = vmatprep.subr.mxu0 %v7775
  %9488 = vmatpush1.msra.mxu0 %v7774
  %9489 = vmatprep.subr.mxu0 %v7679
  %9490 = vmatpush1.msra.mxu0 %v7678
  %9491 = vmatprep.subr.mxu0 %v7583
  %9492 = vmatpush1.msra.mxu0 %v7582
  %9493 = vmatprep.subr.mxu0 %v5443
  %9494 = vmatpush1.msra.mxu0 %v5442
  %9495 = vmatprep.subr.mxu0 %v5345
  %9496 = vmatpush1.msra.mxu0 %v5344
  %9497 = vmatprep.subr.mxu0 %v5247
  %9498 = vmatpush1.msra.mxu0 %v5246
  %9499 = vmatprep.subr.mxu0 %v6605
  %9500 = vmatpush1.msra.mxu0 %v6604
  %9501 = vmatprep.subr.mxu0 %v6509
  %9502 = vmatpush1.msra.mxu0 %v6508
  %9503 = vmatprep.subr.mxu0 %v6413
  %9504 = vmatpush1.msra.mxu0 %v6412
  %9505 = vmatprep.subr.mxu0 0.0
  %9506 = vmatpush2.msra.mxu0 0.0
  %9507 = vmatprep.subr.mxu0 0.0
  %9508 = vmatpush2.msra.mxu0 0.0
  %9509 = vmatprep.subr.mxu0 0.0
  %9510 = vmatpush2.msra.mxu0 0.0
  %9511 = vmatprep.subr.mxu0 0.0
  %9512 = vmatpush2.msra.mxu0 0.0
  %9513 = vmatprep.subr.mxu0 0.0
  %9514 = vmatpush2.msra.mxu0 0.0
  %9515 = vmatprep.subr.mxu0 0.0
  %9516 = vmatpush2.msra.mxu0 0.0
  %9517 = vmatprep.subr.mxu0 0.0
  %9518 = vmatpush2.msra.mxu0 0.0
  %9519 = vmatprep.subr.mxu0 0.0
  %9520 = vmatpush2.msra.mxu0 0.0
  %9521 = vmatprep.subr.mxu0 0.0
  %9522 = vmatpush2.msra.mxu0 0.0
  %9523 = vmatprep.subr.mxu0 0.0
  %9524 = vmatpush2.msra.mxu0 0.0
  %9525 = vmatprep.subr.mxu0 0.0
  %9526 = vmatpush2.msra.mxu0 0.0
  %9527 = vmatprep.subr.mxu0 0.0
  %9528 = vmatpush2.msra.mxu0 0.0
  %9529 = vmatprep.subr.mxu0 0.0
  %9530 = vmatpush2.msra.mxu0 0.0
  %9531 = vmatprep.subr.mxu0 0.0
  %9532 = vmatpush2.msra.mxu0 0.0
  %9533 = vmatprep.subr.mxu0 0.0
  %9534 = vmatpush2.msra.mxu0 0.0
  %9535 = vmatprep.subr.mxu0 0.0
  %9536 = vmatpush2.msra.mxu0 0.0
  %9537 = vmatprep.mubr.f32.mxu0 0.0
  %9538 = vmatmul.mubr.f32.gmra.mxu0 %v8137
  %v9539 = vpop.f32.mrf.mxu0
  %v9540 = vadd.f32 0.0, %v9539
  %v9541 = vpop.f32.mrf.mxu0
  %v9542 = vadd.f32 0.0, %v9541
  %9543 = vmatprep.mubr.f32.mxu0 0.0
  %9544 = vmatmul.mubr.f32.gmra.mxu0 %v8140
  %v9545 = vpop.f32.mrf.mxu0
  %v9546 = vadd.f32 0.0, %v9545
  %v9547 = vpop.f32.mrf.mxu0
  %v9548 = vadd.f32 0.0, %v9547
  %9549 = vmatprep.mubr.f32.mxu0 0.0
  %9550 = vmatmul.mubr.f32.gmra.mxu0 %v8143
  %v9551 = vpop.f32.mrf.mxu0
  %v9552 = vadd.f32 0.0, %v9551
  %v9553 = vpop.f32.mrf.mxu0
  %v9554 = vadd.f32 0.0, %v9553
  %9555 = vdwg.mxu0
  %9556 = vmatprep.subr.mxu0 0.0
  %9557 = vmatpush1.msra.mxu0 0.0
  %9558 = vmatprep.subr.mxu0 0.0
  %9559 = vmatpush1.msra.mxu0 0.0
  %9560 = vmatprep.subr.mxu0 0.0
  %9561 = vmatpush1.msra.mxu0 0.0
  %9562 = vmatprep.subr.mxu0 0.0
  %9563 = vmatpush1.msra.mxu0 0.0
  %9564 = vmatprep.subr.mxu0 0.0
  %9565 = vmatpush1.msra.mxu0 0.0
  %9566 = vmatprep.subr.mxu0 0.0
  %9567 = vmatpush1.msra.mxu0 0.0
  %9568 = vmatprep.subr.mxu0 0.0
  %9569 = vmatpush1.msra.mxu0 0.0
  %9570 = vmatprep.subr.mxu0 %v7777
  %9571 = vmatpush1.msra.mxu0 %v7776
  %9572 = vmatprep.subr.mxu0 %v7681
  %9573 = vmatpush1.msra.mxu0 %v7680
  %9574 = vmatprep.subr.mxu0 %v7585
  %9575 = vmatpush1.msra.mxu0 %v7584
  %9576 = vmatprep.subr.mxu0 %v5445
  %9577 = vmatpush1.msra.mxu0 %v5444
  %9578 = vmatprep.subr.mxu0 %v5347
  %9579 = vmatpush1.msra.mxu0 %v5346
  %9580 = vmatprep.subr.mxu0 %v5249
  %9581 = vmatpush1.msra.mxu0 %v5248
  %9582 = vmatprep.subr.mxu0 %v6607
  %9583 = vmatpush1.msra.mxu0 %v6606
  %9584 = vmatprep.subr.mxu0 %v6511
  %9585 = vmatpush1.msra.mxu0 %v6510
  %9586 = vmatprep.subr.mxu0 %v6415
  %9587 = vmatpush1.msra.mxu0 %v6414
  %9588 = vmatprep.subr.mxu0 0.0
  %9589 = vmatpush2.msra.mxu0 0.0
  %9590 = vmatprep.subr.mxu0 0.0
  %9591 = vmatpush2.msra.mxu0 0.0
  %9592 = vmatprep.subr.mxu0 0.0
  %9593 = vmatpush2.msra.mxu0 0.0
  %9594 = vmatprep.subr.mxu0 0.0
  %9595 = vmatpush2.msra.mxu0 0.0
  %9596 = vmatprep.subr.mxu0 0.0
  %9597 = vmatpush2.msra.mxu0 0.0
  %9598 = vmatprep.subr.mxu0 0.0
  %9599 = vmatpush2.msra.mxu0 0.0
  %9600 = vmatprep.subr.mxu0 0.0
  %9601 = vmatpush2.msra.mxu0 0.0
  %9602 = vmatprep.subr.mxu0 0.0
  %9603 = vmatpush2.msra.mxu0 0.0
  %9604 = vmatprep.subr.mxu0 0.0
  %9605 = vmatpush2.msra.mxu0 0.0
  %9606 = vmatprep.subr.mxu0 0.0
  %9607 = vmatpush2.msra.mxu0 0.0
  %9608 = vmatprep.subr.mxu0 0.0
  %9609 = vmatpush2.msra.mxu0 0.0
  %9610 = vmatprep.subr.mxu0 0.0
  %9611 = vmatpush2.msra.mxu0 0.0
  %9612 = vmatprep.subr.mxu0 0.0
  %9613 = vmatpush2.msra.mxu0 0.0
  %9614 = vmatprep.subr.mxu0 0.0
  %9615 = vmatpush2.msra.mxu0 0.0
  %9616 = vmatprep.subr.mxu0 0.0
  %9617 = vmatpush2.msra.mxu0 0.0
  %9618 = vmatprep.subr.mxu0 0.0
  %9619 = vmatpush2.msra.mxu0 0.0
  %9620 = vmatprep.mubr.f32.mxu0 0.0
  %9621 = vmatmul.mubr.f32.gmra.mxu0 %v8137
  %v9622 = vpop.f32.mrf.mxu0
  %v9623 = vadd.f32 0.0, %v9622
  %v9624 = vpop.f32.mrf.mxu0
  %v9625 = vadd.f32 0.0, %v9624
  %9626 = vmatprep.mubr.f32.mxu0 0.0
  %9627 = vmatmul.mubr.f32.gmra.mxu0 %v8140
  %v9628 = vpop.f32.mrf.mxu0
  %v9629 = vadd.f32 0.0, %v9628
  %v9630 = vpop.f32.mrf.mxu0
  %v9631 = vadd.f32 0.0, %v9630
  %9632 = vmatprep.mubr.f32.mxu0 0.0
  %9633 = vmatmul.mubr.f32.gmra.mxu0 %v8143
  %v9634 = vpop.f32.mrf.mxu0
  %v9635 = vadd.f32 0.0, %v9634
  %v9636 = vpop.f32.mrf.mxu0
  %v9637 = vadd.f32 0.0, %v9636
  %9638 = vdwg.mxu0
  %9639 = vmatprep.subr.mxu0 0.0
  %9640 = vmatpush1.msra.mxu0 0.0
  %9641 = vmatprep.subr.mxu0 0.0
  %9642 = vmatpush1.msra.mxu0 0.0
  %9643 = vmatprep.subr.mxu0 0.0
  %9644 = vmatpush1.msra.mxu0 0.0
  %9645 = vmatprep.subr.mxu0 0.0
  %9646 = vmatpush1.msra.mxu0 0.0
  %9647 = vmatprep.subr.mxu0 0.0
  %9648 = vmatpush1.msra.mxu0 0.0
  %9649 = vmatprep.subr.mxu0 0.0
  %9650 = vmatpush1.msra.mxu0 0.0
  %9651 = vmatprep.subr.mxu0 0.0
  %9652 = vmatpush1.msra.mxu0 0.0
  %9653 = vmatprep.subr.mxu0 %v7779
  %9654 = vmatpush1.msra.mxu0 %v7778
  %9655 = vmatprep.subr.mxu0 %v7683
  %9656 = vmatpush1.msra.mxu0 %v7682
  %9657 = vmatprep.subr.mxu0 %v7587
  %9658 = vmatpush1.msra.mxu0 %v7586
  %9659 = vmatprep.subr.mxu0 %v5447
  %9660 = vmatpush1.msra.mxu0 %v5446
  %9661 = vmatprep.subr.mxu0 %v5349
  %9662 = vmatpush1.msra.mxu0 %v5348
  %9663 = vmatprep.subr.mxu0 %v5251
  %9664 = vmatpush1.msra.mxu0 %v5250
  %9665 = vmatprep.subr.mxu0 %v6609
  %9666 = vmatpush1.msra.mxu0 %v6608
  %9667 = vmatprep.subr.mxu0 %v6513
  %9668 = vmatpush1.msra.mxu0 %v6512
  %9669 = vmatprep.subr.mxu0 %v6417
  %9670 = vmatpush1.msra.mxu0 %v6416
  %9671 = vmatprep.subr.mxu0 0.0
  %9672 = vmatpush2.msra.mxu0 0.0
  %9673 = vmatprep.subr.mxu0 0.0
  %9674 = vmatpush2.msra.mxu0 0.0
  %9675 = vmatprep.subr.mxu0 0.0
  %9676 = vmatpush2.msra.mxu0 0.0
  %9677 = vmatprep.subr.mxu0 0.0
  %9678 = vmatpush2.msra.mxu0 0.0
  %9679 = vmatprep.subr.mxu0 0.0
  %9680 = vmatpush2.msra.mxu0 0.0
  %9681 = vmatprep.subr.mxu0 0.0
  %9682 = vmatpush2.msra.mxu0 0.0
  %9683 = vmatprep.subr.mxu0 0.0
  %9684 = vmatpush2.msra.mxu0 0.0
  %9685 = vmatprep.subr.mxu0 0.0
  %9686 = vmatpush2.msra.mxu0 0.0
  %9687 = vmatprep.subr.mxu0 0.0
  %9688 = vmatpush2.msra.mxu0 0.0
  %9689 = vmatprep.subr.mxu0 0.0
  %9690 = vmatpush2.msra.mxu0 0.0
  %9691 = vmatprep.subr.mxu0 0.0
  %9692 = vmatpush2.msra.mxu0 0.0
  %9693 = vmatprep.subr.mxu0 0.0
  %9694 = vmatpush2.msra.mxu0 0.0
  %9695 = vmatprep.subr.mxu0 0.0
  %9696 = vmatpush2.msra.mxu0 0.0
  %9697 = vmatprep.subr.mxu0 0.0
  %9698 = vmatpush2.msra.mxu0 0.0
  %9699 = vmatprep.subr.mxu0 0.0
  %9700 = vmatpush2.msra.mxu0 0.0
  %9701 = vmatprep.subr.mxu0 0.0
  %9702 = vmatpush2.msra.mxu0 0.0
  %9703 = vmatprep.mubr.f32.mxu0 0.0
  %9704 = vmatmul.mubr.f32.gmra.mxu0 %v8137
  %v9705 = vpop.f32.mrf.mxu0
  %v9706 = vadd.f32 0.0, %v9705
  %v9707 = vpop.f32.mrf.mxu0
  %v9708 = vadd.f32 0.0, %v9707
  %9709 = vmatprep.mubr.f32.mxu0 0.0
  %9710 = vmatmul.mubr.f32.gmra.mxu0 %v8140
  %v9711 = vpop.f32.mrf.mxu0
  %v9712 = vadd.f32 0.0, %v9711
  %v9713 = vpop.f32.mrf.mxu0
  %v9714 = vadd.f32 0.0, %v9713
  %9715 = vmatprep.mubr.f32.mxu0 0.0
  %9716 = vmatmul.mubr.f32.gmra.mxu0 %v8143
  %v9717 = vpop.f32.mrf.mxu0
  %v9718 = vadd.f32 0.0, %v9717
  %v9719 = vpop.f32.mrf.mxu0
  %v9720 = vadd.f32 0.0, %v9719
  %9721 = vdwg.mxu0
  %9722 = vmatprep.subr.mxu0 0.0
  %9723 = vmatpush1.msra.mxu0 0.0
  %9724 = vmatprep.subr.mxu0 0.0
  %9725 = vmatpush1.msra.mxu0 0.0
  %9726 = vmatprep.subr.mxu0 0.0
  %9727 = vmatpush1.msra.mxu0 0.0
  %9728 = vmatprep.subr.mxu0 0.0
  %9729 = vmatpush1.msra.mxu0 0.0
  %9730 = vmatprep.subr.mxu0 0.0
  %9731 = vmatpush1.msra.mxu0 0.0
  %9732 = vmatprep.subr.mxu0 0.0
  %9733 = vmatpush1.msra.mxu0 0.0
  %9734 = vmatprep.subr.mxu0 0.0
  %9735 = vmatpush1.msra.mxu0 0.0
  %9736 = vmatprep.subr.mxu0 %v7781
  %9737 = vmatpush1.msra.mxu0 %v7780
  %9738 = vmatprep.subr.mxu0 %v7685
  %9739 = vmatpush1.msra.mxu0 %v7684
  %9740 = vmatprep.subr.mxu0 %v7589
  %9741 = vmatpush1.msra.mxu0 %v7588
  %9742 = vmatprep.subr.mxu0 %v5449
  %9743 = vmatpush1.msra.mxu0 %v5448
  %9744 = vmatprep.subr.mxu0 %v5351
  %9745 = vmatpush1.msra.mxu0 %v5350
  %9746 = vmatprep.subr.mxu0 %v5253
  %9747 = vmatpush1.msra.mxu0 %v5252
  %9748 = vmatprep.subr.mxu0 %v6611
  %9749 = vmatpush1.msra.mxu0 %v6610
  %9750 = vmatprep.subr.mxu0 %v6515
  %9751 = vmatpush1.msra.mxu0 %v6514
  %9752 = vmatprep.subr.mxu0 %v6419
  %9753 = vmatpush1.msra.mxu0 %v6418
  %9754 = vmatprep.subr.mxu0 0.0
  %9755 = vmatpush2.msra.mxu0 0.0
  %9756 = vmatprep.subr.mxu0 0.0
  %9757 = vmatpush2.msra.mxu0 0.0
  %9758 = vmatprep.subr.mxu0 0.0
  %9759 = vmatpush2.msra.mxu0 0.0
  %9760 = vmatprep.subr.mxu0 0.0
  %9761 = vmatpush2.msra.mxu0 0.0
  %9762 = vmatprep.subr.mxu0 0.0
  %9763 = vmatpush2.msra.mxu0 0.0
  %9764 = vmatprep.subr.mxu0 0.0
  %9765 = vmatpush2.msra.mxu0 0.0
  %9766 = vmatprep.subr.mxu0 0.0
  %9767 = vmatpush2.msra.mxu0 0.0
  %9768 = vmatprep.subr.mxu0 0.0
  %9769 = vmatpush2.msra.mxu0 0.0
  %9770 = vmatprep.subr.mxu0 0.0
  %9771 = vmatpush2.msra.mxu0 0.0
  %9772 = vmatprep.subr.mxu0 0.0
  %9773 = vmatpush2.msra.mxu0 0.0
  %9774 = vmatprep.subr.mxu0 0.0
  %9775 = vmatpush2.msra.mxu0 0.0
  %9776 = vmatprep.subr.mxu0 0.0
  %9777 = vmatpush2.msra.mxu0 0.0
  %9778 = vmatprep.subr.mxu0 0.0
  %9779 = vmatpush2.msra.mxu0 0.0
  %9780 = vmatprep.subr.mxu0 0.0
  %9781 = vmatpush2.msra.mxu0 0.0
  %9782 = vmatprep.subr.mxu0 0.0
  %9783 = vmatpush2.msra.mxu0 0.0
  %9784 = vmatprep.subr.mxu0 0.0
  %9785 = vmatpush2.msra.mxu0 0.0
  %9786 = vmatprep.mubr.f32.mxu0 0.0
  %9787 = vmatmul.mubr.f32.gmra.mxu0 %v8137
  %v9788 = vpop.f32.mrf.mxu0
  %v9789 = vadd.f32 0.0, %v9788
  %v9790 = vpop.f32.mrf.mxu0
  %v9791 = vadd.f32 0.0, %v9790
  %9792 = vmatprep.mubr.f32.mxu0 0.0
  %9793 = vmatmul.mubr.f32.gmra.mxu0 %v8140
  %v9794 = vpop.f32.mrf.mxu0
  %v9795 = vadd.f32 0.0, %v9794
  %v9796 = vpop.f32.mrf.mxu0
  %v9797 = vadd.f32 0.0, %v9796
  %9798 = vmatprep.mubr.f32.mxu0 0.0
  %9799 = vmatmul.mubr.f32.gmra.mxu0 %v8143
  %v9800 = vpop.f32.mrf.mxu0
  %v9801 = vadd.f32 0.0, %v9800
  %v9802 = vpop.f32.mrf.mxu0
  %v9803 = vadd.f32 0.0, %v9802
  %9804 = vdwg.mxu0
  %9805 = vmatprep.subr.mxu0 0.0
  %9806 = vmatpush1.msra.mxu0 0.0
  %9807 = vmatprep.subr.mxu0 0.0
  %9808 = vmatpush1.msra.mxu0 0.0
  %9809 = vmatprep.subr.mxu0 0.0
  %9810 = vmatpush1.msra.mxu0 0.0
  %9811 = vmatprep.subr.mxu0 0.0
  %9812 = vmatpush1.msra.mxu0 0.0
  %9813 = vmatprep.subr.mxu0 0.0
  %9814 = vmatpush1.msra.mxu0 0.0
  %9815 = vmatprep.subr.mxu0 0.0
  %9816 = vmatpush1.msra.mxu0 0.0
  %9817 = vmatprep.subr.mxu0 0.0
  %9818 = vmatpush1.msra.mxu0 0.0
  %9819 = vmatprep.subr.mxu0 %v7783
  %9820 = vmatpush1.msra.mxu0 %v7782
  %9821 = vmatprep.subr.mxu0 %v7687
  %9822 = vmatpush1.msra.mxu0 %v7686
  %9823 = vmatprep.subr.mxu0 %v7591
  %9824 = vmatpush1.msra.mxu0 %v7590
  %9825 = vmatprep.subr.mxu0 %v5451
  %9826 = vmatpush1.msra.mxu0 %v5450
  %9827 = vmatprep.subr.mxu0 %v5353
  %9828 = vmatpush1.msra.mxu0 %v5352
  %9829 = vmatprep.subr.mxu0 %v5255
  %9830 = vmatpush1.msra.mxu0 %v5254
  %9831 = vmatprep.subr.mxu0 %v6613
  %9832 = vmatpush1.msra.mxu0 %v6612
  %9833 = vmatprep.subr.mxu0 %v6517
  %9834 = vmatpush1.msra.mxu0 %v6516
  %9835 = vmatprep.subr.mxu0 %v6421
  %9836 = vmatpush1.msra.mxu0 %v6420
  %9837 = vmatprep.subr.mxu0 0.0
  %9838 = vmatpush2.msra.mxu0 0.0
  %9839 = vmatprep.subr.mxu0 0.0
  %9840 = vmatpush2.msra.mxu0 0.0
  %9841 = vmatprep.subr.mxu0 0.0
  %9842 = vmatpush2.msra.mxu0 0.0
  %9843 = vmatprep.subr.mxu0 0.0
  %9844 = vmatpush2.msra.mxu0 0.0
  %9845 = vmatprep.subr.mxu0 0.0
  %9846 = vmatpush2.msra.mxu0 0.0
  %9847 = vmatprep.subr.mxu0 0.0
  %9848 = vmatpush2.msra.mxu0 0.0
  %9849 = vmatprep.subr.mxu0 0.0
  %9850 = vmatpush2.msra.mxu0 0.0
  %9851 = vmatprep.subr.mxu0 0.0
  %9852 = vmatpush2.msra.mxu0 0.0
  %9853 = vmatprep.subr.mxu0 0.0
  %9854 = vmatpush2.msra.mxu0 0.0
  %9855 = vmatprep.subr.mxu0 0.0
  %9856 = vmatpush2.msra.mxu0 0.0
  %9857 = vmatprep.subr.mxu0 0.0
  %9858 = vmatpush2.msra.mxu0 0.0
  %9859 = vmatprep.subr.mxu0 0.0
  %9860 = vmatpush2.msra.mxu0 0.0
  %9861 = vmatprep.subr.mxu0 0.0
  %9862 = vmatpush2.msra.mxu0 0.0
  %9863 = vmatprep.subr.mxu0 0.0
  %9864 = vmatpush2.msra.mxu0 0.0
  %9865 = vmatprep.subr.mxu0 0.0
  %9866 = vmatpush2.msra.mxu0 0.0
  %9867 = vmatprep.subr.mxu0 0.0
  %9868 = vmatpush2.msra.mxu0 0.0
  %9869 = vmatprep.mubr.f32.mxu0 0.0
  %9870 = vmatmul.mubr.f32.gmra.mxu0 %v8137
  %v9871 = vpop.f32.mrf.mxu0
  %v9872 = vadd.f32 0.0, %v9871
  %v9873 = vpop.f32.mrf.mxu0
  %v9874 = vadd.f32 0.0, %v9873
  %9875 = vmatprep.mubr.f32.mxu0 0.0
  %9876 = vmatmul.mubr.f32.gmra.mxu0 %v8140
  %v9877 = vpop.f32.mrf.mxu0
  %v9878 = vadd.f32 0.0, %v9877
  %v9879 = vpop.f32.mrf.mxu0
  %v9880 = vadd.f32 0.0, %v9879
  %9881 = vmatprep.mubr.f32.mxu0 0.0
  %9882 = vmatmul.mubr.f32.gmra.mxu0 %v8143
  %v9883 = vpop.f32.mrf.mxu0
  %v9884 = vadd.f32 0.0, %v9883
  %v9885 = vpop.f32.mrf.mxu0
  %v9886 = vadd.f32 0.0, %v9885
  %9887 = vdwg.mxu0
  %9888 = vmatprep.subr.mxu0 0.0
  %9889 = vmatpush1.msra.mxu0 0.0
  %9890 = vmatprep.subr.mxu0 0.0
  %9891 = vmatpush1.msra.mxu0 0.0
  %9892 = vmatprep.subr.mxu0 0.0
  %9893 = vmatpush1.msra.mxu0 0.0
  %9894 = vmatprep.subr.mxu0 0.0
  %9895 = vmatpush1.msra.mxu0 0.0
  %9896 = vmatprep.subr.mxu0 0.0
  %9897 = vmatpush1.msra.mxu0 0.0
  %9898 = vmatprep.subr.mxu0 0.0
  %9899 = vmatpush1.msra.mxu0 0.0
  %9900 = vmatprep.subr.mxu0 0.0
  %9901 = vmatpush1.msra.mxu0 0.0
  %9902 = vmatprep.subr.mxu0 %v7785
  %9903 = vmatpush1.msra.mxu0 %v7784
  %9904 = vmatprep.subr.mxu0 %v7689
  %9905 = vmatpush1.msra.mxu0 %v7688
  %9906 = vmatprep.subr.mxu0 %v7593
  %9907 = vmatpush1.msra.mxu0 %v7592
  %9908 = vmatprep.subr.mxu0 %v5453
  %9909 = vmatpush1.msra.mxu0 %v5452
  %9910 = vmatprep.subr.mxu0 %v5355
  %9911 = vmatpush1.msra.mxu0 %v5354
  %9912 = vmatprep.subr.mxu0 %v5257
  %9913 = vmatpush1.msra.mxu0 %v5256
  %9914 = vmatprep.subr.mxu0 %v6615
  %9915 = vmatpush1.msra.mxu0 %v6614
  %9916 = vmatprep.subr.mxu0 %v6519
  %9917 = vmatpush1.msra.mxu0 %v6518
  %9918 = vmatprep.subr.mxu0 %v6423
  %9919 = vmatpush1.msra.mxu0 %v6422
  %9920 = vmatprep.subr.mxu0 0.0
  %9921 = vmatpush2.msra.mxu0 0.0
  %9922 = vmatprep.subr.mxu0 0.0
  %9923 = vmatpush2.msra.mxu0 0.0
  %9924 = vmatprep.subr.mxu0 0.0
  %9925 = vmatpush2.msra.mxu0 0.0
  %9926 = vmatprep.subr.mxu0 0.0
  %9927 = vmatpush2.msra.mxu0 0.0
  %9928 = vmatprep.subr.mxu0 0.0
  %9929 = vmatpush2.msra.mxu0 0.0
  %9930 = vmatprep.subr.mxu0 0.0
  %9931 = vmatpush2.msra.mxu0 0.0
  %9932 = vmatprep.subr.mxu0 0.0
  %9933 = vmatpush2.msra.mxu0 0.0
  %9934 = vmatprep.subr.mxu0 0.0
  %9935 = vmatpush2.msra.mxu0 0.0
  %9936 = vmatprep.subr.mxu0 0.0
  %9937 = vmatpush2.msra.mxu0 0.0
  %9938 = vmatprep.subr.mxu0 0.0
  %9939 = vmatpush2.msra.mxu0 0.0
  %9940 = vmatprep.subr.mxu0 0.0
  %9941 = vmatpush2.msra.mxu0 0.0
  %9942 = vmatprep.subr.mxu0 0.0
  %9943 = vmatpush2.msra.mxu0 0.0
  %9944 = vmatprep.subr.mxu0 0.0
  %9945 = vmatpush2.msra.mxu0 0.0
  %9946 = vmatprep.subr.mxu0 0.0
  %9947 = vmatpush2.msra.mxu0 0.0
  %9948 = vmatprep.subr.mxu0 0.0
  %9949 = vmatpush2.msra.mxu0 0.0
  %9950 = vmatprep.subr.mxu0 0.0
  %9951 = vmatpush2.msra.mxu0 0.0
  %9952 = vmatprep.mubr.f32.mxu0 0.0
  %9953 = vmatmul.mubr.f32.gmra.mxu0 %v8137
  %v9954 = vpop.f32.mrf.mxu0
  %v9955 = vadd.f32 0.0, %v9954
  %v9956 = vpop.f32.mrf.mxu0
  %v9957 = vadd.f32 0.0, %v9956
  %9958 = vmatprep.mubr.f32.mxu0 0.0
  %9959 = vmatmul.mubr.f32.gmra.mxu0 %v8140
  %v9960 = vpop.f32.mrf.mxu0
  %v9961 = vadd.f32 0.0, %v9960
  %v9962 = vpop.f32.mrf.mxu0
  %v9963 = vadd.f32 0.0, %v9962
  %9964 = vmatprep.mubr.f32.mxu0 0.0
  %9965 = vmatmul.mubr.f32.gmra.mxu0 %v8143
  %v9966 = vpop.f32.mrf.mxu0
  %v9967 = vadd.f32 0.0, %v9966
  %v9968 = vpop.f32.mrf.mxu0
  %v9969 = vadd.f32 0.0, %v9968
  %9970 = vdwg.mxu0
  %9971 = vmatprep.subr.mxu0 0.0
  %9972 = vmatpush1.msra.mxu0 0.0
  %9973 = vmatprep.subr.mxu0 0.0
  %9974 = vmatpush1.msra.mxu0 0.0
  %9975 = vmatprep.subr.mxu0 0.0
  %9976 = vmatpush1.msra.mxu0 0.0
  %9977 = vmatprep.subr.mxu0 0.0
  %9978 = vmatpush1.msra.mxu0 0.0
  %9979 = vmatprep.subr.mxu0 0.0
  %9980 = vmatpush1.msra.mxu0 0.0
  %9981 = vmatprep.subr.mxu0 0.0
  %9982 = vmatpush1.msra.mxu0 0.0
  %9983 = vmatprep.subr.mxu0 0.0
  %9984 = vmatpush1.msra.mxu0 0.0
  %9985 = vmatprep.subr.mxu0 %v7787
  %9986 = vmatpush1.msra.mxu0 %v7786
  %9987 = vmatprep.subr.mxu0 %v7691
  %9988 = vmatpush1.msra.mxu0 %v7690
  %9989 = vmatprep.subr.mxu0 %v7595
  %9990 = vmatpush1.msra.mxu0 %v7594
  %9991 = vmatprep.subr.mxu0 %v5455
  %9992 = vmatpush1.msra.mxu0 %v5454
  %9993 = vmatprep.subr.mxu0 %v5357
  %9994 = vmatpush1.msra.mxu0 %v5356
  %9995 = vmatprep.subr.mxu0 %v5259
  %9996 = vmatpush1.msra.mxu0 %v5258
  %9997 = vmatprep.subr.mxu0 %v6617
  %9998 = vmatpush1.msra.mxu0 %v6616
  %9999 = vmatprep.subr.mxu0 %v6521
  %10000 = vmatpush1.msra.mxu0 %v6520
  %10001 = vmatprep.subr.mxu0 %v6425
  %10002 = vmatpush1.msra.mxu0 %v6424
  %10003 = vmatprep.subr.mxu0 0.0
  %10004 = vmatpush2.msra.mxu0 0.0
  %10005 = vmatprep.subr.mxu0 0.0
  %10006 = vmatpush2.msra.mxu0 0.0
  %10007 = vmatprep.subr.mxu0 0.0
  %10008 = vmatpush2.msra.mxu0 0.0
  %10009 = vmatprep.subr.mxu0 0.0
  %10010 = vmatpush2.msra.mxu0 0.0
  %10011 = vmatprep.subr.mxu0 0.0
  %10012 = vmatpush2.msra.mxu0 0.0
  %10013 = vmatprep.subr.mxu0 0.0
  %10014 = vmatpush2.msra.mxu0 0.0
  %10015 = vmatprep.subr.mxu0 0.0
  %10016 = vmatpush2.msra.mxu0 0.0
  %10017 = vmatprep.subr.mxu0 0.0
  %10018 = vmatpush2.msra.mxu0 0.0
  %10019 = vmatprep.subr.mxu0 0.0
  %10020 = vmatpush2.msra.mxu0 0.0
  %10021 = vmatprep.subr.mxu0 0.0
  %10022 = vmatpush2.msra.mxu0 0.0
  %10023 = vmatprep.subr.mxu0 0.0
  %10024 = vmatpush2.msra.mxu0 0.0
  %10025 = vmatprep.subr.mxu0 0.0
  %10026 = vmatpush2.msra.mxu0 0.0
  %10027 = vmatprep.subr.mxu0 0.0
  %10028 = vmatpush2.msra.mxu0 0.0
  %10029 = vmatprep.subr.mxu0 0.0
  %10030 = vmatpush2.msra.mxu0 0.0
  %10031 = vmatprep.subr.mxu0 0.0
  %10032 = vmatpush2.msra.mxu0 0.0
  %10033 = vmatprep.subr.mxu0 0.0
  %10034 = vmatpush2.msra.mxu0 0.0
  %10035 = vmatprep.mubr.f32.mxu0 0.0
  %10036 = vmatmul.mubr.f32.gmra.mxu0 %v8137
  %v10037 = vpop.f32.mrf.mxu0
  %v10038 = vadd.f32 0.0, %v10037
  %v10039 = vpop.f32.mrf.mxu0
  %v10040 = vadd.f32 0.0, %v10039
  %10041 = vmatprep.mubr.f32.mxu0 0.0
  %10042 = vmatmul.mubr.f32.gmra.mxu0 %v8140
  %v10043 = vpop.f32.mrf.mxu0
  %v10044 = vadd.f32 0.0, %v10043
  %v10045 = vpop.f32.mrf.mxu0
  %v10046 = vadd.f32 0.0, %v10045
  %10047 = vmatprep.mubr.f32.mxu0 0.0
  %10048 = vmatmul.mubr.f32.gmra.mxu0 %v8143
  %v10049 = vpop.f32.mrf.mxu0
  %v10050 = vadd.f32 0.0, %v10049
  %v10051 = vpop.f32.mrf.mxu0
  %v10052 = vadd.f32 0.0, %v10051
  %10053 = vdwg.mxu0
  %10054 = vmatprep.subr.mxu0 0.0
  %10055 = vmatpush1.msra.mxu0 0.0
  %10056 = vmatprep.subr.mxu0 0.0
  %10057 = vmatpush1.msra.mxu0 0.0
  %10058 = vmatprep.subr.mxu0 0.0
  %10059 = vmatpush1.msra.mxu0 0.0
  %10060 = vmatprep.subr.mxu0 0.0
  %10061 = vmatpush1.msra.mxu0 0.0
  %10062 = vmatprep.subr.mxu0 0.0
  %10063 = vmatpush1.msra.mxu0 0.0
  %10064 = vmatprep.subr.mxu0 0.0
  %10065 = vmatpush1.msra.mxu0 0.0
  %10066 = vmatprep.subr.mxu0 0.0
  %10067 = vmatpush1.msra.mxu0 0.0
  %10068 = vmatprep.subr.mxu0 %v7789
  %10069 = vmatpush1.msra.mxu0 %v7788
  %10070 = vmatprep.subr.mxu0 %v7693
  %10071 = vmatpush1.msra.mxu0 %v7692
  %10072 = vmatprep.subr.mxu0 %v7597
  %10073 = vmatpush1.msra.mxu0 %v7596
  %10074 = vmatprep.subr.mxu0 %v5457
  %10075 = vmatpush1.msra.mxu0 %v5456
  %10076 = vmatprep.subr.mxu0 %v5359
  %10077 = vmatpush1.msra.mxu0 %v5358
  %10078 = vmatprep.subr.mxu0 %v5261
  %10079 = vmatpush1.msra.mxu0 %v5260
  %10080 = vmatprep.subr.mxu0 %v6619
  %10081 = vmatpush1.msra.mxu0 %v6618
  %10082 = vmatprep.subr.mxu0 %v6523
  %10083 = vmatpush1.msra.mxu0 %v6522
  %10084 = vmatprep.subr.mxu0 %v6427
  %10085 = vmatpush1.msra.mxu0 %v6426
  %10086 = vmatprep.subr.mxu0 0.0
  %10087 = vmatpush2.msra.mxu0 0.0
  %10088 = vmatprep.subr.mxu0 0.0
  %10089 = vmatpush2.msra.mxu0 0.0
  %10090 = vmatprep.subr.mxu0 0.0
  %10091 = vmatpush2.msra.mxu0 0.0
  %10092 = vmatprep.subr.mxu0 0.0
  %10093 = vmatpush2.msra.mxu0 0.0
  %10094 = vmatprep.subr.mxu0 0.0
  %10095 = vmatpush2.msra.mxu0 0.0
  %10096 = vmatprep.subr.mxu0 0.0
  %10097 = vmatpush2.msra.mxu0 0.0
  %10098 = vmatprep.subr.mxu0 0.0
  %10099 = vmatpush2.msra.mxu0 0.0
  %10100 = vmatprep.subr.mxu0 0.0
  %10101 = vmatpush2.msra.mxu0 0.0
  %10102 = vmatprep.subr.mxu0 0.0
  %10103 = vmatpush2.msra.mxu0 0.0
  %10104 = vmatprep.subr.mxu0 0.0
  %10105 = vmatpush2.msra.mxu0 0.0
  %10106 = vmatprep.subr.mxu0 0.0
  %10107 = vmatpush2.msra.mxu0 0.0
  %10108 = vmatprep.subr.mxu0 0.0
  %10109 = vmatpush2.msra.mxu0 0.0
  %10110 = vmatprep.subr.mxu0 0.0
  %10111 = vmatpush2.msra.mxu0 0.0
  %10112 = vmatprep.subr.mxu0 0.0
  %10113 = vmatpush2.msra.mxu0 0.0
  %10114 = vmatprep.subr.mxu0 0.0
  %10115 = vmatpush2.msra.mxu0 0.0
  %10116 = vmatprep.subr.mxu0 0.0
  %10117 = vmatpush2.msra.mxu0 0.0
  %10118 = vmatprep.mubr.f32.mxu0 0.0
  %10119 = vmatmul.mubr.f32.gmra.mxu0 %v8137
  %v10120 = vpop.f32.mrf.mxu0
  %v10121 = vadd.f32 0.0, %v10120
  %v10122 = vpop.f32.mrf.mxu0
  %v10123 = vadd.f32 0.0, %v10122
  %10124 = vmatprep.mubr.f32.mxu0 0.0
  %10125 = vmatmul.mubr.f32.gmra.mxu0 %v8140
  %v10126 = vpop.f32.mrf.mxu0
  %v10127 = vadd.f32 0.0, %v10126
  %v10128 = vpop.f32.mrf.mxu0
  %v10129 = vadd.f32 0.0, %v10128
  %10130 = vmatprep.mubr.f32.mxu0 0.0
  %10131 = vmatmul.mubr.f32.gmra.mxu0 %v8143
  %v10132 = vpop.f32.mrf.mxu0
  %v10133 = vadd.f32 0.0, %v10132
  %v10134 = vpop.f32.mrf.mxu0
  %v10135 = vadd.f32 0.0, %v10134
  %10136 = vdwg.mxu0
  %10137 = vmatprep.subr.mxu0 0.0
  %10138 = vmatpush1.msra.mxu0 0.0
  %10139 = vmatprep.subr.mxu0 0.0
  %10140 = vmatpush1.msra.mxu0 0.0
  %10141 = vmatprep.subr.mxu0 0.0
  %10142 = vmatpush1.msra.mxu0 0.0
  %10143 = vmatprep.subr.mxu0 0.0
  %10144 = vmatpush1.msra.mxu0 0.0
  %10145 = vmatprep.subr.mxu0 0.0
  %10146 = vmatpush1.msra.mxu0 0.0
  %10147 = vmatprep.subr.mxu0 0.0
  %10148 = vmatpush1.msra.mxu0 0.0
  %10149 = vmatprep.subr.mxu0 0.0
  %10150 = vmatpush1.msra.mxu0 0.0
  %10151 = vmatprep.subr.mxu0 %v7791
  %10152 = vmatpush1.msra.mxu0 %v7790
  %10153 = vmatprep.subr.mxu0 %v7695
  %10154 = vmatpush1.msra.mxu0 %v7694
  %10155 = vmatprep.subr.mxu0 %v7599
  %10156 = vmatpush1.msra.mxu0 %v7598
  %10157 = vmatprep.subr.mxu0 %v5459
  %10158 = vmatpush1.msra.mxu0 %v5458
  %10159 = vmatprep.subr.mxu0 %v5361
  %10160 = vmatpush1.msra.mxu0 %v5360
  %10161 = vmatprep.subr.mxu0 %v5263
  %10162 = vmatpush1.msra.mxu0 %v5262
  %10163 = vmatprep.subr.mxu0 %v6621
  %10164 = vmatpush1.msra.mxu0 %v6620
  %10165 = vmatprep.subr.mxu0 %v6525
  %10166 = vmatpush1.msra.mxu0 %v6524
  %10167 = vmatprep.subr.mxu0 %v6429
  %10168 = vmatpush1.msra.mxu0 %v6428
  %10169 = vmatprep.subr.mxu0 0.0
  %10170 = vmatpush2.msra.mxu0 0.0
  %10171 = vmatprep.subr.mxu0 0.0
  %10172 = vmatpush2.msra.mxu0 0.0
  %10173 = vmatprep.subr.mxu0 0.0
  %10174 = vmatpush2.msra.mxu0 0.0
  %10175 = vmatprep.subr.mxu0 0.0
  %10176 = vmatpush2.msra.mxu0 0.0
  %10177 = vmatprep.subr.mxu0 0.0
  %10178 = vmatpush2.msra.mxu0 0.0
  %10179 = vmatprep.subr.mxu0 0.0
  %10180 = vmatpush2.msra.mxu0 0.0
  %10181 = vmatprep.subr.mxu0 0.0
  %10182 = vmatpush2.msra.mxu0 0.0
  %10183 = vmatprep.subr.mxu0 0.0
  %10184 = vmatpush2.msra.mxu0 0.0
  %10185 = vmatprep.subr.mxu0 0.0
  %10186 = vmatpush2.msra.mxu0 0.0
  %10187 = vmatprep.subr.mxu0 0.0
  %10188 = vmatpush2.msra.mxu0 0.0
  %10189 = vmatprep.subr.mxu0 0.0
  %10190 = vmatpush2.msra.mxu0 0.0
  %10191 = vmatprep.subr.mxu0 0.0
  %10192 = vmatpush2.msra.mxu0 0.0
  %10193 = vmatprep.subr.mxu0 0.0
  %10194 = vmatpush2.msra.mxu0 0.0
  %10195 = vmatprep.subr.mxu0 0.0
  %10196 = vmatpush2.msra.mxu0 0.0
  %10197 = vmatprep.subr.mxu0 0.0
  %10198 = vmatpush2.msra.mxu0 0.0
  %10199 = vmatprep.subr.mxu0 0.0
  %10200 = vmatpush2.msra.mxu0 0.0
  %10201 = vmatprep.mubr.f32.mxu0 0.0
  %10202 = vmatmul.mubr.f32.gmra.mxu0 %v8137
  %v10203 = vpop.f32.mrf.mxu0
  %v10204 = vadd.f32 0.0, %v10203
  %v10205 = vpop.f32.mrf.mxu0
  %v10206 = vadd.f32 0.0, %v10205
  %10207 = vmatprep.mubr.f32.mxu0 0.0
  %10208 = vmatmul.mubr.f32.gmra.mxu0 %v8140
  %v10209 = vpop.f32.mrf.mxu0
  %v10210 = vadd.f32 0.0, %v10209
  %v10211 = vpop.f32.mrf.mxu0
  %v10212 = vadd.f32 0.0, %v10211
  %10213 = vmatprep.mubr.f32.mxu0 0.0
  %10214 = vmatmul.mubr.f32.gmra.mxu0 %v8143
  %v10215 = vpop.f32.mrf.mxu0
  %v10216 = vadd.f32 0.0, %v10215
  %v10217 = vpop.f32.mrf.mxu0
  %v10218 = vadd.f32 0.0, %v10217
  %10219 = vdwg.mxu0
  %10220 = vmatprep.subr.mxu0 0.0
  %10221 = vmatpush1.msra.mxu0 0.0
  %10222 = vmatprep.subr.mxu0 0.0
  %10223 = vmatpush1.msra.mxu0 0.0
  %10224 = vmatprep.subr.mxu0 0.0
  %10225 = vmatpush1.msra.mxu0 0.0
  %10226 = vmatprep.subr.mxu0 0.0
  %10227 = vmatpush1.msra.mxu0 0.0
  %10228 = vmatprep.subr.mxu0 0.0
  %10229 = vmatpush1.msra.mxu0 0.0
  %10230 = vmatprep.subr.mxu0 0.0
  %10231 = vmatpush1.msra.mxu0 0.0
  %10232 = vmatprep.subr.mxu0 0.0
  %10233 = vmatpush1.msra.mxu0 0.0
  %10234 = vmatprep.subr.mxu0 %v7793
  %10235 = vmatpush1.msra.mxu0 %v7792
  %10236 = vmatprep.subr.mxu0 %v7697
  %10237 = vmatpush1.msra.mxu0 %v7696
  %10238 = vmatprep.subr.mxu0 %v7601
  %10239 = vmatpush1.msra.mxu0 %v7600
  %10240 = vmatprep.subr.mxu0 %v5461
  %10241 = vmatpush1.msra.mxu0 %v5460
  %10242 = vmatprep.subr.mxu0 %v5363
  %10243 = vmatpush1.msra.mxu0 %v5362
  %10244 = vmatprep.subr.mxu0 %v5265
  %10245 = vmatpush1.msra.mxu0 %v5264
  %10246 = vmatprep.subr.mxu0 %v6623
  %10247 = vmatpush1.msra.mxu0 %v6622
  %10248 = vmatprep.subr.mxu0 %v6527
  %10249 = vmatpush1.msra.mxu0 %v6526
  %10250 = vmatprep.subr.mxu0 %v6431
  %10251 = vmatpush1.msra.mxu0 %v6430
  %10252 = vmatprep.subr.mxu0 0.0
  %10253 = vmatpush2.msra.mxu0 0.0
  %10254 = vmatprep.subr.mxu0 0.0
  %10255 = vmatpush2.msra.mxu0 0.0
  %10256 = vmatprep.subr.mxu0 0.0
  %10257 = vmatpush2.msra.mxu0 0.0
  %10258 = vmatprep.subr.mxu0 0.0
  %10259 = vmatpush2.msra.mxu0 0.0
  %10260 = vmatprep.subr.mxu0 0.0
  %10261 = vmatpush2.msra.mxu0 0.0
  %10262 = vmatprep.subr.mxu0 0.0
  %10263 = vmatpush2.msra.mxu0 0.0
  %10264 = vmatprep.subr.mxu0 0.0
  %10265 = vmatpush2.msra.mxu0 0.0
  %10266 = vmatprep.subr.mxu0 0.0
  %10267 = vmatpush2.msra.mxu0 0.0
  %10268 = vmatprep.subr.mxu0 0.0
  %10269 = vmatpush2.msra.mxu0 0.0
  %10270 = vmatprep.subr.mxu0 0.0
  %10271 = vmatpush2.msra.mxu0 0.0
  %10272 = vmatprep.subr.mxu0 0.0
  %10273 = vmatpush2.msra.mxu0 0.0
  %10274 = vmatprep.subr.mxu0 0.0
  %10275 = vmatpush2.msra.mxu0 0.0
  %10276 = vmatprep.subr.mxu0 0.0
  %10277 = vmatpush2.msra.mxu0 0.0
  %10278 = vmatprep.subr.mxu0 0.0
  %10279 = vmatpush2.msra.mxu0 0.0
  %10280 = vmatprep.subr.mxu0 0.0
  %10281 = vmatpush2.msra.mxu0 0.0
  %10282 = vmatprep.subr.mxu0 0.0
  %10283 = vmatpush2.msra.mxu0 0.0
  %10284 = vmatprep.mubr.f32.mxu0 0.0
  %10285 = vmatmul.mubr.f32.gmra.mxu0 %v8137
  %v10286 = vpop.f32.mrf.mxu0
  %v10287 = vadd.f32 0.0, %v10286
  %v10288 = vpop.f32.mrf.mxu0
  %v10289 = vadd.f32 0.0, %v10288
  %10290 = vmatprep.mubr.f32.mxu0 0.0
  %10291 = vmatmul.mubr.f32.gmra.mxu0 %v8140
  %v10292 = vpop.f32.mrf.mxu0
  %v10293 = vadd.f32 0.0, %v10292
  %v10294 = vpop.f32.mrf.mxu0
  %v10295 = vadd.f32 0.0, %v10294
  %10296 = vmatprep.mubr.f32.mxu0 0.0
  %10297 = vmatmul.mubr.f32.gmra.mxu0 %v8143
  %v10298 = vpop.f32.mrf.mxu0
  %v10299 = vadd.f32 0.0, %v10298
  %v10300 = vpop.f32.mrf.mxu0
  %v10301 = vadd.f32 0.0, %v10300
  %10302 = vdwg.mxu0
  %10303 = vmatprep.subr.mxu0 0.0
  %10304 = vmatpush1.msra.mxu0 0.0
  %10305 = vmatprep.subr.mxu0 0.0
  %10306 = vmatpush1.msra.mxu0 0.0
  %10307 = vmatprep.subr.mxu0 0.0
  %10308 = vmatpush1.msra.mxu0 0.0
  %10309 = vmatprep.subr.mxu0 0.0
  %10310 = vmatpush1.msra.mxu0 0.0
  %10311 = vmatprep.subr.mxu0 0.0
  %10312 = vmatpush1.msra.mxu0 0.0
  %10313 = vmatprep.subr.mxu0 0.0
  %10314 = vmatpush1.msra.mxu0 0.0
  %10315 = vmatprep.subr.mxu0 0.0
  %10316 = vmatpush1.msra.mxu0 0.0
  %10317 = vmatprep.subr.mxu0 %v7795
  %10318 = vmatpush1.msra.mxu0 %v7794
  %10319 = vmatprep.subr.mxu0 %v7699
  %10320 = vmatpush1.msra.mxu0 %v7698
  %10321 = vmatprep.subr.mxu0 %v7603
  %10322 = vmatpush1.msra.mxu0 %v7602
  %10323 = vmatprep.subr.mxu0 %v5463
  %10324 = vmatpush1.msra.mxu0 %v5462
  %10325 = vmatprep.subr.mxu0 %v5365
  %10326 = vmatpush1.msra.mxu0 %v5364
  %10327 = vmatprep.subr.mxu0 %v5267
  %10328 = vmatpush1.msra.mxu0 %v5266
  %10329 = vmatprep.subr.mxu0 %v6625
  %10330 = vmatpush1.msra.mxu0 %v6624
  %10331 = vmatprep.subr.mxu0 %v6529
  %10332 = vmatpush1.msra.mxu0 %v6528
  %10333 = vmatprep.subr.mxu0 %v6433
  %10334 = vmatpush1.msra.mxu0 %v6432
  %10335 = vmatprep.subr.mxu0 0.0
  %10336 = vmatpush2.msra.mxu0 0.0
  %10337 = vmatprep.subr.mxu0 0.0
  %10338 = vmatpush2.msra.mxu0 0.0
  %10339 = vmatprep.subr.mxu0 0.0
  %10340 = vmatpush2.msra.mxu0 0.0
  %10341 = vmatprep.subr.mxu0 0.0
  %10342 = vmatpush2.msra.mxu0 0.0
  %10343 = vmatprep.subr.mxu0 0.0
  %10344 = vmatpush2.msra.mxu0 0.0
  %10345 = vmatprep.subr.mxu0 0.0
  %10346 = vmatpush2.msra.mxu0 0.0
  %10347 = vmatprep.subr.mxu0 0.0
  %10348 = vmatpush2.msra.mxu0 0.0
  %10349 = vmatprep.subr.mxu0 0.0
  %10350 = vmatpush2.msra.mxu0 0.0
  %10351 = vmatprep.subr.mxu0 0.0
  %10352 = vmatpush2.msra.mxu0 0.0
  %10353 = vmatprep.subr.mxu0 0.0
  %10354 = vmatpush2.msra.mxu0 0.0
  %10355 = vmatprep.subr.mxu0 0.0
  %10356 = vmatpush2.msra.mxu0 0.0
  %10357 = vmatprep.subr.mxu0 0.0
  %10358 = vmatpush2.msra.mxu0 0.0
  %10359 = vmatprep.subr.mxu0 0.0
  %10360 = vmatpush2.msra.mxu0 0.0
  %10361 = vmatprep.subr.mxu0 0.0
  %10362 = vmatpush2.msra.mxu0 0.0
  %10363 = vmatprep.subr.mxu0 0.0
  %10364 = vmatpush2.msra.mxu0 0.0
  %10365 = vmatprep.subr.mxu0 0.0
  %10366 = vmatpush2.msra.mxu0 0.0
  %10367 = vmatprep.mubr.f32.mxu0 0.0
  %10368 = vmatmul.mubr.f32.gmra.mxu0 %v8137
  %v10369 = vpop.f32.mrf.mxu0
  %v10370 = vadd.f32 0.0, %v10369
  %v10371 = vpop.f32.mrf.mxu0
  %v10372 = vadd.f32 0.0, %v10371
  %10373 = vmatprep.mubr.f32.mxu0 0.0
  %10374 = vmatmul.mubr.f32.gmra.mxu0 %v8140
  %v10375 = vpop.f32.mrf.mxu0
  %v10376 = vadd.f32 0.0, %v10375
  %v10377 = vpop.f32.mrf.mxu0
  %v10378 = vadd.f32 0.0, %v10377
  %10379 = vmatprep.mubr.f32.mxu0 0.0
  %10380 = vmatmul.mubr.f32.gmra.mxu0 %v8143
  %v10381 = vpop.f32.mrf.mxu0
  %v10382 = vadd.f32 0.0, %v10381
  %v10383 = vpop.f32.mrf.mxu0
  %v10384 = vadd.f32 0.0, %v10383
  %10385 = vdwg.mxu0
  %10386 = vmatprep.subr.mxu0 0.0
  %10387 = vmatpush1.msra.mxu0 0.0
  %10388 = vmatprep.subr.mxu0 0.0
  %10389 = vmatpush1.msra.mxu0 0.0
  %10390 = vmatprep.subr.mxu0 0.0
  %10391 = vmatpush1.msra.mxu0 0.0
  %10392 = vmatprep.subr.mxu0 0.0
  %10393 = vmatpush1.msra.mxu0 0.0
  %10394 = vmatprep.subr.mxu0 0.0
  %10395 = vmatpush1.msra.mxu0 0.0
  %10396 = vmatprep.subr.mxu0 0.0
  %10397 = vmatpush1.msra.mxu0 0.0
  %10398 = vmatprep.subr.mxu0 0.0
  %10399 = vmatpush1.msra.mxu0 0.0
  %10400 = vmatprep.subr.mxu0 %v7797
  %10401 = vmatpush1.msra.mxu0 %v7796
  %10402 = vmatprep.subr.mxu0 %v7701
  %10403 = vmatpush1.msra.mxu0 %v7700
  %10404 = vmatprep.subr.mxu0 %v7605
  %10405 = vmatpush1.msra.mxu0 %v7604
  %10406 = vmatprep.subr.mxu0 %v5465
  %10407 = vmatpush1.msra.mxu0 %v5464
  %10408 = vmatprep.subr.mxu0 %v5367
  %10409 = vmatpush1.msra.mxu0 %v5366
  %10410 = vmatprep.subr.mxu0 %v5269
  %10411 = vmatpush1.msra.mxu0 %v5268
  %10412 = vmatprep.subr.mxu0 %v6627
  %10413 = vmatpush1.msra.mxu0 %v6626
  %10414 = vmatprep.subr.mxu0 %v6531
  %10415 = vmatpush1.msra.mxu0 %v6530
  %10416 = vmatprep.subr.mxu0 %v6435
  %10417 = vmatpush1.msra.mxu0 %v6434
  %10418 = vmatprep.subr.mxu0 0.0
  %10419 = vmatpush2.msra.mxu0 0.0
  %10420 = vmatprep.subr.mxu0 0.0
  %10421 = vmatpush2.msra.mxu0 0.0
  %10422 = vmatprep.subr.mxu0 0.0
  %10423 = vmatpush2.msra.mxu0 0.0
  %10424 = vmatprep.subr.mxu0 0.0
  %10425 = vmatpush2.msra.mxu0 0.0
  %10426 = vmatprep.subr.mxu0 0.0
  %10427 = vmatpush2.msra.mxu0 0.0
  %10428 = vmatprep.subr.mxu0 0.0
  %10429 = vmatpush2.msra.mxu0 0.0
  %10430 = vmatprep.subr.mxu0 0.0
  %10431 = vmatpush2.msra.mxu0 0.0
  %10432 = vmatprep.subr.mxu0 0.0
  %10433 = vmatpush2.msra.mxu0 0.0
  %10434 = vmatprep.subr.mxu0 0.0
  %10435 = vmatpush2.msra.mxu0 0.0
  %10436 = vmatprep.subr.mxu0 0.0
  %10437 = vmatpush2.msra.mxu0 0.0
  %10438 = vmatprep.subr.mxu0 0.0
  %10439 = vmatpush2.msra.mxu0 0.0
  %10440 = vmatprep.subr.mxu0 0.0
  %10441 = vmatpush2.msra.mxu0 0.0
  %10442 = vmatprep.subr.mxu0 0.0
  %10443 = vmatpush2.msra.mxu0 0.0
  %10444 = vmatprep.subr.mxu0 0.0
  %10445 = vmatpush2.msra.mxu0 0.0
  %10446 = vmatprep.subr.mxu0 0.0
  %10447 = vmatpush2.msra.mxu0 0.0
  %10448 = vmatprep.subr.mxu0 0.0
  %10449 = vmatpush2.msra.mxu0 0.0
  %10450 = vmatprep.mubr.f32.mxu0 0.0
  %10451 = vmatmul.mubr.f32.gmra.mxu0 %v8137
  %v10452 = vpop.f32.mrf.mxu0
  %v10453 = vadd.f32 0.0, %v10452
  %v10454 = vpop.f32.mrf.mxu0
  %v10455 = vadd.f32 0.0, %v10454
  %10456 = vmatprep.mubr.f32.mxu0 0.0
  %10457 = vmatmul.mubr.f32.gmra.mxu0 %v8140
  %v10458 = vpop.f32.mrf.mxu0
  %v10459 = vadd.f32 0.0, %v10458
  %v10460 = vpop.f32.mrf.mxu0
  %v10461 = vadd.f32 0.0, %v10460
  %10462 = vmatprep.mubr.f32.mxu0 0.0
  %10463 = vmatmul.mubr.f32.gmra.mxu0 %v8143
  %v10464 = vpop.f32.mrf.mxu0
  %v10465 = vadd.f32 0.0, %v10464
  %v10466 = vpop.f32.mrf.mxu0
  %v10467 = vadd.f32 0.0, %v10466
  %10468 = vdwg.mxu0
  %10469 = vmatprep.subr.mxu0 0.0
  %10470 = vmatpush1.msra.mxu0 0.0
  %10471 = vmatprep.subr.mxu0 0.0
  %10472 = vmatpush1.msra.mxu0 0.0
  %10473 = vmatprep.subr.mxu0 0.0
  %10474 = vmatpush1.msra.mxu0 0.0
  %10475 = vmatprep.subr.mxu0 0.0
  %10476 = vmatpush1.msra.mxu0 0.0
  %10477 = vmatprep.subr.mxu0 0.0
  %10478 = vmatpush1.msra.mxu0 0.0
  %10479 = vmatprep.subr.mxu0 0.0
  %10480 = vmatpush1.msra.mxu0 0.0
  %10481 = vmatprep.subr.mxu0 0.0
  %10482 = vmatpush1.msra.mxu0 0.0
  %10483 = vmatprep.subr.mxu0 %v7799
  %10484 = vmatpush1.msra.mxu0 %v7798
  %10485 = vmatprep.subr.mxu0 %v7703
  %10486 = vmatpush1.msra.mxu0 %v7702
  %10487 = vmatprep.subr.mxu0 %v7607
  %10488 = vmatpush1.msra.mxu0 %v7606
  %10489 = vmatprep.subr.mxu0 %v5467
  %10490 = vmatpush1.msra.mxu0 %v5466
  %10491 = vmatprep.subr.mxu0 %v5369
  %10492 = vmatpush1.msra.mxu0 %v5368
  %10493 = vmatprep.subr.mxu0 %v5271
  %10494 = vmatpush1.msra.mxu0 %v5270
  %10495 = vmatprep.subr.mxu0 %v6629
  %10496 = vmatpush1.msra.mxu0 %v6628
  %10497 = vmatprep.subr.mxu0 %v6533
  %10498 = vmatpush1.msra.mxu0 %v6532
  %10499 = vmatprep.subr.mxu0 %v6437
  %10500 = vmatpush1.msra.mxu0 %v6436
  %10501 = vmatprep.subr.mxu0 0.0
  %10502 = vmatpush2.msra.mxu0 0.0
  %10503 = vmatprep.subr.mxu0 0.0
  %10504 = vmatpush2.msra.mxu0 0.0
  %10505 = vmatprep.subr.mxu0 0.0
  %10506 = vmatpush2.msra.mxu0 0.0
  %10507 = vmatprep.subr.mxu0 0.0
  %10508 = vmatpush2.msra.mxu0 0.0
  %10509 = vmatprep.subr.mxu0 0.0
  %10510 = vmatpush2.msra.mxu0 0.0
  %10511 = vmatprep.subr.mxu0 0.0
  %10512 = vmatpush2.msra.mxu0 0.0
  %10513 = vmatprep.subr.mxu0 0.0
  %10514 = vmatpush2.msra.mxu0 0.0
  %10515 = vmatprep.subr.mxu0 0.0
  %10516 = vmatpush2.msra.mxu0 0.0
  %10517 = vmatprep.subr.mxu0 0.0
  %10518 = vmatpush2.msra.mxu0 0.0
  %10519 = vmatprep.subr.mxu0 0.0
  %10520 = vmatpush2.msra.mxu0 0.0
  %10521 = vmatprep.subr.mxu0 0.0
  %10522 = vmatpush2.msra.mxu0 0.0
  %10523 = vmatprep.subr.mxu0 0.0
  %10524 = vmatpush2.msra.mxu0 0.0
  %10525 = vmatprep.subr.mxu0 0.0
  %10526 = vmatpush2.msra.mxu0 0.0
  %10527 = vmatprep.subr.mxu0 0.0
  %10528 = vmatpush2.msra.mxu0 0.0
  %10529 = vmatprep.subr.mxu0 0.0
  %10530 = vmatpush2.msra.mxu0 0.0
  %10531 = vmatprep.subr.mxu0 0.0
  %10532 = vmatpush2.msra.mxu0 0.0
  %10533 = vmatprep.mubr.f32.mxu0 0.0
  %10534 = vmatmul.mubr.f32.gmra.mxu0 %v8137
  %v10535 = vpop.f32.mrf.mxu0
  %v10536 = vadd.f32 0.0, %v10535
  %v10537 = vpop.f32.mrf.mxu0
  %v10538 = vadd.f32 0.0, %v10537
  %10539 = vmatprep.mubr.f32.mxu0 0.0
  %10540 = vmatmul.mubr.f32.gmra.mxu0 %v8140
  %v10541 = vpop.f32.mrf.mxu0
  %v10542 = vadd.f32 0.0, %v10541
  %v10543 = vpop.f32.mrf.mxu0
  %v10544 = vadd.f32 0.0, %v10543
  %10545 = vmatprep.mubr.f32.mxu0 0.0
  %10546 = vmatmul.mubr.f32.gmra.mxu0 %v8143
  %v10547 = vpop.f32.mrf.mxu0
  %v10548 = vadd.f32 0.0, %v10547
  %v10549 = vpop.f32.mrf.mxu0
  %v10550 = vadd.f32 0.0, %v10549
  %10551 = vdwg.mxu0
  %10552 = vmatprep.subr.mxu0 0.0
  %10553 = vmatpush1.msra.mxu0 0.0
  %10554 = vmatprep.subr.mxu0 0.0
  %10555 = vmatpush1.msra.mxu0 0.0
  %10556 = vmatprep.subr.mxu0 0.0
  %10557 = vmatpush1.msra.mxu0 0.0
  %10558 = vmatprep.subr.mxu0 0.0
  %10559 = vmatpush1.msra.mxu0 0.0
  %10560 = vmatprep.subr.mxu0 0.0
  %10561 = vmatpush1.msra.mxu0 0.0
  %10562 = vmatprep.subr.mxu0 0.0
  %10563 = vmatpush1.msra.mxu0 0.0
  %10564 = vmatprep.subr.mxu0 0.0
  %10565 = vmatpush1.msra.mxu0 0.0
  %10566 = vmatprep.subr.mxu0 %v7801
  %10567 = vmatpush1.msra.mxu0 %v7800
  %10568 = vmatprep.subr.mxu0 %v7705
  %10569 = vmatpush1.msra.mxu0 %v7704
  %10570 = vmatprep.subr.mxu0 %v7609
  %10571 = vmatpush1.msra.mxu0 %v7608
  %10572 = vmatprep.subr.mxu0 %v5469
  %10573 = vmatpush1.msra.mxu0 %v5468
  %10574 = vmatprep.subr.mxu0 %v5371
  %10575 = vmatpush1.msra.mxu0 %v5370
  %10576 = vmatprep.subr.mxu0 %v5273
  %10577 = vmatpush1.msra.mxu0 %v5272
  %10578 = vmatprep.subr.mxu0 %v6631
  %10579 = vmatpush1.msra.mxu0 %v6630
  %10580 = vmatprep.subr.mxu0 %v6535
  %10581 = vmatpush1.msra.mxu0 %v6534
  %10582 = vmatprep.subr.mxu0 %v6439
  %10583 = vmatpush1.msra.mxu0 %v6438
  %10584 = vmatprep.subr.mxu0 0.0
  %10585 = vmatpush2.msra.mxu0 0.0
  %10586 = vmatprep.subr.mxu0 0.0
  %10587 = vmatpush2.msra.mxu0 0.0
  %10588 = vmatprep.subr.mxu0 0.0
  %10589 = vmatpush2.msra.mxu0 0.0
  %10590 = vmatprep.subr.mxu0 0.0
  %10591 = vmatpush2.msra.mxu0 0.0
  %10592 = vmatprep.subr.mxu0 0.0
  %10593 = vmatpush2.msra.mxu0 0.0
  %10594 = vmatprep.subr.mxu0 0.0
  %10595 = vmatpush2.msra.mxu0 0.0
  %10596 = vmatprep.subr.mxu0 0.0
  %10597 = vmatpush2.msra.mxu0 0.0
  %10598 = vmatprep.subr.mxu0 0.0
  %10599 = vmatpush2.msra.mxu0 0.0
  %10600 = vmatprep.subr.mxu0 0.0
  %10601 = vmatpush2.msra.mxu0 0.0
  %10602 = vmatprep.subr.mxu0 0.0
  %10603 = vmatpush2.msra.mxu0 0.0
  %10604 = vmatprep.subr.mxu0 0.0
  %10605 = vmatpush2.msra.mxu0 0.0
  %10606 = vmatprep.subr.mxu0 0.0
  %10607 = vmatpush2.msra.mxu0 0.0
  %10608 = vmatprep.subr.mxu0 0.0
  %10609 = vmatpush2.msra.mxu0 0.0
  %10610 = vmatprep.subr.mxu0 0.0
  %10611 = vmatpush2.msra.mxu0 0.0
  %10612 = vmatprep.subr.mxu0 0.0
  %10613 = vmatpush2.msra.mxu0 0.0
  %10614 = vmatprep.subr.mxu0 0.0
  %10615 = vmatpush2.msra.mxu0 0.0
  %10616 = vmatprep.mubr.f32.mxu0 0.0
  %10617 = vmatmul.mubr.f32.gmra.mxu0 %v8137
  %v10618 = vpop.f32.mrf.mxu0
  %v10619 = vadd.f32 0.0, %v10618
  %v10620 = vpop.f32.mrf.mxu0
  %v10621 = vadd.f32 0.0, %v10620
  %10622 = vmatprep.mubr.f32.mxu0 0.0
  %10623 = vmatmul.mubr.f32.gmra.mxu0 %v8140
  %v10624 = vpop.f32.mrf.mxu0
  %v10625 = vadd.f32 0.0, %v10624
  %v10626 = vpop.f32.mrf.mxu0
  %v10627 = vadd.f32 0.0, %v10626
  %10628 = vmatprep.mubr.f32.mxu0 0.0
  %10629 = vmatmul.mubr.f32.gmra.mxu0 %v8143
  %v10630 = vpop.f32.mrf.mxu0
  %v10631 = vadd.f32 0.0, %v10630
  %v10632 = vpop.f32.mrf.mxu0
  %v10633 = vadd.f32 0.0, %v10632
  %10634 = vdwg.mxu0
  %10635 = vmatprep.subr.mxu0 0.0
  %10636 = vmatpush1.msra.mxu0 0.0
  %10637 = vmatprep.subr.mxu0 0.0
  %10638 = vmatpush1.msra.mxu0 0.0
  %10639 = vmatprep.subr.mxu0 0.0
  %10640 = vmatpush1.msra.mxu0 0.0
  %10641 = vmatprep.subr.mxu0 0.0
  %10642 = vmatpush1.msra.mxu0 0.0
  %10643 = vmatprep.subr.mxu0 0.0
  %10644 = vmatpush1.msra.mxu0 0.0
  %10645 = vmatprep.subr.mxu0 0.0
  %10646 = vmatpush1.msra.mxu0 0.0
  %10647 = vmatprep.subr.mxu0 0.0
  %10648 = vmatpush1.msra.mxu0 0.0
  %10649 = vmatprep.subr.mxu0 %v7803
  %10650 = vmatpush1.msra.mxu0 %v7802
  %10651 = vmatprep.subr.mxu0 %v7707
  %10652 = vmatpush1.msra.mxu0 %v7706
  %10653 = vmatprep.subr.mxu0 %v7611
  %10654 = vmatpush1.msra.mxu0 %v7610
  %10655 = vmatprep.subr.mxu0 %v5471
  %10656 = vmatpush1.msra.mxu0 %v5470
  %10657 = vmatprep.subr.mxu0 %v5373
  %10658 = vmatpush1.msra.mxu0 %v5372
  %10659 = vmatprep.subr.mxu0 %v5275
  %10660 = vmatpush1.msra.mxu0 %v5274
  %10661 = vmatprep.subr.mxu0 %v6633
  %10662 = vmatpush1.msra.mxu0 %v6632
  %10663 = vmatprep.subr.mxu0 %v6537
  %10664 = vmatpush1.msra.mxu0 %v6536
  %10665 = vmatprep.subr.mxu0 %v6441
  %10666 = vmatpush1.msra.mxu0 %v6440
  %10667 = vmatprep.subr.mxu0 0.0
  %10668 = vmatpush2.msra.mxu0 0.0
  %10669 = vmatprep.subr.mxu0 0.0
  %10670 = vmatpush2.msra.mxu0 0.0
  %10671 = vmatprep.subr.mxu0 0.0
  %10672 = vmatpush2.msra.mxu0 0.0
  %10673 = vmatprep.subr.mxu0 0.0
  %10674 = vmatpush2.msra.mxu0 0.0
  %10675 = vmatprep.subr.mxu0 0.0
  %10676 = vmatpush2.msra.mxu0 0.0
  %10677 = vmatprep.subr.mxu0 0.0
  %10678 = vmatpush2.msra.mxu0 0.0
  %10679 = vmatprep.subr.mxu0 0.0
  %10680 = vmatpush2.msra.mxu0 0.0
  %10681 = vmatprep.subr.mxu0 0.0
  %10682 = vmatpush2.msra.mxu0 0.0
  %10683 = vmatprep.subr.mxu0 0.0
  %10684 = vmatpush2.msra.mxu0 0.0
  %10685 = vmatprep.subr.mxu0 0.0
  %10686 = vmatpush2.msra.mxu0 0.0
  %10687 = vmatprep.subr.mxu0 0.0
  %10688 = vmatpush2.msra.mxu0 0.0
  %10689 = vmatprep.subr.mxu0 0.0
  %10690 = vmatpush2.msra.mxu0 0.0
  %10691 = vmatprep.subr.mxu0 0.0
  %10692 = vmatpush2.msra.mxu0 0.0
  %10693 = vmatprep.subr.mxu0 0.0
  %10694 = vmatpush2.msra.mxu0 0.0
  %10695 = vmatprep.subr.mxu0 0.0
  %10696 = vmatpush2.msra.mxu0 0.0
  %10697 = vmatprep.subr.mxu0 0.0
  %10698 = vmatpush2.msra.mxu0 0.0
  %10699 = vmatprep.mubr.f32.mxu0 0.0
  %10700 = vmatmul.mubr.f32.gmra.mxu0 %v8137
  %v10701 = vpop.f32.mrf.mxu0
  %v10702 = vadd.f32 0.0, %v10701
  %v10703 = vpop.f32.mrf.mxu0
  %v10704 = vadd.f32 0.0, %v10703
  %10705 = vmatprep.mubr.f32.mxu0 0.0
  %10706 = vmatmul.mubr.f32.gmra.mxu0 %v8140
  %v10707 = vpop.f32.mrf.mxu0
  %v10708 = vadd.f32 0.0, %v10707
  %v10709 = vpop.f32.mrf.mxu0
  %v10710 = vadd.f32 0.0, %v10709
  %10711 = vmatprep.mubr.f32.mxu0 0.0
  %10712 = vmatmul.mubr.f32.gmra.mxu0 %v8143
  %v10713 = vpop.f32.mrf.mxu0
  %v10714 = vadd.f32 0.0, %v10713
  %v10715 = vpop.f32.mrf.mxu0
  %v10716 = vadd.f32 0.0, %v10715
  %10717 = vdwg.mxu0
  %10718 = vmatprep.subr.mxu0 0.0
  %10719 = vmatpush1.msra.mxu0 0.0
  %10720 = vmatprep.subr.mxu0 0.0
  %10721 = vmatpush1.msra.mxu0 0.0
  %10722 = vmatprep.subr.mxu0 0.0
  %10723 = vmatpush1.msra.mxu0 0.0
  %10724 = vmatprep.subr.mxu0 0.0
  %10725 = vmatpush1.msra.mxu0 0.0
  %10726 = vmatprep.subr.mxu0 0.0
  %10727 = vmatpush1.msra.mxu0 0.0
  %10728 = vmatprep.subr.mxu0 0.0
  %10729 = vmatpush1.msra.mxu0 0.0
  %10730 = vmatprep.subr.mxu0 0.0
  %10731 = vmatpush1.msra.mxu0 0.0
  %10732 = vmatprep.subr.mxu0 %v7805
  %10733 = vmatpush1.msra.mxu0 %v7804
  %10734 = vmatprep.subr.mxu0 %v7709
  %10735 = vmatpush1.msra.mxu0 %v7708
  %10736 = vmatprep.subr.mxu0 %v7613
  %10737 = vmatpush1.msra.mxu0 %v7612
  %10738 = vmatprep.subr.mxu0 %v5473
  %10739 = vmatpush1.msra.mxu0 %v5472
  %10740 = vmatprep.subr.mxu0 %v5375
  %10741 = vmatpush1.msra.mxu0 %v5374
  %10742 = vmatprep.subr.mxu0 %v5277
  %10743 = vmatpush1.msra.mxu0 %v5276
  %10744 = vmatprep.subr.mxu0 %v6635
  %10745 = vmatpush1.msra.mxu0 %v6634
  %10746 = vmatprep.subr.mxu0 %v6539
  %10747 = vmatpush1.msra.mxu0 %v6538
  %10748 = vmatprep.subr.mxu0 %v6443
  %10749 = vmatpush1.msra.mxu0 %v6442
  %10750 = vmatprep.subr.mxu0 0.0
  %10751 = vmatpush2.msra.mxu0 0.0
  %10752 = vmatprep.subr.mxu0 0.0
  %10753 = vmatpush2.msra.mxu0 0.0
  %10754 = vmatprep.subr.mxu0 0.0
  %10755 = vmatpush2.msra.mxu0 0.0
  %10756 = vmatprep.subr.mxu0 0.0
  %10757 = vmatpush2.msra.mxu0 0.0
  %10758 = vmatprep.subr.mxu0 0.0
  %10759 = vmatpush2.msra.mxu0 0.0
  %10760 = vmatprep.subr.mxu0 0.0
  %10761 = vmatpush2.msra.mxu0 0.0
  %10762 = vmatprep.subr.mxu0 0.0
  %10763 = vmatpush2.msra.mxu0 0.0
  %10764 = vmatprep.subr.mxu0 0.0
  %10765 = vmatpush2.msra.mxu0 0.0
  %10766 = vmatprep.subr.mxu0 0.0
  %10767 = vmatpush2.msra.mxu0 0.0
  %10768 = vmatprep.subr.mxu0 0.0
  %10769 = vmatpush2.msra.mxu0 0.0
  %10770 = vmatprep.subr.mxu0 0.0
  %10771 = vmatpush2.msra.mxu0 0.0
  %10772 = vmatprep.subr.mxu0 0.0
  %10773 = vmatpush2.msra.mxu0 0.0
  %10774 = vmatprep.subr.mxu0 0.0
  %10775 = vmatpush2.msra.mxu0 0.0
  %10776 = vmatprep.subr.mxu0 0.0
  %10777 = vmatpush2.msra.mxu0 0.0
  %10778 = vmatprep.subr.mxu0 0.0
  %10779 = vmatpush2.msra.mxu0 0.0
  %10780 = vmatprep.subr.mxu0 0.0
  %10781 = vmatpush2.msra.mxu0 0.0
  %10782 = vmatprep.mubr.f32.mxu0 0.0
  %10783 = vmatmul.mubr.f32.gmra.mxu0 %v8137
  %v10784 = vpop.f32.mrf.mxu0
  %v10785 = vadd.f32 0.0, %v10784
  %v10786 = vpop.f32.mrf.mxu0
  %v10787 = vadd.f32 0.0, %v10786
  %10788 = vmatprep.mubr.f32.mxu0 0.0
  %10789 = vmatmul.mubr.f32.gmra.mxu0 %v8140
  %v10790 = vpop.f32.mrf.mxu0
  %v10791 = vadd.f32 0.0, %v10790
  %v10792 = vpop.f32.mrf.mxu0
  %v10793 = vadd.f32 0.0, %v10792
  %10794 = vmatprep.mubr.f32.mxu0 0.0
  %10795 = vmatmul.mubr.f32.gmra.mxu0 %v8143
  %v10796 = vpop.f32.mrf.mxu0
  %v10797 = vadd.f32 0.0, %v10796
  %v10798 = vpop.f32.mrf.mxu0
  %v10799 = vadd.f32 0.0, %v10798
  %10800 = vdwg.mxu0
  %10801 = vmatprep.subr.mxu0 0.0
  %10802 = vmatpush1.msra.mxu0 0.0
  %10803 = vmatprep.subr.mxu0 0.0
  %10804 = vmatpush1.msra.mxu0 0.0
  %10805 = vmatprep.subr.mxu0 0.0
  %10806 = vmatpush1.msra.mxu0 0.0
  %10807 = vmatprep.subr.mxu0 0.0
  %10808 = vmatpush1.msra.mxu0 0.0
  %10809 = vmatprep.subr.mxu0 0.0
  %10810 = vmatpush1.msra.mxu0 0.0
  %10811 = vmatprep.subr.mxu0 0.0
  %10812 = vmatpush1.msra.mxu0 0.0
  %10813 = vmatprep.subr.mxu0 0.0
  %10814 = vmatpush1.msra.mxu0 0.0
  %10815 = vmatprep.subr.mxu0 %v7807
  %10816 = vmatpush1.msra.mxu0 %v7806
  %10817 = vmatprep.subr.mxu0 %v7711
  %10818 = vmatpush1.msra.mxu0 %v7710
  %10819 = vmatprep.subr.mxu0 %v7615
  %10820 = vmatpush1.msra.mxu0 %v7614
  %10821 = vmatprep.subr.mxu0 %v5475
  %10822 = vmatpush1.msra.mxu0 %v5474
  %10823 = vmatprep.subr.mxu0 %v5377
  %10824 = vmatpush1.msra.mxu0 %v5376
  %10825 = vmatprep.subr.mxu0 %v5279
  %10826 = vmatpush1.msra.mxu0 %v5278
  %10827 = vmatprep.subr.mxu0 %v6637
  %10828 = vmatpush1.msra.mxu0 %v6636
  %10829 = vmatprep.subr.mxu0 %v6541
  %10830 = vmatpush1.msra.mxu0 %v6540
  %10831 = vmatprep.subr.mxu0 %v6445
  %10832 = vmatpush1.msra.mxu0 %v6444
  %10833 = vmatprep.subr.mxu0 0.0
  %10834 = vmatpush2.msra.mxu0 0.0
  %10835 = vmatprep.subr.mxu0 0.0
  %10836 = vmatpush2.msra.mxu0 0.0
  %10837 = vmatprep.subr.mxu0 0.0
  %10838 = vmatpush2.msra.mxu0 0.0
  %10839 = vmatprep.subr.mxu0 0.0
  %10840 = vmatpush2.msra.mxu0 0.0
  %10841 = vmatprep.subr.mxu0 0.0
  %10842 = vmatpush2.msra.mxu0 0.0
  %10843 = vmatprep.subr.mxu0 0.0
  %10844 = vmatpush2.msra.mxu0 0.0
  %10845 = vmatprep.subr.mxu0 0.0
  %10846 = vmatpush2.msra.mxu0 0.0
  %10847 = vmatprep.subr.mxu0 0.0
  %10848 = vmatpush2.msra.mxu0 0.0
  %10849 = vmatprep.subr.mxu0 0.0
  %10850 = vmatpush2.msra.mxu0 0.0
  %10851 = vmatprep.subr.mxu0 0.0
  %10852 = vmatpush2.msra.mxu0 0.0
  %10853 = vmatprep.subr.mxu0 0.0
  %10854 = vmatpush2.msra.mxu0 0.0
  %10855 = vmatprep.subr.mxu0 0.0
  %10856 = vmatpush2.msra.mxu0 0.0
  %10857 = vmatprep.subr.mxu0 0.0
  %10858 = vmatpush2.msra.mxu0 0.0
  %10859 = vmatprep.subr.mxu0 0.0
  %10860 = vmatpush2.msra.mxu0 0.0
  %10861 = vmatprep.subr.mxu0 0.0
  %10862 = vmatpush2.msra.mxu0 0.0
  %10863 = vmatprep.subr.mxu0 0.0
  %10864 = vmatpush2.msra.mxu0 0.0
  %10865 = vmatprep.mubr.f32.mxu0 0.0
  %10866 = vmatmul.mubr.f32.gmra.mxu0 %v8137
  %v10867 = vpop.f32.mrf.mxu0
  %v10868 = vadd.f32 0.0, %v10867
  %v10869 = vpop.f32.mrf.mxu0
  %v10870 = vadd.f32 0.0, %v10869
  %10871 = vmatprep.mubr.f32.mxu0 0.0
  %10872 = vmatmul.mubr.f32.gmra.mxu0 %v8140
  %v10873 = vpop.f32.mrf.mxu0
  %v10874 = vadd.f32 0.0, %v10873
  %v10875 = vpop.f32.mrf.mxu0
  %v10876 = vadd.f32 0.0, %v10875
  %10877 = vmatprep.mubr.f32.mxu0 0.0
  %10878 = vmatmul.mubr.f32.gmra.mxu0 %v8143
  %v10879 = vpop.f32.mrf.mxu0
  %v10880 = vadd.f32 0.0, %v10879
  %v10881 = vpop.f32.mrf.mxu0
  %v10882 = vadd.f32 0.0, %v10881
  %10883 = vdwg.mxu0
  %10884 = vmatprep.subr.mxu0 0.0
  %10885 = vmatpush1.msra.mxu0 0.0
  %10886 = vmatprep.subr.mxu0 0.0
  %10887 = vmatpush1.msra.mxu0 0.0
  %10888 = vmatprep.subr.mxu0 0.0
  %10889 = vmatpush1.msra.mxu0 0.0
  %10890 = vmatprep.subr.mxu0 0.0
  %10891 = vmatpush1.msra.mxu0 0.0
  %10892 = vmatprep.subr.mxu0 0.0
  %10893 = vmatpush1.msra.mxu0 0.0
  %10894 = vmatprep.subr.mxu0 0.0
  %10895 = vmatpush1.msra.mxu0 0.0
  %10896 = vmatprep.subr.mxu0 0.0
  %10897 = vmatpush1.msra.mxu0 0.0
  %10898 = vmatprep.subr.mxu0 %v7809
  %10899 = vmatpush1.msra.mxu0 %v7808
  %10900 = vmatprep.subr.mxu0 %v7713
  %10901 = vmatpush1.msra.mxu0 %v7712
  %10902 = vmatprep.subr.mxu0 %v7617
  %10903 = vmatpush1.msra.mxu0 %v7616
  %10904 = vmatprep.subr.mxu0 %v5477
  %10905 = vmatpush1.msra.mxu0 %v5476
  %10906 = vmatprep.subr.mxu0 %v5379
  %10907 = vmatpush1.msra.mxu0 %v5378
  %10908 = vmatprep.subr.mxu0 %v5281
  %10909 = vmatpush1.msra.mxu0 %v5280
  %10910 = vmatprep.subr.mxu0 %v6639
  %10911 = vmatpush1.msra.mxu0 %v6638
  %10912 = vmatprep.subr.mxu0 %v6543
  %10913 = vmatpush1.msra.mxu0 %v6542
  %10914 = vmatprep.subr.mxu0 %v6447
  %10915 = vmatpush1.msra.mxu0 %v6446
  %10916 = vmatprep.subr.mxu0 0.0
  %10917 = vmatpush2.msra.mxu0 0.0
  %10918 = vmatprep.subr.mxu0 0.0
  %10919 = vmatpush2.msra.mxu0 0.0
  %10920 = vmatprep.subr.mxu0 0.0
  %10921 = vmatpush2.msra.mxu0 0.0
  %10922 = vmatprep.subr.mxu0 0.0
  %10923 = vmatpush2.msra.mxu0 0.0
  %10924 = vmatprep.subr.mxu0 0.0
  %10925 = vmatpush2.msra.mxu0 0.0
  %10926 = vmatprep.subr.mxu0 0.0
  %10927 = vmatpush2.msra.mxu0 0.0
  %10928 = vmatprep.subr.mxu0 0.0
  %10929 = vmatpush2.msra.mxu0 0.0
  %10930 = vmatprep.subr.mxu0 0.0
  %10931 = vmatpush2.msra.mxu0 0.0
  %10932 = vmatprep.subr.mxu0 0.0
  %10933 = vmatpush2.msra.mxu0 0.0
  %10934 = vmatprep.subr.mxu0 0.0
  %10935 = vmatpush2.msra.mxu0 0.0
  %10936 = vmatprep.subr.mxu0 0.0
  %10937 = vmatpush2.msra.mxu0 0.0
  %10938 = vmatprep.subr.mxu0 0.0
  %10939 = vmatpush2.msra.mxu0 0.0
  %10940 = vmatprep.subr.mxu0 0.0
  %10941 = vmatpush2.msra.mxu0 0.0
  %10942 = vmatprep.subr.mxu0 0.0
  %10943 = vmatpush2.msra.mxu0 0.0
  %10944 = vmatprep.subr.mxu0 0.0
  %10945 = vmatpush2.msra.mxu0 0.0
  %10946 = vmatprep.subr.mxu0 0.0
  %10947 = vmatpush2.msra.mxu0 0.0
  %10948 = vmatprep.mubr.f32.mxu0 0.0
  %10949 = vmatmul.mubr.f32.gmra.mxu0 %v8137
  %v10950 = vpop.f32.mrf.mxu0
  %v10951 = vadd.f32 0.0, %v10950
  %v10952 = vpop.f32.mrf.mxu0
  %v10953 = vadd.f32 0.0, %v10952
  %10954 = vmatprep.mubr.f32.mxu0 0.0
  %10955 = vmatmul.mubr.f32.gmra.mxu0 %v8140
  %v10956 = vpop.f32.mrf.mxu0
  %v10957 = vadd.f32 0.0, %v10956
  %v10958 = vpop.f32.mrf.mxu0
  %v10959 = vadd.f32 0.0, %v10958
  %10960 = vmatprep.mubr.f32.mxu0 0.0
  %10961 = vmatmul.mubr.f32.gmra.mxu0 %v8143
  %v10962 = vpop.f32.mrf.mxu0
  %v10963 = vadd.f32 0.0, %v10962
  %v10964 = vpop.f32.mrf.mxu0
  %v10965 = vadd.f32 0.0, %v10964
  %10966 = vdwg.mxu0
  %10967 = vmatprep.subr.mxu0 0.0
  %10968 = vmatpush1.msra.mxu0 0.0
  %10969 = vmatprep.subr.mxu0 0.0
  %10970 = vmatpush1.msra.mxu0 0.0
  %10971 = vmatprep.subr.mxu0 0.0
  %10972 = vmatpush1.msra.mxu0 0.0
  %10973 = vmatprep.subr.mxu0 0.0
  %10974 = vmatpush1.msra.mxu0 0.0
  %10975 = vmatprep.subr.mxu0 0.0
  %10976 = vmatpush1.msra.mxu0 0.0
  %10977 = vmatprep.subr.mxu0 0.0
  %10978 = vmatpush1.msra.mxu0 0.0
  %10979 = vmatprep.subr.mxu0 0.0
  %10980 = vmatpush1.msra.mxu0 0.0
  %10981 = vmatprep.subr.mxu0 %v7811
  %10982 = vmatpush1.msra.mxu0 %v7810
  %10983 = vmatprep.subr.mxu0 %v7715
  %10984 = vmatpush1.msra.mxu0 %v7714
  %10985 = vmatprep.subr.mxu0 %v7619
  %10986 = vmatpush1.msra.mxu0 %v7618
  %10987 = vmatprep.subr.mxu0 %v5479
  %10988 = vmatpush1.msra.mxu0 %v5478
  %10989 = vmatprep.subr.mxu0 %v5381
  %10990 = vmatpush1.msra.mxu0 %v5380
  %10991 = vmatprep.subr.mxu0 %v5283
  %10992 = vmatpush1.msra.mxu0 %v5282
  %10993 = vmatprep.subr.mxu0 %v6641
  %10994 = vmatpush1.msra.mxu0 %v6640
  %10995 = vmatprep.subr.mxu0 %v6545
  %10996 = vmatpush1.msra.mxu0 %v6544
  %10997 = vmatprep.subr.mxu0 %v6449
  %10998 = vmatpush1.msra.mxu0 %v6448
  %10999 = vmatprep.subr.mxu0 0.0
  %11000 = vmatpush2.msra.mxu0 0.0
  %11001 = vmatprep.subr.mxu0 0.0
  %11002 = vmatpush2.msra.mxu0 0.0
  %11003 = vmatprep.subr.mxu0 0.0
  %11004 = vmatpush2.msra.mxu0 0.0
  %11005 = vmatprep.subr.mxu0 0.0
  %11006 = vmatpush2.msra.mxu0 0.0
  %11007 = vmatprep.subr.mxu0 0.0
  %11008 = vmatpush2.msra.mxu0 0.0
  %11009 = vmatprep.subr.mxu0 0.0
  %11010 = vmatpush2.msra.mxu0 0.0
  %11011 = vmatprep.subr.mxu0 0.0
  %11012 = vmatpush2.msra.mxu0 0.0
  %11013 = vmatprep.subr.mxu0 0.0
  %11014 = vmatpush2.msra.mxu0 0.0
  %11015 = vmatprep.subr.mxu0 0.0
  %11016 = vmatpush2.msra.mxu0 0.0
  %11017 = vmatprep.subr.mxu0 0.0
  %11018 = vmatpush2.msra.mxu0 0.0
  %11019 = vmatprep.subr.mxu0 0.0
  %11020 = vmatpush2.msra.mxu0 0.0
  %11021 = vmatprep.subr.mxu0 0.0
  %11022 = vmatpush2.msra.mxu0 0.0
  %11023 = vmatprep.subr.mxu0 0.0
  %11024 = vmatpush2.msra.mxu0 0.0
  %11025 = vmatprep.subr.mxu0 0.0
  %11026 = vmatpush2.msra.mxu0 0.0
  %11027 = vmatprep.subr.mxu0 0.0
  %11028 = vmatpush2.msra.mxu0 0.0
  %11029 = vmatprep.subr.mxu0 0.0
  %11030 = vmatpush2.msra.mxu0 0.0
  %11031 = vmatprep.mubr.f32.mxu0 0.0
  %11032 = vmatmul.mubr.f32.gmra.mxu0 %v8137
  %v11033 = vpop.f32.mrf.mxu0
  %v11034 = vadd.f32 0.0, %v11033
  %v11035 = vpop.f32.mrf.mxu0
  %v11036 = vadd.f32 0.0, %v11035
  %11037 = vmatprep.mubr.f32.mxu0 0.0
  %11038 = vmatmul.mubr.f32.gmra.mxu0 %v8140
  %v11039 = vpop.f32.mrf.mxu0
  %v11040 = vadd.f32 0.0, %v11039
  %v11041 = vpop.f32.mrf.mxu0
  %v11042 = vadd.f32 0.0, %v11041
  %11043 = vmatprep.mubr.f32.mxu0 0.0
  %11044 = vmatmul.mubr.f32.gmra.mxu0 %v8143
  %v11045 = vpop.f32.mrf.mxu0
  %v11046 = vadd.f32 0.0, %v11045
  %v11047 = vpop.f32.mrf.mxu0
  %v11048 = vadd.f32 0.0, %v11047
  %11049 = vdwg.mxu0
  %11050 = vmatprep.subr.mxu0 0.0
  %11051 = vmatpush1.msra.mxu0 0.0
  %11052 = vmatprep.subr.mxu0 0.0
  %11053 = vmatpush1.msra.mxu0 0.0
  %11054 = vmatprep.subr.mxu0 0.0
  %11055 = vmatpush1.msra.mxu0 0.0
  %11056 = vmatprep.subr.mxu0 0.0
  %11057 = vmatpush1.msra.mxu0 0.0
  %11058 = vmatprep.subr.mxu0 0.0
  %11059 = vmatpush1.msra.mxu0 0.0
  %11060 = vmatprep.subr.mxu0 0.0
  %11061 = vmatpush1.msra.mxu0 0.0
  %11062 = vmatprep.subr.mxu0 0.0
  %11063 = vmatpush1.msra.mxu0 0.0
  %11064 = vmatprep.subr.mxu0 %v7813
  %11065 = vmatpush1.msra.mxu0 %v7812
  %11066 = vmatprep.subr.mxu0 %v7717
  %11067 = vmatpush1.msra.mxu0 %v7716
  %11068 = vmatprep.subr.mxu0 %v7621
  %11069 = vmatpush1.msra.mxu0 %v7620
  %11070 = vmatprep.subr.mxu0 %v5481
  %11071 = vmatpush1.msra.mxu0 %v5480
  %11072 = vmatprep.subr.mxu0 %v5383
  %11073 = vmatpush1.msra.mxu0 %v5382
  %11074 = vmatprep.subr.mxu0 %v5285
  %11075 = vmatpush1.msra.mxu0 %v5284
  %11076 = vmatprep.subr.mxu0 %v6643
  %11077 = vmatpush1.msra.mxu0 %v6642
  %11078 = vmatprep.subr.mxu0 %v6547
  %11079 = vmatpush1.msra.mxu0 %v6546
  %11080 = vmatprep.subr.mxu0 %v6451
  %11081 = vmatpush1.msra.mxu0 %v6450
  %11082 = vmatprep.subr.mxu0 0.0
  %11083 = vmatpush2.msra.mxu0 0.0
  %11084 = vmatprep.subr.mxu0 0.0
  %11085 = vmatpush2.msra.mxu0 0.0
  %11086 = vmatprep.subr.mxu0 0.0
  %11087 = vmatpush2.msra.mxu0 0.0
  %11088 = vmatprep.subr.mxu0 0.0
  %11089 = vmatpush2.msra.mxu0 0.0
  %11090 = vmatprep.subr.mxu0 0.0
  %11091 = vmatpush2.msra.mxu0 0.0
  %11092 = vmatprep.subr.mxu0 0.0
  %11093 = vmatpush2.msra.mxu0 0.0
  %11094 = vmatprep.subr.mxu0 0.0
  %11095 = vmatpush2.msra.mxu0 0.0
  %11096 = vmatprep.subr.mxu0 0.0
  %11097 = vmatpush2.msra.mxu0 0.0
  %11098 = vmatprep.subr.mxu0 0.0
  %11099 = vmatpush2.msra.mxu0 0.0
  %11100 = vmatprep.subr.mxu0 0.0
  %11101 = vmatpush2.msra.mxu0 0.0
  %11102 = vmatprep.subr.mxu0 0.0
  %11103 = vmatpush2.msra.mxu0 0.0
  %11104 = vmatprep.subr.mxu0 0.0
  %11105 = vmatpush2.msra.mxu0 0.0
  %11106 = vmatprep.subr.mxu0 0.0
  %11107 = vmatpush2.msra.mxu0 0.0
  %11108 = vmatprep.subr.mxu0 0.0
  %11109 = vmatpush2.msra.mxu0 0.0
  %11110 = vmatprep.subr.mxu0 0.0
  %11111 = vmatpush2.msra.mxu0 0.0
  %11112 = vmatprep.subr.mxu0 0.0
  %11113 = vmatpush2.msra.mxu0 0.0
  %11114 = vmatprep.mubr.f32.mxu0 0.0
  %11115 = vmatmul.mubr.f32.gmra.mxu0 %v8137
  %v11116 = vpop.f32.mrf.mxu0
  %v11117 = vadd.f32 0.0, %v11116
  %v11118 = vpop.f32.mrf.mxu0
  %v11119 = vadd.f32 0.0, %v11118
  %11120 = vmatprep.mubr.f32.mxu0 0.0
  %11121 = vmatmul.mubr.f32.gmra.mxu0 %v8140
  %v11122 = vpop.f32.mrf.mxu0
  %v11123 = vadd.f32 0.0, %v11122
  %v11124 = vpop.f32.mrf.mxu0
  %v11125 = vadd.f32 0.0, %v11124
  %11126 = vmatprep.mubr.f32.mxu0 0.0
  %11127 = vmatmul.mubr.f32.gmra.mxu0 %v8143
  %v11128 = vpop.f32.mrf.mxu0
  %v11129 = vadd.f32 0.0, %v11128
  %v11130 = vpop.f32.mrf.mxu0
  %v11131 = vadd.f32 0.0, %v11130
  %11132 = vdwg.mxu0
  %11133 = vmatprep.subr.mxu0 0.0
  %11134 = vmatpush1.msra.mxu0 0.0
  %11135 = vmatprep.subr.mxu0 0.0
  %11136 = vmatpush1.msra.mxu0 0.0
  %11137 = vmatprep.subr.mxu0 0.0
  %11138 = vmatpush1.msra.mxu0 0.0
  %11139 = vmatprep.subr.mxu0 0.0
  %11140 = vmatpush1.msra.mxu0 0.0
  %11141 = vmatprep.subr.mxu0 0.0
  %11142 = vmatpush1.msra.mxu0 0.0
  %11143 = vmatprep.subr.mxu0 0.0
  %11144 = vmatpush1.msra.mxu0 0.0
  %11145 = vmatprep.subr.mxu0 0.0
  %11146 = vmatpush1.msra.mxu0 0.0
  %11147 = vmatprep.subr.mxu0 %v7815
  %11148 = vmatpush1.msra.mxu0 %v7814
  %11149 = vmatprep.subr.mxu0 %v7719
  %11150 = vmatpush1.msra.mxu0 %v7718
  %11151 = vmatprep.subr.mxu0 %v7623
  %11152 = vmatpush1.msra.mxu0 %v7622
  %11153 = vmatprep.subr.mxu0 %v5483
  %11154 = vmatpush1.msra.mxu0 %v5482
  %11155 = vmatprep.subr.mxu0 %v5385
  %11156 = vmatpush1.msra.mxu0 %v5384
  %11157 = vmatprep.subr.mxu0 %v5287
  %11158 = vmatpush1.msra.mxu0 %v5286
  %11159 = vmatprep.subr.mxu0 %v6645
  %11160 = vmatpush1.msra.mxu0 %v6644
  %11161 = vmatprep.subr.mxu0 %v6549
  %11162 = vmatpush1.msra.mxu0 %v6548
  %11163 = vmatprep.subr.mxu0 %v6453
  %11164 = vmatpush1.msra.mxu0 %v6452
  %11165 = vmatprep.subr.mxu0 0.0
  %11166 = vmatpush2.msra.mxu0 0.0
  %11167 = vmatprep.subr.mxu0 0.0
  %11168 = vmatpush2.msra.mxu0 0.0
  %11169 = vmatprep.subr.mxu0 0.0
  %11170 = vmatpush2.msra.mxu0 0.0
  %11171 = vmatprep.subr.mxu0 0.0
  %11172 = vmatpush2.msra.mxu0 0.0
  %11173 = vmatprep.subr.mxu0 0.0
  %11174 = vmatpush2.msra.mxu0 0.0
  %11175 = vmatprep.subr.mxu0 0.0
  %11176 = vmatpush2.msra.mxu0 0.0
  %11177 = vmatprep.subr.mxu0 0.0
  %11178 = vmatpush2.msra.mxu0 0.0
  %11179 = vmatprep.subr.mxu0 0.0
  %11180 = vmatpush2.msra.mxu0 0.0
  %11181 = vmatprep.subr.mxu0 0.0
  %11182 = vmatpush2.msra.mxu0 0.0
  %11183 = vmatprep.subr.mxu0 0.0
  %11184 = vmatpush2.msra.mxu0 0.0
  %11185 = vmatprep.subr.mxu0 0.0
  %11186 = vmatpush2.msra.mxu0 0.0
  %11187 = vmatprep.subr.mxu0 0.0
  %11188 = vmatpush2.msra.mxu0 0.0
  %11189 = vmatprep.subr.mxu0 0.0
  %11190 = vmatpush2.msra.mxu0 0.0
  %11191 = vmatprep.subr.mxu0 0.0
  %11192 = vmatpush2.msra.mxu0 0.0
  %11193 = vmatprep.subr.mxu0 0.0
  %11194 = vmatpush2.msra.mxu0 0.0
  %11195 = vmatprep.subr.mxu0 0.0
  %11196 = vmatpush2.msra.mxu0 0.0
  %11197 = vmatprep.mubr.f32.mxu0 0.0
  %11198 = vmatmul.mubr.f32.gmra.mxu0 %v8137
  %v11199 = vpop.f32.mrf.mxu0
  %v11200 = vadd.f32 0.0, %v11199
  %v11201 = vpop.f32.mrf.mxu0
  %v11202 = vadd.f32 0.0, %v11201
  %11203 = vmatprep.mubr.f32.mxu0 0.0
  %11204 = vmatmul.mubr.f32.gmra.mxu0 %v8140
  %v11205 = vpop.f32.mrf.mxu0
  %v11206 = vadd.f32 0.0, %v11205
  %v11207 = vpop.f32.mrf.mxu0
  %v11208 = vadd.f32 0.0, %v11207
  %11209 = vmatprep.mubr.f32.mxu0 0.0
  %11210 = vmatmul.mubr.f32.gmra.mxu0 %v8143
  %v11211 = vpop.f32.mrf.mxu0
  %v11212 = vadd.f32 0.0, %v11211
  %v11213 = vpop.f32.mrf.mxu0
  %v11214 = vadd.f32 0.0, %v11213
  %11215 = vdwg.mxu0
  %11216 = vmatprep.subr.mxu0 0.0
  %11217 = vmatpush1.msra.mxu0 0.0
  %11218 = vmatprep.subr.mxu0 0.0
  %11219 = vmatpush1.msra.mxu0 0.0
  %11220 = vmatprep.subr.mxu0 0.0
  %11221 = vmatpush1.msra.mxu0 0.0
  %11222 = vmatprep.subr.mxu0 0.0
  %11223 = vmatpush1.msra.mxu0 0.0
  %11224 = vmatprep.subr.mxu0 0.0
  %11225 = vmatpush1.msra.mxu0 0.0
  %11226 = vmatprep.subr.mxu0 0.0
  %11227 = vmatpush1.msra.mxu0 0.0
  %11228 = vmatprep.subr.mxu0 0.0
  %11229 = vmatpush1.msra.mxu0 0.0
  %11230 = vmatprep.subr.mxu0 %v7817
  %11231 = vmatpush1.msra.mxu0 %v7816
  %11232 = vmatprep.subr.mxu0 %v7721
  %11233 = vmatpush1.msra.mxu0 %v7720
  %11234 = vmatprep.subr.mxu0 %v7625
  %11235 = vmatpush1.msra.mxu0 %v7624
  %11236 = vmatprep.subr.mxu0 %v5485
  %11237 = vmatpush1.msra.mxu0 %v5484
  %11238 = vmatprep.subr.mxu0 %v5387
  %11239 = vmatpush1.msra.mxu0 %v5386
  %11240 = vmatprep.subr.mxu0 %v5289
  %11241 = vmatpush1.msra.mxu0 %v5288
  %11242 = vmatprep.subr.mxu0 %v6647
  %11243 = vmatpush1.msra.mxu0 %v6646
  %11244 = vmatprep.subr.mxu0 %v6551
  %11245 = vmatpush1.msra.mxu0 %v6550
  %11246 = vmatprep.subr.mxu0 %v6455
  %11247 = vmatpush1.msra.mxu0 %v6454
  %11248 = vmatprep.subr.mxu0 0.0
  %11249 = vmatpush2.msra.mxu0 0.0
  %11250 = vmatprep.subr.mxu0 0.0
  %11251 = vmatpush2.msra.mxu0 0.0
  %11252 = vmatprep.subr.mxu0 0.0
  %11253 = vmatpush2.msra.mxu0 0.0
  %11254 = vmatprep.subr.mxu0 0.0
  %11255 = vmatpush2.msra.mxu0 0.0
  %11256 = vmatprep.subr.mxu0 0.0
  %11257 = vmatpush2.msra.mxu0 0.0
  %11258 = vmatprep.subr.mxu0 0.0
  %11259 = vmatpush2.msra.mxu0 0.0
  %11260 = vmatprep.subr.mxu0 0.0
  %11261 = vmatpush2.msra.mxu0 0.0
  %11262 = vmatprep.subr.mxu0 0.0
  %11263 = vmatpush2.msra.mxu0 0.0
  %11264 = vmatprep.subr.mxu0 0.0
  %11265 = vmatpush2.msra.mxu0 0.0
  %11266 = vmatprep.subr.mxu0 0.0
  %11267 = vmatpush2.msra.mxu0 0.0
  %11268 = vmatprep.subr.mxu0 0.0
  %11269 = vmatpush2.msra.mxu0 0.0
  %11270 = vmatprep.subr.mxu0 0.0
  %11271 = vmatpush2.msra.mxu0 0.0
  %11272 = vmatprep.subr.mxu0 0.0
  %11273 = vmatpush2.msra.mxu0 0.0
  %11274 = vmatprep.subr.mxu0 0.0
  %11275 = vmatpush2.msra.mxu0 0.0
  %11276 = vmatprep.subr.mxu0 0.0
  %11277 = vmatpush2.msra.mxu0 0.0
  %11278 = vmatprep.subr.mxu0 0.0
  %11279 = vmatpush2.msra.mxu0 0.0
  %11280 = vmatprep.mubr.f32.mxu0 0.0
  %11281 = vmatmul.mubr.f32.gmra.mxu0 %v8137
  %v11282 = vpop.f32.mrf.mxu0
  %v11283 = vadd.f32 0.0, %v11282
  %v11284 = vpop.f32.mrf.mxu0
  %v11285 = vadd.f32 0.0, %v11284
  %11286 = vmatprep.mubr.f32.mxu0 0.0
  %11287 = vmatmul.mubr.f32.gmra.mxu0 %v8140
  %v11288 = vpop.f32.mrf.mxu0
  %v11289 = vadd.f32 0.0, %v11288
  %v11290 = vpop.f32.mrf.mxu0
  %v11291 = vadd.f32 0.0, %v11290
  %11292 = vmatprep.mubr.f32.mxu0 0.0
  %11293 = vmatmul.mubr.f32.gmra.mxu0 %v8143
  %v11294 = vpop.f32.mrf.mxu0
  %v11295 = vadd.f32 0.0, %v11294
  %v11296 = vpop.f32.mrf.mxu0
  %v11297 = vadd.f32 0.0, %v11296
  %11298 = vdwg.mxu0
  %11299 = vmatprep.subr.mxu0 0.0
  %11300 = vmatpush1.msra.mxu0 0.0
  %11301 = vmatprep.subr.mxu0 0.0
  %11302 = vmatpush1.msra.mxu0 0.0
  %11303 = vmatprep.subr.mxu0 0.0
  %11304 = vmatpush1.msra.mxu0 0.0
  %11305 = vmatprep.subr.mxu0 0.0
  %11306 = vmatpush1.msra.mxu0 0.0
  %11307 = vmatprep.subr.mxu0 0.0
  %11308 = vmatpush1.msra.mxu0 0.0
  %11309 = vmatprep.subr.mxu0 0.0
  %11310 = vmatpush1.msra.mxu0 0.0
  %11311 = vmatprep.subr.mxu0 0.0
  %11312 = vmatpush1.msra.mxu0 0.0
  %11313 = vmatprep.subr.mxu0 %v7819
  %11314 = vmatpush1.msra.mxu0 %v7818
  %11315 = vmatprep.subr.mxu0 %v7723
  %11316 = vmatpush1.msra.mxu0 %v7722
  %11317 = vmatprep.subr.mxu0 %v7627
  %11318 = vmatpush1.msra.mxu0 %v7626
  %11319 = vmatprep.subr.mxu0 %v5487
  %11320 = vmatpush1.msra.mxu0 %v5486
  %11321 = vmatprep.subr.mxu0 %v5389
  %11322 = vmatpush1.msra.mxu0 %v5388
  %11323 = vmatprep.subr.mxu0 %v5291
  %11324 = vmatpush1.msra.mxu0 %v5290
  %11325 = vmatprep.subr.mxu0 %v6649
  %11326 = vmatpush1.msra.mxu0 %v6648
  %11327 = vmatprep.subr.mxu0 %v6553
  %11328 = vmatpush1.msra.mxu0 %v6552
  %11329 = vmatprep.subr.mxu0 %v6457
  %11330 = vmatpush1.msra.mxu0 %v6456
  %11331 = vmatprep.subr.mxu0 0.0
  %11332 = vmatpush2.msra.mxu0 0.0
  %11333 = vmatprep.subr.mxu0 0.0
  %11334 = vmatpush2.msra.mxu0 0.0
  %11335 = vmatprep.subr.mxu0 0.0
  %11336 = vmatpush2.msra.mxu0 0.0
  %11337 = vmatprep.subr.mxu0 0.0
  %11338 = vmatpush2.msra.mxu0 0.0
  %11339 = vmatprep.subr.mxu0 0.0
  %11340 = vmatpush2.msra.mxu0 0.0
  %11341 = vmatprep.subr.mxu0 0.0
  %11342 = vmatpush2.msra.mxu0 0.0
  %11343 = vmatprep.subr.mxu0 0.0
  %11344 = vmatpush2.msra.mxu0 0.0
  %11345 = vmatprep.subr.mxu0 0.0
  %11346 = vmatpush2.msra.mxu0 0.0
  %11347 = vmatprep.subr.mxu0 0.0
  %11348 = vmatpush2.msra.mxu0 0.0
  %11349 = vmatprep.subr.mxu0 0.0
  %11350 = vmatpush2.msra.mxu0 0.0
  %11351 = vmatprep.subr.mxu0 0.0
  %11352 = vmatpush2.msra.mxu0 0.0
  %11353 = vmatprep.subr.mxu0 0.0
  %11354 = vmatpush2.msra.mxu0 0.0
  %11355 = vmatprep.subr.mxu0 0.0
  %11356 = vmatpush2.msra.mxu0 0.0
  %11357 = vmatprep.subr.mxu0 0.0
  %11358 = vmatpush2.msra.mxu0 0.0
  %11359 = vmatprep.subr.mxu0 0.0
  %11360 = vmatpush2.msra.mxu0 0.0
  %11361 = vmatprep.subr.mxu0 0.0
  %11362 = vmatpush2.msra.mxu0 0.0
  %11363 = vmatprep.mubr.f32.mxu0 0.0
  %11364 = vmatmul.mubr.f32.gmra.mxu0 %v8137
  %v11365 = vpop.f32.mrf.mxu0
  %v11366 = vadd.f32 0.0, %v11365
  %v11367 = vpop.f32.mrf.mxu0
  %v11368 = vadd.f32 0.0, %v11367
  %11369 = vmatprep.mubr.f32.mxu0 0.0
  %11370 = vmatmul.mubr.f32.gmra.mxu0 %v8140
  %v11371 = vpop.f32.mrf.mxu0
  %v11372 = vadd.f32 0.0, %v11371
  %v11373 = vpop.f32.mrf.mxu0
  %v11374 = vadd.f32 0.0, %v11373
  %11375 = vmatprep.mubr.f32.mxu0 0.0
  %11376 = vmatmul.mubr.f32.gmra.mxu0 %v8143
  %v11377 = vpop.f32.mrf.mxu0
  %v11378 = vadd.f32 0.0, %v11377
  %v11379 = vpop.f32.mrf.mxu0
  %v11380 = vadd.f32 0.0, %v11379
  %11381 = vdwg.mxu0
  %11382 = vmatprep.subr.mxu0 0.0
  %11383 = vmatpush1.msra.mxu0 0.0
  %11384 = vmatprep.subr.mxu0 0.0
  %11385 = vmatpush1.msra.mxu0 0.0
  %11386 = vmatprep.subr.mxu0 0.0
  %11387 = vmatpush1.msra.mxu0 0.0
  %11388 = vmatprep.subr.mxu0 0.0
  %11389 = vmatpush1.msra.mxu0 0.0
  %11390 = vmatprep.subr.mxu0 0.0
  %11391 = vmatpush1.msra.mxu0 0.0
  %11392 = vmatprep.subr.mxu0 0.0
  %11393 = vmatpush1.msra.mxu0 0.0
  %11394 = vmatprep.subr.mxu0 0.0
  %11395 = vmatpush1.msra.mxu0 0.0
  %11396 = vmatprep.subr.mxu0 %v7821
  %11397 = vmatpush1.msra.mxu0 %v7820
  %11398 = vmatprep.subr.mxu0 %v7725
  %11399 = vmatpush1.msra.mxu0 %v7724
  %11400 = vmatprep.subr.mxu0 %v7629
  %11401 = vmatpush1.msra.mxu0 %v7628
  %11402 = vmatprep.subr.mxu0 %v5489
  %11403 = vmatpush1.msra.mxu0 %v5488
  %11404 = vmatprep.subr.mxu0 %v5391
  %11405 = vmatpush1.msra.mxu0 %v5390
  %11406 = vmatprep.subr.mxu0 %v5293
  %11407 = vmatpush1.msra.mxu0 %v5292
  %11408 = vmatprep.subr.mxu0 %v6651
  %11409 = vmatpush1.msra.mxu0 %v6650
  %11410 = vmatprep.subr.mxu0 %v6555
  %11411 = vmatpush1.msra.mxu0 %v6554
  %11412 = vmatprep.subr.mxu0 %v6459
  %11413 = vmatpush1.msra.mxu0 %v6458
  %11414 = vmatprep.subr.mxu0 0.0
  %11415 = vmatpush2.msra.mxu0 0.0
  %11416 = vmatprep.subr.mxu0 0.0
  %11417 = vmatpush2.msra.mxu0 0.0
  %11418 = vmatprep.subr.mxu0 0.0
  %11419 = vmatpush2.msra.mxu0 0.0
  %11420 = vmatprep.subr.mxu0 0.0
  %11421 = vmatpush2.msra.mxu0 0.0
  %11422 = vmatprep.subr.mxu0 0.0
  %11423 = vmatpush2.msra.mxu0 0.0
  %11424 = vmatprep.subr.mxu0 0.0
  %11425 = vmatpush2.msra.mxu0 0.0
  %11426 = vmatprep.subr.mxu0 0.0
  %11427 = vmatpush2.msra.mxu0 0.0
  %11428 = vmatprep.subr.mxu0 0.0
  %11429 = vmatpush2.msra.mxu0 0.0
  %11430 = vmatprep.subr.mxu0 0.0
  %11431 = vmatpush2.msra.mxu0 0.0
  %11432 = vmatprep.subr.mxu0 0.0
  %11433 = vmatpush2.msra.mxu0 0.0
  %11434 = vmatprep.subr.mxu0 0.0
  %11435 = vmatpush2.msra.mxu0 0.0
  %11436 = vmatprep.subr.mxu0 0.0
  %11437 = vmatpush2.msra.mxu0 0.0
  %11438 = vmatprep.subr.mxu0 0.0
  %11439 = vmatpush2.msra.mxu0 0.0
  %11440 = vmatprep.subr.mxu0 0.0
  %11441 = vmatpush2.msra.mxu0 0.0
  %11442 = vmatprep.subr.mxu0 0.0
  %11443 = vmatpush2.msra.mxu0 0.0
  %11444 = vmatprep.subr.mxu0 0.0
  %11445 = vmatpush2.msra.mxu0 0.0
  %11446 = vmatprep.mubr.f32.mxu0 0.0
  %11447 = vmatmul.mubr.f32.gmra.mxu0 %v8137
  %v11448 = vpop.f32.mrf.mxu0
  %v11449 = vadd.f32 0.0, %v11448
  %v11450 = vpop.f32.mrf.mxu0
  %v11451 = vadd.f32 0.0, %v11450
  %11452 = vmatprep.mubr.f32.mxu0 0.0
  %11453 = vmatmul.mubr.f32.gmra.mxu0 %v8140
  %v11454 = vpop.f32.mrf.mxu0
  %v11455 = vadd.f32 0.0, %v11454
  %v11456 = vpop.f32.mrf.mxu0
  %v11457 = vadd.f32 0.0, %v11456
  %11458 = vmatprep.mubr.f32.mxu0 0.0
  %11459 = vmatmul.mubr.f32.gmra.mxu0 %v8143
  %v11460 = vpop.f32.mrf.mxu0
  %v11461 = vadd.f32 0.0, %v11460
  %v11462 = vpop.f32.mrf.mxu0
  %v11463 = vadd.f32 0.0, %v11462
  %11464 = vdwg.mxu0
  %11465 = vmatprep.subr.mxu0 0.0
  %11466 = vmatpush1.msra.mxu0 0.0
  %11467 = vmatprep.subr.mxu0 0.0
  %11468 = vmatpush1.msra.mxu0 0.0
  %11469 = vmatprep.subr.mxu0 0.0
  %11470 = vmatpush1.msra.mxu0 0.0
  %11471 = vmatprep.subr.mxu0 0.0
  %11472 = vmatpush1.msra.mxu0 0.0
  %11473 = vmatprep.subr.mxu0 0.0
  %11474 = vmatpush1.msra.mxu0 0.0
  %11475 = vmatprep.subr.mxu0 0.0
  %11476 = vmatpush1.msra.mxu0 0.0
  %11477 = vmatprep.subr.mxu0 0.0
  %11478 = vmatpush1.msra.mxu0 0.0
  %11479 = vmatprep.subr.mxu0 %v7823
  %11480 = vmatpush1.msra.mxu0 %v7822
  %11481 = vmatprep.subr.mxu0 %v7727
  %11482 = vmatpush1.msra.mxu0 %v7726
  %11483 = vmatprep.subr.mxu0 %v7631
  %11484 = vmatpush1.msra.mxu0 %v7630
  %11485 = vmatprep.subr.mxu0 %v5491
  %11486 = vmatpush1.msra.mxu0 %v5490
  %11487 = vmatprep.subr.mxu0 %v5393
  %11488 = vmatpush1.msra.mxu0 %v5392
  %11489 = vmatprep.subr.mxu0 %v5295
  %11490 = vmatpush1.msra.mxu0 %v5294
  %11491 = vmatprep.subr.mxu0 %v6653
  %11492 = vmatpush1.msra.mxu0 %v6652
  %11493 = vmatprep.subr.mxu0 %v6557
  %11494 = vmatpush1.msra.mxu0 %v6556
  %11495 = vmatprep.subr.mxu0 %v6461
  %11496 = vmatpush1.msra.mxu0 %v6460
  %11497 = vmatprep.subr.mxu0 0.0
  %11498 = vmatpush2.msra.mxu0 0.0
  %11499 = vmatprep.subr.mxu0 0.0
  %11500 = vmatpush2.msra.mxu0 0.0
  %11501 = vmatprep.subr.mxu0 0.0
  %11502 = vmatpush2.msra.mxu0 0.0
  %11503 = vmatprep.subr.mxu0 0.0
  %11504 = vmatpush2.msra.mxu0 0.0
  %11505 = vmatprep.subr.mxu0 0.0
  %11506 = vmatpush2.msra.mxu0 0.0
  %11507 = vmatprep.subr.mxu0 0.0
  %11508 = vmatpush2.msra.mxu0 0.0
  %11509 = vmatprep.subr.mxu0 0.0
  %11510 = vmatpush2.msra.mxu0 0.0
  %11511 = vmatprep.subr.mxu0 0.0
  %11512 = vmatpush2.msra.mxu0 0.0
  %11513 = vmatprep.subr.mxu0 0.0
  %11514 = vmatpush2.msra.mxu0 0.0
  %11515 = vmatprep.subr.mxu0 0.0
  %11516 = vmatpush2.msra.mxu0 0.0
  %11517 = vmatprep.subr.mxu0 0.0
  %11518 = vmatpush2.msra.mxu0 0.0
  %11519 = vmatprep.subr.mxu0 0.0
  %11520 = vmatpush2.msra.mxu0 0.0
  %11521 = vmatprep.subr.mxu0 0.0
  %11522 = vmatpush2.msra.mxu0 0.0
  %11523 = vmatprep.subr.mxu0 0.0
  %11524 = vmatpush2.msra.mxu0 0.0
  %11525 = vmatprep.subr.mxu0 0.0
  %11526 = vmatpush2.msra.mxu0 0.0
  %11527 = vmatprep.subr.mxu0 0.0
  %11528 = vmatpush2.msra.mxu0 0.0
  %11529 = vmatprep.mubr.f32.mxu0 0.0
  %11530 = vmatmul.mubr.f32.gmra.mxu0 %v8137
  %v11531 = vpop.f32.mrf.mxu0
  %v11532 = vadd.f32 0.0, %v11531
  %v11533 = vpop.f32.mrf.mxu0
  %v11534 = vadd.f32 0.0, %v11533
  %11535 = vmatprep.mubr.f32.mxu0 0.0
  %11536 = vmatmul.mubr.f32.gmra.mxu0 %v8140
  %v11537 = vpop.f32.mrf.mxu0
  %v11538 = vadd.f32 0.0, %v11537
  %v11539 = vpop.f32.mrf.mxu0
  %v11540 = vadd.f32 0.0, %v11539
  %11541 = vmatprep.mubr.f32.mxu0 0.0
  %11542 = vmatmul.mubr.f32.gmra.mxu0 %v8143
  %v11543 = vpop.f32.mrf.mxu0
  %v11544 = vadd.f32 0.0, %v11543
  %v11545 = vpop.f32.mrf.mxu0
  %v11546 = vadd.f32 0.0, %v11545
  %11547 = vdwg.mxu0
  %11548 = vmatprep.subr.mxu0 0.0
  %11549 = vmatpush1.msra.mxu0 0.0
  %11550 = vmatprep.subr.mxu0 0.0
  %11551 = vmatpush1.msra.mxu0 0.0
  %11552 = vmatprep.subr.mxu0 0.0
  %11553 = vmatpush1.msra.mxu0 0.0
  %11554 = vmatprep.subr.mxu0 0.0
  %11555 = vmatpush1.msra.mxu0 0.0
  %11556 = vmatprep.subr.mxu0 0.0
  %11557 = vmatpush1.msra.mxu0 0.0
  %11558 = vmatprep.subr.mxu0 0.0
  %11559 = vmatpush1.msra.mxu0 0.0
  %11560 = vmatprep.subr.mxu0 0.0
  %11561 = vmatpush1.msra.mxu0 0.0
  %11562 = vmatprep.subr.mxu0 %v7825
  %11563 = vmatpush1.msra.mxu0 %v7824
  %11564 = vmatprep.subr.mxu0 %v7729
  %11565 = vmatpush1.msra.mxu0 %v7728
  %11566 = vmatprep.subr.mxu0 %v7633
  %11567 = vmatpush1.msra.mxu0 %v7632
  %11568 = vmatprep.subr.mxu0 %v5493
  %11569 = vmatpush1.msra.mxu0 %v5492
  %11570 = vmatprep.subr.mxu0 %v5395
  %11571 = vmatpush1.msra.mxu0 %v5394
  %11572 = vmatprep.subr.mxu0 %v5297
  %11573 = vmatpush1.msra.mxu0 %v5296
  %11574 = vmatprep.subr.mxu0 %v6655
  %11575 = vmatpush1.msra.mxu0 %v6654
  %11576 = vmatprep.subr.mxu0 %v6559
  %11577 = vmatpush1.msra.mxu0 %v6558
  %11578 = vmatprep.subr.mxu0 %v6463
  %11579 = vmatpush1.msra.mxu0 %v6462
  %11580 = vmatprep.subr.mxu0 0.0
  %11581 = vmatpush2.msra.mxu0 0.0
  %11582 = vmatprep.subr.mxu0 0.0
  %11583 = vmatpush2.msra.mxu0 0.0
  %11584 = vmatprep.subr.mxu0 0.0
  %11585 = vmatpush2.msra.mxu0 0.0
  %11586 = vmatprep.subr.mxu0 0.0
  %11587 = vmatpush2.msra.mxu0 0.0
  %11588 = vmatprep.subr.mxu0 0.0
  %11589 = vmatpush2.msra.mxu0 0.0
  %11590 = vmatprep.subr.mxu0 0.0
  %11591 = vmatpush2.msra.mxu0 0.0
  %11592 = vmatprep.subr.mxu0 0.0
  %11593 = vmatpush2.msra.mxu0 0.0
  %11594 = vmatprep.subr.mxu0 0.0
  %11595 = vmatpush2.msra.mxu0 0.0
  %11596 = vmatprep.subr.mxu0 0.0
  %11597 = vmatpush2.msra.mxu0 0.0
  %11598 = vmatprep.subr.mxu0 0.0
  %11599 = vmatpush2.msra.mxu0 0.0
  %11600 = vmatprep.subr.mxu0 0.0
  %11601 = vmatpush2.msra.mxu0 0.0
  %11602 = vmatprep.subr.mxu0 0.0
  %11603 = vmatpush2.msra.mxu0 0.0
  %11604 = vmatprep.subr.mxu0 0.0
  %11605 = vmatpush2.msra.mxu0 0.0
  %11606 = vmatprep.subr.mxu0 0.0
  %11607 = vmatpush2.msra.mxu0 0.0
  %11608 = vmatprep.subr.mxu0 0.0
  %11609 = vmatpush2.msra.mxu0 0.0
  %11610 = vmatprep.subr.mxu0 0.0
  %11611 = vmatpush2.msra.mxu0 0.0
  %11612 = vmatprep.mubr.f32.mxu0 0.0
  %11613 = vmatmul.mubr.f32.gmra.mxu0 %v8137
  %v11614 = vpop.f32.mrf.mxu0
  %v11615 = vadd.f32 0.0, %v11614
  %v11616 = vpop.f32.mrf.mxu0
  %v11617 = vadd.f32 0.0, %v11616
  %11618 = vmatprep.mubr.f32.mxu0 0.0
  %11619 = vmatmul.mubr.f32.gmra.mxu0 %v8140
  %v11620 = vpop.f32.mrf.mxu0
  %v11621 = vadd.f32 0.0, %v11620
  %v11622 = vpop.f32.mrf.mxu0
  %v11623 = vadd.f32 0.0, %v11622
  %11624 = vmatprep.mubr.f32.mxu0 0.0
  %11625 = vmatmul.mubr.f32.gmra.mxu0 %v8143
  %v11626 = vpop.f32.mrf.mxu0
  %v11627 = vadd.f32 0.0, %v11626
  %v11628 = vpop.f32.mrf.mxu0
  %v11629 = vadd.f32 0.0, %v11628
  %11630 = vdwg.mxu0
  %11631 = vmatprep.subr.mxu0 0.0
  %11632 = vmatpush1.msra.mxu0 0.0
  %11633 = vmatprep.subr.mxu0 0.0
  %11634 = vmatpush1.msra.mxu0 0.0
  %11635 = vmatprep.subr.mxu0 0.0
  %11636 = vmatpush1.msra.mxu0 0.0
  %11637 = vmatprep.subr.mxu0 0.0
  %11638 = vmatpush1.msra.mxu0 0.0
  %11639 = vmatprep.subr.mxu0 0.0
  %11640 = vmatpush1.msra.mxu0 0.0
  %11641 = vmatprep.subr.mxu0 0.0
  %11642 = vmatpush1.msra.mxu0 0.0
  %11643 = vmatprep.subr.mxu0 0.0
  %11644 = vmatpush1.msra.mxu0 0.0
  %11645 = vmatprep.subr.mxu0 %v7827
  %11646 = vmatpush1.msra.mxu0 %v7826
  %11647 = vmatprep.subr.mxu0 %v7731
  %11648 = vmatpush1.msra.mxu0 %v7730
  %11649 = vmatprep.subr.mxu0 %v7635
  %11650 = vmatpush1.msra.mxu0 %v7634
  %11651 = vmatprep.subr.mxu0 %v5495
  %11652 = vmatpush1.msra.mxu0 %v5494
  %11653 = vmatprep.subr.mxu0 %v5397
  %11654 = vmatpush1.msra.mxu0 %v5396
  %11655 = vmatprep.subr.mxu0 %v5299
  %11656 = vmatpush1.msra.mxu0 %v5298
  %11657 = vmatprep.subr.mxu0 %v6657
  %11658 = vmatpush1.msra.mxu0 %v6656
  %11659 = vmatprep.subr.mxu0 %v6561
  %11660 = vmatpush1.msra.mxu0 %v6560
  %11661 = vmatprep.subr.mxu0 %v6465
  %11662 = vmatpush1.msra.mxu0 %v6464
  %11663 = vmatprep.subr.mxu0 0.0
  %11664 = vmatpush2.msra.mxu0 0.0
  %11665 = vmatprep.subr.mxu0 0.0
  %11666 = vmatpush2.msra.mxu0 0.0
  %11667 = vmatprep.subr.mxu0 0.0
  %11668 = vmatpush2.msra.mxu0 0.0
  %11669 = vmatprep.subr.mxu0 0.0
  %11670 = vmatpush2.msra.mxu0 0.0
  %11671 = vmatprep.subr.mxu0 0.0
  %11672 = vmatpush2.msra.mxu0 0.0
  %11673 = vmatprep.subr.mxu0 0.0
  %11674 = vmatpush2.msra.mxu0 0.0
  %11675 = vmatprep.subr.mxu0 0.0
  %11676 = vmatpush2.msra.mxu0 0.0
  %11677 = vmatprep.subr.mxu0 0.0
  %11678 = vmatpush2.msra.mxu0 0.0
  %11679 = vmatprep.subr.mxu0 0.0
  %11680 = vmatpush2.msra.mxu0 0.0
  %11681 = vmatprep.subr.mxu0 0.0
  %11682 = vmatpush2.msra.mxu0 0.0
  %11683 = vmatprep.subr.mxu0 0.0
  %11684 = vmatpush2.msra.mxu0 0.0
  %11685 = vmatprep.subr.mxu0 0.0
  %11686 = vmatpush2.msra.mxu0 0.0
  %11687 = vmatprep.subr.mxu0 0.0
  %11688 = vmatpush2.msra.mxu0 0.0
  %11689 = vmatprep.subr.mxu0 0.0
  %11690 = vmatpush2.msra.mxu0 0.0
  %11691 = vmatprep.subr.mxu0 0.0
  %11692 = vmatpush2.msra.mxu0 0.0
  %11693 = vmatprep.subr.mxu0 0.0
  %11694 = vmatpush2.msra.mxu0 0.0
  %11695 = vmatprep.mubr.f32.mxu0 0.0
  %11696 = vmatmul.mubr.f32.gmra.mxu0 %v8137
  %v11697 = vpop.f32.mrf.mxu0
  %v11698 = vadd.f32 0.0, %v11697
  %v11699 = vpop.f32.mrf.mxu0
  %v11700 = vadd.f32 0.0, %v11699
  %11701 = vmatprep.mubr.f32.mxu0 0.0
  %11702 = vmatmul.mubr.f32.gmra.mxu0 %v8140
  %v11703 = vpop.f32.mrf.mxu0
  %v11704 = vadd.f32 0.0, %v11703
  %v11705 = vpop.f32.mrf.mxu0
  %v11706 = vadd.f32 0.0, %v11705
  %11707 = vmatprep.mubr.f32.mxu0 0.0
  %11708 = vmatmul.mubr.f32.gmra.mxu0 %v8143
  %v11709 = vpop.f32.mrf.mxu0
  %v11710 = vadd.f32 0.0, %v11709
  %v11711 = vpop.f32.mrf.mxu0
  %v11712 = vadd.f32 0.0, %v11711
  %11713 = vdwg.mxu0
  %11714 = vmatprep.subr.mxu0 0.0
  %11715 = vmatpush1.msra.mxu0 0.0
  %11716 = vmatprep.subr.mxu0 0.0
  %11717 = vmatpush1.msra.mxu0 0.0
  %11718 = vmatprep.subr.mxu0 0.0
  %11719 = vmatpush1.msra.mxu0 0.0
  %11720 = vmatprep.subr.mxu0 0.0
  %11721 = vmatpush1.msra.mxu0 0.0
  %11722 = vmatprep.subr.mxu0 0.0
  %11723 = vmatpush1.msra.mxu0 0.0
  %11724 = vmatprep.subr.mxu0 0.0
  %11725 = vmatpush1.msra.mxu0 0.0
  %11726 = vmatprep.subr.mxu0 0.0
  %11727 = vmatpush1.msra.mxu0 0.0
  %11728 = vmatprep.subr.mxu0 %v7829
  %11729 = vmatpush1.msra.mxu0 %v7828
  %11730 = vmatprep.subr.mxu0 %v7733
  %11731 = vmatpush1.msra.mxu0 %v7732
  %11732 = vmatprep.subr.mxu0 %v7637
  %11733 = vmatpush1.msra.mxu0 %v7636
  %11734 = vmatprep.subr.mxu0 %v5497
  %11735 = vmatpush1.msra.mxu0 %v5496
  %11736 = vmatprep.subr.mxu0 %v5399
  %11737 = vmatpush1.msra.mxu0 %v5398
  %11738 = vmatprep.subr.mxu0 %v5301
  %11739 = vmatpush1.msra.mxu0 %v5300
  %11740 = vmatprep.subr.mxu0 %v6659
  %11741 = vmatpush1.msra.mxu0 %v6658
  %11742 = vmatprep.subr.mxu0 %v6563
  %11743 = vmatpush1.msra.mxu0 %v6562
  %11744 = vmatprep.subr.mxu0 %v6467
  %11745 = vmatpush1.msra.mxu0 %v6466
  %11746 = vmatprep.subr.mxu0 0.0
  %11747 = vmatpush2.msra.mxu0 0.0
  %11748 = vmatprep.subr.mxu0 0.0
  %11749 = vmatpush2.msra.mxu0 0.0
  %11750 = vmatprep.subr.mxu0 0.0
  %11751 = vmatpush2.msra.mxu0 0.0
  %11752 = vmatprep.subr.mxu0 0.0
  %11753 = vmatpush2.msra.mxu0 0.0
  %11754 = vmatprep.subr.mxu0 0.0
  %11755 = vmatpush2.msra.mxu0 0.0
  %11756 = vmatprep.subr.mxu0 0.0
  %11757 = vmatpush2.msra.mxu0 0.0
  %11758 = vmatprep.subr.mxu0 0.0
  %11759 = vmatpush2.msra.mxu0 0.0
  %11760 = vmatprep.subr.mxu0 0.0
  %11761 = vmatpush2.msra.mxu0 0.0
  %11762 = vmatprep.subr.mxu0 0.0
  %11763 = vmatpush2.msra.mxu0 0.0
  %11764 = vmatprep.subr.mxu0 0.0
  %11765 = vmatpush2.msra.mxu0 0.0
  %11766 = vmatprep.subr.mxu0 0.0
  %11767 = vmatpush2.msra.mxu0 0.0
  %11768 = vmatprep.subr.mxu0 0.0
  %11769 = vmatpush2.msra.mxu0 0.0
  %11770 = vmatprep.subr.mxu0 0.0
  %11771 = vmatpush2.msra.mxu0 0.0
  %11772 = vmatprep.subr.mxu0 0.0
  %11773 = vmatpush2.msra.mxu0 0.0
  %11774 = vmatprep.subr.mxu0 0.0
  %11775 = vmatpush2.msra.mxu0 0.0
  %11776 = vmatprep.subr.mxu0 0.0
  %11777 = vmatpush2.msra.mxu0 0.0
  %11778 = vmatprep.mubr.f32.mxu0 0.0
  %11779 = vmatmul.mubr.f32.gmra.mxu0 %v8137
  %v11780 = vpop.f32.mrf.mxu0
  %v11781 = vadd.f32 0.0, %v11780
  %v11782 = vpop.f32.mrf.mxu0
  %v11783 = vadd.f32 0.0, %v11782
  %11784 = vmatprep.mubr.f32.mxu0 0.0
  %11785 = vmatmul.mubr.f32.gmra.mxu0 %v8140
  %v11786 = vpop.f32.mrf.mxu0
  %v11787 = vadd.f32 0.0, %v11786
  %v11788 = vpop.f32.mrf.mxu0
  %v11789 = vadd.f32 0.0, %v11788
  %11790 = vmatprep.mubr.f32.mxu0 0.0
  %11791 = vmatmul.mubr.f32.gmra.mxu0 %v8143
  %v11792 = vpop.f32.mrf.mxu0
  %v11793 = vadd.f32 0.0, %v11792
  %v11794 = vpop.f32.mrf.mxu0
  %v11795 = vadd.f32 0.0, %v11794
  %11796 = vdwg.mxu0
  %11797 = vmatprep.subr.mxu0 0.0
  %11798 = vmatpush1.msra.mxu0 0.0
  %11799 = vmatprep.subr.mxu0 0.0
  %11800 = vmatpush1.msra.mxu0 0.0
  %11801 = vmatprep.subr.mxu0 0.0
  %11802 = vmatpush1.msra.mxu0 0.0
  %11803 = vmatprep.subr.mxu0 0.0
  %11804 = vmatpush1.msra.mxu0 0.0
  %11805 = vmatprep.subr.mxu0 0.0
  %11806 = vmatpush1.msra.mxu0 0.0
  %11807 = vmatprep.subr.mxu0 0.0
  %11808 = vmatpush1.msra.mxu0 0.0
  %11809 = vmatprep.subr.mxu0 0.0
  %11810 = vmatpush1.msra.mxu0 0.0
  %11811 = vmatprep.subr.mxu0 %v7831
  %11812 = vmatpush1.msra.mxu0 %v7830
  %11813 = vmatprep.subr.mxu0 %v7735
  %11814 = vmatpush1.msra.mxu0 %v7734
  %11815 = vmatprep.subr.mxu0 %v7639
  %11816 = vmatpush1.msra.mxu0 %v7638
  %11817 = vmatprep.subr.mxu0 %v5499
  %11818 = vmatpush1.msra.mxu0 %v5498
  %11819 = vmatprep.subr.mxu0 %v5401
  %11820 = vmatpush1.msra.mxu0 %v5400
  %11821 = vmatprep.subr.mxu0 %v5303
  %11822 = vmatpush1.msra.mxu0 %v5302
  %11823 = vmatprep.subr.mxu0 %v6661
  %11824 = vmatpush1.msra.mxu0 %v6660
  %11825 = vmatprep.subr.mxu0 %v6565
  %11826 = vmatpush1.msra.mxu0 %v6564
  %11827 = vmatprep.subr.mxu0 %v6469
  %11828 = vmatpush1.msra.mxu0 %v6468
  %11829 = vmatprep.subr.mxu0 0.0
  %11830 = vmatpush2.msra.mxu0 0.0
  %11831 = vmatprep.subr.mxu0 0.0
  %11832 = vmatpush2.msra.mxu0 0.0
  %11833 = vmatprep.subr.mxu0 0.0
  %11834 = vmatpush2.msra.mxu0 0.0
  %11835 = vmatprep.subr.mxu0 0.0
  %11836 = vmatpush2.msra.mxu0 0.0
  %11837 = vmatprep.subr.mxu0 0.0
  %11838 = vmatpush2.msra.mxu0 0.0
  %11839 = vmatprep.subr.mxu0 0.0
  %11840 = vmatpush2.msra.mxu0 0.0
  %11841 = vmatprep.subr.mxu0 0.0
  %11842 = vmatpush2.msra.mxu0 0.0
  %11843 = vmatprep.subr.mxu0 0.0
  %11844 = vmatpush2.msra.mxu0 0.0
  %11845 = vmatprep.subr.mxu0 0.0
  %11846 = vmatpush2.msra.mxu0 0.0
  %11847 = vmatprep.subr.mxu0 0.0
  %11848 = vmatpush2.msra.mxu0 0.0
  %11849 = vmatprep.subr.mxu0 0.0
  %11850 = vmatpush2.msra.mxu0 0.0
  %11851 = vmatprep.subr.mxu0 0.0
  %11852 = vmatpush2.msra.mxu0 0.0
  %11853 = vmatprep.subr.mxu0 0.0
  %11854 = vmatpush2.msra.mxu0 0.0
  %11855 = vmatprep.subr.mxu0 0.0
  %11856 = vmatpush2.msra.mxu0 0.0
  %11857 = vmatprep.subr.mxu0 0.0
  %11858 = vmatpush2.msra.mxu0 0.0
  %11859 = vmatprep.subr.mxu0 0.0
  %11860 = vmatpush2.msra.mxu0 0.0
  %11861 = vmatprep.mubr.f32.mxu0 0.0
  %11862 = vmatmul.mubr.f32.gmra.mxu0 %v8137
  %v11863 = vpop.f32.mrf.mxu0
  %v11864 = vadd.f32 0.0, %v11863
  %v11865 = vpop.f32.mrf.mxu0
  %v11866 = vadd.f32 0.0, %v11865
  %11867 = vmatprep.mubr.f32.mxu0 0.0
  %11868 = vmatmul.mubr.f32.gmra.mxu0 %v8140
  %v11869 = vpop.f32.mrf.mxu0
  %v11870 = vadd.f32 0.0, %v11869
  %v11871 = vpop.f32.mrf.mxu0
  %v11872 = vadd.f32 0.0, %v11871
  %11873 = vmatprep.mubr.f32.mxu0 0.0
  %11874 = vmatmul.mubr.f32.gmra.mxu0 %v8143
  %v11875 = vpop.f32.mrf.mxu0
  %v11876 = vadd.f32 0.0, %v11875
  %v11877 = vpop.f32.mrf.mxu0
  %v11878 = vadd.f32 0.0, %v11877
  %11879 = vdwg.mxu0
  %11880 = vmatprep.subr.mxu0 0.0
  %11881 = vmatpush1.msra.mxu0 0.0
  %11882 = vmatprep.subr.mxu0 0.0
  %11883 = vmatpush1.msra.mxu0 0.0
  %11884 = vmatprep.subr.mxu0 0.0
  %11885 = vmatpush1.msra.mxu0 0.0
  %11886 = vmatprep.subr.mxu0 0.0
  %11887 = vmatpush1.msra.mxu0 0.0
  %11888 = vmatprep.subr.mxu0 0.0
  %11889 = vmatpush1.msra.mxu0 0.0
  %11890 = vmatprep.subr.mxu0 0.0
  %11891 = vmatpush1.msra.mxu0 0.0
  %11892 = vmatprep.subr.mxu0 0.0
  %11893 = vmatpush1.msra.mxu0 0.0
  %11894 = vmatprep.subr.mxu0 %v7833
  %11895 = vmatpush1.msra.mxu0 %v7832
  %11896 = vmatprep.subr.mxu0 %v7737
  %11897 = vmatpush1.msra.mxu0 %v7736
  %11898 = vmatprep.subr.mxu0 %v7641
  %11899 = vmatpush1.msra.mxu0 %v7640
  %11900 = vmatprep.subr.mxu0 %v5501
  %11901 = vmatpush1.msra.mxu0 %v5500
  %11902 = vmatprep.subr.mxu0 %v5403
  %11903 = vmatpush1.msra.mxu0 %v5402
  %11904 = vmatprep.subr.mxu0 %v5305
  %11905 = vmatpush1.msra.mxu0 %v5304
  %11906 = vmatprep.subr.mxu0 %v6663
  %11907 = vmatpush1.msra.mxu0 %v6662
  %11908 = vmatprep.subr.mxu0 %v6567
  %11909 = vmatpush1.msra.mxu0 %v6566
  %11910 = vmatprep.subr.mxu0 %v6471
  %11911 = vmatpush1.msra.mxu0 %v6470
  %11912 = vmatprep.subr.mxu0 0.0
  %11913 = vmatpush2.msra.mxu0 0.0
  %11914 = vmatprep.subr.mxu0 0.0
  %11915 = vmatpush2.msra.mxu0 0.0
  %11916 = vmatprep.subr.mxu0 0.0
  %11917 = vmatpush2.msra.mxu0 0.0
  %11918 = vmatprep.subr.mxu0 0.0
  %11919 = vmatpush2.msra.mxu0 0.0
  %11920 = vmatprep.subr.mxu0 0.0
  %11921 = vmatpush2.msra.mxu0 0.0
  %11922 = vmatprep.subr.mxu0 0.0
  %11923 = vmatpush2.msra.mxu0 0.0
  %11924 = vmatprep.subr.mxu0 0.0
  %11925 = vmatpush2.msra.mxu0 0.0
  %11926 = vmatprep.subr.mxu0 0.0
  %11927 = vmatpush2.msra.mxu0 0.0
  %11928 = vmatprep.subr.mxu0 0.0
  %11929 = vmatpush2.msra.mxu0 0.0
  %11930 = vmatprep.subr.mxu0 0.0
  %11931 = vmatpush2.msra.mxu0 0.0
  %11932 = vmatprep.subr.mxu0 0.0
  %11933 = vmatpush2.msra.mxu0 0.0
  %11934 = vmatprep.subr.mxu0 0.0
  %11935 = vmatpush2.msra.mxu0 0.0
  %11936 = vmatprep.subr.mxu0 0.0
  %11937 = vmatpush2.msra.mxu0 0.0
  %11938 = vmatprep.subr.mxu0 0.0
  %11939 = vmatpush2.msra.mxu0 0.0
  %11940 = vmatprep.subr.mxu0 0.0
  %11941 = vmatpush2.msra.mxu0 0.0
  %11942 = vmatprep.subr.mxu0 0.0
  %11943 = vmatpush2.msra.mxu0 0.0
  %11944 = vmatprep.mubr.f32.mxu0 0.0
  %11945 = vmatmul.mubr.f32.gmra.mxu0 %v8137
  %v11946 = vpop.f32.mrf.mxu0
  %v11947 = vadd.f32 0.0, %v11946
  %v11948 = vpop.f32.mrf.mxu0
  %v11949 = vadd.f32 0.0, %v11948
  %11950 = vmatprep.mubr.f32.mxu0 0.0
  %11951 = vmatmul.mubr.f32.gmra.mxu0 %v8140
  %v11952 = vpop.f32.mrf.mxu0
  %v11953 = vadd.f32 0.0, %v11952
  %v11954 = vpop.f32.mrf.mxu0
  %v11955 = vadd.f32 0.0, %v11954
  %11956 = vmatprep.mubr.f32.mxu0 0.0
  %11957 = vmatmul.mubr.f32.gmra.mxu0 %v8143
  %v11958 = vpop.f32.mrf.mxu0
  %v11959 = vadd.f32 0.0, %v11958
  %v11960 = vpop.f32.mrf.mxu0
  %v11961 = vadd.f32 0.0, %v11960
  %11962 = vdwg.mxu0
  %11963 = vmatprep.subr.mxu0 0.0
  %11964 = vmatpush1.msra.mxu0 0.0
  %11965 = vmatprep.subr.mxu0 0.0
  %11966 = vmatpush1.msra.mxu0 0.0
  %11967 = vmatprep.subr.mxu0 0.0
  %11968 = vmatpush1.msra.mxu0 0.0
  %11969 = vmatprep.subr.mxu0 0.0
  %11970 = vmatpush1.msra.mxu0 0.0
  %11971 = vmatprep.subr.mxu0 0.0
  %11972 = vmatpush1.msra.mxu0 0.0
  %11973 = vmatprep.subr.mxu0 0.0
  %11974 = vmatpush1.msra.mxu0 0.0
  %11975 = vmatprep.subr.mxu0 0.0
  %11976 = vmatpush1.msra.mxu0 0.0
  %11977 = vmatprep.subr.mxu0 %v7835
  %11978 = vmatpush1.msra.mxu0 %v7834
  %11979 = vmatprep.subr.mxu0 %v7739
  %11980 = vmatpush1.msra.mxu0 %v7738
  %11981 = vmatprep.subr.mxu0 %v7643
  %11982 = vmatpush1.msra.mxu0 %v7642
  %11983 = vmatprep.subr.mxu0 %v5503
  %11984 = vmatpush1.msra.mxu0 %v5502
  %11985 = vmatprep.subr.mxu0 %v5405
  %11986 = vmatpush1.msra.mxu0 %v5404
  %11987 = vmatprep.subr.mxu0 %v5307
  %11988 = vmatpush1.msra.mxu0 %v5306
  %11989 = vmatprep.subr.mxu0 %v6665
  %11990 = vmatpush1.msra.mxu0 %v6664
  %11991 = vmatprep.subr.mxu0 %v6569
  %11992 = vmatpush1.msra.mxu0 %v6568
  %11993 = vmatprep.subr.mxu0 %v6473
  %11994 = vmatpush1.msra.mxu0 %v6472
  %11995 = vmatprep.subr.mxu0 0.0
  %11996 = vmatpush2.msra.mxu0 0.0
  %11997 = vmatprep.subr.mxu0 0.0
  %11998 = vmatpush2.msra.mxu0 0.0
  %11999 = vmatprep.subr.mxu0 0.0
  %12000 = vmatpush2.msra.mxu0 0.0
  %12001 = vmatprep.subr.mxu0 0.0
  %12002 = vmatpush2.msra.mxu0 0.0
  %12003 = vmatprep.subr.mxu0 0.0
  %12004 = vmatpush2.msra.mxu0 0.0
  %12005 = vmatprep.subr.mxu0 0.0
  %12006 = vmatpush2.msra.mxu0 0.0
  %12007 = vmatprep.subr.mxu0 0.0
  %12008 = vmatpush2.msra.mxu0 0.0
  %12009 = vmatprep.subr.mxu0 0.0
  %12010 = vmatpush2.msra.mxu0 0.0
  %12011 = vmatprep.subr.mxu0 0.0
  %12012 = vmatpush2.msra.mxu0 0.0
  %12013 = vmatprep.subr.mxu0 0.0
  %12014 = vmatpush2.msra.mxu0 0.0
  %12015 = vmatprep.subr.mxu0 0.0
  %12016 = vmatpush2.msra.mxu0 0.0
  %12017 = vmatprep.subr.mxu0 0.0
  %12018 = vmatpush2.msra.mxu0 0.0
  %12019 = vmatprep.subr.mxu0 0.0
  %12020 = vmatpush2.msra.mxu0 0.0
  %12021 = vmatprep.subr.mxu0 0.0
  %12022 = vmatpush2.msra.mxu0 0.0
  %12023 = vmatprep.subr.mxu0 0.0
  %12024 = vmatpush2.msra.mxu0 0.0
  %12025 = vmatprep.subr.mxu0 0.0
  %12026 = vmatpush2.msra.mxu0 0.0
  %12027 = vmatprep.mubr.f32.mxu0 0.0
  %12028 = vmatmul.mubr.f32.gmra.mxu0 %v8137
  %v12029 = vpop.f32.mrf.mxu0
  %v12030 = vadd.f32 0.0, %v12029
  %v12031 = vpop.f32.mrf.mxu0
  %v12032 = vadd.f32 0.0, %v12031
  %12033 = vmatprep.mubr.f32.mxu0 0.0
  %12034 = vmatmul.mubr.f32.gmra.mxu0 %v8140
  %v12035 = vpop.f32.mrf.mxu0
  %v12036 = vadd.f32 0.0, %v12035
  %v12037 = vpop.f32.mrf.mxu0
  %v12038 = vadd.f32 0.0, %v12037
  %12039 = vmatprep.mubr.f32.mxu0 0.0
  %12040 = vmatmul.mubr.f32.gmra.mxu0 %v8143
  %v12041 = vpop.f32.mrf.mxu0
  %v12042 = vadd.f32 0.0, %v12041
  %v12043 = vpop.f32.mrf.mxu0
  %v12044 = vadd.f32 0.0, %v12043
  %12045 = vdwg.mxu0
  %12046 = vmatprep.subr.mxu0 0.0
  %12047 = vmatpush1.msra.mxu0 0.0
  %12048 = vmatprep.subr.mxu0 0.0
  %12049 = vmatpush1.msra.mxu0 0.0
  %12050 = vmatprep.subr.mxu0 0.0
  %12051 = vmatpush1.msra.mxu0 0.0
  %12052 = vmatprep.subr.mxu0 0.0
  %12053 = vmatpush1.msra.mxu0 0.0
  %12054 = vmatprep.subr.mxu0 0.0
  %12055 = vmatpush1.msra.mxu0 0.0
  %12056 = vmatprep.subr.mxu0 0.0
  %12057 = vmatpush1.msra.mxu0 0.0
  %12058 = vmatprep.subr.mxu0 0.0
  %12059 = vmatpush1.msra.mxu0 0.0
  %12060 = vmatprep.subr.mxu0 %v7837
  %12061 = vmatpush1.msra.mxu0 %v7836
  %12062 = vmatprep.subr.mxu0 %v7741
  %12063 = vmatpush1.msra.mxu0 %v7740
  %12064 = vmatprep.subr.mxu0 %v7645
  %12065 = vmatpush1.msra.mxu0 %v7644
  %12066 = vmatprep.subr.mxu0 %v5505
  %12067 = vmatpush1.msra.mxu0 %v5504
  %12068 = vmatprep.subr.mxu0 %v5407
  %12069 = vmatpush1.msra.mxu0 %v5406
  %12070 = vmatprep.subr.mxu0 %v5309
  %12071 = vmatpush1.msra.mxu0 %v5308
  %12072 = vmatprep.subr.mxu0 %v6667
  %12073 = vmatpush1.msra.mxu0 %v6666
  %12074 = vmatprep.subr.mxu0 %v6571
  %12075 = vmatpush1.msra.mxu0 %v6570
  %12076 = vmatprep.subr.mxu0 %v6475
  %12077 = vmatpush1.msra.mxu0 %v6474
  %12078 = vmatprep.subr.mxu0 0.0
  %12079 = vmatpush2.msra.mxu0 0.0
  %12080 = vmatprep.subr.mxu0 0.0
  %12081 = vmatpush2.msra.mxu0 0.0
  %12082 = vmatprep.subr.mxu0 0.0
  %12083 = vmatpush2.msra.mxu0 0.0
  %12084 = vmatprep.subr.mxu0 0.0
  %12085 = vmatpush2.msra.mxu0 0.0
  %12086 = vmatprep.subr.mxu0 0.0
  %12087 = vmatpush2.msra.mxu0 0.0
  %12088 = vmatprep.subr.mxu0 0.0
  %12089 = vmatpush2.msra.mxu0 0.0
  %12090 = vmatprep.subr.mxu0 0.0
  %12091 = vmatpush2.msra.mxu0 0.0
  %12092 = vmatprep.subr.mxu0 0.0
  %12093 = vmatpush2.msra.mxu0 0.0
  %12094 = vmatprep.subr.mxu0 0.0
  %12095 = vmatpush2.msra.mxu0 0.0
  %12096 = vmatprep.subr.mxu0 0.0
  %12097 = vmatpush2.msra.mxu0 0.0
  %12098 = vmatprep.subr.mxu0 0.0
  %12099 = vmatpush2.msra.mxu0 0.0
  %12100 = vmatprep.subr.mxu0 0.0
  %12101 = vmatpush2.msra.mxu0 0.0
  %12102 = vmatprep.subr.mxu0 0.0
  %12103 = vmatpush2.msra.mxu0 0.0
  %12104 = vmatprep.subr.mxu0 0.0
  %12105 = vmatpush2.msra.mxu0 0.0
  %12106 = vmatprep.subr.mxu0 0.0
  %12107 = vmatpush2.msra.mxu0 0.0
  %12108 = vmatprep.subr.mxu0 0.0
  %12109 = vmatpush2.msra.mxu0 0.0
  %12110 = vmatprep.mubr.f32.mxu0 0.0
  %12111 = vmatmul.mubr.f32.gmra.mxu0 %v8137
  %v12112 = vpop.f32.mrf.mxu0
  %v12113 = vadd.f32 0.0, %v12112
  %v12114 = vpop.f32.mrf.mxu0
  %v12115 = vadd.f32 0.0, %v12114
  %12116 = vmatprep.mubr.f32.mxu0 0.0
  %12117 = vmatmul.mubr.f32.gmra.mxu0 %v8140
  %v12118 = vpop.f32.mrf.mxu0
  %v12119 = vadd.f32 0.0, %v12118
  %v12120 = vpop.f32.mrf.mxu0
  %v12121 = vadd.f32 0.0, %v12120
  %12122 = vmatprep.mubr.f32.mxu0 0.0
  %12123 = vmatmul.mubr.f32.gmra.mxu0 %v8143
  %v12124 = vpop.f32.mrf.mxu0
  %v12125 = vadd.f32 0.0, %v12124
  %v12126 = vpop.f32.mrf.mxu0
  %v12127 = vadd.f32 0.0, %v12126
  %12128 = vdwg.mxu0
  %12129 = vmatprep.subr.mxu0 0.0
  %12130 = vmatpush1.msra.mxu0 0.0
  %12131 = vmatprep.subr.mxu0 0.0
  %12132 = vmatpush1.msra.mxu0 0.0
  %12133 = vmatprep.subr.mxu0 0.0
  %12134 = vmatpush1.msra.mxu0 0.0
  %12135 = vmatprep.subr.mxu0 0.0
  %12136 = vmatpush1.msra.mxu0 0.0
  %12137 = vmatprep.subr.mxu0 0.0
  %12138 = vmatpush1.msra.mxu0 0.0
  %12139 = vmatprep.subr.mxu0 0.0
  %12140 = vmatpush1.msra.mxu0 0.0
  %12141 = vmatprep.subr.mxu0 0.0
  %12142 = vmatpush1.msra.mxu0 0.0
  %12143 = vmatprep.subr.mxu0 0.0
  %12144 = vmatpush1.msra.mxu0 %v8131
  %12145 = vmatprep.subr.mxu0 0.0
  %12146 = vmatpush1.msra.mxu0 %v8130
  %12147 = vmatprep.subr.mxu0 0.0
  %12148 = vmatpush1.msra.mxu0 %v8129
  %12149 = vmatprep.subr.mxu0 %v5507
  %12150 = vmatpush1.msra.mxu0 %v5506
  %12151 = vmatprep.subr.mxu0 %v5409
  %12152 = vmatpush1.msra.mxu0 %v5408
  %12153 = vmatprep.subr.mxu0 %v5311
  %12154 = vmatpush1.msra.mxu0 %v5310
  %12155 = vmatprep.subr.mxu0 %v6669
  %12156 = vmatpush1.msra.mxu0 %v6668
  %12157 = vmatprep.subr.mxu0 %v6573
  %12158 = vmatpush1.msra.mxu0 %v6572
  %12159 = vmatprep.subr.mxu0 %v6477
  %12160 = vmatpush1.msra.mxu0 %v6476
  %12161 = vmatprep.subr.mxu0 0.0
  %12162 = vmatpush2.msra.mxu0 0.0
  %12163 = vmatprep.subr.mxu0 0.0
  %12164 = vmatpush2.msra.mxu0 0.0
  %12165 = vmatprep.subr.mxu0 0.0
  %12166 = vmatpush2.msra.mxu0 0.0
  %12167 = vmatprep.subr.mxu0 0.0
  %12168 = vmatpush2.msra.mxu0 0.0
  %12169 = vmatprep.subr.mxu0 0.0
  %12170 = vmatpush2.msra.mxu0 0.0
  %12171 = vmatprep.subr.mxu0 0.0
  %12172 = vmatpush2.msra.mxu0 0.0
  %12173 = vmatprep.subr.mxu0 0.0
  %12174 = vmatpush2.msra.mxu0 0.0
  %12175 = vmatprep.subr.mxu0 0.0
  %12176 = vmatpush2.msra.mxu0 0.0
  %12177 = vmatprep.subr.mxu0 0.0
  %12178 = vmatpush2.msra.mxu0 0.0
  %12179 = vmatprep.subr.mxu0 0.0
  %12180 = vmatpush2.msra.mxu0 0.0
  %12181 = vmatprep.subr.mxu0 0.0
  %12182 = vmatpush2.msra.mxu0 0.0
  %12183 = vmatprep.subr.mxu0 0.0
  %12184 = vmatpush2.msra.mxu0 0.0
  %12185 = vmatprep.subr.mxu0 0.0
  %12186 = vmatpush2.msra.mxu0 0.0
  %12187 = vmatprep.subr.mxu0 0.0
  %12188 = vmatpush2.msra.mxu0 0.0
  %12189 = vmatprep.subr.mxu0 0.0
  %12190 = vmatpush2.msra.mxu0 0.0
  %12191 = vmatprep.subr.mxu0 0.0
  %12192 = vmatpush2.msra.mxu0 0.0
  %12193 = vmatprep.mubr.f32.mxu0 0.0
  %12194 = vmatmul.mubr.f32.gmra.mxu0 %v8137
  %v12195 = vpop.f32.mrf.mxu0
  %v12196 = vadd.f32 0.0, %v12195
  %v12197 = vpop.f32.mrf.mxu0
  %v12198 = vadd.f32 0.0, %v12197
  %12199 = vmatprep.mubr.f32.mxu0 0.0
  %12200 = vmatmul.mubr.f32.gmra.mxu0 %v8140
  %v12201 = vpop.f32.mrf.mxu0
  %v12202 = vadd.f32 0.0, %v12201
  %v12203 = vpop.f32.mrf.mxu0
  %v12204 = vadd.f32 0.0, %v12203
  %12205 = vmatprep.mubr.f32.mxu0 0.0
  %12206 = vmatmul.mubr.f32.gmra.mxu0 %v8143
  %v12207 = vpop.f32.mrf.mxu0
  %v12208 = vadd.f32 0.0, %v12207
  %v12209 = vpop.f32.mrf.mxu0
  %v12210 = vadd.f32 0.0, %v12209
  %12211 = vdwg.mxu0
  %12212 = vst [vmem:[%s2] sm:$0xff] %v8212
  %12213 = vst [vmem:[%s2 + $0x8] sm:$0xff] %v8214
  %12214 = vst [vmem:[%s2 + $0x10] sm:$0xff] %v8295
  %12215 = vst [vmem:[%s2 + $0x18] sm:$0xff] %v8297
  %12216 = vst [vmem:[%s2 + $0x20] sm:$0xff] %v8378
  %12217 = vst [vmem:[%s2 + $0x28] sm:$0xff] %v8380
  %12218 = vst [vmem:[%s2 + $0x30] sm:$0xff] %v8461
  %12219 = vst [vmem:[%s2 + $0x38] sm:$0xff] %v8463
  %12220 = vst [vmem:[%s2 + $0x40] sm:$0xff] %v8544
  %12221 = vst [vmem:[%s2 + $0x48] sm:$0xff] %v8546
  %12222 = vst [vmem:[%s2 + $0x50] sm:$0xff] %v8627
  %12223 = vst [vmem:[%s2 + $0x58] sm:$0xff] %v8629
  %12224 = vst [vmem:[%s2 + $0x60] sm:$0xff] %v8710
  %12225 = vst [vmem:[%s2 + $0x68] sm:$0xff] %v8712
  %12226 = vst [vmem:[%s2 + $0x70] sm:$0xff] %v8793
  %12227 = vst [vmem:[%s2 + $0x78] sm:$0xff] %v8795
  %12228 = vst [vmem:[%s2 + $0x80] sm:$0xff] %v8876
  %12229 = vst [vmem:[%s2 + $0x88] sm:$0xff] %v8878
  %12230 = vst [vmem:[%s2 + $0x90] sm:$0xff] %v8959
  %12231 = vst [vmem:[%s2 + $0x98] sm:$0xff] %v8961
  %12232 = vst [vmem:[%s2 + $0xa0] sm:$0xff] %v9042
  %12233 = vst [vmem:[%s2 + $0xa8] sm:$0xff] %v9044
  %12234 = vst [vmem:[%s2 + $0xb0] sm:$0xff] %v9125
  %12235 = vst [vmem:[%s2 + $0xb8] sm:$0xff] %v9127
  %12236 = vst [vmem:[%s2 + $0xc0] sm:$0xff] %v9208
  %12237 = vst [vmem:[%s2 + $0xc8] sm:$0xff] %v9210
  %12238 = vst [vmem:[%s2 + $0xd0] sm:$0xff] %v9291
  %12239 = vst [vmem:[%s2 + $0xd8] sm:$0xff] %v9293
  %12240 = vst [vmem:[%s2 + $0xe0] sm:$0xff] %v9374
  %12241 = vst [vmem:[%s2 + $0xe8] sm:$0xff] %v9376
  %12242 = vst [vmem:[%s2 + $0xf0] sm:$0xff] %v9457
  %12243 = vst [vmem:[%s2 + $0xf8] sm:$0xff] %v9459
  %12244 = vst [vmem:[%s2 + $0x100] sm:$0xff] %v9540
  %12245 = vst [vmem:[%s2 + $0x108] sm:$0xff] %v9542
  %12246 = vst [vmem:[%s2 + $0x110] sm:$0xff] %v9623
  %12247 = vst [vmem:[%s2 + $0x118] sm:$0xff] %v9625
  %12248 = vst [vmem:[%s2 + $0x120] sm:$0xff] %v9706
  %12249 = vst [vmem:[%s2 + $0x128] sm:$0xff] %v9708
  %12250 = vst [vmem:[%s2 + $0x130] sm:$0xff] %v9789
  %12251 = vst [vmem:[%s2 + $0x138] sm:$0xff] %v9791
  %12252 = vst [vmem:[%s2 + $0x140] sm:$0xff] %v9872
  %12253 = vst [vmem:[%s2 + $0x148] sm:$0xff] %v9874
  %12254 = vst [vmem:[%s2 + $0x150] sm:$0xff] %v9955
  %12255 = vst [vmem:[%s2 + $0x158] sm:$0xff] %v9957
  %12256 = vst [vmem:[%s2 + $0x160] sm:$0xff] %v10038
  %12257 = vst [vmem:[%s2 + $0x168] sm:$0xff] %v10040
  %12258 = vst [vmem:[%s2 + $0x170] sm:$0xff] %v10121
  %12259 = vst [vmem:[%s2 + $0x178] sm:$0xff] %v10123
  %12260 = vst [vmem:[%s2 + $0x180] sm:$0xff] %v10204
  %12261 = vst [vmem:[%s2 + $0x188] sm:$0xff] %v10206
  %12262 = vst [vmem:[%s2 + $0x190] sm:$0xff] %v10287
  %12263 = vst [vmem:[%s2 + $0x198] sm:$0xff] %v10289
  %12264 = vst [vmem:[%s2 + $0x1a0] sm:$0xff] %v10370
  %12265 = vst [vmem:[%s2 + $0x1a8] sm:$0xff] %v10372
  %12266 = vst [vmem:[%s2 + $0x1b0] sm:$0xff] %v10453
  %12267 = vst [vmem:[%s2 + $0x1b8] sm:$0xff] %v10455
  %12268 = vst [vmem:[%s2 + $0x1c0] sm:$0xff] %v10536
  %12269 = vst [vmem:[%s2 + $0x1c8] sm:$0xff] %v10538
  %12270 = vst [vmem:[%s2 + $0x1d0] sm:$0xff] %v10619
  %12271 = vst [vmem:[%s2 + $0x1d8] sm:$0xff] %v10621
  %12272 = vst [vmem:[%s2 + $0x1e0] sm:$0xff] %v10702
  %12273 = vst [vmem:[%s2 + $0x1e8] sm:$0xff] %v10704
  %12274 = vst [vmem:[%s2 + $0x1f0] sm:$0xff] %v10785
  %12275 = vst [vmem:[%s2 + $0x1f8] sm:$0xff] %v10787
  %12276 = vst [vmem:[%s2 + $0x200] sm:$0xff] %v10868
  %12277 = vst [vmem:[%s2 + $0x208] sm:$0xff] %v10870
  %12278 = vst [vmem:[%s2 + $0x210] sm:$0xff] %v10951
  %12279 = vst [vmem:[%s2 + $0x218] sm:$0xff] %v10953
  %12280 = vst [vmem:[%s2 + $0x220] sm:$0xff] %v11034
  %12281 = vst [vmem:[%s2 + $0x228] sm:$0xff] %v11036
  %12282 = vst [vmem:[%s2 + $0x230] sm:$0xff] %v11117
  %12283 = vst [vmem:[%s2 + $0x238] sm:$0xff] %v11119
  %12284 = vst [vmem:[%s2 + $0x240] sm:$0xff] %v11200
  %12285 = vst [vmem:[%s2 + $0x248] sm:$0xff] %v11202
  %12286 = vst [vmem:[%s2 + $0x250] sm:$0xff] %v11283
  %12287 = vst [vmem:[%s2 + $0x258] sm:$0xff] %v11285
  %12288 = vst [vmem:[%s2 + $0x260] sm:$0xff] %v11366
  %12289 = vst [vmem:[%s2 + $0x268] sm:$0xff] %v11368
  %12290 = vst [vmem:[%s2 + $0x270] sm:$0xff] %v11449
  %12291 = vst [vmem:[%s2 + $0x278] sm:$0xff] %v11451
  %12292 = vst [vmem:[%s2 + $0x280] sm:$0xff] %v11532
  %12293 = vst [vmem:[%s2 + $0x288] sm:$0xff] %v11534
  %12294 = vst [vmem:[%s2 + $0x290] sm:$0xff] %v11615
  %12295 = vst [vmem:[%s2 + $0x298] sm:$0xff] %v11617
  %12296 = vst [vmem:[%s2 + $0x2a0] sm:$0xff] %v11698
  %12297 = vst [vmem:[%s2 + $0x2a8] sm:$0xff] %v11700
  %12298 = vst [vmem:[%s2 + $0x2b0] sm:$0xff] %v11781
  %12299 = vst [vmem:[%s2 + $0x2b8] sm:$0xff] %v11783
  %12300 = vst [vmem:[%s2 + $0x2c0] sm:$0xff] %v11864
  %12301 = vst [vmem:[%s2 + $0x2c8] sm:$0xff] %v11866
  %12302 = vst [vmem:[%s2 + $0x2d0] sm:$0xff] %v11947
  %12303 = vst [vmem:[%s2 + $0x2d8] sm:$0xff] %v11949
  %12304 = vst [vmem:[%s2 + $0x2e0] sm:$0xff] %v12030
  %12305 = vst [vmem:[%s2 + $0x2e8] sm:$0xff] %v12032
  %12306 = vst [vmem:[%s2 + $0x2f0] sm:$0xff] %v12113
  %12307 = vst [vmem:[%s2 + $0x2f8] sm:$0xff] %v12115
  %12308 = vst [vmem:[%s2 + $0x300] sm:$0xff] %v12196
  %12309 = vst [vmem:[%s2 + $0x308] sm:$0xff] %v12198
  %12310 = vst [vmem:[%s2 + $0x310] sm:$0xff] %v8218
  %12311 = vst [vmem:[%s2 + $0x318] sm:$0xff] %v8220
  %12312 = vst [vmem:[%s2 + $0x320] sm:$0xff] %v8301
  %12313 = vst [vmem:[%s2 + $0x328] sm:$0xff] %v8303
  %12314 = vst [vmem:[%s2 + $0x330] sm:$0xff] %v8384
  %12315 = vst [vmem:[%s2 + $0x338] sm:$0xff] %v8386
  %12316 = vst [vmem:[%s2 + $0x340] sm:$0xff] %v8467
  %12317 = vst [vmem:[%s2 + $0x348] sm:$0xff] %v8469
  %12318 = vst [vmem:[%s2 + $0x350] sm:$0xff] %v8550
  %12319 = vst [vmem:[%s2 + $0x358] sm:$0xff] %v8552
  %12320 = vst [vmem:[%s2 + $0x360] sm:$0xff] %v8633
  %12321 = vst [vmem:[%s2 + $0x368] sm:$0xff] %v8635
  %12322 = vst [vmem:[%s2 + $0x370] sm:$0xff] %v8716
  %12323 = vst [vmem:[%s2 + $0x378] sm:$0xff] %v8718
  %12324 = vst [vmem:[%s2 + $0x380] sm:$0xff] %v8799
  %12325 = vst [vmem:[%s2 + $0x388] sm:$0xff] %v8801
  %12326 = vst [vmem:[%s2 + $0x390] sm:$0xff] %v8882
  %12327 = vst [vmem:[%s2 + $0x398] sm:$0xff] %v8884
  %12328 = vst [vmem:[%s2 + $0x3a0] sm:$0xff] %v8965
  %12329 = vst [vmem:[%s2 + $0x3a8] sm:$0xff] %v8967
  %12330 = vst [vmem:[%s2 + $0x3b0] sm:$0xff] %v9048
  %12331 = vst [vmem:[%s2 + $0x3b8] sm:$0xff] %v9050
  %12332 = vst [vmem:[%s2 + $0x3c0] sm:$0xff] %v9131
  %12333 = vst [vmem:[%s2 + $0x3c8] sm:$0xff] %v9133
  %12334 = vst [vmem:[%s2 + $0x3d0] sm:$0xff] %v9214
  %12335 = vst [vmem:[%s2 + $0x3d8] sm:$0xff] %v9216
  %12336 = vst [vmem:[%s2 + $0x3e0] sm:$0xff] %v9297
  %12337 = vst [vmem:[%s2 + $0x3e8] sm:$0xff] %v9299
  %12338 = vst [vmem:[%s2 + $0x3f0] sm:$0xff] %v9380
  %12339 = vst [vmem:[%s2 + $0x3f8] sm:$0xff] %v9382
  %12340 = vst [vmem:[%s2 + $0x400] sm:$0xff] %v9463
  %12341 = vst [vmem:[%s2 + $0x408] sm:$0xff] %v9465
  %12342 = vst [vmem:[%s2 + $0x410] sm:$0xff] %v9546
  %12343 = vst [vmem:[%s2 + $0x418] sm:$0xff] %v9548
  %12344 = vst [vmem:[%s2 + $0x420] sm:$0xff] %v9629
  %12345 = vst [vmem:[%s2 + $0x428] sm:$0xff] %v9631
  %12346 = vst [vmem:[%s2 + $0x430] sm:$0xff] %v9712
  %12347 = vst [vmem:[%s2 + $0x438] sm:$0xff] %v9714
  %12348 = vst [vmem:[%s2 + $0x440] sm:$0xff] %v9795
  %12349 = vst [vmem:[%s2 + $0x448] sm:$0xff] %v9797
  %12350 = vst [vmem:[%s2 + $0x450] sm:$0xff] %v9878
  %12351 = vst [vmem:[%s2 + $0x458] sm:$0xff] %v9880
  %12352 = vst [vmem:[%s2 + $0x460] sm:$0xff] %v9961
  %12353 = vst [vmem:[%s2 + $0x468] sm:$0xff] %v9963
  %12354 = vst [vmem:[%s2 + $0x470] sm:$0xff] %v10044
  %12355 = vst [vmem:[%s2 + $0x478] sm:$0xff] %v10046
  %12356 = vst [vmem:[%s2 + $0x480] sm:$0xff] %v10127
  %12357 = vst [vmem:[%s2 + $0x488] sm:$0xff] %v10129
  %12358 = vst [vmem:[%s2 + $0x490] sm:$0xff] %v10210
  %12359 = vst [vmem:[%s2 + $0x498] sm:$0xff] %v10212
  %12360 = vst [vmem:[%s2 + $0x4a0] sm:$0xff] %v10293
  %12361 = vst [vmem:[%s2 + $0x4a8] sm:$0xff] %v10295
  %12362 = vst [vmem:[%s2 + $0x4b0] sm:$0xff] %v10376
  %12363 = vst [vmem:[%s2 + $0x4b8] sm:$0xff] %v10378
  %12364 = vst [vmem:[%s2 + $0x4c0] sm:$0xff] %v10459
  %12365 = vst [vmem:[%s2 + $0x4c8] sm:$0xff] %v10461
  %12366 = vst [vmem:[%s2 + $0x4d0] sm:$0xff] %v10542
  %12367 = vst [vmem:[%s2 + $0x4d8] sm:$0xff] %v10544
  %12368 = vst [vmem:[%s2 + $0x4e0] sm:$0xff] %v10625
  %12369 = vst [vmem:[%s2 + $0x4e8] sm:$0xff] %v10627
  %12370 = vst [vmem:[%s2 + $0x4f0] sm:$0xff] %v10708
  %12371 = vst [vmem:[%s2 + $0x4f8] sm:$0xff] %v10710
  %12372 = vst [vmem:[%s2 + $0x500] sm:$0xff] %v10791
  %12373 = vst [vmem:[%s2 + $0x508] sm:$0xff] %v10793
  %12374 = vst [vmem:[%s2 + $0x510] sm:$0xff] %v10874
  %12375 = vst [vmem:[%s2 + $0x518] sm:$0xff] %v10876
  %12376 = vst [vmem:[%s2 + $0x520] sm:$0xff] %v10957
  %12377 = vst [vmem:[%s2 + $0x528] sm:$0xff] %v10959
  %12378 = vst [vmem:[%s2 + $0x530] sm:$0xff] %v11040
  %12379 = vst [vmem:[%s2 + $0x538] sm:$0xff] %v11042
  %12380 = vst [vmem:[%s2 + $0x540] sm:$0xff] %v11123
  %12381 = vst [vmem:[%s2 + $0x548] sm:$0xff] %v11125
  %12382 = vst [vmem:[%s2 + $0x550] sm:$0xff] %v11206
  %12383 = vst [vmem:[%s2 + $0x558] sm:$0xff] %v11208
  %12384 = vst [vmem:[%s2 + $0x560] sm:$0xff] %v11289
  %12385 = vst [vmem:[%s2 + $0x568] sm:$0xff] %v11291
  %12386 = vst [vmem:[%s2 + $0x570] sm:$0xff] %v11372
  %12387 = vst [vmem:[%s2 + $0x578] sm:$0xff] %v11374
  %12388 = vst [vmem:[%s2 + $0x580] sm:$0xff] %v11455
  %12389 = vst [vmem:[%s2 + $0x588] sm:$0xff] %v11457
  %12390 = vst [vmem:[%s2 + $0x590] sm:$0xff] %v11538
  %12391 = vst [vmem:[%s2 + $0x598] sm:$0xff] %v11540
  %12392 = vst [vmem:[%s2 + $0x5a0] sm:$0xff] %v11621
  %12393 = vst [vmem:[%s2 + $0x5a8] sm:$0xff] %v11623
  %12394 = vst [vmem:[%s2 + $0x5b0] sm:$0xff] %v11704
  %12395 = vst [vmem:[%s2 + $0x5b8] sm:$0xff] %v11706
  %12396 = vst [vmem:[%s2 + $0x5c0] sm:$0xff] %v11787
  %12397 = vst [vmem:[%s2 + $0x5c8] sm:$0xff] %v11789
  %12398 = vst [vmem:[%s2 + $0x5d0] sm:$0xff] %v11870
  %12399 = vst [vmem:[%s2 + $0x5d8] sm:$0xff] %v11872
  %12400 = vst [vmem:[%s2 + $0x5e0] sm:$0xff] %v11953
  %12401 = vst [vmem:[%s2 + $0x5e8] sm:$0xff] %v11955
  %12402 = vst [vmem:[%s2 + $0x5f0] sm:$0xff] %v12036
  %12403 = vst [vmem:[%s2 + $0x5f8] sm:$0xff] %v12038
  %12404 = vst [vmem:[%s2 + $0x600] sm:$0xff] %v12119
  %12405 = vst [vmem:[%s2 + $0x608] sm:$0xff] %v12121
  %12406 = vst [vmem:[%s2 + $0x610] sm:$0xff] %v12202
  %12407 = vst [vmem:[%s2 + $0x618] sm:$0xff] %v12204
  %12408 = vst [vmem:[%s2 + $0x620] sm:$0xff] %v8224
  %12409 = vst [vmem:[%s2 + $0x628] sm:$0xff] %v8226
  %12410 = vst [vmem:[%s2 + $0x630] sm:$0xff] %v8307
  %12411 = vst [vmem:[%s2 + $0x638] sm:$0xff] %v8309
  %12412 = vst [vmem:[%s2 + $0x640] sm:$0xff] %v8390
  %12413 = vst [vmem:[%s2 + $0x648] sm:$0xff] %v8392
  %12414 = vst [vmem:[%s2 + $0x650] sm:$0xff] %v8473
  %12415 = vst [vmem:[%s2 + $0x658] sm:$0xff] %v8475
  %12416 = vst [vmem:[%s2 + $0x660] sm:$0xff] %v8556
  %12417 = vst [vmem:[%s2 + $0x668] sm:$0xff] %v8558
  %12418 = vst [vmem:[%s2 + $0x670] sm:$0xff] %v8639
  %12419 = vst [vmem:[%s2 + $0x678] sm:$0xff] %v8641
  %12420 = vst [vmem:[%s2 + $0x680] sm:$0xff] %v8722
  %12421 = vst [vmem:[%s2 + $0x688] sm:$0xff] %v8724
  %12422 = vst [vmem:[%s2 + $0x690] sm:$0xff] %v8805
  %12423 = vst [vmem:[%s2 + $0x698] sm:$0xff] %v8807
  %12424 = vst [vmem:[%s2 + $0x6a0] sm:$0xff] %v8888
  %12425 = vst [vmem:[%s2 + $0x6a8] sm:$0xff] %v8890
  %12426 = vst [vmem:[%s2 + $0x6b0] sm:$0xff] %v8971
  %12427 = vst [vmem:[%s2 + $0x6b8] sm:$0xff] %v8973
  %12428 = vst [vmem:[%s2 + $0x6c0] sm:$0xff] %v9054
  %12429 = vst [vmem:[%s2 + $0x6c8] sm:$0xff] %v9056
  %12430 = vst [vmem:[%s2 + $0x6d0] sm:$0xff] %v9137
  %12431 = vst [vmem:[%s2 + $0x6d8] sm:$0xff] %v9139
  %12432 = vst [vmem:[%s2 + $0x6e0] sm:$0xff] %v9220
  %12433 = vst [vmem:[%s2 + $0x6e8] sm:$0xff] %v9222
  %12434 = vst [vmem:[%s2 + $0x6f0] sm:$0xff] %v9303
  %12435 = vst [vmem:[%s2 + $0x6f8] sm:$0xff] %v9305
  %12436 = vst [vmem:[%s2 + $0x700] sm:$0xff] %v9386
  %12437 = vst [vmem:[%s2 + $0x708] sm:$0xff] %v9388
  %12438 = vst [vmem:[%s2 + $0x710] sm:$0xff] %v9469
  %12439 = vst [vmem:[%s2 + $0x718] sm:$0xff] %v9471
  %12440 = vst [vmem:[%s2 + $0x720] sm:$0xff] %v9552
  %12441 = vst [vmem:[%s2 + $0x728] sm:$0xff] %v9554
  %12442 = vst [vmem:[%s2 + $0x730] sm:$0xff] %v9635
  %12443 = vst [vmem:[%s2 + $0x738] sm:$0xff] %v9637
  %12444 = vst [vmem:[%s2 + $0x740] sm:$0xff] %v9718
  %12445 = vst [vmem:[%s2 + $0x748] sm:$0xff] %v9720
  %12446 = vst [vmem:[%s2 + $0x750] sm:$0xff] %v9801
  %12447 = vst [vmem:[%s2 + $0x758] sm:$0xff] %v9803
  %12448 = vst [vmem:[%s2 + $0x760] sm:$0xff] %v9884
  %12449 = vst [vmem:[%s2 + $0x768] sm:$0xff] %v9886
  %12450 = vst [vmem:[%s2 + $0x770] sm:$0xff] %v9967
  %12451 = vst [vmem:[%s2 + $0x778] sm:$0xff] %v9969
  %12452 = vst [vmem:[%s2 + $0x780] sm:$0xff] %v10050
  %12453 = vst [vmem:[%s2 + $0x788] sm:$0xff] %v10052
  %12454 = vst [vmem:[%s2 + $0x790] sm:$0xff] %v10133
  %12455 = vst [vmem:[%s2 + $0x798] sm:$0xff] %v10135
  %12456 = vst [vmem:[%s2 + $0x7a0] sm:$0xff] %v10216
  %12457 = vst [vmem:[%s2 + $0x7a8] sm:$0xff] %v10218
  %12458 = vst [vmem:[%s2 + $0x7b0] sm:$0xff] %v10299
  %12459 = vst [vmem:[%s2 + $0x7b8] sm:$0xff] %v10301
  %12460 = vst [vmem:[%s2 + $0x7c0] sm:$0xff] %v10382
  %12461 = vst [vmem:[%s2 + $0x7c8] sm:$0xff] %v10384
  %12462 = vst [vmem:[%s2 + $0x7d0] sm:$0xff] %v10465
  %12463 = vst [vmem:[%s2 + $0x7d8] sm:$0xff] %v10467
  %12464 = vst [vmem:[%s2 + $0x7e0] sm:$0xff] %v10548
  %12465 = vst [vmem:[%s2 + $0x7e8] sm:$0xff] %v10550
  %12466 = vst [vmem:[%s2 + $0x7f0] sm:$0xff] %v10631
  %12467 = vst [vmem:[%s2 + $0x7f8] sm:$0xff] %v10633
  %12468 = vst [vmem:[%s2 + $0x800] sm:$0xff] %v10714
  %12469 = vst [vmem:[%s2 + $0x808] sm:$0xff] %v10716
  %12470 = vst [vmem:[%s2 + $0x810] sm:$0xff] %v10797
  %12471 = vst [vmem:[%s2 + $0x818] sm:$0xff] %v10799
  %12472 = vst [vmem:[%s2 + $0x820] sm:$0xff] %v10880
  %12473 = vst [vmem:[%s2 + $0x828] sm:$0xff] %v10882
  %12474 = vst [vmem:[%s2 + $0x830] sm:$0xff] %v10963
  %12475 = vst [vmem:[%s2 + $0x838] sm:$0xff] %v10965
  %12476 = vst [vmem:[%s2 + $0x840] sm:$0xff] %v11046
  %12477 = vst [vmem:[%s2 + $0x848] sm:$0xff] %v11048
  %12478 = vst [vmem:[%s2 + $0x850] sm:$0xff] %v11129
  %12479 = vst [vmem:[%s2 + $0x858] sm:$0xff] %v11131
  %12480 = vst [vmem:[%s2 + $0x860] sm:$0xff] %v11212
  %12481 = vst [vmem:[%s2 + $0x868] sm:$0xff] %v11214
  %12482 = vst [vmem:[%s2 + $0x870] sm:$0xff] %v11295
  %12483 = vst [vmem:[%s2 + $0x878] sm:$0xff] %v11297
  %12484 = vst [vmem:[%s2 + $0x880] sm:$0xff] %v11378
  %12485 = vst [vmem:[%s2 + $0x888] sm:$0xff] %v11380
  %12486 = vst [vmem:[%s2 + $0x890] sm:$0xff] %v11461
  %12487 = vst [vmem:[%s2 + $0x898] sm:$0xff] %v11463
  %12488 = vst [vmem:[%s2 + $0x8a0] sm:$0xff] %v11544
  %12489 = vst [vmem:[%s2 + $0x8a8] sm:$0xff] %v11546
  %12490 = vst [vmem:[%s2 + $0x8b0] sm:$0xff] %v11627
  %12491 = vst [vmem:[%s2 + $0x8b8] sm:$0xff] %v11629
  %12492 = vst [vmem:[%s2 + $0x8c0] sm:$0xff] %v11710
  %12493 = vst [vmem:[%s2 + $0x8c8] sm:$0xff] %v11712
  %12494 = vst [vmem:[%s2 + $0x8d0] sm:$0xff] %v11793
  %12495 = vst [vmem:[%s2 + $0x8d8] sm:$0xff] %v11795
  %12496 = vst [vmem:[%s2 + $0x8e0] sm:$0xff] %v11876
  %12497 = vst [vmem:[%s2 + $0x8e8] sm:$0xff] %v11878
  %12498 = vst [vmem:[%s2 + $0x8f0] sm:$0xff] %v11959
  %12499 = vst [vmem:[%s2 + $0x8f8] sm:$0xff] %v11961
  %12500 = vst [vmem:[%s2 + $0x900] sm:$0xff] %v12042
  %12501 = vst [vmem:[%s2 + $0x908] sm:$0xff] %v12044
  %12502 = vst [vmem:[%s2 + $0x910] sm:$0xff] %v12125
  %12503 = vst [vmem:[%s2 + $0x918] sm:$0xff] %v12127
  %12504 = vst [vmem:[%s2 + $0x920] sm:$0xff] %v12208
  %12505 = vst [vmem:[%s2 + $0x928] sm:$0xff] %v12210
  // Predicated region
  $region10: #{kernel_generated_0_forward.1} parent=0 // pred_check
    _
  $region11: #{kernel_generated_0_forward.1} parent=0 // pred_check_branch
    %12507 = sbr.rel (0) target = $region13
  $region12: #{kernel_generated_0_forward.1} parent=0 // pred_region
    _
  $region13: #{kernel_generated_0_forward.1} parent=0 // pred_fallthru
    _
  // Predicated region
  $region14: #{kernel_generated_0_forward.1} parent=0 // pred_check
    _
  $region15: #{kernel_generated_0_forward.1} parent=0 // pred_check_branch
    %12509 = sbr.rel (0) target = $region17
  $region16: #{kernel_generated_0_forward.1} parent=0 // pred_region
    _
  $region17: #{kernel_generated_0_forward.1} parent=0 // pred_fallthru
    _

</llo_original>
